<compile_context>
chip_gen: v5e
topology: v5e:2x2
jax: 0.10.0
libtpu: 0.0.40
codegen_flags: <defaults>
</compile_context>

<pallas_src>
import functools

import jax
import jax.numpy as jnp
from jax.experimental import pallas as pl
from jax.experimental.pallas import tpu as pltpu


HEAD_PAD = 128                      # per-head width 96 zero-padded to a lane tile
_INV_SQRT2 = 0.7071067811865476

CAT_VOCABS = [2, 2, 2, 2, 3, 3, 4, 6, 7, 7, 7]   # categorical features 0..10


def _gelu(y):
    # exact (erf-based) GELU, same as torch.nn.GELU default
    return 0.5 * y * (1.0 + jax.lax.erf(y * _INV_SQRT2))


def _layernorm(x, g, b, eps=1e-5):
    mu = jnp.mean(x, axis=-1, keepdims=True)
    xc = x - mu
    var = jnp.mean(xc * xc, axis=-1, keepdims=True)
    return xc * jax.lax.rsqrt(var + eps) * g + b


# --------------------------- fused forward kernel ---------------------------

def _fused_forward_kernel(pre_ref, spos_ref, mask_ref, wtile_ref, ssel_ref, bout_ref,
                          wqkv_ref, wu_ref, bu_ref, g1_ref, b1_ref,
                          wfc1_ref, bfc1_ref, wfc2_ref, bfc2_ref, g2_ref, b2_ref,
                          out_ref, x_scr, att_scr, *, heads, eph):
    """One grid step == one TransformerBlock (block d's weights are streamed in).

    Step 0 additionally builds the block-0 input (GELU(tab-emb + feature pos)
    + sequence positional embedding); the last step additionally runs the
    Flatten + Linear(E*T, 1) head and writes the (B, 1) output.  Activations
    stay resident in `x_scr` (VMEM) for the whole grid.
    """
    d = pl.program_id(0)
    hp = heads * eph

    @pl.when(d == 0)
    def _():
        x_scr[...] = _gelu(pre_ref[...]) + spos_ref[...]

    x = x_scr[...]                                            # (M, E) f32

    # Fused Q|K|V projection (bias-free); 1/E**0.25 folded into q/k weights.
    qkv = jnp.dot(x.astype(jnp.bfloat16), wqkv_ref[0],
                  preferred_element_type=jnp.float32)         # (M, 3*hp) f32

    # All-head attention.  The B sequences share the row axis; the additive
    # block-diagonal mask keeps each softmax within its own sequence.
    mask = mask_ref[...]
    for h in range(heads):
        q = qkv[:, h * eph:(h + 1) * eph]                     # lane-aligned slices
        k = qkv[:, hp + h * eph:hp + (h + 1) * eph]
        v = qkv[:, 2 * hp + h * eph:2 * hp + (h + 1) * eph]
        s = jax.lax.dot_general(q, k, (((1,), (1,)), ((), ())),
                                preferred_element_type=jnp.float32) + mask
        s = s - jnp.max(s, axis=-1, keepdims=True)
        p = jnp.exp(s)
        p = p * pl.reciprocal(jnp.sum(p, axis=-1, keepdims=True), approx=True)
        o = jnp.dot(p, v, preferred_element_type=jnp.float32)  # (M, eph)
        att_scr[:, h * eph:(h + 1) * eph] = o.astype(jnp.bfloat16)

    # Unify heads + residual + LayerNorm1.
    u = jnp.dot(att_scr[...], wu_ref[0],
                preferred_element_type=jnp.float32) + bu_ref[0]
    x1 = _layernorm(u + x, g1_ref[0], b1_ref[0])

    # Feed-forward (Linear -> ReLU -> Linear) + residual + LayerNorm2.
    h1 = jnp.dot(x1.astype(jnp.bfloat16), wfc1_ref[0],
                 preferred_element_type=jnp.float32) + bfc1_ref[0]
    h1 = jnp.maximum(h1, 0.0)
    ff = jnp.dot(h1.astype(jnp.bfloat16), wfc2_ref[0],
                 preferred_element_type=jnp.float32) + bfc2_ref[0]
    x2 = _layernorm(ff + x1, g2_ref[0], b2_ref[0])
    x_scr[...] = x2

    # Final head: Flatten + Linear(T*E, 1), fused into the last block.
    @pl.when(d == pl.num_programs(0) - 1)
    def _():
        z = x2 * wtile_ref[...]                               # (M, E)
        per_seq = jnp.dot(ssel_ref[...], z,
                          preferred_element_type=jnp.float32)  # (B, E)
        out_ref[...] = jnp.sum(per_seq, axis=-1, keepdims=True) + bout_ref[...]


def fused_transformer(pre, spos, packed, *, heads, eph=HEAD_PAD):
    M, E = pre.shape
    B = packed["ssel"].shape[0]
    depth = packed["wqkv"].shape[0]
    hp = heads * eph

    c2 = lambda d: (0, 0)       # grid-invariant inputs: DMA'd once
    blk = lambda d: (d, 0, 0)   # per-block weight stacks: one slab per grid step

    in_specs = [
        pl.BlockSpec((M, E), c2),               # pre-GELU embeddings (+feature pos)
        pl.BlockSpec((M, E), c2),               # sequence positional rows
        pl.BlockSpec((M, M), c2),               # block-diagonal attention mask
        pl.BlockSpec((M, E), c2),               # final-linear weight, tiled per row
        pl.BlockSpec((B, M), c2),               # per-sequence row-sum selector
        pl.BlockSpec((1, 1), c2),               # final bias
        pl.BlockSpec((1, E, 3 * hp), blk),      # fused, padded Q|K|V weights (bf16)
        pl.BlockSpec((1, hp, E), blk),          # padded unify weights (bf16)
        pl.BlockSpec((1, 1, E), blk),           # unify bias
        pl.BlockSpec((1, 1, E), blk),           # LN1 gamma
        pl.BlockSpec((1, 1, E), blk),           # LN1 beta
        pl.BlockSpec((1, E, 4 * E), blk),       # fc1 weight (bf16)
        pl.BlockSpec((1, 1, 4 * E), blk),       # fc1 bias
        pl.BlockSpec((1, 4 * E, E), blk),       # fc2 weight (bf16)
        pl.BlockSpec((1, 1, E), blk),           # fc2 bias
        pl.BlockSpec((1, 1, E), blk),           # LN2 gamma
        pl.BlockSpec((1, 1, E), blk),           # LN2 beta
    ]

    return pl.pallas_call(
        functools.partial(_fused_forward_kernel, heads=heads, eph=eph),
        grid=(depth,),
        out_shape=jax.ShapeDtypeStruct((B, 1), jnp.float32),
        in_specs=in_specs,
        out_specs=pl.BlockSpec((B, 1), c2),
        scratch_shapes=[
            pltpu.VMEM((M, E), jnp.float32),      # resident activations
            pltpu.VMEM((M, hp), jnp.bfloat16),    # concatenated head outputs
        ],
        compiler_params=pltpu.CompilerParams(
            dimension_semantics=("arbitrary",),   # blocks are sequential (carried state)
            vmem_limit_bytes=32 * 1024 * 1024,
        ),
    )(pre, spos, packed["mask"], packed["wtile"], packed["ssel"], packed["bout"],
      packed["wqkv"], packed["wu"], packed["bu"], packed["g1"], packed["b1"],
      packed["wfc1"], packed["bfc1"], packed["wfc2"], packed["bfc2"],
      packed["g2"], packed["b2"])


# ------------------------------ parameters ---------------------------------

def init_params(key, *, in_features, h_emb, heads, depth, seq_len):
    E = in_features * h_emb
    n_num = in_features - len(CAT_VOCABS)
    keys = iter(jax.random.split(key, 32 + 16 * depth))

    def nrm(shape, scale=0.05):
        return jax.random.normal(next(keys), shape, dtype=jnp.float32) * scale

    params = {
        "cat_tables": [nrm((v, h_emb)) for v in CAT_VOCABS],
        "num_w": nrm((n_num, h_emb)),      # Linear(1, h_emb).weight per numeric feature
        "num_b": nrm((n_num, h_emb)),      # Linear(1, h_emb).bias   per numeric feature
        "na_emb": nrm((1, h_emb)),
        "feat_pos_emb": nrm((in_features, h_emb)),
        "seq_pos_emb": nrm((seq_len, E)),
        "blocks": [],
        "w_out": nrm((E * seq_len, 1)),
        "b_out": nrm((1,)),
    }
    for _ in range(depth):
        params["blocks"].append({
            "wq": nrm((E, E * heads)), "wk": nrm((E, E * heads)), "wv": nrm((E, E * heads)),
            "w_unify": nrm((heads * E, E)), "b_unify": nrm((E,)),
            "g1": jnp.ones((E,), jnp.float32), "b1": jnp.zeros((E,), jnp.float32),
            "g2": jnp.ones((E,), jnp.float32), "b2": jnp.zeros((E,), jnp.float32),
            "w_fc1": nrm((E, 4 * E)), "b_fc1": nrm((4 * E,)),
            "w_fc2": nrm((4 * E, E)), "b_fc2": nrm((E,)),
        })
    return params


def pack_params(params, *, B, T, heads, eph=HEAD_PAD):
    """Re-layout weights for the fused kernel: stack along depth (streamed one
    block per grid step), fuse Q|K|V with the 1/E**0.25 scale folded into q/k,
    zero-pad the per-head width E -> eph for lane-aligned slices, cast matmul
    weights to bf16 (halved DMA) while biases / LN affines stay f32."""
    E = params["seq_pos_emb"].shape[1]
    scale = float(E) ** -0.25

    def pad_proj(w, s):                      # (E, heads*E) -> (E, heads*eph)
        w = (w * s).reshape(E, heads, E)
        w = jnp.pad(w, ((0, 0), (0, 0), (0, eph - E)))
        return w.reshape(E, heads * eph)

    def pad_unify(w):                        # (heads*E, E) -> (heads*eph, E)
        w = w.reshape(heads, E, E)
        w = jnp.pad(w, ((0, 0), (0, eph - E), (0, 0)))
        return w.reshape(heads * eph, E)

    stacks = {k: [] for k in ("wqkv", "wu", "bu", "g1", "b1",
                              "wfc1", "bfc1", "wfc2", "bfc2", "g2", "b2")}
    for blk in params["blocks"]:
        stacks["wqkv"].append(jnp.concatenate(
            [pad_proj(blk["wq"], scale), pad_proj(blk["wk"], scale),
             pad_proj(blk["wv"], 1.0)], axis=-1))
        stacks["wu"].append(pad_unify(blk["w_unify"]))
        stacks["bu"].append(blk["b_unify"].reshape(1, E))
        stacks["g1"].append(blk["g1"].reshape(1, E))
        stacks["b1"].append(blk["b1"].reshape(1, E))
        stacks["wfc1"].append(blk["w_fc1"])
        stacks["bfc1"].append(blk["b_fc1"].reshape(1, 4 * E))
        stacks["wfc2"].append(blk["w_fc2"])
        stacks["bfc2"].append(blk["b_fc2"].reshape(1, E))
        stacks["g2"].append(blk["g2"].reshape(1, E))
        stacks["b2"].append(blk["b2"].reshape(1, E))

    bf16 = {"wqkv", "wu", "wfc1", "wfc2"}
    packed = {k: jnp.stack(v).astype(jnp.bfloat16 if k in bf16 else jnp.float32)
              for k, v in stacks.items()}

    # Final Flatten + Linear(E*T, 1) head, pre-arranged for a fused epilogue.
    packed["wtile"] = jnp.tile(params["w_out"].reshape(T, E), (B, 1))
    packed["ssel"] = jnp.repeat(jnp.eye(B, dtype=jnp.float32), T, axis=1)
    packed["bout"] = params["b_out"].reshape(1, 1)

    # Additive block-diagonal mask separating the B sequences sharing rows.
    rb = jnp.arange(B * T, dtype=jnp.int32) // T
    packed["mask"] = jnp.where(rb[:, None] == rb[None, :], 0.0, -1e30).astype(jnp.float32)
    return packed


# ------------------------------- model glue --------------------------------

def tabular_embedding_pre(x, params):
    """TabularEmbedding up to (and excluding) the GELU: returns the flattened
    per-feature embeddings + feature positional embedding, shape (B*T, D*h).
    The tiny data-dependent categorical gathers / NaN substitution stay in
    JAX glue; GELU and everything downstream run inside the fused kernel."""
    B, T, D = x.shape
    xf = x.reshape(B * T, D)
    nan_mask = jnp.isnan(xf)

    cols = []
    for d in range(D):
        col = xf[:, d]
        m = nan_mask[:, d]
        if d < len(CAT_VOCABS):
            idx = jnp.where(m, 0.0, col).astype(jnp.int32)    # torch .int() on valid ids
            e = params["cat_tables"][d][idx]
        else:
            j = d - len(CAT_VOCABS)
            val = jnp.where(m, 0.0, col)
            e = val[:, None] * params["num_w"][j][None, :] + params["num_b"][j][None, :]
        e = jnp.where(m[:, None], params["na_emb"][0][None, :], e)
        cols.append(e)

    emb = jnp.stack(cols, axis=2)                 # (BT, h, D) == torch.stack(dim=2)
    emb_flat = emb.reshape(B * T, -1)             # flatten(1): index = h_idx*D + d
    # pos_emb is flattened in (D, h) order, exactly as in the PyTorch module.
    pos_flat = params["feat_pos_emb"].reshape(1, -1)
    return emb_flat + pos_flat


def transformer_forward(x, params, packed, *, heads, eph=HEAD_PAD):
    B, T, _ = x.shape
    pre = tabular_embedding_pre(x, params)                    # (B*T, E)
    spos = jnp.tile(params["seq_pos_emb"][:T], (B, 1))        # (B*T, E)
    return fused_transformer(pre, spos, packed, heads=heads, eph=eph)


def reference_forward(x, params, *, heads):
    """Pure-JAX (XLA) reference mirroring the PyTorch module, using the same
    bf16 weight rounding the Pallas kernel uses (activations stay f32)."""
    B, T, _ = x.shape
    pre = tabular_embedding_pre(x, params)
    E = pre.shape[-1]
    scale = float(E) ** -0.25
    xx = _gelu(pre) + jnp.tile(params["seq_pos_emb"][:T], (B, 1))

    def bf(w):
        return w.astype(jnp.bfloat16).astype(jnp.float32)

    for blk in params["blocks"]:
        def split(w):
            return (xx @ w).reshape(B, T, heads, E).transpose(0, 2, 1, 3)
        q = split(bf(blk["wq"] * scale))
        k = split(bf(blk["wk"] * scale))
        v = split(bf(blk["wv"]))
        s = jnp.einsum("bhte,bhse->bhts", q, k)
        p = jax.nn.softmax(s, axis=-1)
        o = jnp.einsum("bhts,bhse->bhte", p, v)
        o = o.transpose(0, 2, 1, 3).reshape(B * T, heads * E)
        u = o @ bf(blk["w_unify"]) + blk["b_unify"]
        x1 = _layernorm(u + xx, blk["g1"], blk["b1"])
        h1 = jax.nn.relu(x1 @ bf(blk["w_fc1"]) + blk["b_fc1"])
        ff = h1 @ bf(blk["w_fc2"]) + blk["b_fc2"]
        xx = _layernorm(ff + x1, blk["g2"], blk["b2"])

    flat = xx.reshape(B, T * E)
    return flat @ params["w_out"] + params["b_out"]


# ----------------------------------- main -----------------------------------

if __name__ == "__main__":
    # Module-consistent small shapes:
    #   in_features D = 12 (11 categorical + 1 numeric), feature_embed_dim = 8
    #   -> embedding_dim E = 96; heads = 16, depth = 6, seq_length T = 13
    #   (fixed by the positional embedding / final Linear(E*13, 1)).
    B, T, D = 2, 13, 12
    H_EMB, HEADS, DEPTH = 8, 16, 6

    key = jax.random.PRNGKey(0)
    kp, kx_cat, kx_num = jax.random.split(key, 3)

    params = init_params(kp, in_features=D, h_emb=H_EMB, heads=HEADS,
                         depth=DEPTH, seq_len=T)
    packed = pack_params(params, B=B, T=T, heads=HEADS)

    # Deterministic inputs: valid categorical ids + continuous numeric columns.
    cat_keys = jax.random.split(kx_cat, len(CAT_VOCABS))
    cat_cols = [jax.random.randint(cat_keys[i], (B, T), 0, CAT_VOCABS[i]).astype(jnp.float32)
                for i in range(len(CAT_VOCABS))]
    num_keys = jax.random.split(kx_num, D - len(CAT_VOCABS))
    num_cols = [jax.random.normal(num_keys[j], (B, T), dtype=jnp.float32)
                for j in range(D - len(CAT_VOCABS))]
    x = jnp.stack(cat_cols + num_cols, axis=-1)               # (B, T, D) float32

    fwd = jax.jit(functools.partial(transformer_forward, heads=HEADS))
    out = jax.block_until_ready(fwd(x, params, packed))

    assert out.shape == (B, 1), out.shape
    assert bool(jnp.all(jnp.isfinite(out)))

    # Cross-check the fused kernel against a pure-JAX reference of the module.
    ref = jax.block_until_ready(
        jax.jit(functools.partial(reference_forward, heads=HEADS))(x, params))
    assert bool(jnp.allclose(out, ref, rtol=1e-1, atol=1e-1)), (out, ref)

    # TODO(synk): training-only paths (GaussianNoise, Dropout, random NaN masking)
    # are identity in eval mode and intentionally not implemented; the unused
    # embed_time branch of TabularEmbedding is likewise omitted.
    print("KERNEL_OK")
</pallas_src>

<mosaic_0001>
module attributes {stable_mosaic.version = 11 : i64} {
  func.func @_fused_forward_kernel(%arg0: i32, %arg1: memref<26x96xf32, #tpu.memory_space<vmem>>, %arg2: memref<26x96xf32, #tpu.memory_space<vmem>>, %arg3: memref<26x26xf32, #tpu.memory_space<vmem>>, %arg4: memref<26x96xf32, #tpu.memory_space<vmem>>, %arg5: memref<2x26xf32, #tpu.memory_space<vmem>>, %arg6: memref<1x1xf32, #tpu.memory_space<vmem>>, %arg7: memref<1x96x6144xbf16, #tpu.memory_space<vmem>>, %arg8: memref<1x2048x96xbf16, #tpu.memory_space<vmem>>, %arg9: memref<1x1x96xf32, #tpu.memory_space<vmem>>, %arg10: memref<1x1x96xf32, #tpu.memory_space<vmem>>, %arg11: memref<1x1x96xf32, #tpu.memory_space<vmem>>, %arg12: memref<1x96x384xbf16, #tpu.memory_space<vmem>>, %arg13: memref<1x1x384xf32, #tpu.memory_space<vmem>>, %arg14: memref<1x384x96xbf16, #tpu.memory_space<vmem>>, %arg15: memref<1x1x96xf32, #tpu.memory_space<vmem>>, %arg16: memref<1x1x96xf32, #tpu.memory_space<vmem>>, %arg17: memref<1x1x96xf32, #tpu.memory_space<vmem>>, %arg18: memref<2x1xf32, #tpu.memory_space<vmem>>, %arg19: memref<26x96xf32, #tpu.memory_space<vmem>>, %arg20: memref<26x2048xbf16, #tpu.memory_space<vmem>>) attributes {dimension_semantics = [#tpu.dimension_semantics<arbitrary>], iteration_bounds = array<i64: 6>, scalar_prefetch = 0 : i64, scratch_operands = 2 : i64, tpu.core_type = #tpu.core_type<tc>, window_params = [{pipeline_mode = #tpu.pipeline_mode<synchronous>, transform_indices = @transform_0, window_bounds = array<i64: 26, 96>}, {pipeline_mode = #tpu.pipeline_mode<synchronous>, transform_indices = @transform_1, window_bounds = array<i64: 26, 96>}, {pipeline_mode = #tpu.pipeline_mode<synchronous>, transform_indices = @transform_2, window_bounds = array<i64: 26, 26>}, {pipeline_mode = #tpu.pipeline_mode<synchronous>, transform_indices = @transform_3, window_bounds = array<i64: 26, 96>}, {pipeline_mode = #tpu.pipeline_mode<synchronous>, transform_indices = @transform_4, window_bounds = array<i64: 2, 26>}, {pipeline_mode = #tpu.pipeline_mode<synchronous>, transform_indices = @transform_5, window_bounds = array<i64: 1, 1>}, {transform_indices = @transform_6, window_bounds = array<i64: 1, 96, 6144>}, {transform_indices = @transform_7, window_bounds = array<i64: 1, 2048, 96>}, {transform_indices = @transform_8, window_bounds = array<i64: 1, 1, 96>}, {transform_indices = @transform_9, window_bounds = array<i64: 1, 1, 96>}, {transform_indices = @transform_10, window_bounds = array<i64: 1, 1, 96>}, {transform_indices = @transform_11, window_bounds = array<i64: 1, 96, 384>}, {transform_indices = @transform_12, window_bounds = array<i64: 1, 1, 384>}, {transform_indices = @transform_13, window_bounds = array<i64: 1, 384, 96>}, {transform_indices = @transform_14, window_bounds = array<i64: 1, 1, 96>}, {transform_indices = @transform_15, window_bounds = array<i64: 1, 1, 96>}, {transform_indices = @transform_16, window_bounds = array<i64: 1, 1, 96>}, {pipeline_mode = #tpu.pipeline_mode<synchronous>, transform_indices = @transform_17, window_bounds = array<i64: 2, 1>}]} {
    %c0_i32 = arith.constant 0 : i32
    %0 = arith.cmpi eq, %arg0, %c0_i32 : i32
    %1 = arith.extui %0 : i1 to i32
    %c0_i32_0 = arith.constant 0 : i32
    %2 = arith.cmpi ne, %1, %c0_i32_0 : i32
    scf.if %2 {
      %c0_137 = arith.constant 0 : index
      %c0_138 = arith.constant 0 : index
      %377 = vector.load %arg1[%c0_137, %c0_138] : memref<26x96xf32, #tpu.memory_space<vmem>>, vector<26x96xf32>
      %cst_139 = arith.constant 5.000000e-01 : f32
      %378 = vector.broadcast %cst_139 : f32 to vector<26x96xf32>
      %379 = arith.mulf %378, %377 : vector<26x96xf32>
      %cst_140 = arith.constant 0.707106769 : f32
      %380 = vector.broadcast %cst_140 : f32 to vector<26x96xf32>
      %381 = arith.mulf %377, %380 : vector<26x96xf32>
      %382 = math.erf %381 : vector<26x96xf32>
      %cst_141 = arith.constant 1.000000e+00 : f32
      %383 = vector.broadcast %cst_141 : f32 to vector<26x96xf32>
      %384 = arith.addf %383, %382 : vector<26x96xf32>
      %385 = arith.mulf %379, %384 : vector<26x96xf32>
      %c0_142 = arith.constant 0 : index
      %c0_143 = arith.constant 0 : index
      %386 = vector.load %arg2[%c0_142, %c0_143] : memref<26x96xf32, #tpu.memory_space<vmem>>, vector<26x96xf32>
      %387 = arith.addf %385, %386 : vector<26x96xf32>
      %c0_144 = arith.constant 0 : index
      %c0_145 = arith.constant 0 : index
      %388 = vector.load %arg19[%c0_144, %c0_145] : memref<26x96xf32, #tpu.memory_space<vmem>>, vector<26x96xf32>
      tpu.vector_store %arg19[%c0_144, %c0_145], %387 {strides = array<i32>} : memref<26x96xf32, #tpu.memory_space<vmem>>, vector<26x96xf32>,
    } else {
    }
    %c0 = arith.constant 0 : index
    %c0_1 = arith.constant 0 : index
    %3 = vector.load %arg19[%c0, %c0_1] : memref<26x96xf32, #tpu.memory_space<vmem>>, vector<26x96xf32>
    %4 = arith.truncf %3 : vector<26x96xf32> to vector<26x96xbf16>
    %c0_2 = arith.constant 0 : index
    %c0_3 = arith.constant 0 : index
    %c0_4 = arith.constant 0 : index
    %5 = vector.load %arg7[%c0_2, %c0_3, %c0_4] : memref<1x96x6144xbf16, #tpu.memory_space<vmem>>, vector<1x96x6144xbf16>
    %6 = vector.shape_cast %5 : vector<1x96x6144xbf16> to vector<96x6144xbf16>
    %cst = arith.constant dense<0.000000e+00> : vector<26x6144xf32>
    %7 = tpu.matmul %4, %6, %cst {dimension_numbers = #tpu.dot_dimension_numbers<[1], [0], [0], [1], [0, 0, 1, 1], [], []>} : vector<26x96xbf16>, vector<96x6144xbf16>, vector<26x6144xf32> -> vector<26x6144xf32>
    %c0_5 = arith.constant 0 : index
    %c0_6 = arith.constant 0 : index
    %8 = vector.load %arg3[%c0_5, %c0_6] : memref<26x26xf32, #tpu.memory_space<vmem>>, vector<26x26xf32>
    %9 = vector.extract_strided_slice %7 {offsets = [0, 0], sizes = [26, 128], strides = [1, 1]} : vector<26x6144xf32> to vector<26x128xf32>
    %10 = vector.extract_strided_slice %7 {offsets = [0, 2048], sizes = [26, 128], strides = [1, 1]} : vector<26x6144xf32> to vector<26x128xf32>
    %11 = vector.extract_strided_slice %7 {offsets = [0, 4096], sizes = [26, 128], strides = [1, 1]} : vector<26x6144xf32> to vector<26x128xf32>
    %cst_7 = arith.constant dense<0.000000e+00> : vector<26x26xf32>
    %12 = tpu.matmul %9, %10, %cst_7 {dimension_numbers = #tpu.dot_dimension_numbers<[1], [1], [0], [0], [0, 0, 1, 0], [], []>} : vector<26x128xf32>, vector<26x128xf32>, vector<26x26xf32> -> vector<26x26xf32>
    %13 = arith.addf %12, %8 : vector<26x26xf32>
    %cst_8 = arith.constant dense<0xFF800000> : vector<26xf32>
    %14 = vector.multi_reduction <maximumf>, %13, %cst_8 [1] : vector<26x26xf32> to vector<26xf32>
    %15 = vector.shape_cast %14 : vector<26xf32> to vector<26x1xf32>
    %16 = vector.broadcast %15 : vector<26x1xf32> to vector<26x26xf32>
    %17 = arith.subf %13, %16 : vector<26x26xf32>
    %18 = math.exp %17 : vector<26x26xf32>
    %cst_9 = arith.constant dense<0.000000e+00> : vector<26xf32>
    %19 = vector.multi_reduction <add>, %18, %cst_9 [1] : vector<26x26xf32> to vector<26xf32>
    %20 = vector.shape_cast %19 : vector<26xf32> to vector<26x1xf32>
    %21 = tpu.reciprocal %20 {approx = true} : vector<26x1xf32> -> vector<26x1xf32>
    %22 = vector.broadcast %21 : vector<26x1xf32> to vector<26x26xf32>
    %23 = arith.mulf %18, %22 : vector<26x26xf32>
    %cst_10 = arith.constant dense<0.000000e+00> : vector<26x128xf32>
    %24 = tpu.matmul %23, %11, %cst_10 {dimension_numbers = #tpu.dot_dimension_numbers<[1], [0], [0], [1], [0, 0, 1, 1], [], []>} : vector<26x26xf32>, vector<26x128xf32>, vector<26x128xf32> -> vector<26x128xf32>
    %25 = arith.truncf %24 : vector<26x128xf32> to vector<26x128xbf16>
    %c0_11 = arith.constant 0 : index
    %c0_12 = arith.constant 0 : index
    %26 = vector.load %arg20[%c0_11, %c0_12] : memref<26x2048xbf16, #tpu.memory_space<vmem>>, vector<26x128xbf16>
    tpu.vector_store %arg20[%c0_11, %c0_12], %25 {strides = array<i32>} : memref<26x2048xbf16, #tpu.memory_space<vmem>>, vector<26x128xbf16>,
    %27 = vector.extract_strided_slice %7 {offsets = [0, 128], sizes = [26, 128], strides = [1, 1]} : vector<26x6144xf32> to vector<26x128xf32>
    %28 = vector.extract_strided_slice %7 {offsets = [0, 2176], sizes = [26, 128], strides = [1, 1]} : vector<26x6144xf32> to vector<26x128xf32>
    %29 = vector.extract_strided_slice %7 {offsets = [0, 4224], sizes = [26, 128], strides = [1, 1]} : vector<26x6144xf32> to vector<26x128xf32>
    %cst_13 = arith.constant dense<0.000000e+00> : vector<26x26xf32>
    %30 = tpu.matmul %27, %28, %cst_13 {dimension_numbers = #tpu.dot_dimension_numbers<[1], [1], [0], [0], [0, 0, 1, 0], [], []>} : vector<26x128xf32>, vector<26x128xf32>, vector<26x26xf32> -> vector<26x26xf32>
    %31 = arith.addf %30, %8 : vector<26x26xf32>
    %cst_14 = arith.constant dense<0xFF800000> : vector<26xf32>
    %32 = vector.multi_reduction <maximumf>, %31, %cst_14 [1] : vector<26x26xf32> to vector<26xf32>
    %33 = vector.shape_cast %32 : vector<26xf32> to vector<26x1xf32>
    %34 = vector.broadcast %33 : vector<26x1xf32> to vector<26x26xf32>
    %35 = arith.subf %31, %34 : vector<26x26xf32>
    %36 = math.exp %35 : vector<26x26xf32>
    %cst_15 = arith.constant dense<0.000000e+00> : vector<26xf32>
    %37 = vector.multi_reduction <add>, %36, %cst_15 [1] : vector<26x26xf32> to vector<26xf32>
    %38 = vector.shape_cast %37 : vector<26xf32> to vector<26x1xf32>
    %39 = tpu.reciprocal %38 {approx = true} : vector<26x1xf32> -> vector<26x1xf32>
    %40 = vector.broadcast %39 : vector<26x1xf32> to vector<26x26xf32>
    %41 = arith.mulf %36, %40 : vector<26x26xf32>
    %cst_16 = arith.constant dense<0.000000e+00> : vector<26x128xf32>
    %42 = tpu.matmul %41, %29, %cst_16 {dimension_numbers = #tpu.dot_dimension_numbers<[1], [0], [0], [1], [0, 0, 1, 1], [], []>} : vector<26x26xf32>, vector<26x128xf32>, vector<26x128xf32> -> vector<26x128xf32>
    %43 = arith.truncf %42 : vector<26x128xf32> to vector<26x128xbf16>
    %c0_17 = arith.constant 0 : index
    %c128 = arith.constant 128 : index
    %44 = vector.load %arg20[%c0_17, %c128] : memref<26x2048xbf16, #tpu.memory_space<vmem>>, vector<26x128xbf16>
    tpu.vector_store %arg20[%c0_17, %c128], %43 {strides = array<i32>} : memref<26x2048xbf16, #tpu.memory_space<vmem>>, vector<26x128xbf16>,
    %45 = vector.extract_strided_slice %7 {offsets = [0, 256], sizes = [26, 128], strides = [1, 1]} : vector<26x6144xf32> to vector<26x128xf32>
    %46 = vector.extract_strided_slice %7 {offsets = [0, 2304], sizes = [26, 128], strides = [1, 1]} : vector<26x6144xf32> to vector<26x128xf32>
    %47 = vector.extract_strided_slice %7 {offsets = [0, 4352], sizes = [26, 128], strides = [1, 1]} : vector<26x6144xf32> to vector<26x128xf32>
    %cst_18 = arith.constant dense<0.000000e+00> : vector<26x26xf32>
    %48 = tpu.matmul %45, %46, %cst_18 {dimension_numbers = #tpu.dot_dimension_numbers<[1], [1], [0], [0], [0, 0, 1, 0], [], []>} : vector<26x128xf32>, vector<26x128xf32>, vector<26x26xf32> -> vector<26x26xf32>
    %49 = arith.addf %48, %8 : vector<26x26xf32>
    %cst_19 = arith.constant dense<0xFF800000> : vector<26xf32>
    %50 = vector.multi_reduction <maximumf>, %49, %cst_19 [1] : vector<26x26xf32> to vector<26xf32>
    %51 = vector.shape_cast %50 : vector<26xf32> to vector<26x1xf32>
    %52 = vector.broadcast %51 : vector<26x1xf32> to vector<26x26xf32>
    %53 = arith.subf %49, %52 : vector<26x26xf32>
    %54 = math.exp %53 : vector<26x26xf32>
    %cst_20 = arith.constant dense<0.000000e+00> : vector<26xf32>
    %55 = vector.multi_reduction <add>, %54, %cst_20 [1] : vector<26x26xf32> to vector<26xf32>
    %56 = vector.shape_cast %55 : vector<26xf32> to vector<26x1xf32>
    %57 = tpu.reciprocal %56 {approx = true} : vector<26x1xf32> -> vector<26x1xf32>
    %58 = vector.broadcast %57 : vector<26x1xf32> to vector<26x26xf32>
    %59 = arith.mulf %54, %58 : vector<26x26xf32>
    %cst_21 = arith.constant dense<0.000000e+00> : vector<26x128xf32>
    %60 = tpu.matmul %59, %47, %cst_21 {dimension_numbers = #tpu.dot_dimension_numbers<[1], [0], [0], [1], [0, 0, 1, 1], [], []>} : vector<26x26xf32>, vector<26x128xf32>, vector<26x128xf32> -> vector<26x128xf32>
    %61 = arith.truncf %60 : vector<26x128xf32> to vector<26x128xbf16>
    %c0_22 = arith.constant 0 : index
    %c256 = arith.constant 256 : index
    %62 = vector.load %arg20[%c0_22, %c256] : memref<26x2048xbf16, #tpu.memory_space<vmem>>, vector<26x128xbf16>
    tpu.vector_store %arg20[%c0_22, %c256], %61 {strides = array<i32>} : memref<26x2048xbf16, #tpu.memory_space<vmem>>, vector<26x128xbf16>,
    %63 = vector.extract_strided_slice %7 {offsets = [0, 384], sizes = [26, 128], strides = [1, 1]} : vector<26x6144xf32> to vector<26x128xf32>
    %64 = vector.extract_strided_slice %7 {offsets = [0, 2432], sizes = [26, 128], strides = [1, 1]} : vector<26x6144xf32> to vector<26x128xf32>
    %65 = vector.extract_strided_slice %7 {offsets = [0, 4480], sizes = [26, 128], strides = [1, 1]} : vector<26x6144xf32> to vector<26x128xf32>
    %cst_23 = arith.constant dense<0.000000e+00> : vector<26x26xf32>
    %66 = tpu.matmul %63, %64, %cst_23 {dimension_numbers = #tpu.dot_dimension_numbers<[1], [1], [0], [0], [0, 0, 1, 0], [], []>} : vector<26x128xf32>, vector<26x128xf32>, vector<26x26xf32> -> vector<26x26xf32>
    %67 = arith.addf %66, %8 : vector<26x26xf32>
    %cst_24 = arith.constant dense<0xFF800000> : vector<26xf32>
    %68 = vector.multi_reduction <maximumf>, %67, %cst_24 [1] : vector<26x26xf32> to vector<26xf32>
    %69 = vector.shape_cast %68 : vector<26xf32> to vector<26x1xf32>
    %70 = vector.broadcast %69 : vector<26x1xf32> to vector<26x26xf32>
    %71 = arith.subf %67, %70 : vector<26x26xf32>
    %72 = math.exp %71 : vector<26x26xf32>
    %cst_25 = arith.constant dense<0.000000e+00> : vector<26xf32>
    %73 = vector.multi_reduction <add>, %72, %cst_25 [1] : vector<26x26xf32> to vector<26xf32>
    %74 = vector.shape_cast %73 : vector<26xf32> to vector<26x1xf32>
    %75 = tpu.reciprocal %74 {approx = true} : vector<26x1xf32> -> vector<26x1xf32>
    %76 = vector.broadcast %75 : vector<26x1xf32> to vector<26x26xf32>
    %77 = arith.mulf %72, %76 : vector<26x26xf32>
    %cst_26 = arith.constant dense<0.000000e+00> : vector<26x128xf32>
    %78 = tpu.matmul %77, %65, %cst_26 {dimension_numbers = #tpu.dot_dimension_numbers<[1], [0], [0], [1], [0, 0, 1, 1], [], []>} : vector<26x26xf32>, vector<26x128xf32>, vector<26x128xf32> -> vector<26x128xf32>
    %79 = arith.truncf %78 : vector<26x128xf32> to vector<26x128xbf16>
    %c0_27 = arith.constant 0 : index
    %c384 = arith.constant 384 : index
    %80 = vector.load %arg20[%c0_27, %c384] : memref<26x2048xbf16, #tpu.memory_space<vmem>>, vector<26x128xbf16>
    tpu.vector_store %arg20[%c0_27, %c384], %79 {strides = array<i32>} : memref<26x2048xbf16, #tpu.memory_space<vmem>>, vector<26x128xbf16>,
    %81 = vector.extract_strided_slice %7 {offsets = [0, 512], sizes = [26, 128], strides = [1, 1]} : vector<26x6144xf32> to vector<26x128xf32>
    %82 = vector.extract_strided_slice %7 {offsets = [0, 2560], sizes = [26, 128], strides = [1, 1]} : vector<26x6144xf32> to vector<26x128xf32>
    %83 = vector.extract_strided_slice %7 {offsets = [0, 4608], sizes = [26, 128], strides = [1, 1]} : vector<26x6144xf32> to vector<26x128xf32>
    %cst_28 = arith.constant dense<0.000000e+00> : vector<26x26xf32>
    %84 = tpu.matmul %81, %82, %cst_28 {dimension_numbers = #tpu.dot_dimension_numbers<[1], [1], [0], [0], [0, 0, 1, 0], [], []>} : vector<26x128xf32>, vector<26x128xf32>, vector<26x26xf32> -> vector<26x26xf32>
    %85 = arith.addf %84, %8 : vector<26x26xf32>
    %cst_29 = arith.constant dense<0xFF800000> : vector<26xf32>
    %86 = vector.multi_reduction <maximumf>, %85, %cst_29 [1] : vector<26x26xf32> to vector<26xf32>
    %87 = vector.shape_cast %86 : vector<26xf32> to vector<26x1xf32>
    %88 = vector.broadcast %87 : vector<26x1xf32> to vector<26x26xf32>
    %89 = arith.subf %85, %88 : vector<26x26xf32>
    %90 = math.exp %89 : vector<26x26xf32>
    %cst_30 = arith.constant dense<0.000000e+00> : vector<26xf32>
    %91 = vector.multi_reduction <add>, %90, %cst_30 [1] : vector<26x26xf32> to vector<26xf32>
    %92 = vector.shape_cast %91 : vector<26xf32> to vector<26x1xf32>
    %93 = tpu.reciprocal %92 {approx = true} : vector<26x1xf32> -> vector<26x1xf32>
    %94 = vector.broadcast %93 : vector<26x1xf32> to vector<26x26xf32>
    %95 = arith.mulf %90, %94 : vector<26x26xf32>
    %cst_31 = arith.constant dense<0.000000e+00> : vector<26x128xf32>
    %96 = tpu.matmul %95, %83, %cst_31 {dimension_numbers = #tpu.dot_dimension_numbers<[1], [0], [0], [1], [0, 0, 1, 1], [], []>} : vector<26x26xf32>, vector<26x128xf32>, vector<26x128xf32> -> vector<26x128xf32>
    %97 = arith.truncf %96 : vector<26x128xf32> to vector<26x128xbf16>
    %c0_32 = arith.constant 0 : index
    %c512 = arith.constant 512 : index
    %98 = vector.load %arg20[%c0_32, %c512] : memref<26x2048xbf16, #tpu.memory_space<vmem>>, vector<26x128xbf16>
    tpu.vector_store %arg20[%c0_32, %c512], %97 {strides = array<i32>} : memref<26x2048xbf16, #tpu.memory_space<vmem>>, vector<26x128xbf16>,
    %99 = vector.extract_strided_slice %7 {offsets = [0, 640], sizes = [26, 128], strides = [1, 1]} : vector<26x6144xf32> to vector<26x128xf32>
    %100 = vector.extract_strided_slice %7 {offsets = [0, 2688], sizes = [26, 128], strides = [1, 1]} : vector<26x6144xf32> to vector<26x128xf32>
    %101 = vector.extract_strided_slice %7 {offsets = [0, 4736], sizes = [26, 128], strides = [1, 1]} : vector<26x6144xf32> to vector<26x128xf32>
    %cst_33 = arith.constant dense<0.000000e+00> : vector<26x26xf32>
    %102 = tpu.matmul %99, %100, %cst_33 {dimension_numbers = #tpu.dot_dimension_numbers<[1], [1], [0], [0], [0, 0, 1, 0], [], []>} : vector<26x128xf32>, vector<26x128xf32>, vector<26x26xf32> -> vector<26x26xf32>
    %103 = arith.addf %102, %8 : vector<26x26xf32>
    %cst_34 = arith.constant dense<0xFF800000> : vector<26xf32>
    %104 = vector.multi_reduction <maximumf>, %103, %cst_34 [1] : vector<26x26xf32> to vector<26xf32>
    %105 = vector.shape_cast %104 : vector<26xf32> to vector<26x1xf32>
    %106 = vector.broadcast %105 : vector<26x1xf32> to vector<26x26xf32>
    %107 = arith.subf %103, %106 : vector<26x26xf32>
    %108 = math.exp %107 : vector<26x26xf32>
    %cst_35 = arith.constant dense<0.000000e+00> : vector<26xf32>
    %109 = vector.multi_reduction <add>, %108, %cst_35 [1] : vector<26x26xf32> to vector<26xf32>
    %110 = vector.shape_cast %109 : vector<26xf32> to vector<26x1xf32>
    %111 = tpu.reciprocal %110 {approx = true} : vector<26x1xf32> -> vector<26x1xf32>
    %112 = vector.broadcast %111 : vector<26x1xf32> to vector<26x26xf32>
    %113 = arith.mulf %108, %112 : vector<26x26xf32>
    %cst_36 = arith.constant dense<0.000000e+00> : vector<26x128xf32>
    %114 = tpu.matmul %113, %101, %cst_36 {dimension_numbers = #tpu.dot_dimension_numbers<[1], [0], [0], [1], [0, 0, 1, 1], [], []>} : vector<26x26xf32>, vector<26x128xf32>, vector<26x128xf32> -> vector<26x128xf32>
    %115 = arith.truncf %114 : vector<26x128xf32> to vector<26x128xbf16>
    %c0_37 = arith.constant 0 : index
    %c640 = arith.constant 640 : index
    %116 = vector.load %arg20[%c0_37, %c640] : memref<26x2048xbf16, #tpu.memory_space<vmem>>, vector<26x128xbf16>
    tpu.vector_store %arg20[%c0_37, %c640], %115 {strides = array<i32>} : memref<26x2048xbf16, #tpu.memory_space<vmem>>, vector<26x128xbf16>,
    %117 = vector.extract_strided_slice %7 {offsets = [0, 768], sizes = [26, 128], strides = [1, 1]} : vector<26x6144xf32> to vector<26x128xf32>
    %118 = vector.extract_strided_slice %7 {offsets = [0, 2816], sizes = [26, 128], strides = [1, 1]} : vector<26x6144xf32> to vector<26x128xf32>
    %119 = vector.extract_strided_slice %7 {offsets = [0, 4864], sizes = [26, 128], strides = [1, 1]} : vector<26x6144xf32> to vector<26x128xf32>
    %cst_38 = arith.constant dense<0.000000e+00> : vector<26x26xf32>
    %120 = tpu.matmul %117, %118, %cst_38 {dimension_numbers = #tpu.dot_dimension_numbers<[1], [1], [0], [0], [0, 0, 1, 0], [], []>} : vector<26x128xf32>, vector<26x128xf32>, vector<26x26xf32> -> vector<26x26xf32>
    %121 = arith.addf %120, %8 : vector<26x26xf32>
    %cst_39 = arith.constant dense<0xFF800000> : vector<26xf32>
    %122 = vector.multi_reduction <maximumf>, %121, %cst_39 [1] : vector<26x26xf32> to vector<26xf32>
    %123 = vector.shape_cast %122 : vector<26xf32> to vector<26x1xf32>
    %124 = vector.broadcast %123 : vector<26x1xf32> to vector<26x26xf32>
    %125 = arith.subf %121, %124 : vector<26x26xf32>
    %126 = math.exp %125 : vector<26x26xf32>
    %cst_40 = arith.constant dense<0.000000e+00> : vector<26xf32>
    %127 = vector.multi_reduction <add>, %126, %cst_40 [1] : vector<26x26xf32> to vector<26xf32>
    %128 = vector.shape_cast %127 : vector<26xf32> to vector<26x1xf32>
    %129 = tpu.reciprocal %128 {approx = true} : vector<26x1xf32> -> vector<26x1xf32>
    %130 = vector.broadcast %129 : vector<26x1xf32> to vector<26x26xf32>
    %131 = arith.mulf %126, %130 : vector<26x26xf32>
    %cst_41 = arith.constant dense<0.000000e+00> : vector<26x128xf32>
    %132 = tpu.matmul %131, %119, %cst_41 {dimension_numbers = #tpu.dot_dimension_numbers<[1], [0], [0], [1], [0, 0, 1, 1], [], []>} : vector<26x26xf32>, vector<26x128xf32>, vector<26x128xf32> -> vector<26x128xf32>
    %133 = arith.truncf %132 : vector<26x128xf32> to vector<26x128xbf16>
    %c0_42 = arith.constant 0 : index
    %c768 = arith.constant 768 : index
    %134 = vector.load %arg20[%c0_42, %c768] : memref<26x2048xbf16, #tpu.memory_space<vmem>>, vector<26x128xbf16>
    tpu.vector_store %arg20[%c0_42, %c768], %133 {strides = array<i32>} : memref<26x2048xbf16, #tpu.memory_space<vmem>>, vector<26x128xbf16>,
    %135 = vector.extract_strided_slice %7 {offsets = [0, 896], sizes = [26, 128], strides = [1, 1]} : vector<26x6144xf32> to vector<26x128xf32>
    %136 = vector.extract_strided_slice %7 {offsets = [0, 2944], sizes = [26, 128], strides = [1, 1]} : vector<26x6144xf32> to vector<26x128xf32>
    %137 = vector.extract_strided_slice %7 {offsets = [0, 4992], sizes = [26, 128], strides = [1, 1]} : vector<26x6144xf32> to vector<26x128xf32>
    %cst_43 = arith.constant dense<0.000000e+00> : vector<26x26xf32>
    %138 = tpu.matmul %135, %136, %cst_43 {dimension_numbers = #tpu.dot_dimension_numbers<[1], [1], [0], [0], [0, 0, 1, 0], [], []>} : vector<26x128xf32>, vector<26x128xf32>, vector<26x26xf32> -> vector<26x26xf32>
    %139 = arith.addf %138, %8 : vector<26x26xf32>
    %cst_44 = arith.constant dense<0xFF800000> : vector<26xf32>
    %140 = vector.multi_reduction <maximumf>, %139, %cst_44 [1] : vector<26x26xf32> to vector<26xf32>
    %141 = vector.shape_cast %140 : vector<26xf32> to vector<26x1xf32>
    %142 = vector.broadcast %141 : vector<26x1xf32> to vector<26x26xf32>
    %143 = arith.subf %139, %142 : vector<26x26xf32>
    %144 = math.exp %143 : vector<26x26xf32>
    %cst_45 = arith.constant dense<0.000000e+00> : vector<26xf32>
    %145 = vector.multi_reduction <add>, %144, %cst_45 [1] : vector<26x26xf32> to vector<26xf32>
    %146 = vector.shape_cast %145 : vector<26xf32> to vector<26x1xf32>
    %147 = tpu.reciprocal %146 {approx = true} : vector<26x1xf32> -> vector<26x1xf32>
    %148 = vector.broadcast %147 : vector<26x1xf32> to vector<26x26xf32>
    %149 = arith.mulf %144, %148 : vector<26x26xf32>
    %cst_46 = arith.constant dense<0.000000e+00> : vector<26x128xf32>
    %150 = tpu.matmul %149, %137, %cst_46 {dimension_numbers = #tpu.dot_dimension_numbers<[1], [0], [0], [1], [0, 0, 1, 1], [], []>} : vector<26x26xf32>, vector<26x128xf32>, vector<26x128xf32> -> vector<26x128xf32>
    %151 = arith.truncf %150 : vector<26x128xf32> to vector<26x128xbf16>
    %c0_47 = arith.constant 0 : index
    %c896 = arith.constant 896 : index
    %152 = vector.load %arg20[%c0_47, %c896] : memref<26x2048xbf16, #tpu.memory_space<vmem>>, vector<26x128xbf16>
    tpu.vector_store %arg20[%c0_47, %c896], %151 {strides = array<i32>} : memref<26x2048xbf16, #tpu.memory_space<vmem>>, vector<26x128xbf16>,
    %153 = vector.extract_strided_slice %7 {offsets = [0, 1024], sizes = [26, 128], strides = [1, 1]} : vector<26x6144xf32> to vector<26x128xf32>
    %154 = vector.extract_strided_slice %7 {offsets = [0, 3072], sizes = [26, 128], strides = [1, 1]} : vector<26x6144xf32> to vector<26x128xf32>
    %155 = vector.extract_strided_slice %7 {offsets = [0, 5120], sizes = [26, 128], strides = [1, 1]} : vector<26x6144xf32> to vector<26x128xf32>
    %cst_48 = arith.constant dense<0.000000e+00> : vector<26x26xf32>
    %156 = tpu.matmul %153, %154, %cst_48 {dimension_numbers = #tpu.dot_dimension_numbers<[1], [1], [0], [0], [0, 0, 1, 0], [], []>} : vector<26x128xf32>, vector<26x128xf32>, vector<26x26xf32> -> vector<26x26xf32>
    %157 = arith.addf %156, %8 : vector<26x26xf32>
    %cst_49 = arith.constant dense<0xFF800000> : vector<26xf32>
    %158 = vector.multi_reduction <maximumf>, %157, %cst_49 [1] : vector<26x26xf32> to vector<26xf32>
    %159 = vector.shape_cast %158 : vector<26xf32> to vector<26x1xf32>
    %160 = vector.broadcast %159 : vector<26x1xf32> to vector<26x26xf32>
    %161 = arith.subf %157, %160 : vector<26x26xf32>
    %162 = math.exp %161 : vector<26x26xf32>
    %cst_50 = arith.constant dense<0.000000e+00> : vector<26xf32>
    %163 = vector.multi_reduction <add>, %162, %cst_50 [1] : vector<26x26xf32> to vector<26xf32>
    %164 = vector.shape_cast %163 : vector<26xf32> to vector<26x1xf32>
    %165 = tpu.reciprocal %164 {approx = true} : vector<26x1xf32> -> vector<26x1xf32>
    %166 = vector.broadcast %165 : vector<26x1xf32> to vector<26x26xf32>
    %167 = arith.mulf %162, %166 : vector<26x26xf32>
    %cst_51 = arith.constant dense<0.000000e+00> : vector<26x128xf32>
    %168 = tpu.matmul %167, %155, %cst_51 {dimension_numbers = #tpu.dot_dimension_numbers<[1], [0], [0], [1], [0, 0, 1, 1], [], []>} : vector<26x26xf32>, vector<26x128xf32>, vector<26x128xf32> -> vector<26x128xf32>
    %169 = arith.truncf %168 : vector<26x128xf32> to vector<26x128xbf16>
    %c0_52 = arith.constant 0 : index
    %c1024 = arith.constant 1024 : index
    %170 = vector.load %arg20[%c0_52, %c1024] : memref<26x2048xbf16, #tpu.memory_space<vmem>>, vector<26x128xbf16>
    tpu.vector_store %arg20[%c0_52, %c1024], %169 {strides = array<i32>} : memref<26x2048xbf16, #tpu.memory_space<vmem>>, vector<26x128xbf16>,
    %171 = vector.extract_strided_slice %7 {offsets = [0, 1152], sizes = [26, 128], strides = [1, 1]} : vector<26x6144xf32> to vector<26x128xf32>
    %172 = vector.extract_strided_slice %7 {offsets = [0, 3200], sizes = [26, 128], strides = [1, 1]} : vector<26x6144xf32> to vector<26x128xf32>
    %173 = vector.extract_strided_slice %7 {offsets = [0, 5248], sizes = [26, 128], strides = [1, 1]} : vector<26x6144xf32> to vector<26x128xf32>
    %cst_53 = arith.constant dense<0.000000e+00> : vector<26x26xf32>
    %174 = tpu.matmul %171, %172, %cst_53 {dimension_numbers = #tpu.dot_dimension_numbers<[1], [1], [0], [0], [0, 0, 1, 0], [], []>} : vector<26x128xf32>, vector<26x128xf32>, vector<26x26xf32> -> vector<26x26xf32>
    %175 = arith.addf %174, %8 : vector<26x26xf32>
    %cst_54 = arith.constant dense<0xFF800000> : vector<26xf32>
    %176 = vector.multi_reduction <maximumf>, %175, %cst_54 [1] : vector<26x26xf32> to vector<26xf32>
    %177 = vector.shape_cast %176 : vector<26xf32> to vector<26x1xf32>
    %178 = vector.broadcast %177 : vector<26x1xf32> to vector<26x26xf32>
    %179 = arith.subf %175, %178 : vector<26x26xf32>
    %180 = math.exp %179 : vector<26x26xf32>
    %cst_55 = arith.constant dense<0.000000e+00> : vector<26xf32>
    %181 = vector.multi_reduction <add>, %180, %cst_55 [1] : vector<26x26xf32> to vector<26xf32>
    %182 = vector.shape_cast %181 : vector<26xf32> to vector<26x1xf32>
    %183 = tpu.reciprocal %182 {approx = true} : vector<26x1xf32> -> vector<26x1xf32>
    %184 = vector.broadcast %183 : vector<26x1xf32> to vector<26x26xf32>
    %185 = arith.mulf %180, %184 : vector<26x26xf32>
    %cst_56 = arith.constant dense<0.000000e+00> : vector<26x128xf32>
    %186 = tpu.matmul %185, %173, %cst_56 {dimension_numbers = #tpu.dot_dimension_numbers<[1], [0], [0], [1], [0, 0, 1, 1], [], []>} : vector<26x26xf32>, vector<26x128xf32>, vector<26x128xf32> -> vector<26x128xf32>
    %187 = arith.truncf %186 : vector<26x128xf32> to vector<26x128xbf16>
    %c0_57 = arith.constant 0 : index
    %c1152 = arith.constant 1152 : index
    %188 = vector.load %arg20[%c0_57, %c1152] : memref<26x2048xbf16, #tpu.memory_space<vmem>>, vector<26x128xbf16>
    tpu.vector_store %arg20[%c0_57, %c1152], %187 {strides = array<i32>} : memref<26x2048xbf16, #tpu.memory_space<vmem>>, vector<26x128xbf16>,
    %189 = vector.extract_strided_slice %7 {offsets = [0, 1280], sizes = [26, 128], strides = [1, 1]} : vector<26x6144xf32> to vector<26x128xf32>
    %190 = vector.extract_strided_slice %7 {offsets = [0, 3328], sizes = [26, 128], strides = [1, 1]} : vector<26x6144xf32> to vector<26x128xf32>
    %191 = vector.extract_strided_slice %7 {offsets = [0, 5376], sizes = [26, 128], strides = [1, 1]} : vector<26x6144xf32> to vector<26x128xf32>
    %cst_58 = arith.constant dense<0.000000e+00> : vector<26x26xf32>
    %192 = tpu.matmul %189, %190, %cst_58 {dimension_numbers = #tpu.dot_dimension_numbers<[1], [1], [0], [0], [0, 0, 1, 0], [], []>} : vector<26x128xf32>, vector<26x128xf32>, vector<26x26xf32> -> vector<26x26xf32>
    %193 = arith.addf %192, %8 : vector<26x26xf32>
    %cst_59 = arith.constant dense<0xFF800000> : vector<26xf32>
    %194 = vector.multi_reduction <maximumf>, %193, %cst_59 [1] : vector<26x26xf32> to vector<26xf32>
    %195 = vector.shape_cast %194 : vector<26xf32> to vector<26x1xf32>
    %196 = vector.broadcast %195 : vector<26x1xf32> to vector<26x26xf32>
    %197 = arith.subf %193, %196 : vector<26x26xf32>
    %198 = math.exp %197 : vector<26x26xf32>
    %cst_60 = arith.constant dense<0.000000e+00> : vector<26xf32>
    %199 = vector.multi_reduction <add>, %198, %cst_60 [1] : vector<26x26xf32> to vector<26xf32>
    %200 = vector.shape_cast %199 : vector<26xf32> to vector<26x1xf32>
    %201 = tpu.reciprocal %200 {approx = true} : vector<26x1xf32> -> vector<26x1xf32>
    %202 = vector.broadcast %201 : vector<26x1xf32> to vector<26x26xf32>
    %203 = arith.mulf %198, %202 : vector<26x26xf32>
    %cst_61 = arith.constant dense<0.000000e+00> : vector<26x128xf32>
    %204 = tpu.matmul %203, %191, %cst_61 {dimension_numbers = #tpu.dot_dimension_numbers<[1], [0], [0], [1], [0, 0, 1, 1], [], []>} : vector<26x26xf32>, vector<26x128xf32>, vector<26x128xf32> -> vector<26x128xf32>
    %205 = arith.truncf %204 : vector<26x128xf32> to vector<26x128xbf16>
    %c0_62 = arith.constant 0 : index
    %c1280 = arith.constant 1280 : index
    %206 = vector.load %arg20[%c0_62, %c1280] : memref<26x2048xbf16, #tpu.memory_space<vmem>>, vector<26x128xbf16>
    tpu.vector_store %arg20[%c0_62, %c1280], %205 {strides = array<i32>} : memref<26x2048xbf16, #tpu.memory_space<vmem>>, vector<26x128xbf16>,
    %207 = vector.extract_strided_slice %7 {offsets = [0, 1408], sizes = [26, 128], strides = [1, 1]} : vector<26x6144xf32> to vector<26x128xf32>
    %208 = vector.extract_strided_slice %7 {offsets = [0, 3456], sizes = [26, 128], strides = [1, 1]} : vector<26x6144xf32> to vector<26x128xf32>
    %209 = vector.extract_strided_slice %7 {offsets = [0, 5504], sizes = [26, 128], strides = [1, 1]} : vector<26x6144xf32> to vector<26x128xf32>
    %cst_63 = arith.constant dense<0.000000e+00> : vector<26x26xf32>
    %210 = tpu.matmul %207, %208, %cst_63 {dimension_numbers = #tpu.dot_dimension_numbers<[1], [1], [0], [0], [0, 0, 1, 0], [], []>} : vector<26x128xf32>, vector<26x128xf32>, vector<26x26xf32> -> vector<26x26xf32>
    %211 = arith.addf %210, %8 : vector<26x26xf32>
    %cst_64 = arith.constant dense<0xFF800000> : vector<26xf32>
    %212 = vector.multi_reduction <maximumf>, %211, %cst_64 [1] : vector<26x26xf32> to vector<26xf32>
    %213 = vector.shape_cast %212 : vector<26xf32> to vector<26x1xf32>
    %214 = vector.broadcast %213 : vector<26x1xf32> to vector<26x26xf32>
    %215 = arith.subf %211, %214 : vector<26x26xf32>
    %216 = math.exp %215 : vector<26x26xf32>
    %cst_65 = arith.constant dense<0.000000e+00> : vector<26xf32>
    %217 = vector.multi_reduction <add>, %216, %cst_65 [1] : vector<26x26xf32> to vector<26xf32>
    %218 = vector.shape_cast %217 : vector<26xf32> to vector<26x1xf32>
    %219 = tpu.reciprocal %218 {approx = true} : vector<26x1xf32> -> vector<26x1xf32>
    %220 = vector.broadcast %219 : vector<26x1xf32> to vector<26x26xf32>
    %221 = arith.mulf %216, %220 : vector<26x26xf32>
    %cst_66 = arith.constant dense<0.000000e+00> : vector<26x128xf32>
    %222 = tpu.matmul %221, %209, %cst_66 {dimension_numbers = #tpu.dot_dimension_numbers<[1], [0], [0], [1], [0, 0, 1, 1], [], []>} : vector<26x26xf32>, vector<26x128xf32>, vector<26x128xf32> -> vector<26x128xf32>
    %223 = arith.truncf %222 : vector<26x128xf32> to vector<26x128xbf16>
    %c0_67 = arith.constant 0 : index
    %c1408 = arith.constant 1408 : index
    %224 = vector.load %arg20[%c0_67, %c1408] : memref<26x2048xbf16, #tpu.memory_space<vmem>>, vector<26x128xbf16>
    tpu.vector_store %arg20[%c0_67, %c1408], %223 {strides = array<i32>} : memref<26x2048xbf16, #tpu.memory_space<vmem>>, vector<26x128xbf16>,
    %225 = vector.extract_strided_slice %7 {offsets = [0, 1536], sizes = [26, 128], strides = [1, 1]} : vector<26x6144xf32> to vector<26x128xf32>
    %226 = vector.extract_strided_slice %7 {offsets = [0, 3584], sizes = [26, 128], strides = [1, 1]} : vector<26x6144xf32> to vector<26x128xf32>
    %227 = vector.extract_strided_slice %7 {offsets = [0, 5632], sizes = [26, 128], strides = [1, 1]} : vector<26x6144xf32> to vector<26x128xf32>
    %cst_68 = arith.constant dense<0.000000e+00> : vector<26x26xf32>
    %228 = tpu.matmul %225, %226, %cst_68 {dimension_numbers = #tpu.dot_dimension_numbers<[1], [1], [0], [0], [0, 0, 1, 0], [], []>} : vector<26x128xf32>, vector<26x128xf32>, vector<26x26xf32> -> vector<26x26xf32>
    %229 = arith.addf %228, %8 : vector<26x26xf32>
    %cst_69 = arith.constant dense<0xFF800000> : vector<26xf32>
    %230 = vector.multi_reduction <maximumf>, %229, %cst_69 [1] : vector<26x26xf32> to vector<26xf32>
    %231 = vector.shape_cast %230 : vector<26xf32> to vector<26x1xf32>
    %232 = vector.broadcast %231 : vector<26x1xf32> to vector<26x26xf32>
    %233 = arith.subf %229, %232 : vector<26x26xf32>
    %234 = math.exp %233 : vector<26x26xf32>
    %cst_70 = arith.constant dense<0.000000e+00> : vector<26xf32>
    %235 = vector.multi_reduction <add>, %234, %cst_70 [1] : vector<26x26xf32> to vector<26xf32>
    %236 = vector.shape_cast %235 : vector<26xf32> to vector<26x1xf32>
    %237 = tpu.reciprocal %236 {approx = true} : vector<26x1xf32> -> vector<26x1xf32>
    %238 = vector.broadcast %237 : vector<26x1xf32> to vector<26x26xf32>
    %239 = arith.mulf %234, %238 : vector<26x26xf32>
    %cst_71 = arith.constant dense<0.000000e+00> : vector<26x128xf32>
    %240 = tpu.matmul %239, %227, %cst_71 {dimension_numbers = #tpu.dot_dimension_numbers<[1], [0], [0], [1], [0, 0, 1, 1], [], []>} : vector<26x26xf32>, vector<26x128xf32>, vector<26x128xf32> -> vector<26x128xf32>
    %241 = arith.truncf %240 : vector<26x128xf32> to vector<26x128xbf16>
    %c0_72 = arith.constant 0 : index
    %c1536 = arith.constant 1536 : index
    %242 = vector.load %arg20[%c0_72, %c1536] : memref<26x2048xbf16, #tpu.memory_space<vmem>>, vector<26x128xbf16>
    tpu.vector_store %arg20[%c0_72, %c1536], %241 {strides = array<i32>} : memref<26x2048xbf16, #tpu.memory_space<vmem>>, vector<26x128xbf16>,
    %243 = vector.extract_strided_slice %7 {offsets = [0, 1664], sizes = [26, 128], strides = [1, 1]} : vector<26x6144xf32> to vector<26x128xf32>
    %244 = vector.extract_strided_slice %7 {offsets = [0, 3712], sizes = [26, 128], strides = [1, 1]} : vector<26x6144xf32> to vector<26x128xf32>
    %245 = vector.extract_strided_slice %7 {offsets = [0, 5760], sizes = [26, 128], strides = [1, 1]} : vector<26x6144xf32> to vector<26x128xf32>
    %cst_73 = arith.constant dense<0.000000e+00> : vector<26x26xf32>
    %246 = tpu.matmul %243, %244, %cst_73 {dimension_numbers = #tpu.dot_dimension_numbers<[1], [1], [0], [0], [0, 0, 1, 0], [], []>} : vector<26x128xf32>, vector<26x128xf32>, vector<26x26xf32> -> vector<26x26xf32>
    %247 = arith.addf %246, %8 : vector<26x26xf32>
    %cst_74 = arith.constant dense<0xFF800000> : vector<26xf32>
    %248 = vector.multi_reduction <maximumf>, %247, %cst_74 [1] : vector<26x26xf32> to vector<26xf32>
    %249 = vector.shape_cast %248 : vector<26xf32> to vector<26x1xf32>
    %250 = vector.broadcast %249 : vector<26x1xf32> to vector<26x26xf32>
    %251 = arith.subf %247, %250 : vector<26x26xf32>
    %252 = math.exp %251 : vector<26x26xf32>
    %cst_75 = arith.constant dense<0.000000e+00> : vector<26xf32>
    %253 = vector.multi_reduction <add>, %252, %cst_75 [1] : vector<26x26xf32> to vector<26xf32>
    %254 = vector.shape_cast %253 : vector<26xf32> to vector<26x1xf32>
    %255 = tpu.reciprocal %254 {approx = true} : vector<26x1xf32> -> vector<26x1xf32>
    %256 = vector.broadcast %255 : vector<26x1xf32> to vector<26x26xf32>
    %257 = arith.mulf %252, %256 : vector<26x26xf32>
    %cst_76 = arith.constant dense<0.000000e+00> : vector<26x128xf32>
    %258 = tpu.matmul %257, %245, %cst_76 {dimension_numbers = #tpu.dot_dimension_numbers<[1], [0], [0], [1], [0, 0, 1, 1], [], []>} : vector<26x26xf32>, vector<26x128xf32>, vector<26x128xf32> -> vector<26x128xf32>
    %259 = arith.truncf %258 : vector<26x128xf32> to vector<26x128xbf16>
    %c0_77 = arith.constant 0 : index
    %c1664 = arith.constant 1664 : index
    %260 = vector.load %arg20[%c0_77, %c1664] : memref<26x2048xbf16, #tpu.memory_space<vmem>>, vector<26x128xbf16>
    tpu.vector_store %arg20[%c0_77, %c1664], %259 {strides = array<i32>} : memref<26x2048xbf16, #tpu.memory_space<vmem>>, vector<26x128xbf16>,
    %261 = vector.extract_strided_slice %7 {offsets = [0, 1792], sizes = [26, 128], strides = [1, 1]} : vector<26x6144xf32> to vector<26x128xf32>
    %262 = vector.extract_strided_slice %7 {offsets = [0, 3840], sizes = [26, 128], strides = [1, 1]} : vector<26x6144xf32> to vector<26x128xf32>
    %263 = vector.extract_strided_slice %7 {offsets = [0, 5888], sizes = [26, 128], strides = [1, 1]} : vector<26x6144xf32> to vector<26x128xf32>
    %cst_78 = arith.constant dense<0.000000e+00> : vector<26x26xf32>
    %264 = tpu.matmul %261, %262, %cst_78 {dimension_numbers = #tpu.dot_dimension_numbers<[1], [1], [0], [0], [0, 0, 1, 0], [], []>} : vector<26x128xf32>, vector<26x128xf32>, vector<26x26xf32> -> vector<26x26xf32>
    %265 = arith.addf %264, %8 : vector<26x26xf32>
    %cst_79 = arith.constant dense<0xFF800000> : vector<26xf32>
    %266 = vector.multi_reduction <maximumf>, %265, %cst_79 [1] : vector<26x26xf32> to vector<26xf32>
    %267 = vector.shape_cast %266 : vector<26xf32> to vector<26x1xf32>
    %268 = vector.broadcast %267 : vector<26x1xf32> to vector<26x26xf32>
    %269 = arith.subf %265, %268 : vector<26x26xf32>
    %270 = math.exp %269 : vector<26x26xf32>
    %cst_80 = arith.constant dense<0.000000e+00> : vector<26xf32>
    %271 = vector.multi_reduction <add>, %270, %cst_80 [1] : vector<26x26xf32> to vector<26xf32>
    %272 = vector.shape_cast %271 : vector<26xf32> to vector<26x1xf32>
    %273 = tpu.reciprocal %272 {approx = true} : vector<26x1xf32> -> vector<26x1xf32>
    %274 = vector.broadcast %273 : vector<26x1xf32> to vector<26x26xf32>
    %275 = arith.mulf %270, %274 : vector<26x26xf32>
    %cst_81 = arith.constant dense<0.000000e+00> : vector<26x128xf32>
    %276 = tpu.matmul %275, %263, %cst_81 {dimension_numbers = #tpu.dot_dimension_numbers<[1], [0], [0], [1], [0, 0, 1, 1], [], []>} : vector<26x26xf32>, vector<26x128xf32>, vector<26x128xf32> -> vector<26x128xf32>
    %277 = arith.truncf %276 : vector<26x128xf32> to vector<26x128xbf16>
    %c0_82 = arith.constant 0 : index
    %c1792 = arith.constant 1792 : index
    %278 = vector.load %arg20[%c0_82, %c1792] : memref<26x2048xbf16, #tpu.memory_space<vmem>>, vector<26x128xbf16>
    tpu.vector_store %arg20[%c0_82, %c1792], %277 {strides = array<i32>} : memref<26x2048xbf16, #tpu.memory_space<vmem>>, vector<26x128xbf16>,
    %279 = vector.extract_strided_slice %7 {offsets = [0, 1920], sizes = [26, 128], strides = [1, 1]} : vector<26x6144xf32> to vector<26x128xf32>
    %280 = vector.extract_strided_slice %7 {offsets = [0, 3968], sizes = [26, 128], strides = [1, 1]} : vector<26x6144xf32> to vector<26x128xf32>
    %281 = vector.extract_strided_slice %7 {offsets = [0, 6016], sizes = [26, 128], strides = [1, 1]} : vector<26x6144xf32> to vector<26x128xf32>
    %cst_83 = arith.constant dense<0.000000e+00> : vector<26x26xf32>
    %282 = tpu.matmul %279, %280, %cst_83 {dimension_numbers = #tpu.dot_dimension_numbers<[1], [1], [0], [0], [0, 0, 1, 0], [], []>} : vector<26x128xf32>, vector<26x128xf32>, vector<26x26xf32> -> vector<26x26xf32>
    %283 = arith.addf %282, %8 : vector<26x26xf32>
    %cst_84 = arith.constant dense<0xFF800000> : vector<26xf32>
    %284 = vector.multi_reduction <maximumf>, %283, %cst_84 [1] : vector<26x26xf32> to vector<26xf32>
    %285 = vector.shape_cast %284 : vector<26xf32> to vector<26x1xf32>
    %286 = vector.broadcast %285 : vector<26x1xf32> to vector<26x26xf32>
    %287 = arith.subf %283, %286 : vector<26x26xf32>
    %288 = math.exp %287 : vector<26x26xf32>
    %cst_85 = arith.constant dense<0.000000e+00> : vector<26xf32>
    %289 = vector.multi_reduction <add>, %288, %cst_85 [1] : vector<26x26xf32> to vector<26xf32>
    %290 = vector.shape_cast %289 : vector<26xf32> to vector<26x1xf32>
    %291 = tpu.reciprocal %290 {approx = true} : vector<26x1xf32> -> vector<26x1xf32>
    %292 = vector.broadcast %291 : vector<26x1xf32> to vector<26x26xf32>
    %293 = arith.mulf %288, %292 : vector<26x26xf32>
    %cst_86 = arith.constant dense<0.000000e+00> : vector<26x128xf32>
    %294 = tpu.matmul %293, %281, %cst_86 {dimension_numbers = #tpu.dot_dimension_numbers<[1], [0], [0], [1], [0, 0, 1, 1], [], []>} : vector<26x26xf32>, vector<26x128xf32>, vector<26x128xf32> -> vector<26x128xf32>
    %295 = arith.truncf %294 : vector<26x128xf32> to vector<26x128xbf16>
    %c0_87 = arith.constant 0 : index
    %c1920 = arith.constant 1920 : index
    %296 = vector.load %arg20[%c0_87, %c1920] : memref<26x2048xbf16, #tpu.memory_space<vmem>>, vector<26x128xbf16>
    tpu.vector_store %arg20[%c0_87, %c1920], %295 {strides = array<i32>} : memref<26x2048xbf16, #tpu.memory_space<vmem>>, vector<26x128xbf16>,
    %c0_88 = arith.constant 0 : index
    %c0_89 = arith.constant 0 : index
    %297 = vector.load %arg20[%c0_88, %c0_89] : memref<26x2048xbf16, #tpu.memory_space<vmem>>, vector<26x2048xbf16>
    %c0_90 = arith.constant 0 : index
    %c0_91 = arith.constant 0 : index
    %c0_92 = arith.constant 0 : index
    %298 = vector.load %arg8[%c0_90, %c0_91, %c0_92] : memref<1x2048x96xbf16, #tpu.memory_space<vmem>>, vector<1x2048x96xbf16>
    %299 = vector.shape_cast %298 : vector<1x2048x96xbf16> to vector<2048x96xbf16>
    %cst_93 = arith.constant dense<0.000000e+00> : vector<26x96xf32>
    %300 = tpu.matmul %297, %299, %cst_93 {dimension_numbers = #tpu.dot_dimension_numbers<[1], [0], [0], [1], [0, 0, 1, 1], [], []>} : vector<26x2048xbf16>, vector<2048x96xbf16>, vector<26x96xf32> -> vector<26x96xf32>
    %c0_94 = arith.constant 0 : index
    %c0_95 = arith.constant 0 : index
    %c0_96 = arith.constant 0 : index
    %301 = vector.load %arg9[%c0_94, %c0_95, %c0_96] : memref<1x1x96xf32, #tpu.memory_space<vmem>>, vector<1x1x96xf32>
    %302 = vector.shape_cast %301 : vector<1x1x96xf32> to vector<1x96xf32>
    %303 = vector.broadcast %302 : vector<1x96xf32> to vector<26x96xf32>
    %304 = arith.addf %300, %303 : vector<26x96xf32>
    %305 = arith.addf %304, %3 : vector<26x96xf32>
    %c0_97 = arith.constant 0 : index
    %c0_98 = arith.constant 0 : index
    %c0_99 = arith.constant 0 : index
    %306 = vector.load %arg10[%c0_97, %c0_98, %c0_99] : memref<1x1x96xf32, #tpu.memory_space<vmem>>, vector<1x1x96xf32>
    %307 = vector.shape_cast %306 : vector<1x1x96xf32> to vector<1x96xf32>
    %c0_100 = arith.constant 0 : index
    %c0_101 = arith.constant 0 : index
    %c0_102 = arith.constant 0 : index
    %308 = vector.load %arg11[%c0_100, %c0_101, %c0_102] : memref<1x1x96xf32, #tpu.memory_space<vmem>>, vector<1x1x96xf32>
    %309 = vector.shape_cast %308 : vector<1x1x96xf32> to vector<1x96xf32>
    %cst_103 = arith.constant dense<0.000000e+00> : vector<26xf32>
    %310 = vector.multi_reduction <add>, %305, %cst_103 [1] : vector<26x96xf32> to vector<26xf32>
    %311 = vector.shape_cast %310 : vector<26xf32> to vector<26x1xf32>
    %cst_104 = arith.constant 9.600000e+01 : f32
    %312 = vector.broadcast %cst_104 : f32 to vector<26x1xf32>
    %313 = arith.divf %311, %312 : vector<26x1xf32>
    %314 = vector.broadcast %313 : vector<26x1xf32> to vector<26x96xf32>
    %315 = arith.subf %305, %314 : vector<26x96xf32>
    %316 = arith.mulf %315, %315 : vector<26x96xf32>
    %cst_105 = arith.constant dense<0.000000e+00> : vector<26xf32>
    %317 = vector.multi_reduction <add>, %316, %cst_105 [1] : vector<26x96xf32> to vector<26xf32>
    %318 = vector.shape_cast %317 : vector<26xf32> to vector<26x1xf32>
    %cst_106 = arith.constant 9.600000e+01 : f32
    %319 = vector.broadcast %cst_106 : f32 to vector<26x1xf32>
    %320 = arith.divf %318, %319 : vector<26x1xf32>
    %cst_107 = arith.constant 9.99999974E-6 : f32
    %321 = vector.broadcast %cst_107 : f32 to vector<26x1xf32>
    %322 = arith.addf %320, %321 : vector<26x1xf32>
    %323 = math.rsqrt %322 : vector<26x1xf32>
    %324 = vector.broadcast %323 : vector<26x1xf32> to vector<26x96xf32>
    %325 = arith.mulf %315, %324 : vector<26x96xf32>
    %326 = vector.broadcast %307 : vector<1x96xf32> to vector<26x96xf32>
    %327 = arith.mulf %325, %326 : vector<26x96xf32>
    %328 = vector.broadcast %309 : vector<1x96xf32> to vector<26x96xf32>
    %329 = arith.addf %327, %328 : vector<26x96xf32>
    %330 = arith.truncf %329 : vector<26x96xf32> to vector<26x96xbf16>
    %c0_108 = arith.constant 0 : index
    %c0_109 = arith.constant 0 : index
    %c0_110 = arith.constant 0 : index
    %331 = vector.load %arg12[%c0_108, %c0_109, %c0_110] : memref<1x96x384xbf16, #tpu.memory_space<vmem>>, vector<1x96x384xbf16>
    %332 = vector.shape_cast %331 : vector<1x96x384xbf16> to vector<96x384xbf16>
    %cst_111 = arith.constant dense<0.000000e+00> : vector<26x384xf32>
    %333 = tpu.matmul %330, %332, %cst_111 {dimension_numbers = #tpu.dot_dimension_numbers<[1], [0], [0], [1], [0, 0, 1, 1], [], []>} : vector<26x96xbf16>, vector<96x384xbf16>, vector<26x384xf32> -> vector<26x384xf32>
    %c0_112 = arith.constant 0 : index
    %c0_113 = arith.constant 0 : index
    %c0_114 = arith.constant 0 : index
    %334 = vector.load %arg13[%c0_112, %c0_113, %c0_114] : memref<1x1x384xf32, #tpu.memory_space<vmem>>, vector<1x1x384xf32>
    %335 = vector.shape_cast %334 : vector<1x1x384xf32> to vector<1x384xf32>
    %336 = vector.broadcast %335 : vector<1x384xf32> to vector<26x384xf32>
    %337 = arith.addf %333, %336 : vector<26x384xf32>
    %cst_115 = arith.constant 0.000000e+00 : f32
    %338 = vector.broadcast %cst_115 : f32 to vector<26x384xf32>
    %339 = arith.maximumf %337, %338 : vector<26x384xf32>
    %340 = arith.truncf %339 : vector<26x384xf32> to vector<26x384xbf16>
    %c0_116 = arith.constant 0 : index
    %c0_117 = arith.constant 0 : index
    %c0_118 = arith.constant 0 : index
    %341 = vector.load %arg14[%c0_116, %c0_117, %c0_118] : memref<1x384x96xbf16, #tpu.memory_space<vmem>>, vector<1x384x96xbf16>
    %342 = vector.shape_cast %341 : vector<1x384x96xbf16> to vector<384x96xbf16>
    %cst_119 = arith.constant dense<0.000000e+00> : vector<26x96xf32>
    %343 = tpu.matmul %340, %342, %cst_119 {dimension_numbers = #tpu.dot_dimension_numbers<[1], [0], [0], [1], [0, 0, 1, 1], [], []>} : vector<26x384xbf16>, vector<384x96xbf16>, vector<26x96xf32> -> vector<26x96xf32>
    %c0_120 = arith.constant 0 : index
    %c0_121 = arith.constant 0 : index
    %c0_122 = arith.constant 0 : index
    %344 = vector.load %arg15[%c0_120, %c0_121, %c0_122] : memref<1x1x96xf32, #tpu.memory_space<vmem>>, vector<1x1x96xf32>
    %345 = vector.shape_cast %344 : vector<1x1x96xf32> to vector<1x96xf32>
    %346 = vector.broadcast %345 : vector<1x96xf32> to vector<26x96xf32>
    %347 = arith.addf %343, %346 : vector<26x96xf32>
    %348 = arith.addf %347, %329 : vector<26x96xf32>
    %c0_123 = arith.constant 0 : index
    %c0_124 = arith.constant 0 : index
    %c0_125 = arith.constant 0 : index
    %349 = vector.load %arg16[%c0_123, %c0_124, %c0_125] : memref<1x1x96xf32, #tpu.memory_space<vmem>>, vector<1x1x96xf32>
    %350 = vector.shape_cast %349 : vector<1x1x96xf32> to vector<1x96xf32>
    %c0_126 = arith.constant 0 : index
    %c0_127 = arith.constant 0 : index
    %c0_128 = arith.constant 0 : index
    %351 = vector.load %arg17[%c0_126, %c0_127, %c0_128] : memref<1x1x96xf32, #tpu.memory_space<vmem>>, vector<1x1x96xf32>
    %352 = vector.shape_cast %351 : vector<1x1x96xf32> to vector<1x96xf32>
    %cst_129 = arith.constant dense<0.000000e+00> : vector<26xf32>
    %353 = vector.multi_reduction <add>, %348, %cst_129 [1] : vector<26x96xf32> to vector<26xf32>
    %354 = vector.shape_cast %353 : vector<26xf32> to vector<26x1xf32>
    %cst_130 = arith.constant 9.600000e+01 : f32
    %355 = vector.broadcast %cst_130 : f32 to vector<26x1xf32>
    %356 = arith.divf %354, %355 : vector<26x1xf32>
    %357 = vector.broadcast %356 : vector<26x1xf32> to vector<26x96xf32>
    %358 = arith.subf %348, %357 : vector<26x96xf32>
    %359 = arith.mulf %358, %358 : vector<26x96xf32>
    %cst_131 = arith.constant dense<0.000000e+00> : vector<26xf32>
    %360 = vector.multi_reduction <add>, %359, %cst_131 [1] : vector<26x96xf32> to vector<26xf32>
    %361 = vector.shape_cast %360 : vector<26xf32> to vector<26x1xf32>
    %cst_132 = arith.constant 9.600000e+01 : f32
    %362 = vector.broadcast %cst_132 : f32 to vector<26x1xf32>
    %363 = arith.divf %361, %362 : vector<26x1xf32>
    %cst_133 = arith.constant 9.99999974E-6 : f32
    %364 = vector.broadcast %cst_133 : f32 to vector<26x1xf32>
    %365 = arith.addf %363, %364 : vector<26x1xf32>
    %366 = math.rsqrt %365 : vector<26x1xf32>
    %367 = vector.broadcast %366 : vector<26x1xf32> to vector<26x96xf32>
    %368 = arith.mulf %358, %367 : vector<26x96xf32>
    %369 = vector.broadcast %350 : vector<1x96xf32> to vector<26x96xf32>
    %370 = arith.mulf %368, %369 : vector<26x96xf32>
    %371 = vector.broadcast %352 : vector<1x96xf32> to vector<26x96xf32>
    %372 = arith.addf %370, %371 : vector<26x96xf32>
    %c0_134 = arith.constant 0 : index
    %c0_135 = arith.constant 0 : index
    %373 = vector.load %arg19[%c0_134, %c0_135] : memref<26x96xf32, #tpu.memory_space<vmem>>, vector<26x96xf32>
    tpu.vector_store %arg19[%c0_134, %c0_135], %372 {strides = array<i32>} : memref<26x96xf32, #tpu.memory_space<vmem>>, vector<26x96xf32>,
    %c5_i32 = arith.constant 5 : i32
    %374 = arith.cmpi eq, %arg0, %c5_i32 : i32
    %375 = arith.extui %374 : i1 to i32
    %c0_i32_136 = arith.constant 0 : i32
    %376 = arith.cmpi ne, %375, %c0_i32_136 : i32
    scf.if %376 {
      %c0_137 = arith.constant 0 : index
      %c0_138 = arith.constant 0 : index
      %377 = vector.load %arg4[%c0_137, %c0_138] : memref<26x96xf32, #tpu.memory_space<vmem>>, vector<26x96xf32>
      %378 = arith.mulf %372, %377 : vector<26x96xf32>
      %c0_139 = arith.constant 0 : index
      %c0_140 = arith.constant 0 : index
      %379 = vector.load %arg5[%c0_139, %c0_140] : memref<2x26xf32, #tpu.memory_space<vmem>>, vector<2x26xf32>
      %cst_141 = arith.constant dense<0.000000e+00> : vector<2x96xf32>
      %380 = tpu.matmul %379, %378, %cst_141 {dimension_numbers = #tpu.dot_dimension_numbers<[1], [0], [0], [1], [0, 0, 1, 1], [], []>} : vector<2x26xf32>, vector<26x96xf32>, vector<2x96xf32> -> vector<2x96xf32>
      %cst_142 = arith.constant dense<0.000000e+00> : vector<2xf32>
      %381 = vector.multi_reduction <add>, %380, %cst_142 [1] : vector<2x96xf32> to vector<2xf32>
      %382 = vector.shape_cast %381 : vector<2xf32> to vector<2x1xf32>
      %c0_143 = arith.constant 0 : index
      %c0_144 = arith.constant 0 : index
      %383 = vector.load %arg6[%c0_143, %c0_144] : memref<1x1xf32, #tpu.memory_space<vmem>>, vector<1x1xf32>
      %384 = vector.broadcast %383 : vector<1x1xf32> to vector<2x1xf32>
      %385 = arith.addf %382, %384 : vector<2x1xf32>
      %c0_145 = arith.constant 0 : index
      %c0_146 = arith.constant 0 : index
      %386 = vector.load %arg18[%c0_145, %c0_146] : memref<2x1xf32, #tpu.memory_space<vmem>>, vector<2x1xf32>
      tpu.vector_store %arg18[%c0_145, %c0_146], %385 {strides = array<i32>} : memref<2x1xf32, #tpu.memory_space<vmem>>, vector<2x1xf32>,
    } else {
    }
    return
  }
  func.func @transform_0(%arg0: i32) -> (i32, i32) {
    %c0_i32 = arith.constant 0 : i32
    %c0_i32_0 = arith.constant 0 : i32
    %c0_i32_1 = arith.constant 0 : i32
    return %c0_i32, %c0_i32_0 : i32, i32
  }
  func.func @transform_1(%arg0: i32) -> (i32, i32) {
    %c0_i32 = arith.constant 0 : i32
    %c0_i32_0 = arith.constant 0 : i32
    %c0_i32_1 = arith.constant 0 : i32
    return %c0_i32, %c0_i32_0 : i32, i32
  }
  func.func @transform_2(%arg0: i32) -> (i32, i32) {
    %c0_i32 = arith.constant 0 : i32
    %c0_i32_0 = arith.constant 0 : i32
    %c0_i32_1 = arith.constant 0 : i32
    return %c0_i32, %c0_i32_0 : i32, i32
  }
  func.func @transform_3(%arg0: i32) -> (i32, i32) {
    %c0_i32 = arith.constant 0 : i32
    %c0_i32_0 = arith.constant 0 : i32
    %c0_i32_1 = arith.constant 0 : i32
    return %c0_i32, %c0_i32_0 : i32, i32
  }
  func.func @transform_4(%arg0: i32) -> (i32, i32) {
    %c0_i32 = arith.constant 0 : i32
    %c0_i32_0 = arith.constant 0 : i32
    %c0_i32_1 = arith.constant 0 : i32
    return %c0_i32, %c0_i32_0 : i32, i32
  }
  func.func @transform_5(%arg0: i32) -> (i32, i32) {
    %c0_i32 = arith.constant 0 : i32
    %c0_i32_0 = arith.constant 0 : i32
    %c0_i32_1 = arith.constant 0 : i32
    return %c0_i32, %c0_i32_0 : i32, i32
  }
  func.func @transform_6(%arg0: i32) -> (i32, i32, i32) {
    %c0_i32 = arith.constant 0 : i32
    %c0_i32_0 = arith.constant 0 : i32
    %c0_i32_1 = arith.constant 0 : i32
    return %arg0, %c0_i32, %c0_i32_0 : i32, i32, i32
  }
  func.func @transform_7(%arg0: i32) -> (i32, i32, i32) {
    %c0_i32 = arith.constant 0 : i32
    %c0_i32_0 = arith.constant 0 : i32
    %c0_i32_1 = arith.constant 0 : i32
    return %arg0, %c0_i32, %c0_i32_0 : i32, i32, i32
  }
  func.func @transform_8(%arg0: i32) -> (i32, i32, i32) {
    %c0_i32 = arith.constant 0 : i32
    %c0_i32_0 = arith.constant 0 : i32
    %c0_i32_1 = arith.constant 0 : i32
    return %arg0, %c0_i32, %c0_i32_0 : i32, i32, i32
  }
  func.func @transform_9(%arg0: i32) -> (i32, i32, i32) {
    %c0_i32 = arith.constant 0 : i32
    %c0_i32_0 = arith.constant 0 : i32
    %c0_i32_1 = arith.constant 0 : i32
    return %arg0, %c0_i32, %c0_i32_0 : i32, i32, i32
  }
  func.func @transform_10(%arg0: i32) -> (i32, i32, i32) {
    %c0_i32 = arith.constant 0 : i32
    %c0_i32_0 = arith.constant 0 : i32
    %c0_i32_1 = arith.constant 0 : i32
    return %arg0, %c0_i32, %c0_i32_0 : i32, i32, i32
  }
  func.func @transform_11(%arg0: i32) -> (i32, i32, i32) {
    %c0_i32 = arith.constant 0 : i32
    %c0_i32_0 = arith.constant 0 : i32
    %c0_i32_1 = arith.constant 0 : i32
    return %arg0, %c0_i32, %c0_i32_0 : i32, i32, i32
  }
  func.func @transform_12(%arg0: i32) -> (i32, i32, i32) {
    %c0_i32 = arith.constant 0 : i32
    %c0_i32_0 = arith.constant 0 : i32
    %c0_i32_1 = arith.constant 0 : i32
    return %arg0, %c0_i32, %c0_i32_0 : i32, i32, i32
  }
  func.func @transform_13(%arg0: i32) -> (i32, i32, i32) {
    %c0_i32 = arith.constant 0 : i32
    %c0_i32_0 = arith.constant 0 : i32
    %c0_i32_1 = arith.constant 0 : i32
    return %arg0, %c0_i32, %c0_i32_0 : i32, i32, i32
  }
  func.func @transform_14(%arg0: i32) -> (i32, i32, i32) {
    %c0_i32 = arith.constant 0 : i32
    %c0_i32_0 = arith.constant 0 : i32
    %c0_i32_1 = arith.constant 0 : i32
    return %arg0, %c0_i32, %c0_i32_0 : i32, i32, i32
  }
  func.func @transform_15(%arg0: i32) -> (i32, i32, i32) {
    %c0_i32 = arith.constant 0 : i32
    %c0_i32_0 = arith.constant 0 : i32
    %c0_i32_1 = arith.constant 0 : i32
    return %arg0, %c0_i32, %c0_i32_0 : i32, i32, i32
  }
  func.func @transform_16(%arg0: i32) -> (i32, i32, i32) {
    %c0_i32 = arith.constant 0 : i32
    %c0_i32_0 = arith.constant 0 : i32
    %c0_i32_1 = arith.constant 0 : i32
    return %arg0, %c0_i32, %c0_i32_0 : i32, i32, i32
  }
  func.func @transform_17(%arg0: i32) -> (i32, i32) {
    %c0_i32 = arith.constant 0 : i32
    %c0_i32_0 = arith.constant 0 : i32
    %c0_i32_1 = arith.constant 0 : i32
    return %c0_i32, %c0_i32_0 : i32, i32
  }
}

</mosaic_0001>

<llo_original>
// kernel: ne.1
$region0: #{ne.1}
  #allocation0 [shape = 's32[1]{0}', space=sflag, size = 0x4, scoped, tag = 'scoped memory for ne.1']
  %s0 = inlined_call_operand.vmem [shape: f32[26,12], index: 0, kind: input, shape index: {}, may-alias: {0,1}]
  %s1 = inlined_call_operand.vmem [shape: f32[26,12], index: 1, kind: input, shape index: {}, may-alias: {0,1}]
  %s2 = inlined_call_operand.vmem [shape: pred[26,12], index: 2, kind: output, shape index: {}]
  %v3 = vld [vmem:[%s0] sm:$0xff]
  %v4 = vld [vmem:[%s1] sm:$0xff]
  %5 = xla_tuple %v3, %v4
  %6 = xla_tuple %5
  %vm7 = vcmp.ne.f32.partialorder %v3, %v4
  %v8 = vsel %vm7, 1, 0
  %9 = xla_tuple %v8
  %v10 = vpack.c.b16 0, %v8
  %v11 = vpack.c.b8 0, %v10
  %s13 = ssub.s32 4, 1
  %14 = vst [vmem:[%s2] sm:%s13] %v11
  %s15 = scalar_lea.vmem %s0, 8
  %v16 = vld [vmem:[%s15] sm:$0xff]
  %s17 = scalar_lea.vmem %s1, 8
  %v18 = vld [vmem:[%s17] sm:$0xff]
  %19 = xla_tuple %v16, %v18
  %20 = xla_tuple %19
  %vm21 = vcmp.ne.f32.partialorder %v16, %v18
  %v22 = vsel %vm21, 1, 0
  %23 = xla_tuple %v22
  %s24 = scalar_lea.vmem %s2, 2
  %v25 = vpack.c.b16 0, %v22
  %v26 = vpack.c.b8 0, %v25
  %s28 = ssub.s32 4, 1
  %29 = vst [vmem:[%s24] sm:%s28] %v26

// kernel: tile.9
$region0: #{tile.9}
  %s0 = inlined_call_operand.vmem [shape: f32[2,13,96], index: 0, kind: input, shape index: {}]
  %s1 = inlined_call_operand.vmem [shape: f32[26,96], index: 1, kind: output, shape index: {}]
  %v2 = vld [vmem:[%s0] sm:$0xff]
  %vm3 = vcmask 785408
  %4 = vst.msk [vmem:[%s1] sm:$0xff] %vm3, %v2
  %s5 = scalar_lea.vmem %s0, 8
  %v6 = vld [vmem:[%s5] sm:$0x1f]
  %vm7 = vcmask 785408
  %s8 = scalar_lea.vmem %s1, 8
  %9 = vst.msk [vmem:[%s8] sm:$0x1f] %vm7, %v6
  %s10 = scalar_lea.vmem %s0, 16
  %v11 = vld [vmem:[%s10] sm:$0xff]
  %vm12 = vcmask 785408
  %s13 = scalar_lea.vmem %s1, 13
  %14 = vst.msk [vmem:[%s13] sm:$0xff] %vm12, %v11
  %s15 = scalar_lea.vmem %s0, 24
  %v16 = vld [vmem:[%s15] sm:$0x1f]
  %vm17 = vcmask 785408
  %s18 = scalar_lea.vmem %s1, 21
  %19 = vst.msk [vmem:[%s18] sm:$0x1f] %vm17, %v16

// kernel: transformer_forward.1
$region0: #{transformer_forward.1}
  #allocation0 [shape = 'u32[]', space=smem, size = 0x4, offset = 0x4, fixed_abs, tag = 'smem constant byte address 0x4 - core index']
  #allocation1 [shape = 'u32[72,128]{1,0:T(1,128)}', space=vmem, size = 0x9000, scoped, tag = 'internal scratch']
  #allocation2 [shape = 'f32[26,96]{1,0:T(8,128)}', space=vmem, size = 0x4000, scoped, tag = 'scratch operand']
  #allocation3 [shape = 'bf16[26,2048]{1,0:T(8,128)(2,1)}', space=vmem, size = 0x20000, scoped, tag = 'scratch operand']
  #allocation4 [shape = 'f32[1,1]{1,0:T(1,128)S(1)}', space=vmem, size = 0x200, scoped, tag = 'scoped memory for transformer_forward.1']
  %s0 = inlined_call_operand.vmem [shape: f32[26,96], index: 0, kind: input, shape index: {}]
  %s1 = inlined_call_operand.vmem [shape: f32[26,96], index: 1, kind: input, shape index: {}]
  %s2 = inlined_call_operand.vmem [shape: f32[26,26], index: 2, kind: input, shape index: {}]
  %s3 = inlined_call_operand.vmem [shape: f32[26,96], index: 3, kind: input, shape index: {}]
  %s4 = inlined_call_operand.vmem [shape: f32[2,26], index: 4, kind: input, shape index: {}]
  %s5 = inlined_call_operand.<no memory space> [shape: f32[1,1], index: 5, kind: input, shape index: {}]
  %s6 = inlined_call_operand.hbm [shape: bf16[6,96,6144], index: 6, kind: input, shape index: {}]
  %s7 = inlined_call_operand.vmem [shape: bf16[6,2048,96], index: 7, kind: input, shape index: {}]
  %s8 = inlined_call_operand.vmem [shape: f32[6,1,96], index: 8, kind: input, shape index: {}]
  %s9 = inlined_call_operand.vmem [shape: f32[6,1,96], index: 9, kind: input, shape index: {}]
  %s10 = inlined_call_operand.vmem [shape: f32[6,1,96], index: 10, kind: input, shape index: {}]
  %s11 = inlined_call_operand.vmem [shape: bf16[6,96,384], index: 11, kind: input, shape index: {}]
  %s12 = inlined_call_operand.vmem [shape: f32[6,1,384], index: 12, kind: input, shape index: {}]
  %s13 = inlined_call_operand.vmem [shape: bf16[6,384,96], index: 13, kind: input, shape index: {}]
  %s14 = inlined_call_operand.vmem [shape: f32[6,1,96], index: 14, kind: input, shape index: {}]
  %s15 = inlined_call_operand.vmem [shape: f32[6,1,96], index: 15, kind: input, shape index: {}]
  %s16 = inlined_call_operand.vmem [shape: f32[6,1,96], index: 16, kind: input, shape index: {}]
  %s17 = inlined_call_operand.vmem [shape: f32[2,1], index: 17, kind: output, shape index: {}]
  %s18 = sld [smem:[#allocation0]]
  $region113: #{transformer_forward.1} parent=0
    _
  %s20 = ssub.s32 1, %s18
  %s21 = scalar_select 0, %s20, %s18
  %v22 = vstv %s5
  %23 = vst [vmem:[#allocation4] sm:$0x1] %v22
  $region1: #{transformer_forward.1} parent=0
    #allocation5 [shape = 'u8[2359296]{0}', space=vmem, size = 0x240000, scoped, tag = 'input window, operand 6']
    #allocation6 [shape = 's32[2]{0}', space=sflag, size = 0x8, scoped, tag = 'scoped memory for transformer_forward.1']
    %24 = vsyncpa [#allocation6], 0
    %s25 = scalar_lea.sflag [#allocation6], 1
    %26 = vsyncpa %s25, 0
    loop: start=0, step=1, limit=8
    $region2: #{transformer_forward.1} parent=1 // loop_pre_header
      _
    $region3: #{transformer_forward.1} parent=1 // loop_header
      %s28 = sphi 0, %s32
      %p29 = scmp.ge.s32.totalorder %s28, 8
      %s36 = sphi 0, %s36
      %s38 = sphi 0, %s36
      %s39 = sphi 0, %s38
      %s53 = sphi 0, %s39
      %s57 = sphi 0, %s57
      %s59 = sphi 0, %s57
      %s60 = sphi 0, %s59
      %s74 = sphi 0, %s60
      %s78 = sphi 0, %s78
      %s80 = sphi 0, %s78
      %s81 = sphi 0, %s80
      %s95 = sphi 0, %s81
      %s99 = sphi 0, %s99
      %s101 = sphi 0, %s99
      %s102 = sphi 0, %s101
      %s116 = sphi 0, %s102
      %s120 = sphi 0, %s120
      %s122 = sphi 0, %s120
      %s123 = sphi 0, %s122
      %s137 = sphi 0, %s123
      %s141 = sphi 0, %s141
      %s143 = sphi 0, %s141
      %s144 = sphi 0, %s143
      %s158 = sphi 0, %s144
      %s164 = sphi 0, %s166
      %s167 = sphi 0, %s164
      %s168 = sphi 0, %s167
      %s184 = sphi 0, %s168
      %s190 = sphi 0, %s192
      %s193 = sphi 0, %s190
      %s194 = sphi 0, %s193
      %s210 = sphi 0, %s194
      %s216 = sphi 0, %s218
      %s219 = sphi 0, %s216
      %s220 = sphi 0, %s219
      %s236 = sphi 0, %s220
      %s242 = sphi 0, %s244
      %s245 = sphi 0, %s242
      %s246 = sphi 0, %s245
      %s262 = sphi 0, %s246
      %s268 = sphi 0, %s270
      %s271 = sphi 0, %s268
      %s272 = sphi 0, %s271
      %s288 = sphi 0, %s272
      %s294 = sphi 0, %s296
      %s297 = sphi 0, %s294
      %s298 = sphi 0, %s297
      %s314 = sphi 0, %s298
      %s320 = sphi 0, %s322
      %s323 = sphi 0, %s320
      %s324 = sphi 0, %s323
      %s340 = sphi 0, %s324
      %s346 = sphi 0, %s348
      %s349 = sphi 0, %s346
      %s350 = sphi 0, %s349
      %s366 = sphi 0, %s350
      %s372 = sphi 0, %s374
      %s375 = sphi 0, %s372
      %s376 = sphi 0, %s375
      %s392 = sphi 0, %s376
      %s398 = sphi 0, %s400
      %s401 = sphi 0, %s398
      %s402 = sphi 0, %s401
      %s418 = sphi 0, %s402
      %s424 = sphi 0, %s426
      %s427 = sphi 0, %s424
      %s428 = sphi 0, %s427
      %s444 = sphi 0, %s428
      %s448 = sphi 0, %s448
      %s450 = sphi 0, %s448
      %s451 = sphi 0, %s450
      %s465 = sphi 0, %s451
    $region4: #{transformer_forward.1} parent=1 // loop_header_branch
      %31 = sbr.rel (%p29) target = $region8
    $region5: #{transformer_forward.1} parent=1 // loop_body
      %s33 = ssub.s32 %s28, 1
      %s34 = ssub.s32 %s28, 2
      %s35 = sadd.s32 %s28, 1
      %s37 = sadd.s32 %s36, 1
      %p40 = scmp.eq.s32.totalorder %s28, 5
      %p41 = scmp.ne.s32.totalorder %s36, %s38
      %p42 = scmp.eq.s32.totalorder %s28, 0
      %p43 = por %p41, %p42
      %p44 = scmp.ne.s32.totalorder %s36, %s38
      %p45 = scmp.eq.s32.totalorder %s33, 5
      %p46 = por %p44, %p45
      %p47 = scmp.ne.s32.totalorder %s38, %s39
      %p48 = scmp.eq.s32.totalorder %s33, 0
      %p49 = por %p47, %p48
      %p50 = scmp.ne.s32.totalorder %s38, %s39
      %p51 = scmp.eq.s32.totalorder %s34, 5
      %p52 = por %p50, %p51
      %p54 = scmp.ne.s32.totalorder %s39, %s53
      %p55 = scmp.eq.s32.totalorder %s34, 0
      %p56 = por %p54, %p55
      %s58 = sadd.s32 %s57, 1
      %p61 = scmp.eq.s32.totalorder %s28, 5
      %p62 = scmp.ne.s32.totalorder %s57, %s59
      %p63 = scmp.eq.s32.totalorder %s28, 0
      %p64 = por %p62, %p63
      %p65 = scmp.ne.s32.totalorder %s57, %s59
      %p66 = scmp.eq.s32.totalorder %s33, 5
      %p67 = por %p65, %p66
      %p68 = scmp.ne.s32.totalorder %s59, %s60
      %p69 = scmp.eq.s32.totalorder %s33, 0
      %p70 = por %p68, %p69
      %p71 = scmp.ne.s32.totalorder %s59, %s60
      %p72 = scmp.eq.s32.totalorder %s34, 5
      %p73 = por %p71, %p72
      %p75 = scmp.ne.s32.totalorder %s60, %s74
      %p76 = scmp.eq.s32.totalorder %s34, 0
      %p77 = por %p75, %p76
      %s79 = sadd.s32 %s78, 1
      %p82 = scmp.eq.s32.totalorder %s28, 5
      %p83 = scmp.ne.s32.totalorder %s78, %s80
      %p84 = scmp.eq.s32.totalorder %s28, 0
      %p85 = por %p83, %p84
      %p86 = scmp.ne.s32.totalorder %s78, %s80
      %p87 = scmp.eq.s32.totalorder %s33, 5
      %p88 = por %p86, %p87
      %p89 = scmp.ne.s32.totalorder %s80, %s81
      %p90 = scmp.eq.s32.totalorder %s33, 0
      %p91 = por %p89, %p90
      %p92 = scmp.ne.s32.totalorder %s80, %s81
      %p93 = scmp.eq.s32.totalorder %s34, 5
      %p94 = por %p92, %p93
      %p96 = scmp.ne.s32.totalorder %s81, %s95
      %p97 = scmp.eq.s32.totalorder %s34, 0
      %p98 = por %p96, %p97
      %s100 = sadd.s32 %s99, 1
      %p103 = scmp.eq.s32.totalorder %s28, 5
      %p104 = scmp.ne.s32.totalorder %s99, %s101
      %p105 = scmp.eq.s32.totalorder %s28, 0
      %p106 = por %p104, %p105
      %p107 = scmp.ne.s32.totalorder %s99, %s101
      %p108 = scmp.eq.s32.totalorder %s33, 5
      %p109 = por %p107, %p108
      %p110 = scmp.ne.s32.totalorder %s101, %s102
      %p111 = scmp.eq.s32.totalorder %s33, 0
      %p112 = por %p110, %p111
      %p113 = scmp.ne.s32.totalorder %s101, %s102
      %p114 = scmp.eq.s32.totalorder %s34, 5
      %p115 = por %p113, %p114
      %p117 = scmp.ne.s32.totalorder %s102, %s116
      %p118 = scmp.eq.s32.totalorder %s34, 0
      %p119 = por %p117, %p118
      %s121 = sadd.s32 %s120, 1
      %p124 = scmp.eq.s32.totalorder %s28, 5
      %p125 = scmp.ne.s32.totalorder %s120, %s122
      %p126 = scmp.eq.s32.totalorder %s28, 0
      %p127 = por %p125, %p126
      %p128 = scmp.ne.s32.totalorder %s120, %s122
      %p129 = scmp.eq.s32.totalorder %s33, 5
      %p130 = por %p128, %p129
      %p131 = scmp.ne.s32.totalorder %s122, %s123
      %p132 = scmp.eq.s32.totalorder %s33, 0
      %p133 = por %p131, %p132
      %p134 = scmp.ne.s32.totalorder %s122, %s123
      %p135 = scmp.eq.s32.totalorder %s34, 5
      %p136 = por %p134, %p135
      %p138 = scmp.ne.s32.totalorder %s123, %s137
      %p139 = scmp.eq.s32.totalorder %s34, 0
      %p140 = por %p138, %p139
      %s142 = sadd.s32 %s141, 1
      %p145 = scmp.eq.s32.totalorder %s28, 5
      %p146 = scmp.ne.s32.totalorder %s141, %s143
      %p147 = scmp.eq.s32.totalorder %s28, 0
      %p148 = por %p146, %p147
      %p149 = scmp.ne.s32.totalorder %s141, %s143
      %p150 = scmp.eq.s32.totalorder %s33, 5
      %p151 = por %p149, %p150
      %p152 = scmp.ne.s32.totalorder %s143, %s144
      %p153 = scmp.eq.s32.totalorder %s33, 0
      %p154 = por %p152, %p153
      %p155 = scmp.ne.s32.totalorder %s143, %s144
      %p156 = scmp.eq.s32.totalorder %s34, 5
      %p157 = por %p155, %p156
      %p159 = scmp.ne.s32.totalorder %s144, %s158
      %p160 = scmp.eq.s32.totalorder %s34, 0
      %p161 = por %p159, %p160
      %s162 = ssub.s32 %s28, %s35
      %p163 = scmp.eq.s32.totalorder %s162, 0
      %s165 = sadd.s32 %s164, 1
      %s166 = scalar_select %p163, %s164, %s165
      %p169 = pneg %p163
      %p170 = scmp.eq.s32.totalorder %s28, 5
      %p171 = por %p169, %p170
      %p172 = scmp.ne.s32.totalorder %s164, %s167
      %p173 = scmp.eq.s32.totalorder %s28, 0
      %p174 = por %p172, %p173
      %p175 = scmp.ne.s32.totalorder %s164, %s167
      %p176 = scmp.eq.s32.totalorder %s33, 5
      %p177 = por %p175, %p176
      %p178 = scmp.ne.s32.totalorder %s167, %s168
      %p179 = scmp.eq.s32.totalorder %s33, 0
      %p180 = por %p178, %p179
      %p181 = scmp.ne.s32.totalorder %s167, %s168
      %p182 = scmp.eq.s32.totalorder %s34, 5
      %p183 = por %p181, %p182
      %p185 = scmp.ne.s32.totalorder %s168, %s184
      %p186 = scmp.eq.s32.totalorder %s34, 0
      %p187 = por %p185, %p186
      %s188 = ssub.s32 %s28, %s35
      %p189 = scmp.eq.s32.totalorder %s188, 0
      %s191 = sadd.s32 %s190, 1
      %s192 = scalar_select %p189, %s190, %s191
      %p195 = pneg %p189
      %p196 = scmp.eq.s32.totalorder %s28, 5
      %p197 = por %p195, %p196
      %p198 = scmp.ne.s32.totalorder %s190, %s193
      %p199 = scmp.eq.s32.totalorder %s28, 0
      %p200 = por %p198, %p199
      %p201 = scmp.ne.s32.totalorder %s190, %s193
      %p202 = scmp.eq.s32.totalorder %s33, 5
      %p203 = por %p201, %p202
      %p204 = scmp.ne.s32.totalorder %s193, %s194
      %p205 = scmp.eq.s32.totalorder %s33, 0
      %p206 = por %p204, %p205
      %p207 = scmp.ne.s32.totalorder %s193, %s194
      %p208 = scmp.eq.s32.totalorder %s34, 5
      %p209 = por %p207, %p208
      %p211 = scmp.ne.s32.totalorder %s194, %s210
      %p212 = scmp.eq.s32.totalorder %s34, 0
      %p213 = por %p211, %p212
      %s214 = ssub.s32 %s28, %s35
      %p215 = scmp.eq.s32.totalorder %s214, 0
      %s217 = sadd.s32 %s216, 1
      %s218 = scalar_select %p215, %s216, %s217
      %p221 = pneg %p215
      %p222 = scmp.eq.s32.totalorder %s28, 5
      %p223 = por %p221, %p222
      %p224 = scmp.ne.s32.totalorder %s216, %s219
      %p225 = scmp.eq.s32.totalorder %s28, 0
      %p226 = por %p224, %p225
      %p227 = scmp.ne.s32.totalorder %s216, %s219
      %p228 = scmp.eq.s32.totalorder %s33, 5
      %p229 = por %p227, %p228
      %p230 = scmp.ne.s32.totalorder %s219, %s220
      %p231 = scmp.eq.s32.totalorder %s33, 0
      %p232 = por %p230, %p231
      %p233 = scmp.ne.s32.totalorder %s219, %s220
      %p234 = scmp.eq.s32.totalorder %s34, 5
      %p235 = por %p233, %p234
      %p237 = scmp.ne.s32.totalorder %s220, %s236
      %p238 = scmp.eq.s32.totalorder %s34, 0
      %p239 = por %p237, %p238
      %s240 = ssub.s32 %s28, %s35
      %p241 = scmp.eq.s32.totalorder %s240, 0
      %s243 = sadd.s32 %s242, 1
      %s244 = scalar_select %p241, %s242, %s243
      %p247 = pneg %p241
      %p248 = scmp.eq.s32.totalorder %s28, 5
      %p249 = por %p247, %p248
      %p250 = scmp.ne.s32.totalorder %s242, %s245
      %p251 = scmp.eq.s32.totalorder %s28, 0
      %p252 = por %p250, %p251
      %p253 = scmp.ne.s32.totalorder %s242, %s245
      %p254 = scmp.eq.s32.totalorder %s33, 5
      %p255 = por %p253, %p254
      %p256 = scmp.ne.s32.totalorder %s245, %s246
      %p257 = scmp.eq.s32.totalorder %s33, 0
      %p258 = por %p256, %p257
      %p259 = scmp.ne.s32.totalorder %s245, %s246
      %p260 = scmp.eq.s32.totalorder %s34, 5
      %p261 = por %p259, %p260
      %p263 = scmp.ne.s32.totalorder %s246, %s262
      %p264 = scmp.eq.s32.totalorder %s34, 0
      %p265 = por %p263, %p264
      %s266 = ssub.s32 %s28, %s35
      %p267 = scmp.eq.s32.totalorder %s266, 0
      %s269 = sadd.s32 %s268, 1
      %s270 = scalar_select %p267, %s268, %s269
      %p273 = pneg %p267
      %p274 = scmp.eq.s32.totalorder %s28, 5
      %p275 = por %p273, %p274
      %p276 = scmp.ne.s32.totalorder %s268, %s271
      %p277 = scmp.eq.s32.totalorder %s28, 0
      %p278 = por %p276, %p277
      %p279 = scmp.ne.s32.totalorder %s268, %s271
      %p280 = scmp.eq.s32.totalorder %s33, 5
      %p281 = por %p279, %p280
      %p282 = scmp.ne.s32.totalorder %s271, %s272
      %p283 = scmp.eq.s32.totalorder %s33, 0
      %p284 = por %p282, %p283
      %p285 = scmp.ne.s32.totalorder %s271, %s272
      %p286 = scmp.eq.s32.totalorder %s34, 5
      %p287 = por %p285, %p286
      %p289 = scmp.ne.s32.totalorder %s272, %s288
      %p290 = scmp.eq.s32.totalorder %s34, 0
      %p291 = por %p289, %p290
      %s292 = ssub.s32 %s28, %s35
      %p293 = scmp.eq.s32.totalorder %s292, 0
      %s295 = sadd.s32 %s294, 1
      %s296 = scalar_select %p293, %s294, %s295
      %p299 = pneg %p293
      %p300 = scmp.eq.s32.totalorder %s28, 5
      %p301 = por %p299, %p300
      %p302 = scmp.ne.s32.totalorder %s294, %s297
      %p303 = scmp.eq.s32.totalorder %s28, 0
      %p304 = por %p302, %p303
      %p305 = scmp.ne.s32.totalorder %s294, %s297
      %p306 = scmp.eq.s32.totalorder %s33, 5
      %p307 = por %p305, %p306
      %p308 = scmp.ne.s32.totalorder %s297, %s298
      %p309 = scmp.eq.s32.totalorder %s33, 0
      %p310 = por %p308, %p309
      %p311 = scmp.ne.s32.totalorder %s297, %s298
      %p312 = scmp.eq.s32.totalorder %s34, 5
      %p313 = por %p311, %p312
      %p315 = scmp.ne.s32.totalorder %s298, %s314
      %p316 = scmp.eq.s32.totalorder %s34, 0
      %p317 = por %p315, %p316
      %s318 = ssub.s32 %s28, %s35
      %p319 = scmp.eq.s32.totalorder %s318, 0
      %s321 = sadd.s32 %s320, 1
      %s322 = scalar_select %p319, %s320, %s321
      %p325 = pneg %p319
      %p326 = scmp.eq.s32.totalorder %s28, 5
      %p327 = por %p325, %p326
      %p328 = scmp.ne.s32.totalorder %s320, %s323
      %p329 = scmp.eq.s32.totalorder %s28, 0
      %p330 = por %p328, %p329
      %p331 = scmp.ne.s32.totalorder %s320, %s323
      %p332 = scmp.eq.s32.totalorder %s33, 5
      %p333 = por %p331, %p332
      %p334 = scmp.ne.s32.totalorder %s323, %s324
      %p335 = scmp.eq.s32.totalorder %s33, 0
      %p336 = por %p334, %p335
      %p337 = scmp.ne.s32.totalorder %s323, %s324
      %p338 = scmp.eq.s32.totalorder %s34, 5
      %p339 = por %p337, %p338
      %p341 = scmp.ne.s32.totalorder %s324, %s340
      %p342 = scmp.eq.s32.totalorder %s34, 0
      %p343 = por %p341, %p342
      %s344 = ssub.s32 %s28, %s35
      %p345 = scmp.eq.s32.totalorder %s344, 0
      %s347 = sadd.s32 %s346, 1
      %s348 = scalar_select %p345, %s346, %s347
      %p351 = pneg %p345
      %p352 = scmp.eq.s32.totalorder %s28, 5
      %p353 = por %p351, %p352
      %p354 = scmp.ne.s32.totalorder %s346, %s349
      %p355 = scmp.eq.s32.totalorder %s28, 0
      %p356 = por %p354, %p355
      %p357 = scmp.ne.s32.totalorder %s346, %s349
      %p358 = scmp.eq.s32.totalorder %s33, 5
      %p359 = por %p357, %p358
      %p360 = scmp.ne.s32.totalorder %s349, %s350
      %p361 = scmp.eq.s32.totalorder %s33, 0
      %p362 = por %p360, %p361
      %p363 = scmp.ne.s32.totalorder %s349, %s350
      %p364 = scmp.eq.s32.totalorder %s34, 5
      %p365 = por %p363, %p364
      %p367 = scmp.ne.s32.totalorder %s350, %s366
      %p368 = scmp.eq.s32.totalorder %s34, 0
      %p369 = por %p367, %p368
      %s370 = ssub.s32 %s28, %s35
      %p371 = scmp.eq.s32.totalorder %s370, 0
      %s373 = sadd.s32 %s372, 1
      %s374 = scalar_select %p371, %s372, %s373
      %p377 = pneg %p371
      %p378 = scmp.eq.s32.totalorder %s28, 5
      %p379 = por %p377, %p378
      %p380 = scmp.ne.s32.totalorder %s372, %s375
      %p381 = scmp.eq.s32.totalorder %s28, 0
      %p382 = por %p380, %p381
      %p383 = scmp.ne.s32.totalorder %s372, %s375
      %p384 = scmp.eq.s32.totalorder %s33, 5
      %p385 = por %p383, %p384
      %p386 = scmp.ne.s32.totalorder %s375, %s376
      %p387 = scmp.eq.s32.totalorder %s33, 0
      %p388 = por %p386, %p387
      %p389 = scmp.ne.s32.totalorder %s375, %s376
      %p390 = scmp.eq.s32.totalorder %s34, 5
      %p391 = por %p389, %p390
      %p393 = scmp.ne.s32.totalorder %s376, %s392
      %p394 = scmp.eq.s32.totalorder %s34, 0
      %p395 = por %p393, %p394
      %s396 = ssub.s32 %s28, %s35
      %p397 = scmp.eq.s32.totalorder %s396, 0
      %s399 = sadd.s32 %s398, 1
      %s400 = scalar_select %p397, %s398, %s399
      %p403 = pneg %p397
      %p404 = scmp.eq.s32.totalorder %s28, 5
      %p405 = por %p403, %p404
      %p406 = scmp.ne.s32.totalorder %s398, %s401
      %p407 = scmp.eq.s32.totalorder %s28, 0
      %p408 = por %p406, %p407
      %p409 = scmp.ne.s32.totalorder %s398, %s401
      %p410 = scmp.eq.s32.totalorder %s33, 5
      %p411 = por %p409, %p410
      %p412 = scmp.ne.s32.totalorder %s401, %s402
      %p413 = scmp.eq.s32.totalorder %s33, 0
      %p414 = por %p412, %p413
      %p415 = scmp.ne.s32.totalorder %s401, %s402
      %p416 = scmp.eq.s32.totalorder %s34, 5
      %p417 = por %p415, %p416
      %p419 = scmp.ne.s32.totalorder %s402, %s418
      %p420 = scmp.eq.s32.totalorder %s34, 0
      %p421 = por %p419, %p420
      %s422 = ssub.s32 %s28, %s35
      %p423 = scmp.eq.s32.totalorder %s422, 0
      %s425 = sadd.s32 %s424, 1
      %s426 = scalar_select %p423, %s424, %s425
      %p429 = pneg %p423
      %p430 = scmp.eq.s32.totalorder %s28, 5
      %p431 = por %p429, %p430
      %p432 = scmp.ne.s32.totalorder %s424, %s427
      %p433 = scmp.eq.s32.totalorder %s28, 0
      %p434 = por %p432, %p433
      %p435 = scmp.ne.s32.totalorder %s424, %s427
      %p436 = scmp.eq.s32.totalorder %s33, 5
      %p437 = por %p435, %p436
      %p438 = scmp.ne.s32.totalorder %s427, %s428
      %p439 = scmp.eq.s32.totalorder %s33, 0
      %p440 = por %p438, %p439
      %p441 = scmp.ne.s32.totalorder %s427, %s428
      %p442 = scmp.eq.s32.totalorder %s34, 5
      %p443 = por %p441, %p442
      %p445 = scmp.ne.s32.totalorder %s428, %s444
      %p446 = scmp.eq.s32.totalorder %s34, 0
      %p447 = por %p445, %p446
      %s449 = sadd.s32 %s448, 1
      %p452 = scmp.eq.s32.totalorder %s28, 5
      %p453 = scmp.ne.s32.totalorder %s448, %s450
      %p454 = scmp.eq.s32.totalorder %s28, 0
      %p455 = por %p453, %p454
      %p456 = scmp.ne.s32.totalorder %s448, %s450
      %p457 = scmp.eq.s32.totalorder %s33, 5
      %p458 = por %p456, %p457
      %p459 = scmp.ne.s32.totalorder %s450, %s451
      %p460 = scmp.eq.s32.totalorder %s33, 0
      %p461 = por %p459, %p460
      %p462 = scmp.ne.s32.totalorder %s450, %s451
      %p463 = scmp.eq.s32.totalorder %s34, 5
      %p464 = por %p462, %p463
      %p466 = scmp.ne.s32.totalorder %s451, %s465
      %p467 = scmp.eq.s32.totalorder %s34, 0
      %p468 = por %p466, %p467
      %p469 = scmp.le.s32.totalorder 1, %s28
      %p470 = scmp.lt.s32.totalorder %s28, 7
      %p471 = pnand %p469, %p470
      %p472 = pneg %p471
      // Predicated region
      $region9: #{transformer_forward.1} parent=5 // pred_check
        _
      $region10: #{transformer_forward.1} parent=5 // pred_check_branch
        %474 = sbr.rel (%p471) target = $region12
      $region11: #{transformer_forward.1} parent=5 // pred_region
        %s475 = ssub.s32 %s28, 1
        // Predicated region
        $region13: #{transformer_forward.1} parent=11 // pred_check
          %p476 = pneg %p49
        $region14: #{transformer_forward.1} parent=11 // pred_check_branch
          %478 = sbr.rel (%p476) target = $region16
        $region15: #{transformer_forward.1} parent=11 // pred_region
          _
        $region16: #{transformer_forward.1} parent=11 // pred_fallthru
          _
        // Predicated region
        $region17: #{transformer_forward.1} parent=11 // pred_check
          %p479 = pneg %p70
        $region18: #{transformer_forward.1} parent=11 // pred_check_branch
          %481 = sbr.rel (%p479) target = $region20
        $region19: #{transformer_forward.1} parent=11 // pred_region
          _
        $region20: #{transformer_forward.1} parent=11 // pred_fallthru
          _
        // Predicated region
        $region21: #{transformer_forward.1} parent=11 // pred_check
          %p482 = pneg %p91
        $region22: #{transformer_forward.1} parent=11 // pred_check_branch
          %484 = sbr.rel (%p482) target = $region24
        $region23: #{transformer_forward.1} parent=11 // pred_region
          _
        $region24: #{transformer_forward.1} parent=11 // pred_fallthru
          _
        // Predicated region
        $region25: #{transformer_forward.1} parent=11 // pred_check
          %p485 = pneg %p112
        $region26: #{transformer_forward.1} parent=11 // pred_check_branch
          %487 = sbr.rel (%p485) target = $region28
        $region27: #{transformer_forward.1} parent=11 // pred_region
          _
        $region28: #{transformer_forward.1} parent=11 // pred_fallthru
          _
        // Predicated region
        $region29: #{transformer_forward.1} parent=11 // pred_check
          %p488 = pneg %p133
        $region30: #{transformer_forward.1} parent=11 // pred_check_branch
          %490 = sbr.rel (%p488) target = $region32
        $region31: #{transformer_forward.1} parent=11 // pred_region
          _
        $region32: #{transformer_forward.1} parent=11 // pred_fallthru
          _
        // Predicated region
        $region33: #{transformer_forward.1} parent=11 // pred_check
          %p491 = pneg %p154
        $region34: #{transformer_forward.1} parent=11 // pred_check_branch
          %493 = sbr.rel (%p491) target = $region36
        $region35: #{transformer_forward.1} parent=11 // pred_region
          _
        $region36: #{transformer_forward.1} parent=11 // pred_fallthru
          _
      $region12: #{transformer_forward.1} parent=5 // pred_fallthru
        _
      %p494 = scmp.lt.s32.totalorder %s28, 6
      // Predicated region
      $region37: #{transformer_forward.1} parent=5 // pred_check
        %p495 = pneg %p494
      $region38: #{transformer_forward.1} parent=5 // pred_check_branch
        %497 = sbr.rel (%p495) target = $region40
      $region39: #{transformer_forward.1} parent=5 // pred_region
        // Predicated region
        $region41: #{transformer_forward.1} parent=39 // pred_check
          %p498 = pneg %p174
        $region42: #{transformer_forward.1} parent=39 // pred_check_branch
          %500 = sbr.rel (%p498) target = $region44
        $region43: #{transformer_forward.1} parent=39 // pred_region
          %s501 = sand.u32 %s164, 1
          %s502 = scalar_lea.sflag [#allocation6], %s501
          %s503 = sand.u32 %s164, 1
          %s504 = smul.addr %s503, 2304
          %s505 = scalar_lea.vmem [#allocation5], %s504
          %507 = vsyncadd %s502, 0
          %s508 = smul.addr %s28, 576
          %s509 = smul.addr %s508, 4
          %s510 = scalar_lea.hbm %s6, %s509
          %s511 = sshll.u32 %s510, 4
          %s512 = int_to_ptr.hbm [resolvable:$true] %s511
          %s513 = sshll.u32 %s505, 4
          %s514 = int_to_ptr.vmem [resolvable:$true] %s513
          %519 = dma.hbm_to_vmem [thread:$0]  %s512, 36864, %s514, %s502, 3072, 3072, 192
        $region44: #{transformer_forward.1} parent=39 // pred_fallthru
          _
        // Predicated region
        $region45: #{transformer_forward.1} parent=39 // pred_check
          %p520 = pneg %p200
        $region46: #{transformer_forward.1} parent=39 // pred_check_branch
          %522 = sbr.rel (%p520) target = $region48
        $region47: #{transformer_forward.1} parent=39 // pred_region
          %p523 = scmp.lt.s32.totalorder %s28, 5
          %s524 = scalar_select %p523, %s28, 5
          %s525 = smul.addr %s524, 256
          %s526 = smul.addr %s525, 4
          %s527 = scalar_lea.vmem %s7, %s526
        $region48: #{transformer_forward.1} parent=39 // pred_fallthru
          _
        // Predicated region
        $region49: #{transformer_forward.1} parent=39 // pred_check
          %p528 = pneg %p226
        $region50: #{transformer_forward.1} parent=39 // pred_check_branch
          %530 = sbr.rel (%p528) target = $region52
        $region51: #{transformer_forward.1} parent=39 // pred_region
          %p531 = scmp.lt.s32.totalorder %s28, 5
          %s532 = scalar_select %p531, %s28, 5
          %s533 = scalar_lea.vmem %s8, %s532
        $region52: #{transformer_forward.1} parent=39 // pred_fallthru
          _
        // Predicated region
        $region53: #{transformer_forward.1} parent=39 // pred_check
          %p534 = pneg %p252
        $region54: #{transformer_forward.1} parent=39 // pred_check_branch
          %536 = sbr.rel (%p534) target = $region56
        $region55: #{transformer_forward.1} parent=39 // pred_region
          %p537 = scmp.lt.s32.totalorder %s28, 5
          %s538 = scalar_select %p537, %s28, 5
          %s539 = scalar_lea.vmem %s9, %s538
        $region56: #{transformer_forward.1} parent=39 // pred_fallthru
          _
        // Predicated region
        $region57: #{transformer_forward.1} parent=39 // pred_check
          %p540 = pneg %p278
        $region58: #{transformer_forward.1} parent=39 // pred_check_branch
          %542 = sbr.rel (%p540) target = $region60
        $region59: #{transformer_forward.1} parent=39 // pred_region
          %p543 = scmp.lt.s32.totalorder %s28, 5
          %s544 = scalar_select %p543, %s28, 5
          %s545 = scalar_lea.vmem %s10, %s544
        $region60: #{transformer_forward.1} parent=39 // pred_fallthru
          _
        // Predicated region
        $region61: #{transformer_forward.1} parent=39 // pred_check
          %p546 = pneg %p304
        $region62: #{transformer_forward.1} parent=39 // pred_check_branch
          %548 = sbr.rel (%p546) target = $region64
        $region63: #{transformer_forward.1} parent=39 // pred_region
          %p549 = scmp.lt.s32.totalorder %s28, 5
          %s550 = scalar_select %p549, %s28, 5
          %s551 = smul.addr %s550, 36
          %s552 = smul.addr %s551, 4
          %s553 = scalar_lea.vmem %s11, %s552
        $region64: #{transformer_forward.1} parent=39 // pred_fallthru
          _
        // Predicated region
        $region65: #{transformer_forward.1} parent=39 // pred_check
          %p554 = pneg %p330
        $region66: #{transformer_forward.1} parent=39 // pred_check_branch
          %556 = sbr.rel (%p554) target = $region68
        $region67: #{transformer_forward.1} parent=39 // pred_region
          %p557 = scmp.lt.s32.totalorder %s28, 5
          %s558 = scalar_select %p557, %s28, 5
          %s559 = smul.addr %s558, 3
          %s560 = scalar_lea.vmem %s12, %s559
        $region68: #{transformer_forward.1} parent=39 // pred_fallthru
          _
        // Predicated region
        $region69: #{transformer_forward.1} parent=39 // pred_check
          %p561 = pneg %p356
        $region70: #{transformer_forward.1} parent=39 // pred_check_branch
          %563 = sbr.rel (%p561) target = $region72
        $region71: #{transformer_forward.1} parent=39 // pred_region
          %p564 = scmp.lt.s32.totalorder %s28, 5
          %s565 = scalar_select %p564, %s28, 5
          %s566 = smul.addr %s565, 48
          %s567 = smul.addr %s566, 4
          %s568 = scalar_lea.vmem %s13, %s567
        $region72: #{transformer_forward.1} parent=39 // pred_fallthru
          _
        // Predicated region
        $region73: #{transformer_forward.1} parent=39 // pred_check
          %p569 = pneg %p382
        $region74: #{transformer_forward.1} parent=39 // pred_check_branch
          %571 = sbr.rel (%p569) target = $region76
        $region75: #{transformer_forward.1} parent=39 // pred_region
          %p572 = scmp.lt.s32.totalorder %s28, 5
          %s573 = scalar_select %p572, %s28, 5
          %s574 = scalar_lea.vmem %s14, %s573
        $region76: #{transformer_forward.1} parent=39 // pred_fallthru
          _
        // Predicated region
        $region77: #{transformer_forward.1} parent=39 // pred_check
          %p575 = pneg %p408
        $region78: #{transformer_forward.1} parent=39 // pred_check_branch
          %577 = sbr.rel (%p575) target = $region80
        $region79: #{transformer_forward.1} parent=39 // pred_region
          %p578 = scmp.lt.s32.totalorder %s28, 5
          %s579 = scalar_select %p578, %s28, 5
          %s580 = scalar_lea.vmem %s15, %s579
        $region80: #{transformer_forward.1} parent=39 // pred_fallthru
          _
        // Predicated region
        $region81: #{transformer_forward.1} parent=39 // pred_check
          %p581 = pneg %p434
        $region82: #{transformer_forward.1} parent=39 // pred_check_branch
          %583 = sbr.rel (%p581) target = $region84
        $region83: #{transformer_forward.1} parent=39 // pred_region
          %p584 = scmp.lt.s32.totalorder %s28, 5
          %s585 = scalar_select %p584, %s28, 5
          %s586 = scalar_lea.vmem %s16, %s585
        $region84: #{transformer_forward.1} parent=39 // pred_fallthru
          _
      $region40: #{transformer_forward.1} parent=5 // pred_fallthru
        _
      %p587 = scmp.le.s32.totalorder 1, %s28
      %p588 = scmp.lt.s32.totalorder %s28, 7
      %p589 = pnand %p587, %p588
      %p590 = pneg %p589
      // Predicated region
      $region85: #{transformer_forward.1} parent=5 // pred_check
        _
      $region86: #{transformer_forward.1} parent=5 // pred_check_branch
        %592 = sbr.rel (%p589) target = $region88
      $region87: #{transformer_forward.1} parent=5 // pred_region
        %s593 = ssub.s32 %s28, 1
        %s594 = sand.u32 %s167, 1
        %s595 = scalar_lea.sflag [#allocation6], %s594
        %s596 = sand.u32 %s167, 1
        %s597 = smul.addr %s596, 2304
        %s598 = scalar_lea.vmem [#allocation5], %s597
        // Predicated region
        $region89: #{transformer_forward.1} parent=87 // pred_check
          %p599 = pneg %p180
        $region90: #{transformer_forward.1} parent=87 // pred_check_branch
          %601 = sbr.rel (%p599) target = $region92
        $region91: #{transformer_forward.1} parent=87 // pred_region
          %603 = dma.done %s595, 36864
        $region92: #{transformer_forward.1} parent=87 // pred_fallthru
          _
        %p604 = pneg %p49
        %p605 = pneg %p46
        %p606 = pneg %p70
        %p607 = pneg %p67
        %p608 = pneg %p91
        %p609 = pneg %p88
        %p610 = pneg %p112
        %p611 = pneg %p109
        %p612 = pneg %p133
        %p613 = pneg %p130
        %p614 = pneg %p154
        %p615 = pneg %p151
        %s616 = sand.u32 %s167, 1
        %s617 = scalar_lea.sflag [#allocation6], %s616
        %s618 = sand.u32 %s167, 1
        %s619 = smul.addr %s618, 2304
        %s620 = scalar_lea.vmem [#allocation5], %s619
        %p621 = pneg %p180
        %p622 = pneg %p177
        %p623 = scmp.lt.s32.totalorder %s33, 5
        %s624 = scalar_select %p623, %s33, 5
        %s625 = smul.addr %s624, 256
        %s626 = smul.addr %s625, 4
        %s627 = scalar_lea.vmem %s7, %s626
        %p628 = pneg %p206
        %p629 = pneg %p203
        %p630 = scmp.lt.s32.totalorder %s33, 5
        %s631 = scalar_select %p630, %s33, 5
        %s632 = scalar_lea.vmem %s8, %s631
        %p633 = pneg %p232
        %p634 = pneg %p229
        %p635 = scmp.lt.s32.totalorder %s33, 5
        %s636 = scalar_select %p635, %s33, 5
        %s637 = scalar_lea.vmem %s9, %s636
        %p638 = pneg %p258
        %p639 = pneg %p255
        %p640 = scmp.lt.s32.totalorder %s33, 5
        %s641 = scalar_select %p640, %s33, 5
        %s642 = scalar_lea.vmem %s10, %s641
        %p643 = pneg %p284
        %p644 = pneg %p281
        %p645 = scmp.lt.s32.totalorder %s33, 5
        %s646 = scalar_select %p645, %s33, 5
        %s647 = smul.addr %s646, 36
        %s648 = smul.addr %s647, 4
        %s649 = scalar_lea.vmem %s11, %s648
        %p650 = pneg %p310
        %p651 = pneg %p307
        %p652 = scmp.lt.s32.totalorder %s33, 5
        %s653 = scalar_select %p652, %s33, 5
        %s654 = smul.addr %s653, 3
        %s655 = scalar_lea.vmem %s12, %s654
        %p656 = pneg %p336
        %p657 = pneg %p333
        %p658 = scmp.lt.s32.totalorder %s33, 5
        %s659 = scalar_select %p658, %s33, 5
        %s660 = smul.addr %s659, 48
        %s661 = smul.addr %s660, 4
        %s662 = scalar_lea.vmem %s13, %s661
        %p663 = pneg %p362
        %p664 = pneg %p359
        %p665 = scmp.lt.s32.totalorder %s33, 5
        %s666 = scalar_select %p665, %s33, 5
        %s667 = scalar_lea.vmem %s14, %s666
        %p668 = pneg %p388
        %p669 = pneg %p385
        %p670 = scmp.lt.s32.totalorder %s33, 5
        %s671 = scalar_select %p670, %s33, 5
        %s672 = scalar_lea.vmem %s15, %s671
        %p673 = pneg %p414
        %p674 = pneg %p411
        %p675 = scmp.lt.s32.totalorder %s33, 5
        %s676 = scalar_select %p675, %s33, 5
        %s677 = scalar_lea.vmem %s16, %s676
        %p678 = pneg %p440
        %p679 = pneg %p437
        %p680 = pneg %p461
        %p681 = pneg %p458
        %p682 = scmp.lt.s32.totalorder %s33, 5
        %s683 = scalar_select %p682, %s33, 5
        %s684 = smul.addr %s683, 256
        %s685 = smul.addr %s684, 4
        %s686 = scalar_lea.vmem %s7, %s685
        %p687 = scmp.lt.s32.totalorder %s33, 5
        %s688 = scalar_select %p687, %s33, 5
        %s689 = scalar_lea.vmem %s8, %s688
        %p690 = scmp.lt.s32.totalorder %s33, 5
        %s691 = scalar_select %p690, %s33, 5
        %s692 = scalar_lea.vmem %s9, %s691
        %p693 = scmp.lt.s32.totalorder %s33, 5
        %s694 = scalar_select %p693, %s33, 5
        %s695 = scalar_lea.vmem %s10, %s694
        %p696 = scmp.lt.s32.totalorder %s33, 5
        %s697 = scalar_select %p696, %s33, 5
        %s698 = smul.addr %s697, 36
        %s699 = smul.addr %s698, 4
        %s700 = scalar_lea.vmem %s11, %s699
        %p701 = scmp.lt.s32.totalorder %s33, 5
        %s702 = scalar_select %p701, %s33, 5
        %s703 = smul.addr %s702, 3
        %s704 = scalar_lea.vmem %s12, %s703
        %p705 = scmp.lt.s32.totalorder %s33, 5
        %s706 = scalar_select %p705, %s33, 5
        %s707 = smul.addr %s706, 48
        %s708 = smul.addr %s707, 4
        %s709 = scalar_lea.vmem %s13, %s708
        %p710 = scmp.lt.s32.totalorder %s33, 5
        %s711 = scalar_select %p710, %s33, 5
        %s712 = scalar_lea.vmem %s14, %s711
        %p713 = scmp.lt.s32.totalorder %s33, 5
        %s714 = scalar_select %p713, %s33, 5
        %s715 = scalar_lea.vmem %s15, %s714
        %p716 = scmp.lt.s32.totalorder %s33, 5
        %s717 = scalar_select %p716, %s33, 5
        %s718 = scalar_lea.vmem %s16, %s717
        %p720 = scmp.eq.s32.totalorder %s33, 0
        // Predicated region
        $region93: #{transformer_forward.1} parent=87 // pred_check
          %p721 = pneg %p720
        $region94: #{transformer_forward.1} parent=87 // pred_check_branch
          %723 = sbr.rel (%p721) target = $region96
        $region95: #{transformer_forward.1} parent=87 // pred_region
          %v724 = vld [vmem:[%s0] sm:$0xff]
          %v725 = vld [vmem:[%s0 + $0x8] sm:$0xff]
          %v726 = vld [vmem:[%s0 + $0x10] sm:$0xff]
          %v727 = vld [vmem:[%s0 + $0x18] sm:$0x3]
          %v728 = vmul.f32 %v724, 0.5
          %v729 = vmul.f32 %v725, 0.5
          %v730 = vmul.f32 %v726, 0.5
          %v731 = vmul.f32 %v727, 0.5
          %v732 = vmul.f32 %v724, 0.70710677
          %v733 = vmul.f32 %v725, 0.70710677
          %v734 = vmul.f32 %v726, 0.70710677
          %v735 = vmul.f32 %v727, 0.70710677
          %v736 = vmul.f32 %v732, %v732
          %v737 = vmin.f32 16.0, %v736
          %v738 = vmul.f32 %v737, 2.1237322e-06
          %v739 = vadd.f32 %v738, 0.00028619796
          %v740 = vmul.f32 %v737, %v739
          %v741 = vadd.f32 %v740, 0.0036580483
          %v742 = vmul.f32 %v737, %v741
          %v743 = vadd.f32 %v742, 0.05243302
          %v744 = vmul.f32 %v737, %v743
          %v745 = vadd.f32 %v744, 0.18741608
          %v746 = vmul.f32 %v737, %v745
          %v747 = vadd.f32 %v746, 1.1283791
          %v748 = vmul.f32 %v732, %v747
          %v749 = vmul.f32 %v737, 3.8918573e-05
          %v750 = vadd.f32 %v749, 0.001143296
          %v751 = vmul.f32 %v737, %v750
          %v752 = vadd.f32 %v751, 0.014752088
          %v753 = vmul.f32 %v737, %v752
          %v754 = vadd.f32 %v753, 0.112945676
          %v755 = vmul.f32 %v737, %v754
          %v756 = vadd.f32 %v755, 0.4994258
          %v757 = vmul.f32 %v737, %v756
          %v758 = vadd.f32 %v757, 1.0
          %v759 = vrcp.pop %v758
          %v760 = vmul.f32 %v758, %v759
          %v761 = vsub.f32 1.0, %v760
          %v762 = vmul.f32 %v759, %v761
          %v763 = vadd.f32 %v759, %v762
          %vm764 = vweird.f32 %v758
          %vm765 = vweird.f32 %v759
          %vm766 = vmor %vm764, %vm765
          %v767 = vsel %vm766, %v759, %v763
          %v768 = vand.u32 2147483647, %v758
          %vm769 = vcmp.eq.f32.partialorder %v768, 8.507059e+37
          %v770 = vand.u32 %v758, 2147483648
          %v771 = vor.u32 1.1754944e-38, %v770
          %v772 = vsel %vm769, %v771, %v767
          %v773 = vmul.f32 %v748, %v772
          %v774 = vmin.f32 %v773, 1.0
          %v775 = vmax.f32 %v774, -1.0
          %v776 = vmul.f32 %v733, %v733
          %v777 = vmin.f32 16.0, %v776
          %v778 = vmul.f32 %v777, 2.1237322e-06
          %v779 = vadd.f32 %v778, 0.00028619796
          %v780 = vmul.f32 %v777, %v779
          %v781 = vadd.f32 %v780, 0.0036580483
          %v782 = vmul.f32 %v777, %v781
          %v783 = vadd.f32 %v782, 0.05243302
          %v784 = vmul.f32 %v777, %v783
          %v785 = vadd.f32 %v784, 0.18741608
          %v786 = vmul.f32 %v777, %v785
          %v787 = vadd.f32 %v786, 1.1283791
          %v788 = vmul.f32 %v733, %v787
          %v789 = vmul.f32 %v777, 3.8918573e-05
          %v790 = vadd.f32 %v789, 0.001143296
          %v791 = vmul.f32 %v777, %v790
          %v792 = vadd.f32 %v791, 0.014752088
          %v793 = vmul.f32 %v777, %v792
          %v794 = vadd.f32 %v793, 0.112945676
          %v795 = vmul.f32 %v777, %v794
          %v796 = vadd.f32 %v795, 0.4994258
          %v797 = vmul.f32 %v777, %v796
          %v798 = vadd.f32 %v797, 1.0
          %v799 = vrcp.pop %v798
          %v800 = vmul.f32 %v798, %v799
          %v801 = vsub.f32 1.0, %v800
          %v802 = vmul.f32 %v799, %v801
          %v803 = vadd.f32 %v799, %v802
          %vm804 = vweird.f32 %v798
          %vm805 = vweird.f32 %v799
          %vm806 = vmor %vm804, %vm805
          %v807 = vsel %vm806, %v799, %v803
          %v808 = vand.u32 2147483647, %v798
          %vm809 = vcmp.eq.f32.partialorder %v808, 8.507059e+37
          %v810 = vand.u32 %v798, 2147483648
          %v811 = vor.u32 1.1754944e-38, %v810
          %v812 = vsel %vm809, %v811, %v807
          %v813 = vmul.f32 %v788, %v812
          %v814 = vmin.f32 %v813, 1.0
          %v815 = vmax.f32 %v814, -1.0
          %v816 = vmul.f32 %v734, %v734
          %v817 = vmin.f32 16.0, %v816
          %v818 = vmul.f32 %v817, 2.1237322e-06
          %v819 = vadd.f32 %v818, 0.00028619796
          %v820 = vmul.f32 %v817, %v819
          %v821 = vadd.f32 %v820, 0.0036580483
          %v822 = vmul.f32 %v817, %v821
          %v823 = vadd.f32 %v822, 0.05243302
          %v824 = vmul.f32 %v817, %v823
          %v825 = vadd.f32 %v824, 0.18741608
          %v826 = vmul.f32 %v817, %v825
          %v827 = vadd.f32 %v826, 1.1283791
          %v828 = vmul.f32 %v734, %v827
          %v829 = vmul.f32 %v817, 3.8918573e-05
          %v830 = vadd.f32 %v829, 0.001143296
          %v831 = vmul.f32 %v817, %v830
          %v832 = vadd.f32 %v831, 0.014752088
          %v833 = vmul.f32 %v817, %v832
          %v834 = vadd.f32 %v833, 0.112945676
          %v835 = vmul.f32 %v817, %v834
          %v836 = vadd.f32 %v835, 0.4994258
          %v837 = vmul.f32 %v817, %v836
          %v838 = vadd.f32 %v837, 1.0
          %v839 = vrcp.pop %v838
          %v840 = vmul.f32 %v838, %v839
          %v841 = vsub.f32 1.0, %v840
          %v842 = vmul.f32 %v839, %v841
          %v843 = vadd.f32 %v839, %v842
          %vm844 = vweird.f32 %v838
          %vm845 = vweird.f32 %v839
          %vm846 = vmor %vm844, %vm845
          %v847 = vsel %vm846, %v839, %v843
          %v848 = vand.u32 2147483647, %v838
          %vm849 = vcmp.eq.f32.partialorder %v848, 8.507059e+37
          %v850 = vand.u32 %v838, 2147483648
          %v851 = vor.u32 1.1754944e-38, %v850
          %v852 = vsel %vm849, %v851, %v847
          %v853 = vmul.f32 %v828, %v852
          %v854 = vmin.f32 %v853, 1.0
          %v855 = vmax.f32 %v854, -1.0
          %v856 = vmul.f32 %v735, %v735
          %v857 = vmin.f32 16.0, %v856
          %v858 = vmul.f32 %v857, 2.1237322e-06
          %v859 = vadd.f32 %v858, 0.00028619796
          %v860 = vmul.f32 %v857, %v859
          %v861 = vadd.f32 %v860, 0.0036580483
          %v862 = vmul.f32 %v857, %v861
          %v863 = vadd.f32 %v862, 0.05243302
          %v864 = vmul.f32 %v857, %v863
          %v865 = vadd.f32 %v864, 0.18741608
          %v866 = vmul.f32 %v857, %v865
          %v867 = vadd.f32 %v866, 1.1283791
          %v868 = vmul.f32 %v735, %v867
          %v869 = vmul.f32 %v857, 3.8918573e-05
          %v870 = vadd.f32 %v869, 0.001143296
          %v871 = vmul.f32 %v857, %v870
          %v872 = vadd.f32 %v871, 0.014752088
          %v873 = vmul.f32 %v857, %v872
          %v874 = vadd.f32 %v873, 0.112945676
          %v875 = vmul.f32 %v857, %v874
          %v876 = vadd.f32 %v875, 0.4994258
          %v877 = vmul.f32 %v857, %v876
          %v878 = vadd.f32 %v877, 1.0
          %v879 = vrcp.pop %v878
          %v880 = vmul.f32 %v878, %v879
          %v881 = vsub.f32 1.0, %v880
          %v882 = vmul.f32 %v879, %v881
          %v883 = vadd.f32 %v879, %v882
          %vm884 = vweird.f32 %v878
          %vm885 = vweird.f32 %v879
          %vm886 = vmor %vm884, %vm885
          %v887 = vsel %vm886, %v879, %v883
          %v888 = vand.u32 2147483647, %v878
          %vm889 = vcmp.eq.f32.partialorder %v888, 8.507059e+37
          %v890 = vand.u32 %v878, 2147483648
          %v891 = vor.u32 1.1754944e-38, %v890
          %v892 = vsel %vm889, %v891, %v887
          %v893 = vmul.f32 %v868, %v892
          %v894 = vmin.f32 %v893, 1.0
          %v895 = vmax.f32 %v894, -1.0
          %v896 = vadd.f32 %v775, 1.0
          %v897 = vadd.f32 %v815, 1.0
          %v898 = vadd.f32 %v855, 1.0
          %v899 = vadd.f32 %v895, 1.0
          %v900 = vmul.f32 %v728, %v896
          %v901 = vmul.f32 %v729, %v897
          %v902 = vmul.f32 %v730, %v898
          %v903 = vmul.f32 %v731, %v899
          %v904 = vld [vmem:[%s1] sm:$0xff]
          %v905 = vld [vmem:[%s1 + $0x8] sm:$0xff]
          %v906 = vld [vmem:[%s1 + $0x10] sm:$0xff]
          %v907 = vld [vmem:[%s1 + $0x18] sm:$0x3]
          %v908 = vadd.f32 %v900, %v904
          %v909 = vadd.f32 %v901, %v905
          %v910 = vadd.f32 %v902, %v906
          %v911 = vadd.f32 %v903, %v907
          %vm912 = vcmask 785408
          %913 = vst.msk [vmem:[#allocation2] sm:$0xff] %vm912, %v908
          %914 = vst.msk [vmem:[#allocation2 + $0x8] sm:$0xff] %vm912, %v909
          %915 = vst.msk [vmem:[#allocation2 + $0x10] sm:$0xff] %vm912, %v910
          %vm916 = vcmask 779264
          %917 = vst.msk [vmem:[#allocation2 + $0x18] sm:$0x3] %vm916, %v911
        $region96: #{transformer_forward.1} parent=87 // pred_fallthru
          _
        %v918 = vld [vmem:[#allocation2] sm:$0xff]
        %v919 = vld [vmem:[#allocation2 + $0x8] sm:$0xff]
        %v920 = vld [vmem:[#allocation2 + $0x10] sm:$0xff]
        %v921 = vld [vmem:[#allocation2 + $0x18] sm:$0x3]
        %v922 = vpack.c.bf16 %v919, %v918
        %v923 = vpack.c.bf16 %v921, %v920
        %v924 = vld [vmem:[%s598] sm:$0xff]
        %v925 = vld [vmem:[%s598 + $0x8] sm:$0xff]
        %v926 = vld [vmem:[%s598 + $0x10] sm:$0xff]
        %v927 = vld [vmem:[%s598 + $0x18] sm:$0xff]
        %v928 = vld [vmem:[%s598 + $0x20] sm:$0xff]
        %v929 = vld [vmem:[%s598 + $0x28] sm:$0xff]
        %v930 = vld [vmem:[%s598 + $0x30] sm:$0xff]
        %v931 = vld [vmem:[%s598 + $0x38] sm:$0xff]
        %v932 = vld [vmem:[%s598 + $0x40] sm:$0xff]
        %v933 = vld [vmem:[%s598 + $0x48] sm:$0xff]
        %v934 = vld [vmem:[%s598 + $0x50] sm:$0xff]
        %v935 = vld [vmem:[%s598 + $0x58] sm:$0xff]
        %v936 = vld [vmem:[%s598 + $0x60] sm:$0xff]
        %v937 = vld [vmem:[%s598 + $0x68] sm:$0xff]
        %v938 = vld [vmem:[%s598 + $0x70] sm:$0xff]
        %v939 = vld [vmem:[%s598 + $0x78] sm:$0xff]
        %v940 = vld [vmem:[%s598 + $0x80] sm:$0xff]
        %v941 = vld [vmem:[%s598 + $0x88] sm:$0xff]
        %v942 = vld [vmem:[%s598 + $0x90] sm:$0xff]
        %v943 = vld [vmem:[%s598 + $0x98] sm:$0xff]
        %v944 = vld [vmem:[%s598 + $0xa0] sm:$0xff]
        %v945 = vld [vmem:[%s598 + $0xa8] sm:$0xff]
        %v946 = vld [vmem:[%s598 + $0xb0] sm:$0xff]
        %v947 = vld [vmem:[%s598 + $0xb8] sm:$0xff]
        %v948 = vld [vmem:[%s598 + $0xc0] sm:$0xff]
        %v949 = vld [vmem:[%s598 + $0xc8] sm:$0xff]
        %v950 = vld [vmem:[%s598 + $0xd0] sm:$0xff]
        %v951 = vld [vmem:[%s598 + $0xd8] sm:$0xff]
        %v952 = vld [vmem:[%s598 + $0xe0] sm:$0xff]
        %v953 = vld [vmem:[%s598 + $0xe8] sm:$0xff]
        %v954 = vld [vmem:[%s598 + $0xf0] sm:$0xff]
        %v955 = vld [vmem:[%s598 + $0xf8] sm:$0xff]
        %v956 = vld [vmem:[%s598 + $0x100] sm:$0xff]
        %v957 = vld [vmem:[%s598 + $0x108] sm:$0xff]
        %v958 = vld [vmem:[%s598 + $0x110] sm:$0xff]
        %v959 = vld [vmem:[%s598 + $0x118] sm:$0xff]
        %v960 = vld [vmem:[%s598 + $0x120] sm:$0xff]
        %v961 = vld [vmem:[%s598 + $0x128] sm:$0xff]
        %v962 = vld [vmem:[%s598 + $0x130] sm:$0xff]
        %v963 = vld [vmem:[%s598 + $0x138] sm:$0xff]
        %v964 = vld [vmem:[%s598 + $0x140] sm:$0xff]
        %v965 = vld [vmem:[%s598 + $0x148] sm:$0xff]
        %v966 = vld [vmem:[%s598 + $0x150] sm:$0xff]
        %v967 = vld [vmem:[%s598 + $0x158] sm:$0xff]
        %v968 = vld [vmem:[%s598 + $0x160] sm:$0xff]
        %v969 = vld [vmem:[%s598 + $0x168] sm:$0xff]
        %v970 = vld [vmem:[%s598 + $0x170] sm:$0xff]
        %v971 = vld [vmem:[%s598 + $0x178] sm:$0xff]
        %v972 = vld [vmem:[%s598 + $0x180] sm:$0xff]
        %v973 = vld [vmem:[%s598 + $0x188] sm:$0xff]
        %v974 = vld [vmem:[%s598 + $0x190] sm:$0xff]
        %v975 = vld [vmem:[%s598 + $0x198] sm:$0xff]
        %v976 = vld [vmem:[%s598 + $0x1a0] sm:$0xff]
        %v977 = vld [vmem:[%s598 + $0x1a8] sm:$0xff]
        %v978 = vld [vmem:[%s598 + $0x1b0] sm:$0xff]
        %v979 = vld [vmem:[%s598 + $0x1b8] sm:$0xff]
        %v980 = vld [vmem:[%s598 + $0x1c0] sm:$0xff]
        %v981 = vld [vmem:[%s598 + $0x1c8] sm:$0xff]
        %v982 = vld [vmem:[%s598 + $0x1d0] sm:$0xff]
        %v983 = vld [vmem:[%s598 + $0x1d8] sm:$0xff]
        %v984 = vld [vmem:[%s598 + $0x1e0] sm:$0xff]
        %v985 = vld [vmem:[%s598 + $0x1e8] sm:$0xff]
        %v986 = vld [vmem:[%s598 + $0x1f0] sm:$0xff]
        %v987 = vld [vmem:[%s598 + $0x1f8] sm:$0xff]
        %v988 = vld [vmem:[%s598 + $0x200] sm:$0xff]
        %v989 = vld [vmem:[%s598 + $0x208] sm:$0xff]
        %v990 = vld [vmem:[%s598 + $0x210] sm:$0xff]
        %v991 = vld [vmem:[%s598 + $0x218] sm:$0xff]
        %v992 = vld [vmem:[%s598 + $0x220] sm:$0xff]
        %v993 = vld [vmem:[%s598 + $0x228] sm:$0xff]
        %v994 = vld [vmem:[%s598 + $0x230] sm:$0xff]
        %v995 = vld [vmem:[%s598 + $0x238] sm:$0xff]
        %v996 = vld [vmem:[%s598 + $0x240] sm:$0xff]
        %v997 = vld [vmem:[%s598 + $0x248] sm:$0xff]
        %v998 = vld [vmem:[%s598 + $0x250] sm:$0xff]
        %v999 = vld [vmem:[%s598 + $0x258] sm:$0xff]
        %v1000 = vld [vmem:[%s598 + $0x260] sm:$0xff]
        %v1001 = vld [vmem:[%s598 + $0x268] sm:$0xff]
        %v1002 = vld [vmem:[%s598 + $0x270] sm:$0xff]
        %v1003 = vld [vmem:[%s598 + $0x278] sm:$0xff]
        %v1004 = vld [vmem:[%s598 + $0x280] sm:$0xff]
        %v1005 = vld [vmem:[%s598 + $0x288] sm:$0xff]
        %v1006 = vld [vmem:[%s598 + $0x290] sm:$0xff]
        %v1007 = vld [vmem:[%s598 + $0x298] sm:$0xff]
        %v1008 = vld [vmem:[%s598 + $0x2a0] sm:$0xff]
        %v1009 = vld [vmem:[%s598 + $0x2a8] sm:$0xff]
        %v1010 = vld [vmem:[%s598 + $0x2b0] sm:$0xff]
        %v1011 = vld [vmem:[%s598 + $0x2b8] sm:$0xff]
        %v1012 = vld [vmem:[%s598 + $0x2c0] sm:$0xff]
        %v1013 = vld [vmem:[%s598 + $0x2c8] sm:$0xff]
        %v1014 = vld [vmem:[%s598 + $0x2d0] sm:$0xff]
        %v1015 = vld [vmem:[%s598 + $0x2d8] sm:$0xff]
        %v1016 = vld [vmem:[%s598 + $0x2e0] sm:$0xff]
        %v1017 = vld [vmem:[%s598 + $0x2e8] sm:$0xff]
        %v1018 = vld [vmem:[%s598 + $0x2f0] sm:$0xff]
        %v1019 = vld [vmem:[%s598 + $0x2f8] sm:$0xff]
        %v1020 = vld [vmem:[%s598 + $0x300] sm:$0xff]
        %v1021 = vld [vmem:[%s598 + $0x308] sm:$0xff]
        %v1022 = vld [vmem:[%s598 + $0x310] sm:$0xff]
        %v1023 = vld [vmem:[%s598 + $0x318] sm:$0xff]
        %v1024 = vld [vmem:[%s598 + $0x320] sm:$0xff]
        %v1025 = vld [vmem:[%s598 + $0x328] sm:$0xff]
        %v1026 = vld [vmem:[%s598 + $0x330] sm:$0xff]
        %v1027 = vld [vmem:[%s598 + $0x338] sm:$0xff]
        %v1028 = vld [vmem:[%s598 + $0x340] sm:$0xff]
        %v1029 = vld [vmem:[%s598 + $0x348] sm:$0xff]
        %v1030 = vld [vmem:[%s598 + $0x350] sm:$0xff]
        %v1031 = vld [vmem:[%s598 + $0x358] sm:$0xff]
        %v1032 = vld [vmem:[%s598 + $0x360] sm:$0xff]
        %v1033 = vld [vmem:[%s598 + $0x368] sm:$0xff]
        %v1034 = vld [vmem:[%s598 + $0x370] sm:$0xff]
        %v1035 = vld [vmem:[%s598 + $0x378] sm:$0xff]
        %v1036 = vld [vmem:[%s598 + $0x380] sm:$0xff]
        %v1037 = vld [vmem:[%s598 + $0x388] sm:$0xff]
        %v1038 = vld [vmem:[%s598 + $0x390] sm:$0xff]
        %v1039 = vld [vmem:[%s598 + $0x398] sm:$0xff]
        %v1040 = vld [vmem:[%s598 + $0x3a0] sm:$0xff]
        %v1041 = vld [vmem:[%s598 + $0x3a8] sm:$0xff]
        %v1042 = vld [vmem:[%s598 + $0x3b0] sm:$0xff]
        %v1043 = vld [vmem:[%s598 + $0x3b8] sm:$0xff]
        %v1044 = vld [vmem:[%s598 + $0x3c0] sm:$0xff]
        %v1045 = vld [vmem:[%s598 + $0x3c8] sm:$0xff]
        %v1046 = vld [vmem:[%s598 + $0x3d0] sm:$0xff]
        %v1047 = vld [vmem:[%s598 + $0x3d8] sm:$0xff]
        %v1048 = vld [vmem:[%s598 + $0x3e0] sm:$0xff]
        %v1049 = vld [vmem:[%s598 + $0x3e8] sm:$0xff]
        %v1050 = vld [vmem:[%s598 + $0x3f0] sm:$0xff]
        %v1051 = vld [vmem:[%s598 + $0x3f8] sm:$0xff]
        %v1052 = vld [vmem:[%s598 + $0x400] sm:$0xff]
        %v1053 = vld [vmem:[%s598 + $0x408] sm:$0xff]
        %v1054 = vld [vmem:[%s598 + $0x410] sm:$0xff]
        %v1055 = vld [vmem:[%s598 + $0x418] sm:$0xff]
        %v1056 = vld [vmem:[%s598 + $0x420] sm:$0xff]
        %v1057 = vld [vmem:[%s598 + $0x428] sm:$0xff]
        %v1058 = vld [vmem:[%s598 + $0x430] sm:$0xff]
        %v1059 = vld [vmem:[%s598 + $0x438] sm:$0xff]
        %v1060 = vld [vmem:[%s598 + $0x440] sm:$0xff]
        %v1061 = vld [vmem:[%s598 + $0x448] sm:$0xff]
        %v1062 = vld [vmem:[%s598 + $0x450] sm:$0xff]
        %v1063 = vld [vmem:[%s598 + $0x458] sm:$0xff]
        %v1064 = vld [vmem:[%s598 + $0x460] sm:$0xff]
        %v1065 = vld [vmem:[%s598 + $0x468] sm:$0xff]
        %v1066 = vld [vmem:[%s598 + $0x470] sm:$0xff]
        %v1067 = vld [vmem:[%s598 + $0x478] sm:$0xff]
        %v1068 = vld [vmem:[%s598 + $0x480] sm:$0xff]
        %v1069 = vld [vmem:[%s598 + $0x488] sm:$0xff]
        %v1070 = vld [vmem:[%s598 + $0x490] sm:$0xff]
        %v1071 = vld [vmem:[%s598 + $0x498] sm:$0xff]
        %v1072 = vld [vmem:[%s598 + $0x4a0] sm:$0xff]
        %v1073 = vld [vmem:[%s598 + $0x4a8] sm:$0xff]
        %v1074 = vld [vmem:[%s598 + $0x4b0] sm:$0xff]
        %v1075 = vld [vmem:[%s598 + $0x4b8] sm:$0xff]
        %v1076 = vld [vmem:[%s598 + $0x4c0] sm:$0xff]
        %v1077 = vld [vmem:[%s598 + $0x4c8] sm:$0xff]
        %v1078 = vld [vmem:[%s598 + $0x4d0] sm:$0xff]
        %v1079 = vld [vmem:[%s598 + $0x4d8] sm:$0xff]
        %v1080 = vld [vmem:[%s598 + $0x4e0] sm:$0xff]
        %v1081 = vld [vmem:[%s598 + $0x4e8] sm:$0xff]
        %v1082 = vld [vmem:[%s598 + $0x4f0] sm:$0xff]
        %v1083 = vld [vmem:[%s598 + $0x4f8] sm:$0xff]
        %v1084 = vld [vmem:[%s598 + $0x500] sm:$0xff]
        %v1085 = vld [vmem:[%s598 + $0x508] sm:$0xff]
        %v1086 = vld [vmem:[%s598 + $0x510] sm:$0xff]
        %v1087 = vld [vmem:[%s598 + $0x518] sm:$0xff]
        %v1088 = vld [vmem:[%s598 + $0x520] sm:$0xff]
        %v1089 = vld [vmem:[%s598 + $0x528] sm:$0xff]
        %v1090 = vld [vmem:[%s598 + $0x530] sm:$0xff]
        %v1091 = vld [vmem:[%s598 + $0x538] sm:$0xff]
        %v1092 = vld [vmem:[%s598 + $0x540] sm:$0xff]
        %v1093 = vld [vmem:[%s598 + $0x548] sm:$0xff]
        %v1094 = vld [vmem:[%s598 + $0x550] sm:$0xff]
        %v1095 = vld [vmem:[%s598 + $0x558] sm:$0xff]
        %v1096 = vld [vmem:[%s598 + $0x560] sm:$0xff]
        %v1097 = vld [vmem:[%s598 + $0x568] sm:$0xff]
        %v1098 = vld [vmem:[%s598 + $0x570] sm:$0xff]
        %v1099 = vld [vmem:[%s598 + $0x578] sm:$0xff]
        %v1100 = vld [vmem:[%s598 + $0x580] sm:$0xff]
        %v1101 = vld [vmem:[%s598 + $0x588] sm:$0xff]
        %v1102 = vld [vmem:[%s598 + $0x590] sm:$0xff]
        %v1103 = vld [vmem:[%s598 + $0x598] sm:$0xff]
        %v1104 = vld [vmem:[%s598 + $0x5a0] sm:$0xff]
        %v1105 = vld [vmem:[%s598 + $0x5a8] sm:$0xff]
        %v1106 = vld [vmem:[%s598 + $0x5b0] sm:$0xff]
        %v1107 = vld [vmem:[%s598 + $0x5b8] sm:$0xff]
        %v1108 = vld [vmem:[%s598 + $0x5c0] sm:$0xff]
        %v1109 = vld [vmem:[%s598 + $0x5c8] sm:$0xff]
        %v1110 = vld [vmem:[%s598 + $0x5d0] sm:$0xff]
        %v1111 = vld [vmem:[%s598 + $0x5d8] sm:$0xff]
        %v1112 = vld [vmem:[%s598 + $0x5e0] sm:$0xff]
        %v1113 = vld [vmem:[%s598 + $0x5e8] sm:$0xff]
        %v1114 = vld [vmem:[%s598 + $0x5f0] sm:$0xff]
        %v1115 = vld [vmem:[%s598 + $0x5f8] sm:$0xff]
        %v1116 = vld [vmem:[%s598 + $0x600] sm:$0xff]
        %v1117 = vld [vmem:[%s598 + $0x608] sm:$0xff]
        %v1118 = vld [vmem:[%s598 + $0x610] sm:$0xff]
        %v1119 = vld [vmem:[%s598 + $0x618] sm:$0xff]
        %v1120 = vld [vmem:[%s598 + $0x620] sm:$0xff]
        %v1121 = vld [vmem:[%s598 + $0x628] sm:$0xff]
        %v1122 = vld [vmem:[%s598 + $0x630] sm:$0xff]
        %v1123 = vld [vmem:[%s598 + $0x638] sm:$0xff]
        %v1124 = vld [vmem:[%s598 + $0x640] sm:$0xff]
        %v1125 = vld [vmem:[%s598 + $0x648] sm:$0xff]
        %v1126 = vld [vmem:[%s598 + $0x650] sm:$0xff]
        %v1127 = vld [vmem:[%s598 + $0x658] sm:$0xff]
        %v1128 = vld [vmem:[%s598 + $0x660] sm:$0xff]
        %v1129 = vld [vmem:[%s598 + $0x668] sm:$0xff]
        %v1130 = vld [vmem:[%s598 + $0x670] sm:$0xff]
        %v1131 = vld [vmem:[%s598 + $0x678] sm:$0xff]
        %v1132 = vld [vmem:[%s598 + $0x680] sm:$0xff]
        %v1133 = vld [vmem:[%s598 + $0x688] sm:$0xff]
        %v1134 = vld [vmem:[%s598 + $0x690] sm:$0xff]
        %v1135 = vld [vmem:[%s598 + $0x698] sm:$0xff]
        %v1136 = vld [vmem:[%s598 + $0x6a0] sm:$0xff]
        %v1137 = vld [vmem:[%s598 + $0x6a8] sm:$0xff]
        %v1138 = vld [vmem:[%s598 + $0x6b0] sm:$0xff]
        %v1139 = vld [vmem:[%s598 + $0x6b8] sm:$0xff]
        %v1140 = vld [vmem:[%s598 + $0x6c0] sm:$0xff]
        %v1141 = vld [vmem:[%s598 + $0x6c8] sm:$0xff]
        %v1142 = vld [vmem:[%s598 + $0x6d0] sm:$0xff]
        %v1143 = vld [vmem:[%s598 + $0x6d8] sm:$0xff]
        %v1144 = vld [vmem:[%s598 + $0x6e0] sm:$0xff]
        %v1145 = vld [vmem:[%s598 + $0x6e8] sm:$0xff]
        %v1146 = vld [vmem:[%s598 + $0x6f0] sm:$0xff]
        %v1147 = vld [vmem:[%s598 + $0x6f8] sm:$0xff]
        %v1148 = vld [vmem:[%s598 + $0x700] sm:$0xff]
        %v1149 = vld [vmem:[%s598 + $0x708] sm:$0xff]
        %v1150 = vld [vmem:[%s598 + $0x710] sm:$0xff]
        %v1151 = vld [vmem:[%s598 + $0x718] sm:$0xff]
        %v1152 = vld [vmem:[%s598 + $0x720] sm:$0xff]
        %v1153 = vld [vmem:[%s598 + $0x728] sm:$0xff]
        %v1154 = vld [vmem:[%s598 + $0x730] sm:$0xff]
        %v1155 = vld [vmem:[%s598 + $0x738] sm:$0xff]
        %v1156 = vld [vmem:[%s598 + $0x740] sm:$0xff]
        %v1157 = vld [vmem:[%s598 + $0x748] sm:$0xff]
        %v1158 = vld [vmem:[%s598 + $0x750] sm:$0xff]
        %v1159 = vld [vmem:[%s598 + $0x758] sm:$0xff]
        %v1160 = vld [vmem:[%s598 + $0x760] sm:$0xff]
        %v1161 = vld [vmem:[%s598 + $0x768] sm:$0xff]
        %v1162 = vld [vmem:[%s598 + $0x770] sm:$0xff]
        %v1163 = vld [vmem:[%s598 + $0x778] sm:$0xff]
        %v1164 = vld [vmem:[%s598 + $0x780] sm:$0xff]
        %v1165 = vld [vmem:[%s598 + $0x788] sm:$0xff]
        %v1166 = vld [vmem:[%s598 + $0x790] sm:$0xff]
        %v1167 = vld [vmem:[%s598 + $0x798] sm:$0xff]
        %v1168 = vld [vmem:[%s598 + $0x7a0] sm:$0xff]
        %v1169 = vld [vmem:[%s598 + $0x7a8] sm:$0xff]
        %v1170 = vld [vmem:[%s598 + $0x7b0] sm:$0xff]
        %v1171 = vld [vmem:[%s598 + $0x7b8] sm:$0xff]
        %v1172 = vld [vmem:[%s598 + $0x7c0] sm:$0xff]
        %v1173 = vld [vmem:[%s598 + $0x7c8] sm:$0xff]
        %v1174 = vld [vmem:[%s598 + $0x7d0] sm:$0xff]
        %v1175 = vld [vmem:[%s598 + $0x7d8] sm:$0xff]
        %v1176 = vld [vmem:[%s598 + $0x7e0] sm:$0xff]
        %v1177 = vld [vmem:[%s598 + $0x7e8] sm:$0xff]
        %v1178 = vld [vmem:[%s598 + $0x7f0] sm:$0xff]
        %v1179 = vld [vmem:[%s598 + $0x7f8] sm:$0xff]
        %v1180 = vld [vmem:[%s598 + $0x800] sm:$0xff]
        %v1181 = vld [vmem:[%s598 + $0x808] sm:$0xff]
        %v1182 = vld [vmem:[%s598 + $0x810] sm:$0xff]
        %v1183 = vld [vmem:[%s598 + $0x818] sm:$0xff]
        %v1184 = vld [vmem:[%s598 + $0x820] sm:$0xff]
        %v1185 = vld [vmem:[%s598 + $0x828] sm:$0xff]
        %v1186 = vld [vmem:[%s598 + $0x830] sm:$0xff]
        %v1187 = vld [vmem:[%s598 + $0x838] sm:$0xff]
        %v1188 = vld [vmem:[%s598 + $0x840] sm:$0xff]
        %v1189 = vld [vmem:[%s598 + $0x848] sm:$0xff]
        %v1190 = vld [vmem:[%s598 + $0x850] sm:$0xff]
        %v1191 = vld [vmem:[%s598 + $0x858] sm:$0xff]
        %v1192 = vld [vmem:[%s598 + $0x860] sm:$0xff]
        %v1193 = vld [vmem:[%s598 + $0x868] sm:$0xff]
        %v1194 = vld [vmem:[%s598 + $0x870] sm:$0xff]
        %v1195 = vld [vmem:[%s598 + $0x878] sm:$0xff]
        %v1196 = vld [vmem:[%s598 + $0x880] sm:$0xff]
        %v1197 = vld [vmem:[%s598 + $0x888] sm:$0xff]
        %v1198 = vld [vmem:[%s598 + $0x890] sm:$0xff]
        %v1199 = vld [vmem:[%s598 + $0x898] sm:$0xff]
        %v1200 = vld [vmem:[%s598 + $0x8a0] sm:$0xff]
        %v1201 = vld [vmem:[%s598 + $0x8a8] sm:$0xff]
        %v1202 = vld [vmem:[%s598 + $0x8b0] sm:$0xff]
        %v1203 = vld [vmem:[%s598 + $0x8b8] sm:$0xff]
        %v1204 = vld [vmem:[%s598 + $0x8c0] sm:$0xff]
        %v1205 = vld [vmem:[%s598 + $0x8c8] sm:$0xff]
        %v1206 = vld [vmem:[%s598 + $0x8d0] sm:$0xff]
        %v1207 = vld [vmem:[%s598 + $0x8d8] sm:$0xff]
        %v1208 = vld [vmem:[%s598 + $0x8e0] sm:$0xff]
        %v1209 = vld [vmem:[%s598 + $0x8e8] sm:$0xff]
        %v1210 = vld [vmem:[%s598 + $0x8f0] sm:$0xff]
        %v1211 = vld [vmem:[%s598 + $0x8f8] sm:$0xff]
        %v1500 = vunpack.c.l.b16 %v924
        %v1501 = vunpack.c.h.b16 %v924
        %v1502 = vunpack.c.l.b16 %v925
        %v1503 = vunpack.c.h.b16 %v925
        %v1504 = vunpack.c.l.b16 %v926
        %v1505 = vunpack.c.h.b16 %v926
        %v1506 = vunpack.c.l.b16 %v927
        %v1507 = vunpack.c.h.b16 %v927
        %v1508 = vunpack.c.l.b16 %v928
        %v1509 = vunpack.c.h.b16 %v928
        %v1510 = vunpack.c.l.b16 %v929
        %v1511 = vunpack.c.h.b16 %v929
        %v1512 = vunpack.c.l.b16 %v930
        %v1513 = vunpack.c.h.b16 %v930
        %v1514 = vunpack.c.l.b16 %v931
        %v1515 = vunpack.c.h.b16 %v931
        %v1516 = vunpack.c.l.b16 %v932
        %v1517 = vunpack.c.h.b16 %v932
        %v1518 = vunpack.c.l.b16 %v933
        %v1519 = vunpack.c.h.b16 %v933
        %v1520 = vunpack.c.l.b16 %v934
        %v1521 = vunpack.c.h.b16 %v934
        %v1522 = vunpack.c.l.b16 %v935
        %v1523 = vunpack.c.h.b16 %v935
        %v1524 = vunpack.c.l.b16 %v936
        %v1525 = vunpack.c.h.b16 %v936
        %v1526 = vunpack.c.l.b16 %v937
        %v1527 = vunpack.c.h.b16 %v937
        %v1528 = vunpack.c.l.b16 %v938
        %v1529 = vunpack.c.h.b16 %v938
        %v1530 = vunpack.c.l.b16 %v939
        %v1531 = vunpack.c.h.b16 %v939
        %v1532 = vunpack.c.l.b16 %v940
        %v1533 = vunpack.c.h.b16 %v940
        %v1534 = vunpack.c.l.b16 %v941
        %v1535 = vunpack.c.h.b16 %v941
        %v1536 = vunpack.c.l.b16 %v942
        %v1537 = vunpack.c.h.b16 %v942
        %v1538 = vunpack.c.l.b16 %v943
        %v1539 = vunpack.c.h.b16 %v943
        %v1540 = vunpack.c.l.b16 %v944
        %v1541 = vunpack.c.h.b16 %v944
        %v1542 = vunpack.c.l.b16 %v945
        %v1543 = vunpack.c.h.b16 %v945
        %v1544 = vunpack.c.l.b16 %v946
        %v1545 = vunpack.c.h.b16 %v946
        %v1546 = vunpack.c.l.b16 %v947
        %v1547 = vunpack.c.h.b16 %v947
        %v1548 = vunpack.c.l.b16 %v948
        %v1549 = vunpack.c.h.b16 %v948
        %v1550 = vunpack.c.l.b16 %v949
        %v1551 = vunpack.c.h.b16 %v949
        %v1552 = vunpack.c.l.b16 %v950
        %v1553 = vunpack.c.h.b16 %v950
        %v1554 = vunpack.c.l.b16 %v951
        %v1555 = vunpack.c.h.b16 %v951
        %v1556 = vunpack.c.l.b16 %v952
        %v1557 = vunpack.c.h.b16 %v952
        %v1558 = vunpack.c.l.b16 %v953
        %v1559 = vunpack.c.h.b16 %v953
        %v1560 = vunpack.c.l.b16 %v954
        %v1561 = vunpack.c.h.b16 %v954
        %v1562 = vunpack.c.l.b16 %v955
        %v1563 = vunpack.c.h.b16 %v955
        %v1564 = vunpack.c.l.b16 %v956
        %v1565 = vunpack.c.h.b16 %v956
        %v1566 = vunpack.c.l.b16 %v957
        %v1567 = vunpack.c.h.b16 %v957
        %v1568 = vunpack.c.l.b16 %v958
        %v1569 = vunpack.c.h.b16 %v958
        %v1570 = vunpack.c.l.b16 %v959
        %v1571 = vunpack.c.h.b16 %v959
        %v1572 = vunpack.c.l.b16 %v960
        %v1573 = vunpack.c.h.b16 %v960
        %v1574 = vunpack.c.l.b16 %v961
        %v1575 = vunpack.c.h.b16 %v961
        %v1576 = vunpack.c.l.b16 %v962
        %v1577 = vunpack.c.h.b16 %v962
        %v1578 = vunpack.c.l.b16 %v963
        %v1579 = vunpack.c.h.b16 %v963
        %v1580 = vunpack.c.l.b16 %v964
        %v1581 = vunpack.c.h.b16 %v964
        %v1582 = vunpack.c.l.b16 %v965
        %v1583 = vunpack.c.h.b16 %v965
        %v1584 = vunpack.c.l.b16 %v966
        %v1585 = vunpack.c.h.b16 %v966
        %v1586 = vunpack.c.l.b16 %v967
        %v1587 = vunpack.c.h.b16 %v967
        %v1588 = vunpack.c.l.b16 %v968
        %v1589 = vunpack.c.h.b16 %v968
        %v1590 = vunpack.c.l.b16 %v969
        %v1591 = vunpack.c.h.b16 %v969
        %v1592 = vunpack.c.l.b16 %v970
        %v1593 = vunpack.c.h.b16 %v970
        %v1594 = vunpack.c.l.b16 %v971
        %v1595 = vunpack.c.h.b16 %v971
        %v1596 = vunpack.c.l.b16 %v972
        %v1597 = vunpack.c.h.b16 %v972
        %v1598 = vunpack.c.l.b16 %v973
        %v1599 = vunpack.c.h.b16 %v973
        %v1600 = vunpack.c.l.b16 %v974
        %v1601 = vunpack.c.h.b16 %v974
        %v1602 = vunpack.c.l.b16 %v975
        %v1603 = vunpack.c.h.b16 %v975
        %v1604 = vunpack.c.l.b16 %v976
        %v1605 = vunpack.c.h.b16 %v976
        %v1606 = vunpack.c.l.b16 %v977
        %v1607 = vunpack.c.h.b16 %v977
        %v1608 = vunpack.c.l.b16 %v978
        %v1609 = vunpack.c.h.b16 %v978
        %v1610 = vunpack.c.l.b16 %v979
        %v1611 = vunpack.c.h.b16 %v979
        %v1612 = vunpack.c.l.b16 %v980
        %v1613 = vunpack.c.h.b16 %v980
        %v1614 = vunpack.c.l.b16 %v981
        %v1615 = vunpack.c.h.b16 %v981
        %v1616 = vunpack.c.l.b16 %v982
        %v1617 = vunpack.c.h.b16 %v982
        %v1618 = vunpack.c.l.b16 %v983
        %v1619 = vunpack.c.h.b16 %v983
        %v1620 = vunpack.c.l.b16 %v984
        %v1621 = vunpack.c.h.b16 %v984
        %v1622 = vunpack.c.l.b16 %v985
        %v1623 = vunpack.c.h.b16 %v985
        %v1624 = vunpack.c.l.b16 %v986
        %v1625 = vunpack.c.h.b16 %v986
        %v1626 = vunpack.c.l.b16 %v987
        %v1627 = vunpack.c.h.b16 %v987
        %v1628 = vunpack.c.l.b16 %v988
        %v1629 = vunpack.c.h.b16 %v988
        %v1630 = vunpack.c.l.b16 %v989
        %v1631 = vunpack.c.h.b16 %v989
        %v1632 = vunpack.c.l.b16 %v990
        %v1633 = vunpack.c.h.b16 %v990
        %v1634 = vunpack.c.l.b16 %v991
        %v1635 = vunpack.c.h.b16 %v991
        %v1636 = vunpack.c.l.b16 %v992
        %v1637 = vunpack.c.h.b16 %v992
        %v1638 = vunpack.c.l.b16 %v993
        %v1639 = vunpack.c.h.b16 %v993
        %v1640 = vunpack.c.l.b16 %v994
        %v1641 = vunpack.c.h.b16 %v994
        %v1642 = vunpack.c.l.b16 %v995
        %v1643 = vunpack.c.h.b16 %v995
        %v1644 = vunpack.c.l.b16 %v996
        %v1645 = vunpack.c.h.b16 %v996
        %v1646 = vunpack.c.l.b16 %v997
        %v1647 = vunpack.c.h.b16 %v997
        %v1648 = vunpack.c.l.b16 %v998
        %v1649 = vunpack.c.h.b16 %v998
        %v1650 = vunpack.c.l.b16 %v999
        %v1651 = vunpack.c.h.b16 %v999
        %v1652 = vunpack.c.l.b16 %v1000
        %v1653 = vunpack.c.h.b16 %v1000
        %v1654 = vunpack.c.l.b16 %v1001
        %v1655 = vunpack.c.h.b16 %v1001
        %v1656 = vunpack.c.l.b16 %v1002
        %v1657 = vunpack.c.h.b16 %v1002
        %v1658 = vunpack.c.l.b16 %v1003
        %v1659 = vunpack.c.h.b16 %v1003
        %v1660 = vunpack.c.l.b16 %v1004
        %v1661 = vunpack.c.h.b16 %v1004
        %v1662 = vunpack.c.l.b16 %v1005
        %v1663 = vunpack.c.h.b16 %v1005
        %v1664 = vunpack.c.l.b16 %v1006
        %v1665 = vunpack.c.h.b16 %v1006
        %v1666 = vunpack.c.l.b16 %v1007
        %v1667 = vunpack.c.h.b16 %v1007
        %v1668 = vunpack.c.l.b16 %v1008
        %v1669 = vunpack.c.h.b16 %v1008
        %v1670 = vunpack.c.l.b16 %v1009
        %v1671 = vunpack.c.h.b16 %v1009
        %v1672 = vunpack.c.l.b16 %v1010
        %v1673 = vunpack.c.h.b16 %v1010
        %v1674 = vunpack.c.l.b16 %v1011
        %v1675 = vunpack.c.h.b16 %v1011
        %v1676 = vunpack.c.l.b16 %v1012
        %v1677 = vunpack.c.h.b16 %v1012
        %v1678 = vunpack.c.l.b16 %v1013
        %v1679 = vunpack.c.h.b16 %v1013
        %v1680 = vunpack.c.l.b16 %v1014
        %v1681 = vunpack.c.h.b16 %v1014
        %v1682 = vunpack.c.l.b16 %v1015
        %v1683 = vunpack.c.h.b16 %v1015
        %v1684 = vunpack.c.l.b16 %v1016
        %v1685 = vunpack.c.h.b16 %v1016
        %v1686 = vunpack.c.l.b16 %v1017
        %v1687 = vunpack.c.h.b16 %v1017
        %v1688 = vunpack.c.l.b16 %v1018
        %v1689 = vunpack.c.h.b16 %v1018
        %v1690 = vunpack.c.l.b16 %v1019
        %v1691 = vunpack.c.h.b16 %v1019
        %v1692 = vunpack.c.l.b16 %v1020
        %v1693 = vunpack.c.h.b16 %v1020
        %v1694 = vunpack.c.l.b16 %v1021
        %v1695 = vunpack.c.h.b16 %v1021
        %v1696 = vunpack.c.l.b16 %v1022
        %v1697 = vunpack.c.h.b16 %v1022
        %v1698 = vunpack.c.l.b16 %v1023
        %v1699 = vunpack.c.h.b16 %v1023
        %v1700 = vunpack.c.l.b16 %v1024
        %v1701 = vunpack.c.h.b16 %v1024
        %v1702 = vunpack.c.l.b16 %v1025
        %v1703 = vunpack.c.h.b16 %v1025
        %v1704 = vunpack.c.l.b16 %v1026
        %v1705 = vunpack.c.h.b16 %v1026
        %v1706 = vunpack.c.l.b16 %v1027
        %v1707 = vunpack.c.h.b16 %v1027
        %v1708 = vunpack.c.l.b16 %v1028
        %v1709 = vunpack.c.h.b16 %v1028
        %v1710 = vunpack.c.l.b16 %v1029
        %v1711 = vunpack.c.h.b16 %v1029
        %v1712 = vunpack.c.l.b16 %v1030
        %v1713 = vunpack.c.h.b16 %v1030
        %v1714 = vunpack.c.l.b16 %v1031
        %v1715 = vunpack.c.h.b16 %v1031
        %v1716 = vunpack.c.l.b16 %v1032
        %v1717 = vunpack.c.h.b16 %v1032
        %v1718 = vunpack.c.l.b16 %v1033
        %v1719 = vunpack.c.h.b16 %v1033
        %v1720 = vunpack.c.l.b16 %v1034
        %v1721 = vunpack.c.h.b16 %v1034
        %v1722 = vunpack.c.l.b16 %v1035
        %v1723 = vunpack.c.h.b16 %v1035
        %v1724 = vunpack.c.l.b16 %v1036
        %v1725 = vunpack.c.h.b16 %v1036
        %v1726 = vunpack.c.l.b16 %v1037
        %v1727 = vunpack.c.h.b16 %v1037
        %v1728 = vunpack.c.l.b16 %v1038
        %v1729 = vunpack.c.h.b16 %v1038
        %v1730 = vunpack.c.l.b16 %v1039
        %v1731 = vunpack.c.h.b16 %v1039
        %v1732 = vunpack.c.l.b16 %v1040
        %v1733 = vunpack.c.h.b16 %v1040
        %v1734 = vunpack.c.l.b16 %v1041
        %v1735 = vunpack.c.h.b16 %v1041
        %v1736 = vunpack.c.l.b16 %v1042
        %v1737 = vunpack.c.h.b16 %v1042
        %v1738 = vunpack.c.l.b16 %v1043
        %v1739 = vunpack.c.h.b16 %v1043
        %v1740 = vunpack.c.l.b16 %v1044
        %v1741 = vunpack.c.h.b16 %v1044
        %v1742 = vunpack.c.l.b16 %v1045
        %v1743 = vunpack.c.h.b16 %v1045
        %v1744 = vunpack.c.l.b16 %v1046
        %v1745 = vunpack.c.h.b16 %v1046
        %v1746 = vunpack.c.l.b16 %v1047
        %v1747 = vunpack.c.h.b16 %v1047
        %v1748 = vunpack.c.l.b16 %v1048
        %v1749 = vunpack.c.h.b16 %v1048
        %v1750 = vunpack.c.l.b16 %v1049
        %v1751 = vunpack.c.h.b16 %v1049
        %v1752 = vunpack.c.l.b16 %v1050
        %v1753 = vunpack.c.h.b16 %v1050
        %v1754 = vunpack.c.l.b16 %v1051
        %v1755 = vunpack.c.h.b16 %v1051
        %v1756 = vunpack.c.l.b16 %v1052
        %v1757 = vunpack.c.h.b16 %v1052
        %v1758 = vunpack.c.l.b16 %v1053
        %v1759 = vunpack.c.h.b16 %v1053
        %v1760 = vunpack.c.l.b16 %v1054
        %v1761 = vunpack.c.h.b16 %v1054
        %v1762 = vunpack.c.l.b16 %v1055
        %v1763 = vunpack.c.h.b16 %v1055
        %v1764 = vunpack.c.l.b16 %v1056
        %v1765 = vunpack.c.h.b16 %v1056
        %v1766 = vunpack.c.l.b16 %v1057
        %v1767 = vunpack.c.h.b16 %v1057
        %v1768 = vunpack.c.l.b16 %v1058
        %v1769 = vunpack.c.h.b16 %v1058
        %v1770 = vunpack.c.l.b16 %v1059
        %v1771 = vunpack.c.h.b16 %v1059
        %v1772 = vunpack.c.l.b16 %v1060
        %v1773 = vunpack.c.h.b16 %v1060
        %v1774 = vunpack.c.l.b16 %v1061
        %v1775 = vunpack.c.h.b16 %v1061
        %v1776 = vunpack.c.l.b16 %v1062
        %v1777 = vunpack.c.h.b16 %v1062
        %v1778 = vunpack.c.l.b16 %v1063
        %v1779 = vunpack.c.h.b16 %v1063
        %v1780 = vunpack.c.l.b16 %v1064
        %v1781 = vunpack.c.h.b16 %v1064
        %v1782 = vunpack.c.l.b16 %v1065
        %v1783 = vunpack.c.h.b16 %v1065
        %v1784 = vunpack.c.l.b16 %v1066
        %v1785 = vunpack.c.h.b16 %v1066
        %v1786 = vunpack.c.l.b16 %v1067
        %v1787 = vunpack.c.h.b16 %v1067
        %v1788 = vunpack.c.l.b16 %v1068
        %v1789 = vunpack.c.h.b16 %v1068
        %v1790 = vunpack.c.l.b16 %v1069
        %v1791 = vunpack.c.h.b16 %v1069
        %v1792 = vunpack.c.l.b16 %v1070
        %v1793 = vunpack.c.h.b16 %v1070
        %v1794 = vunpack.c.l.b16 %v1071
        %v1795 = vunpack.c.h.b16 %v1071
        %v1796 = vunpack.c.l.b16 %v1072
        %v1797 = vunpack.c.h.b16 %v1072
        %v1798 = vunpack.c.l.b16 %v1073
        %v1799 = vunpack.c.h.b16 %v1073
        %v1800 = vunpack.c.l.b16 %v1074
        %v1801 = vunpack.c.h.b16 %v1074
        %v1802 = vunpack.c.l.b16 %v1075
        %v1803 = vunpack.c.h.b16 %v1075
        %v1804 = vunpack.c.l.b16 %v1076
        %v1805 = vunpack.c.h.b16 %v1076
        %v1806 = vunpack.c.l.b16 %v1077
        %v1807 = vunpack.c.h.b16 %v1077
        %v1808 = vunpack.c.l.b16 %v1078
        %v1809 = vunpack.c.h.b16 %v1078
        %v1810 = vunpack.c.l.b16 %v1079
        %v1811 = vunpack.c.h.b16 %v1079
        %v1812 = vunpack.c.l.b16 %v1080
        %v1813 = vunpack.c.h.b16 %v1080
        %v1814 = vunpack.c.l.b16 %v1081
        %v1815 = vunpack.c.h.b16 %v1081
        %v1816 = vunpack.c.l.b16 %v1082
        %v1817 = vunpack.c.h.b16 %v1082
        %v1818 = vunpack.c.l.b16 %v1083
        %v1819 = vunpack.c.h.b16 %v1083
        %v1820 = vunpack.c.l.b16 %v1084
        %v1821 = vunpack.c.h.b16 %v1084
        %v1822 = vunpack.c.l.b16 %v1085
        %v1823 = vunpack.c.h.b16 %v1085
        %v1824 = vunpack.c.l.b16 %v1086
        %v1825 = vunpack.c.h.b16 %v1086
        %v1826 = vunpack.c.l.b16 %v1087
        %v1827 = vunpack.c.h.b16 %v1087
        %v1828 = vunpack.c.l.b16 %v1088
        %v1829 = vunpack.c.h.b16 %v1088
        %v1830 = vunpack.c.l.b16 %v1089
        %v1831 = vunpack.c.h.b16 %v1089
        %v1832 = vunpack.c.l.b16 %v1090
        %v1833 = vunpack.c.h.b16 %v1090
        %v1834 = vunpack.c.l.b16 %v1091
        %v1835 = vunpack.c.h.b16 %v1091
        %v1836 = vunpack.c.l.b16 %v1092
        %v1837 = vunpack.c.h.b16 %v1092
        %v1838 = vunpack.c.l.b16 %v1093
        %v1839 = vunpack.c.h.b16 %v1093
        %v1840 = vunpack.c.l.b16 %v1094
        %v1841 = vunpack.c.h.b16 %v1094
        %v1842 = vunpack.c.l.b16 %v1095
        %v1843 = vunpack.c.h.b16 %v1095
        %v1844 = vunpack.c.l.b16 %v1096
        %v1845 = vunpack.c.h.b16 %v1096
        %v1846 = vunpack.c.l.b16 %v1097
        %v1847 = vunpack.c.h.b16 %v1097
        %v1848 = vunpack.c.l.b16 %v1098
        %v1849 = vunpack.c.h.b16 %v1098
        %v1850 = vunpack.c.l.b16 %v1099
        %v1851 = vunpack.c.h.b16 %v1099
        %v1852 = vunpack.c.l.b16 %v1100
        %v1853 = vunpack.c.h.b16 %v1100
        %v1854 = vunpack.c.l.b16 %v1101
        %v1855 = vunpack.c.h.b16 %v1101
        %v1856 = vunpack.c.l.b16 %v1102
        %v1857 = vunpack.c.h.b16 %v1102
        %v1858 = vunpack.c.l.b16 %v1103
        %v1859 = vunpack.c.h.b16 %v1103
        %v1860 = vunpack.c.l.b16 %v1104
        %v1861 = vunpack.c.h.b16 %v1104
        %v1862 = vunpack.c.l.b16 %v1105
        %v1863 = vunpack.c.h.b16 %v1105
        %v1864 = vunpack.c.l.b16 %v1106
        %v1865 = vunpack.c.h.b16 %v1106
        %v1866 = vunpack.c.l.b16 %v1107
        %v1867 = vunpack.c.h.b16 %v1107
        %v1868 = vunpack.c.l.b16 %v1108
        %v1869 = vunpack.c.h.b16 %v1108
        %v1870 = vunpack.c.l.b16 %v1109
        %v1871 = vunpack.c.h.b16 %v1109
        %v1872 = vunpack.c.l.b16 %v1110
        %v1873 = vunpack.c.h.b16 %v1110
        %v1874 = vunpack.c.l.b16 %v1111
        %v1875 = vunpack.c.h.b16 %v1111
        %v1876 = vunpack.c.l.b16 %v1112
        %v1877 = vunpack.c.h.b16 %v1112
        %v1878 = vunpack.c.l.b16 %v1113
        %v1879 = vunpack.c.h.b16 %v1113
        %v1880 = vunpack.c.l.b16 %v1114
        %v1881 = vunpack.c.h.b16 %v1114
        %v1882 = vunpack.c.l.b16 %v1115
        %v1883 = vunpack.c.h.b16 %v1115
        %v1884 = vunpack.c.l.b16 %v1116
        %v1885 = vunpack.c.h.b16 %v1116
        %v1886 = vunpack.c.l.b16 %v1117
        %v1887 = vunpack.c.h.b16 %v1117
        %v1888 = vunpack.c.l.b16 %v1118
        %v1889 = vunpack.c.h.b16 %v1118
        %v1890 = vunpack.c.l.b16 %v1119
        %v1891 = vunpack.c.h.b16 %v1119
        %v1892 = vunpack.c.l.b16 %v1120
        %v1893 = vunpack.c.h.b16 %v1120
        %v1894 = vunpack.c.l.b16 %v1121
        %v1895 = vunpack.c.h.b16 %v1121
        %v1896 = vunpack.c.l.b16 %v1122
        %v1897 = vunpack.c.h.b16 %v1122
        %v1898 = vunpack.c.l.b16 %v1123
        %v1899 = vunpack.c.h.b16 %v1123
        %v1900 = vunpack.c.l.b16 %v1124
        %v1901 = vunpack.c.h.b16 %v1124
        %v1902 = vunpack.c.l.b16 %v1125
        %v1903 = vunpack.c.h.b16 %v1125
        %v1904 = vunpack.c.l.b16 %v1126
        %v1905 = vunpack.c.h.b16 %v1126
        %v1906 = vunpack.c.l.b16 %v1127
        %v1907 = vunpack.c.h.b16 %v1127
        %v1908 = vunpack.c.l.b16 %v1128
        %v1909 = vunpack.c.h.b16 %v1128
        %v1910 = vunpack.c.l.b16 %v1129
        %v1911 = vunpack.c.h.b16 %v1129
        %v1912 = vunpack.c.l.b16 %v1130
        %v1913 = vunpack.c.h.b16 %v1130
        %v1914 = vunpack.c.l.b16 %v1131
        %v1915 = vunpack.c.h.b16 %v1131
        %v1916 = vunpack.c.l.b16 %v1132
        %v1917 = vunpack.c.h.b16 %v1132
        %v1918 = vunpack.c.l.b16 %v1133
        %v1919 = vunpack.c.h.b16 %v1133
        %v1920 = vunpack.c.l.b16 %v1134
        %v1921 = vunpack.c.h.b16 %v1134
        %v1922 = vunpack.c.l.b16 %v1135
        %v1923 = vunpack.c.h.b16 %v1135
        %v1924 = vunpack.c.l.b16 %v1136
        %v1925 = vunpack.c.h.b16 %v1136
        %v1926 = vunpack.c.l.b16 %v1137
        %v1927 = vunpack.c.h.b16 %v1137
        %v1928 = vunpack.c.l.b16 %v1138
        %v1929 = vunpack.c.h.b16 %v1138
        %v1930 = vunpack.c.l.b16 %v1139
        %v1931 = vunpack.c.h.b16 %v1139
        %v1932 = vunpack.c.l.b16 %v1140
        %v1933 = vunpack.c.h.b16 %v1140
        %v1934 = vunpack.c.l.b16 %v1141
        %v1935 = vunpack.c.h.b16 %v1141
        %v1936 = vunpack.c.l.b16 %v1142
        %v1937 = vunpack.c.h.b16 %v1142
        %v1938 = vunpack.c.l.b16 %v1143
        %v1939 = vunpack.c.h.b16 %v1143
        %v1940 = vunpack.c.l.b16 %v1144
        %v1941 = vunpack.c.h.b16 %v1144
        %v1942 = vunpack.c.l.b16 %v1145
        %v1943 = vunpack.c.h.b16 %v1145
        %v1944 = vunpack.c.l.b16 %v1146
        %v1945 = vunpack.c.h.b16 %v1146
        %v1946 = vunpack.c.l.b16 %v1147
        %v1947 = vunpack.c.h.b16 %v1147
        %v1948 = vunpack.c.l.b16 %v1148
        %v1949 = vunpack.c.h.b16 %v1148
        %v1950 = vunpack.c.l.b16 %v1149
        %v1951 = vunpack.c.h.b16 %v1149
        %v1952 = vunpack.c.l.b16 %v1150
        %v1953 = vunpack.c.h.b16 %v1150
        %v1954 = vunpack.c.l.b16 %v1151
        %v1955 = vunpack.c.h.b16 %v1151
        %v1956 = vunpack.c.l.b16 %v1152
        %v1957 = vunpack.c.h.b16 %v1152
        %v1958 = vunpack.c.l.b16 %v1153
        %v1959 = vunpack.c.h.b16 %v1153
        %v1960 = vunpack.c.l.b16 %v1154
        %v1961 = vunpack.c.h.b16 %v1154
        %v1962 = vunpack.c.l.b16 %v1155
        %v1963 = vunpack.c.h.b16 %v1155
        %v1964 = vunpack.c.l.b16 %v1156
        %v1965 = vunpack.c.h.b16 %v1156
        %v1966 = vunpack.c.l.b16 %v1157
        %v1967 = vunpack.c.h.b16 %v1157
        %v1968 = vunpack.c.l.b16 %v1158
        %v1969 = vunpack.c.h.b16 %v1158
        %v1970 = vunpack.c.l.b16 %v1159
        %v1971 = vunpack.c.h.b16 %v1159
        %v1972 = vunpack.c.l.b16 %v1160
        %v1973 = vunpack.c.h.b16 %v1160
        %v1974 = vunpack.c.l.b16 %v1161
        %v1975 = vunpack.c.h.b16 %v1161
        %v1976 = vunpack.c.l.b16 %v1162
        %v1977 = vunpack.c.h.b16 %v1162
        %v1978 = vunpack.c.l.b16 %v1163
        %v1979 = vunpack.c.h.b16 %v1163
        %v1980 = vunpack.c.l.b16 %v1164
        %v1981 = vunpack.c.h.b16 %v1164
        %v1982 = vunpack.c.l.b16 %v1165
        %v1983 = vunpack.c.h.b16 %v1165
        %v1984 = vunpack.c.l.b16 %v1166
        %v1985 = vunpack.c.h.b16 %v1166
        %v1986 = vunpack.c.l.b16 %v1167
        %v1987 = vunpack.c.h.b16 %v1167
        %v1988 = vunpack.c.l.b16 %v1168
        %v1989 = vunpack.c.h.b16 %v1168
        %v1990 = vunpack.c.l.b16 %v1169
        %v1991 = vunpack.c.h.b16 %v1169
        %v1992 = vunpack.c.l.b16 %v1170
        %v1993 = vunpack.c.h.b16 %v1170
        %v1994 = vunpack.c.l.b16 %v1171
        %v1995 = vunpack.c.h.b16 %v1171
        %v1996 = vunpack.c.l.b16 %v1172
        %v1997 = vunpack.c.h.b16 %v1172
        %v1998 = vunpack.c.l.b16 %v1173
        %v1999 = vunpack.c.h.b16 %v1173
        %v2000 = vunpack.c.l.b16 %v1174
        %v2001 = vunpack.c.h.b16 %v1174
        %v2002 = vunpack.c.l.b16 %v1175
        %v2003 = vunpack.c.h.b16 %v1175
        %v2004 = vunpack.c.l.b16 %v1176
        %v2005 = vunpack.c.h.b16 %v1176
        %v2006 = vunpack.c.l.b16 %v1177
        %v2007 = vunpack.c.h.b16 %v1177
        %v2008 = vunpack.c.l.b16 %v1178
        %v2009 = vunpack.c.h.b16 %v1178
        %v2010 = vunpack.c.l.b16 %v1179
        %v2011 = vunpack.c.h.b16 %v1179
        %v2012 = vunpack.c.l.b16 %v1180
        %v2013 = vunpack.c.h.b16 %v1180
        %v2014 = vunpack.c.l.b16 %v1181
        %v2015 = vunpack.c.h.b16 %v1181
        %v2016 = vunpack.c.l.b16 %v1182
        %v2017 = vunpack.c.h.b16 %v1182
        %v2018 = vunpack.c.l.b16 %v1183
        %v2019 = vunpack.c.h.b16 %v1183
        %v2020 = vunpack.c.l.b16 %v1184
        %v2021 = vunpack.c.h.b16 %v1184
        %v2022 = vunpack.c.l.b16 %v1185
        %v2023 = vunpack.c.h.b16 %v1185
        %v2024 = vunpack.c.l.b16 %v1186
        %v2025 = vunpack.c.h.b16 %v1186
        %v2026 = vunpack.c.l.b16 %v1187
        %v2027 = vunpack.c.h.b16 %v1187
        %v2028 = vunpack.c.l.b16 %v1188
        %v2029 = vunpack.c.h.b16 %v1188
        %v2030 = vunpack.c.l.b16 %v1189
        %v2031 = vunpack.c.h.b16 %v1189
        %v2032 = vunpack.c.l.b16 %v1190
        %v2033 = vunpack.c.h.b16 %v1190
        %v2034 = vunpack.c.l.b16 %v1191
        %v2035 = vunpack.c.h.b16 %v1191
        %v2036 = vunpack.c.l.b16 %v1192
        %v2037 = vunpack.c.h.b16 %v1192
        %v2038 = vunpack.c.l.b16 %v1193
        %v2039 = vunpack.c.h.b16 %v1193
        %v2040 = vunpack.c.l.b16 %v1194
        %v2041 = vunpack.c.h.b16 %v1194
        %v2042 = vunpack.c.l.b16 %v1195
        %v2043 = vunpack.c.h.b16 %v1195
        %v2044 = vunpack.c.l.b16 %v1196
        %v2045 = vunpack.c.h.b16 %v1196
        %v2046 = vunpack.c.l.b16 %v1197
        %v2047 = vunpack.c.h.b16 %v1197
        %v2048 = vunpack.c.l.b16 %v1198
        %v2049 = vunpack.c.h.b16 %v1198
        %v2050 = vunpack.c.l.b16 %v1199
        %v2051 = vunpack.c.h.b16 %v1199
        %v2052 = vunpack.c.l.b16 %v1200
        %v2053 = vunpack.c.h.b16 %v1200
        %v2054 = vunpack.c.l.b16 %v1201
        %v2055 = vunpack.c.h.b16 %v1201
        %v2056 = vunpack.c.l.b16 %v1202
        %v2057 = vunpack.c.h.b16 %v1202
        %v2058 = vunpack.c.l.b16 %v1203
        %v2059 = vunpack.c.h.b16 %v1203
        %v2060 = vunpack.c.l.b16 %v1204
        %v2061 = vunpack.c.h.b16 %v1204
        %v2062 = vunpack.c.l.b16 %v1205
        %v2063 = vunpack.c.h.b16 %v1205
        %v2064 = vunpack.c.l.b16 %v1206
        %v2065 = vunpack.c.h.b16 %v1206
        %v2066 = vunpack.c.l.b16 %v1207
        %v2067 = vunpack.c.h.b16 %v1207
        %v2068 = vunpack.c.l.b16 %v1208
        %v2069 = vunpack.c.h.b16 %v1208
        %v2070 = vunpack.c.l.b16 %v1209
        %v2071 = vunpack.c.h.b16 %v1209
        %v2072 = vunpack.c.l.b16 %v1210
        %v2073 = vunpack.c.h.b16 %v1210
        %v2074 = vunpack.c.l.b16 %v1211
        %v2075 = vunpack.c.h.b16 %v1211
        %v2076 = vpack.c.b16 %v1548, %v1500
        %v2077 = vpack.c.b16 %v1549, %v1501
        %v2078 = vpack.c.b16 %v1550, %v1502
        %v2079 = vpack.c.b16 %v1551, %v1503
        %v2080 = vpack.c.b16 %v1552, %v1504
        %v2081 = vpack.c.b16 %v1553, %v1505
        %v2082 = vpack.c.b16 %v1554, %v1506
        %v2083 = vpack.c.b16 %v1555, %v1507
        %v2084 = vpack.c.b16 %v1556, %v1508
        %v2085 = vpack.c.b16 %v1557, %v1509
        %v2086 = vpack.c.b16 %v1558, %v1510
        %v2087 = vpack.c.b16 %v1559, %v1511
        %v2088 = vpack.c.b16 %v1560, %v1512
        %v2089 = vpack.c.b16 %v1561, %v1513
        %v2090 = vpack.c.b16 %v1562, %v1514
        %v2091 = vpack.c.b16 %v1563, %v1515
        %v2092 = vpack.c.b16 %v1564, %v1516
        %v2093 = vpack.c.b16 %v1565, %v1517
        %v2094 = vpack.c.b16 %v1566, %v1518
        %v2095 = vpack.c.b16 %v1567, %v1519
        %v2096 = vpack.c.b16 %v1568, %v1520
        %v2097 = vpack.c.b16 %v1569, %v1521
        %v2098 = vpack.c.b16 %v1570, %v1522
        %v2099 = vpack.c.b16 %v1571, %v1523
        %v2100 = vpack.c.b16 %v1572, %v1524
        %v2101 = vpack.c.b16 %v1573, %v1525
        %v2102 = vpack.c.b16 %v1574, %v1526
        %v2103 = vpack.c.b16 %v1575, %v1527
        %v2104 = vpack.c.b16 %v1576, %v1528
        %v2105 = vpack.c.b16 %v1577, %v1529
        %v2106 = vpack.c.b16 %v1578, %v1530
        %v2107 = vpack.c.b16 %v1579, %v1531
        %v2108 = vpack.c.b16 %v1580, %v1532
        %v2109 = vpack.c.b16 %v1581, %v1533
        %v2110 = vpack.c.b16 %v1582, %v1534
        %v2111 = vpack.c.b16 %v1583, %v1535
        %v2112 = vpack.c.b16 %v1584, %v1536
        %v2113 = vpack.c.b16 %v1585, %v1537
        %v2114 = vpack.c.b16 %v1586, %v1538
        %v2115 = vpack.c.b16 %v1587, %v1539
        %v2116 = vpack.c.b16 %v1588, %v1540
        %v2117 = vpack.c.b16 %v1589, %v1541
        %v2118 = vpack.c.b16 %v1590, %v1542
        %v2119 = vpack.c.b16 %v1591, %v1543
        %v2120 = vpack.c.b16 %v1592, %v1544
        %v2121 = vpack.c.b16 %v1593, %v1545
        %v2122 = vpack.c.b16 %v1594, %v1546
        %v2123 = vpack.c.b16 %v1595, %v1547
        %v2124 = vpack.c.b16 %v1644, %v1596
        %v2125 = vpack.c.b16 %v1645, %v1597
        %v2126 = vpack.c.b16 %v1646, %v1598
        %v2127 = vpack.c.b16 %v1647, %v1599
        %v2128 = vpack.c.b16 %v1648, %v1600
        %v2129 = vpack.c.b16 %v1649, %v1601
        %v2130 = vpack.c.b16 %v1650, %v1602
        %v2131 = vpack.c.b16 %v1651, %v1603
        %v2132 = vpack.c.b16 %v1652, %v1604
        %v2133 = vpack.c.b16 %v1653, %v1605
        %v2134 = vpack.c.b16 %v1654, %v1606
        %v2135 = vpack.c.b16 %v1655, %v1607
        %v2136 = vpack.c.b16 %v1656, %v1608
        %v2137 = vpack.c.b16 %v1657, %v1609
        %v2138 = vpack.c.b16 %v1658, %v1610
        %v2139 = vpack.c.b16 %v1659, %v1611
        %v2140 = vpack.c.b16 %v1660, %v1612
        %v2141 = vpack.c.b16 %v1661, %v1613
        %v2142 = vpack.c.b16 %v1662, %v1614
        %v2143 = vpack.c.b16 %v1663, %v1615
        %v2144 = vpack.c.b16 %v1664, %v1616
        %v2145 = vpack.c.b16 %v1665, %v1617
        %v2146 = vpack.c.b16 %v1666, %v1618
        %v2147 = vpack.c.b16 %v1667, %v1619
        %v2148 = vpack.c.b16 %v1668, %v1620
        %v2149 = vpack.c.b16 %v1669, %v1621
        %v2150 = vpack.c.b16 %v1670, %v1622
        %v2151 = vpack.c.b16 %v1671, %v1623
        %v2152 = vpack.c.b16 %v1672, %v1624
        %v2153 = vpack.c.b16 %v1673, %v1625
        %v2154 = vpack.c.b16 %v1674, %v1626
        %v2155 = vpack.c.b16 %v1675, %v1627
        %v2156 = vpack.c.b16 %v1676, %v1628
        %v2157 = vpack.c.b16 %v1677, %v1629
        %v2158 = vpack.c.b16 %v1678, %v1630
        %v2159 = vpack.c.b16 %v1679, %v1631
        %v2160 = vpack.c.b16 %v1680, %v1632
        %v2161 = vpack.c.b16 %v1681, %v1633
        %v2162 = vpack.c.b16 %v1682, %v1634
        %v2163 = vpack.c.b16 %v1683, %v1635
        %v2164 = vpack.c.b16 %v1684, %v1636
        %v2165 = vpack.c.b16 %v1685, %v1637
        %v2166 = vpack.c.b16 %v1686, %v1638
        %v2167 = vpack.c.b16 %v1687, %v1639
        %v2168 = vpack.c.b16 %v1688, %v1640
        %v2169 = vpack.c.b16 %v1689, %v1641
        %v2170 = vpack.c.b16 %v1690, %v1642
        %v2171 = vpack.c.b16 %v1691, %v1643
        %v2172 = vpack.c.b16 %v1740, %v1692
        %v2173 = vpack.c.b16 %v1741, %v1693
        %v2174 = vpack.c.b16 %v1742, %v1694
        %v2175 = vpack.c.b16 %v1743, %v1695
        %v2176 = vpack.c.b16 %v1744, %v1696
        %v2177 = vpack.c.b16 %v1745, %v1697
        %v2178 = vpack.c.b16 %v1746, %v1698
        %v2179 = vpack.c.b16 %v1747, %v1699
        %v2180 = vpack.c.b16 %v1748, %v1700
        %v2181 = vpack.c.b16 %v1749, %v1701
        %v2182 = vpack.c.b16 %v1750, %v1702
        %v2183 = vpack.c.b16 %v1751, %v1703
        %v2184 = vpack.c.b16 %v1752, %v1704
        %v2185 = vpack.c.b16 %v1753, %v1705
        %v2186 = vpack.c.b16 %v1754, %v1706
        %v2187 = vpack.c.b16 %v1755, %v1707
        %v2188 = vpack.c.b16 %v1756, %v1708
        %v2189 = vpack.c.b16 %v1757, %v1709
        %v2190 = vpack.c.b16 %v1758, %v1710
        %v2191 = vpack.c.b16 %v1759, %v1711
        %v2192 = vpack.c.b16 %v1760, %v1712
        %v2193 = vpack.c.b16 %v1761, %v1713
        %v2194 = vpack.c.b16 %v1762, %v1714
        %v2195 = vpack.c.b16 %v1763, %v1715
        %v2196 = vpack.c.b16 %v1764, %v1716
        %v2197 = vpack.c.b16 %v1765, %v1717
        %v2198 = vpack.c.b16 %v1766, %v1718
        %v2199 = vpack.c.b16 %v1767, %v1719
        %v2200 = vpack.c.b16 %v1768, %v1720
        %v2201 = vpack.c.b16 %v1769, %v1721
        %v2202 = vpack.c.b16 %v1770, %v1722
        %v2203 = vpack.c.b16 %v1771, %v1723
        %v2204 = vpack.c.b16 %v1772, %v1724
        %v2205 = vpack.c.b16 %v1773, %v1725
        %v2206 = vpack.c.b16 %v1774, %v1726
        %v2207 = vpack.c.b16 %v1775, %v1727
        %v2208 = vpack.c.b16 %v1776, %v1728
        %v2209 = vpack.c.b16 %v1777, %v1729
        %v2210 = vpack.c.b16 %v1778, %v1730
        %v2211 = vpack.c.b16 %v1779, %v1731
        %v2212 = vpack.c.b16 %v1780, %v1732
        %v2213 = vpack.c.b16 %v1781, %v1733
        %v2214 = vpack.c.b16 %v1782, %v1734
        %v2215 = vpack.c.b16 %v1783, %v1735
        %v2216 = vpack.c.b16 %v1784, %v1736
        %v2217 = vpack.c.b16 %v1785, %v1737
        %v2218 = vpack.c.b16 %v1786, %v1738
        %v2219 = vpack.c.b16 %v1787, %v1739
        %v2220 = vpack.c.b16 %v1836, %v1788
        %v2221 = vpack.c.b16 %v1837, %v1789
        %v2222 = vpack.c.b16 %v1838, %v1790
        %v2223 = vpack.c.b16 %v1839, %v1791
        %v2224 = vpack.c.b16 %v1840, %v1792
        %v2225 = vpack.c.b16 %v1841, %v1793
        %v2226 = vpack.c.b16 %v1842, %v1794
        %v2227 = vpack.c.b16 %v1843, %v1795
        %v2228 = vpack.c.b16 %v1844, %v1796
        %v2229 = vpack.c.b16 %v1845, %v1797
        %v2230 = vpack.c.b16 %v1846, %v1798
        %v2231 = vpack.c.b16 %v1847, %v1799
        %v2232 = vpack.c.b16 %v1848, %v1800
        %v2233 = vpack.c.b16 %v1849, %v1801
        %v2234 = vpack.c.b16 %v1850, %v1802
        %v2235 = vpack.c.b16 %v1851, %v1803
        %v2236 = vpack.c.b16 %v1852, %v1804
        %v2237 = vpack.c.b16 %v1853, %v1805
        %v2238 = vpack.c.b16 %v1854, %v1806
        %v2239 = vpack.c.b16 %v1855, %v1807
        %v2240 = vpack.c.b16 %v1856, %v1808
        %v2241 = vpack.c.b16 %v1857, %v1809
        %v2242 = vpack.c.b16 %v1858, %v1810
        %v2243 = vpack.c.b16 %v1859, %v1811
        %v2244 = vpack.c.b16 %v1860, %v1812
        %v2245 = vpack.c.b16 %v1861, %v1813
        %v2246 = vpack.c.b16 %v1862, %v1814
        %v2247 = vpack.c.b16 %v1863, %v1815
        %v2248 = vpack.c.b16 %v1864, %v1816
        %v2249 = vpack.c.b16 %v1865, %v1817
        %v2250 = vpack.c.b16 %v1866, %v1818
        %v2251 = vpack.c.b16 %v1867, %v1819
        %v2252 = vpack.c.b16 %v1868, %v1820
        %v2253 = vpack.c.b16 %v1869, %v1821
        %v2254 = vpack.c.b16 %v1870, %v1822
        %v2255 = vpack.c.b16 %v1871, %v1823
        %v2256 = vpack.c.b16 %v1872, %v1824
        %v2257 = vpack.c.b16 %v1873, %v1825
        %v2258 = vpack.c.b16 %v1874, %v1826
        %v2259 = vpack.c.b16 %v1875, %v1827
        %v2260 = vpack.c.b16 %v1876, %v1828
        %v2261 = vpack.c.b16 %v1877, %v1829
        %v2262 = vpack.c.b16 %v1878, %v1830
        %v2263 = vpack.c.b16 %v1879, %v1831
        %v2264 = vpack.c.b16 %v1880, %v1832
        %v2265 = vpack.c.b16 %v1881, %v1833
        %v2266 = vpack.c.b16 %v1882, %v1834
        %v2267 = vpack.c.b16 %v1883, %v1835
        %v2268 = vpack.c.b16 %v1932, %v1884
        %v2269 = vpack.c.b16 %v1933, %v1885
        %v2270 = vpack.c.b16 %v1934, %v1886
        %v2271 = vpack.c.b16 %v1935, %v1887
        %v2272 = vpack.c.b16 %v1936, %v1888
        %v2273 = vpack.c.b16 %v1937, %v1889
        %v2274 = vpack.c.b16 %v1938, %v1890
        %v2275 = vpack.c.b16 %v1939, %v1891
        %v2276 = vpack.c.b16 %v1940, %v1892
        %v2277 = vpack.c.b16 %v1941, %v1893
        %v2278 = vpack.c.b16 %v1942, %v1894
        %v2279 = vpack.c.b16 %v1943, %v1895
        %v2280 = vpack.c.b16 %v1944, %v1896
        %v2281 = vpack.c.b16 %v1945, %v1897
        %v2282 = vpack.c.b16 %v1946, %v1898
        %v2283 = vpack.c.b16 %v1947, %v1899
        %v2284 = vpack.c.b16 %v1948, %v1900
        %v2285 = vpack.c.b16 %v1949, %v1901
        %v2286 = vpack.c.b16 %v1950, %v1902
        %v2287 = vpack.c.b16 %v1951, %v1903
        %v2288 = vpack.c.b16 %v1952, %v1904
        %v2289 = vpack.c.b16 %v1953, %v1905
        %v2290 = vpack.c.b16 %v1954, %v1906
        %v2291 = vpack.c.b16 %v1955, %v1907
        %v2292 = vpack.c.b16 %v1956, %v1908
        %v2293 = vpack.c.b16 %v1957, %v1909
        %v2294 = vpack.c.b16 %v1958, %v1910
        %v2295 = vpack.c.b16 %v1959, %v1911
        %v2296 = vpack.c.b16 %v1960, %v1912
        %v2297 = vpack.c.b16 %v1961, %v1913
        %v2298 = vpack.c.b16 %v1962, %v1914
        %v2299 = vpack.c.b16 %v1963, %v1915
        %v2300 = vpack.c.b16 %v1964, %v1916
        %v2301 = vpack.c.b16 %v1965, %v1917
        %v2302 = vpack.c.b16 %v1966, %v1918
        %v2303 = vpack.c.b16 %v1967, %v1919
        %v2304 = vpack.c.b16 %v1968, %v1920
        %v2305 = vpack.c.b16 %v1969, %v1921
        %v2306 = vpack.c.b16 %v1970, %v1922
        %v2307 = vpack.c.b16 %v1971, %v1923
        %v2308 = vpack.c.b16 %v1972, %v1924
        %v2309 = vpack.c.b16 %v1973, %v1925
        %v2310 = vpack.c.b16 %v1974, %v1926
        %v2311 = vpack.c.b16 %v1975, %v1927
        %v2312 = vpack.c.b16 %v1976, %v1928
        %v2313 = vpack.c.b16 %v1977, %v1929
        %v2314 = vpack.c.b16 %v1978, %v1930
        %v2315 = vpack.c.b16 %v1979, %v1931
        %v2316 = vpack.c.b16 %v2028, %v1980
        %v2317 = vpack.c.b16 %v2029, %v1981
        %v2318 = vpack.c.b16 %v2030, %v1982
        %v2319 = vpack.c.b16 %v2031, %v1983
        %v2320 = vpack.c.b16 %v2032, %v1984
        %v2321 = vpack.c.b16 %v2033, %v1985
        %v2322 = vpack.c.b16 %v2034, %v1986
        %v2323 = vpack.c.b16 %v2035, %v1987
        %v2324 = vpack.c.b16 %v2036, %v1988
        %v2325 = vpack.c.b16 %v2037, %v1989
        %v2326 = vpack.c.b16 %v2038, %v1990
        %v2327 = vpack.c.b16 %v2039, %v1991
        %v2328 = vpack.c.b16 %v2040, %v1992
        %v2329 = vpack.c.b16 %v2041, %v1993
        %v2330 = vpack.c.b16 %v2042, %v1994
        %v2331 = vpack.c.b16 %v2043, %v1995
        %v2332 = vpack.c.b16 %v2044, %v1996
        %v2333 = vpack.c.b16 %v2045, %v1997
        %v2334 = vpack.c.b16 %v2046, %v1998
        %v2335 = vpack.c.b16 %v2047, %v1999
        %v2336 = vpack.c.b16 %v2048, %v2000
        %v2337 = vpack.c.b16 %v2049, %v2001
        %v2338 = vpack.c.b16 %v2050, %v2002
        %v2339 = vpack.c.b16 %v2051, %v2003
        %v2340 = vpack.c.b16 %v2052, %v2004
        %v2341 = vpack.c.b16 %v2053, %v2005
        %v2342 = vpack.c.b16 %v2054, %v2006
        %v2343 = vpack.c.b16 %v2055, %v2007
        %v2344 = vpack.c.b16 %v2056, %v2008
        %v2345 = vpack.c.b16 %v2057, %v2009
        %v2346 = vpack.c.b16 %v2058, %v2010
        %v2347 = vpack.c.b16 %v2059, %v2011
        %v2348 = vpack.c.b16 %v2060, %v2012
        %v2349 = vpack.c.b16 %v2061, %v2013
        %v2350 = vpack.c.b16 %v2062, %v2014
        %v2351 = vpack.c.b16 %v2063, %v2015
        %v2352 = vpack.c.b16 %v2064, %v2016
        %v2353 = vpack.c.b16 %v2065, %v2017
        %v2354 = vpack.c.b16 %v2066, %v2018
        %v2355 = vpack.c.b16 %v2067, %v2019
        %v2356 = vpack.c.b16 %v2068, %v2020
        %v2357 = vpack.c.b16 %v2069, %v2021
        %v2358 = vpack.c.b16 %v2070, %v2022
        %v2359 = vpack.c.b16 %v2071, %v2023
        %v2360 = vpack.c.b16 %v2072, %v2024
        %v2361 = vpack.c.b16 %v2073, %v2025
        %v2362 = vpack.c.b16 %v2074, %v2026
        %v2363 = vpack.c.b16 %v2075, %v2027
        %vm2652 = vcmask 785408
        %v2654 = vsel %vm2652, %v922, 0
        %v2657 = vsel %vm2652, %v923, 0
        %2659 = vmatpush.bf16.msra.mxu0 0
        %2660 = vmatpush.bf16.msra.mxu0 0
        %2661 = vmatpush.bf16.msra.mxu0 %v2316
        %2662 = vmatpush.bf16.msra.mxu0 %v2268
        %2663 = vmatpush.bf16.msra.mxu0 %v2220
        %2664 = vmatpush.bf16.msra.mxu0 %v2172
        %2665 = vmatpush.bf16.msra.mxu0 %v2124
        %2666 = vmatpush.bf16.msra.mxu0 %v2076
        %2667 = vmatmul.bf16.gmra.mxu0 %v2654
        %v2668 = vpop.f32.mrf.mxu0
        %v2669 = vadd.f32 0.0, %v2668
        %v2670 = vpop.f32.mrf.mxu0
        %v2671 = vadd.f32 0.0, %v2670
        %2672 = vmatmul.bf16.gmra.mxu0 %v2657
        %v2673 = vpop.f32.mrf.mxu0
        %v2674 = vadd.f32 0.0, %v2673
        %v2675 = vpop.f32.mrf.mxu0
        %v2676 = vadd.f32 0.0, %v2675
        %2677 = vdwg.mxu0
        %2678 = vmatpush.bf16.msra.mxu0 0
        %2679 = vmatpush.bf16.msra.mxu0 0
        %2680 = vmatpush.bf16.msra.mxu0 %v2317
        %2681 = vmatpush.bf16.msra.mxu0 %v2269
        %2682 = vmatpush.bf16.msra.mxu0 %v2221
        %2683 = vmatpush.bf16.msra.mxu0 %v2173
        %2684 = vmatpush.bf16.msra.mxu0 %v2125
        %2685 = vmatpush.bf16.msra.mxu0 %v2077
        %2686 = vmatmul.bf16.gmra.mxu0 %v2654
        %v2687 = vpop.f32.mrf.mxu0
        %v2688 = vadd.f32 0.0, %v2687
        %v2689 = vpop.f32.mrf.mxu0
        %v2690 = vadd.f32 0.0, %v2689
        %2691 = vmatmul.bf16.gmra.mxu0 %v2657
        %v2692 = vpop.f32.mrf.mxu0
        %v2693 = vadd.f32 0.0, %v2692
        %v2694 = vpop.f32.mrf.mxu0
        %v2695 = vadd.f32 0.0, %v2694
        %2696 = vdwg.mxu0
        %2697 = vmatpush.bf16.msra.mxu0 0
        %2698 = vmatpush.bf16.msra.mxu0 0
        %2699 = vmatpush.bf16.msra.mxu0 %v2318
        %2700 = vmatpush.bf16.msra.mxu0 %v2270
        %2701 = vmatpush.bf16.msra.mxu0 %v2222
        %2702 = vmatpush.bf16.msra.mxu0 %v2174
        %2703 = vmatpush.bf16.msra.mxu0 %v2126
        %2704 = vmatpush.bf16.msra.mxu0 %v2078
        %2705 = vmatmul.bf16.gmra.mxu0 %v2654
        %v2706 = vpop.f32.mrf.mxu0
        %v2707 = vadd.f32 0.0, %v2706
        %v2708 = vpop.f32.mrf.mxu0
        %v2709 = vadd.f32 0.0, %v2708
        %2710 = vmatmul.bf16.gmra.mxu0 %v2657
        %v2711 = vpop.f32.mrf.mxu0
        %v2712 = vadd.f32 0.0, %v2711
        %v2713 = vpop.f32.mrf.mxu0
        %v2714 = vadd.f32 0.0, %v2713
        %2715 = vdwg.mxu0
        %2716 = vmatpush.bf16.msra.mxu0 0
        %2717 = vmatpush.bf16.msra.mxu0 0
        %2718 = vmatpush.bf16.msra.mxu0 %v2319
        %2719 = vmatpush.bf16.msra.mxu0 %v2271
        %2720 = vmatpush.bf16.msra.mxu0 %v2223
        %2721 = vmatpush.bf16.msra.mxu0 %v2175
        %2722 = vmatpush.bf16.msra.mxu0 %v2127
        %2723 = vmatpush.bf16.msra.mxu0 %v2079
        %2724 = vmatmul.bf16.gmra.mxu0 %v2654
        %v2725 = vpop.f32.mrf.mxu0
        %v2726 = vadd.f32 0.0, %v2725
        %v2727 = vpop.f32.mrf.mxu0
        %v2728 = vadd.f32 0.0, %v2727
        %2729 = vmatmul.bf16.gmra.mxu0 %v2657
        %v2730 = vpop.f32.mrf.mxu0
        %v2731 = vadd.f32 0.0, %v2730
        %v2732 = vpop.f32.mrf.mxu0
        %v2733 = vadd.f32 0.0, %v2732
        %2734 = vdwg.mxu0
        %2735 = vmatpush.bf16.msra.mxu0 0
        %2736 = vmatpush.bf16.msra.mxu0 0
        %2737 = vmatpush.bf16.msra.mxu0 %v2320
        %2738 = vmatpush.bf16.msra.mxu0 %v2272
        %2739 = vmatpush.bf16.msra.mxu0 %v2224
        %2740 = vmatpush.bf16.msra.mxu0 %v2176
        %2741 = vmatpush.bf16.msra.mxu0 %v2128
        %2742 = vmatpush.bf16.msra.mxu0 %v2080
        %2743 = vmatmul.bf16.gmra.mxu0 %v2654
        %v2744 = vpop.f32.mrf.mxu0
        %v2745 = vadd.f32 0.0, %v2744
        %v2746 = vpop.f32.mrf.mxu0
        %v2747 = vadd.f32 0.0, %v2746
        %2748 = vmatmul.bf16.gmra.mxu0 %v2657
        %v2749 = vpop.f32.mrf.mxu0
        %v2750 = vadd.f32 0.0, %v2749
        %v2751 = vpop.f32.mrf.mxu0
        %v2752 = vadd.f32 0.0, %v2751
        %2753 = vdwg.mxu0
        %2754 = vmatpush.bf16.msra.mxu0 0
        %2755 = vmatpush.bf16.msra.mxu0 0
        %2756 = vmatpush.bf16.msra.mxu0 %v2321
        %2757 = vmatpush.bf16.msra.mxu0 %v2273
        %2758 = vmatpush.bf16.msra.mxu0 %v2225
        %2759 = vmatpush.bf16.msra.mxu0 %v2177
        %2760 = vmatpush.bf16.msra.mxu0 %v2129
        %2761 = vmatpush.bf16.msra.mxu0 %v2081
        %2762 = vmatmul.bf16.gmra.mxu0 %v2654
        %v2763 = vpop.f32.mrf.mxu0
        %v2764 = vadd.f32 0.0, %v2763
        %v2765 = vpop.f32.mrf.mxu0
        %v2766 = vadd.f32 0.0, %v2765
        %2767 = vmatmul.bf16.gmra.mxu0 %v2657
        %v2768 = vpop.f32.mrf.mxu0
        %v2769 = vadd.f32 0.0, %v2768
        %v2770 = vpop.f32.mrf.mxu0
        %v2771 = vadd.f32 0.0, %v2770
        %2772 = vdwg.mxu0
        %2773 = vmatpush.bf16.msra.mxu0 0
        %2774 = vmatpush.bf16.msra.mxu0 0
        %2775 = vmatpush.bf16.msra.mxu0 %v2322
        %2776 = vmatpush.bf16.msra.mxu0 %v2274
        %2777 = vmatpush.bf16.msra.mxu0 %v2226
        %2778 = vmatpush.bf16.msra.mxu0 %v2178
        %2779 = vmatpush.bf16.msra.mxu0 %v2130
        %2780 = vmatpush.bf16.msra.mxu0 %v2082
        %2781 = vmatmul.bf16.gmra.mxu0 %v2654
        %v2782 = vpop.f32.mrf.mxu0
        %v2783 = vadd.f32 0.0, %v2782
        %v2784 = vpop.f32.mrf.mxu0
        %v2785 = vadd.f32 0.0, %v2784
        %2786 = vmatmul.bf16.gmra.mxu0 %v2657
        %v2787 = vpop.f32.mrf.mxu0
        %v2788 = vadd.f32 0.0, %v2787
        %v2789 = vpop.f32.mrf.mxu0
        %v2790 = vadd.f32 0.0, %v2789
        %2791 = vdwg.mxu0
        %2792 = vmatpush.bf16.msra.mxu0 0
        %2793 = vmatpush.bf16.msra.mxu0 0
        %2794 = vmatpush.bf16.msra.mxu0 %v2323
        %2795 = vmatpush.bf16.msra.mxu0 %v2275
        %2796 = vmatpush.bf16.msra.mxu0 %v2227
        %2797 = vmatpush.bf16.msra.mxu0 %v2179
        %2798 = vmatpush.bf16.msra.mxu0 %v2131
        %2799 = vmatpush.bf16.msra.mxu0 %v2083
        %2800 = vmatmul.bf16.gmra.mxu0 %v2654
        %v2801 = vpop.f32.mrf.mxu0
        %v2802 = vadd.f32 0.0, %v2801
        %v2803 = vpop.f32.mrf.mxu0
        %v2804 = vadd.f32 0.0, %v2803
        %2805 = vmatmul.bf16.gmra.mxu0 %v2657
        %v2806 = vpop.f32.mrf.mxu0
        %v2807 = vadd.f32 0.0, %v2806
        %v2808 = vpop.f32.mrf.mxu0
        %v2809 = vadd.f32 0.0, %v2808
        %2810 = vdwg.mxu0
        %2811 = vmatpush.bf16.msra.mxu0 0
        %2812 = vmatpush.bf16.msra.mxu0 0
        %2813 = vmatpush.bf16.msra.mxu0 %v2324
        %2814 = vmatpush.bf16.msra.mxu0 %v2276
        %2815 = vmatpush.bf16.msra.mxu0 %v2228
        %2816 = vmatpush.bf16.msra.mxu0 %v2180
        %2817 = vmatpush.bf16.msra.mxu0 %v2132
        %2818 = vmatpush.bf16.msra.mxu0 %v2084
        %2819 = vmatmul.bf16.gmra.mxu0 %v2654
        %v2820 = vpop.f32.mrf.mxu0
        %v2821 = vadd.f32 0.0, %v2820
        %v2822 = vpop.f32.mrf.mxu0
        %v2823 = vadd.f32 0.0, %v2822
        %2824 = vmatmul.bf16.gmra.mxu0 %v2657
        %v2825 = vpop.f32.mrf.mxu0
        %v2826 = vadd.f32 0.0, %v2825
        %v2827 = vpop.f32.mrf.mxu0
        %v2828 = vadd.f32 0.0, %v2827
        %2829 = vdwg.mxu0
        %2830 = vmatpush.bf16.msra.mxu0 0
        %2831 = vmatpush.bf16.msra.mxu0 0
        %2832 = vmatpush.bf16.msra.mxu0 %v2325
        %2833 = vmatpush.bf16.msra.mxu0 %v2277
        %2834 = vmatpush.bf16.msra.mxu0 %v2229
        %2835 = vmatpush.bf16.msra.mxu0 %v2181
        %2836 = vmatpush.bf16.msra.mxu0 %v2133
        %2837 = vmatpush.bf16.msra.mxu0 %v2085
        %2838 = vmatmul.bf16.gmra.mxu0 %v2654
        %v2839 = vpop.f32.mrf.mxu0
        %v2840 = vadd.f32 0.0, %v2839
        %v2841 = vpop.f32.mrf.mxu0
        %v2842 = vadd.f32 0.0, %v2841
        %2843 = vmatmul.bf16.gmra.mxu0 %v2657
        %v2844 = vpop.f32.mrf.mxu0
        %v2845 = vadd.f32 0.0, %v2844
        %v2846 = vpop.f32.mrf.mxu0
        %v2847 = vadd.f32 0.0, %v2846
        %2848 = vdwg.mxu0
        %2849 = vmatpush.bf16.msra.mxu0 0
        %2850 = vmatpush.bf16.msra.mxu0 0
        %2851 = vmatpush.bf16.msra.mxu0 %v2326
        %2852 = vmatpush.bf16.msra.mxu0 %v2278
        %2853 = vmatpush.bf16.msra.mxu0 %v2230
        %2854 = vmatpush.bf16.msra.mxu0 %v2182
        %2855 = vmatpush.bf16.msra.mxu0 %v2134
        %2856 = vmatpush.bf16.msra.mxu0 %v2086
        %2857 = vmatmul.bf16.gmra.mxu0 %v2654
        %v2858 = vpop.f32.mrf.mxu0
        %v2859 = vadd.f32 0.0, %v2858
        %v2860 = vpop.f32.mrf.mxu0
        %v2861 = vadd.f32 0.0, %v2860
        %2862 = vmatmul.bf16.gmra.mxu0 %v2657
        %v2863 = vpop.f32.mrf.mxu0
        %v2864 = vadd.f32 0.0, %v2863
        %v2865 = vpop.f32.mrf.mxu0
        %v2866 = vadd.f32 0.0, %v2865
        %2867 = vdwg.mxu0
        %2868 = vmatpush.bf16.msra.mxu0 0
        %2869 = vmatpush.bf16.msra.mxu0 0
        %2870 = vmatpush.bf16.msra.mxu0 %v2327
        %2871 = vmatpush.bf16.msra.mxu0 %v2279
        %2872 = vmatpush.bf16.msra.mxu0 %v2231
        %2873 = vmatpush.bf16.msra.mxu0 %v2183
        %2874 = vmatpush.bf16.msra.mxu0 %v2135
        %2875 = vmatpush.bf16.msra.mxu0 %v2087
        %2876 = vmatmul.bf16.gmra.mxu0 %v2654
        %v2877 = vpop.f32.mrf.mxu0
        %v2878 = vadd.f32 0.0, %v2877
        %v2879 = vpop.f32.mrf.mxu0
        %v2880 = vadd.f32 0.0, %v2879
        %2881 = vmatmul.bf16.gmra.mxu0 %v2657
        %v2882 = vpop.f32.mrf.mxu0
        %v2883 = vadd.f32 0.0, %v2882
        %v2884 = vpop.f32.mrf.mxu0
        %v2885 = vadd.f32 0.0, %v2884
        %2886 = vdwg.mxu0
        %2887 = vmatpush.bf16.msra.mxu0 0
        %2888 = vmatpush.bf16.msra.mxu0 0
        %2889 = vmatpush.bf16.msra.mxu0 %v2328
        %2890 = vmatpush.bf16.msra.mxu0 %v2280
        %2891 = vmatpush.bf16.msra.mxu0 %v2232
        %2892 = vmatpush.bf16.msra.mxu0 %v2184
        %2893 = vmatpush.bf16.msra.mxu0 %v2136
        %2894 = vmatpush.bf16.msra.mxu0 %v2088
        %2895 = vmatmul.bf16.gmra.mxu0 %v2654
        %v2896 = vpop.f32.mrf.mxu0
        %v2897 = vadd.f32 0.0, %v2896
        %v2898 = vpop.f32.mrf.mxu0
        %v2899 = vadd.f32 0.0, %v2898
        %2900 = vmatmul.bf16.gmra.mxu0 %v2657
        %v2901 = vpop.f32.mrf.mxu0
        %v2902 = vadd.f32 0.0, %v2901
        %v2903 = vpop.f32.mrf.mxu0
        %v2904 = vadd.f32 0.0, %v2903
        %2905 = vdwg.mxu0
        %2906 = vmatpush.bf16.msra.mxu0 0
        %2907 = vmatpush.bf16.msra.mxu0 0
        %2908 = vmatpush.bf16.msra.mxu0 %v2329
        %2909 = vmatpush.bf16.msra.mxu0 %v2281
        %2910 = vmatpush.bf16.msra.mxu0 %v2233
        %2911 = vmatpush.bf16.msra.mxu0 %v2185
        %2912 = vmatpush.bf16.msra.mxu0 %v2137
        %2913 = vmatpush.bf16.msra.mxu0 %v2089
        %2914 = vmatmul.bf16.gmra.mxu0 %v2654
        %v2915 = vpop.f32.mrf.mxu0
        %v2916 = vadd.f32 0.0, %v2915
        %v2917 = vpop.f32.mrf.mxu0
        %v2918 = vadd.f32 0.0, %v2917
        %2919 = vmatmul.bf16.gmra.mxu0 %v2657
        %v2920 = vpop.f32.mrf.mxu0
        %v2921 = vadd.f32 0.0, %v2920
        %v2922 = vpop.f32.mrf.mxu0
        %v2923 = vadd.f32 0.0, %v2922
        %2924 = vdwg.mxu0
        %2925 = vmatpush.bf16.msra.mxu0 0
        %2926 = vmatpush.bf16.msra.mxu0 0
        %2927 = vmatpush.bf16.msra.mxu0 %v2330
        %2928 = vmatpush.bf16.msra.mxu0 %v2282
        %2929 = vmatpush.bf16.msra.mxu0 %v2234
        %2930 = vmatpush.bf16.msra.mxu0 %v2186
        %2931 = vmatpush.bf16.msra.mxu0 %v2138
        %2932 = vmatpush.bf16.msra.mxu0 %v2090
        %2933 = vmatmul.bf16.gmra.mxu0 %v2654
        %v2934 = vpop.f32.mrf.mxu0
        %v2935 = vadd.f32 0.0, %v2934
        %v2936 = vpop.f32.mrf.mxu0
        %v2937 = vadd.f32 0.0, %v2936
        %2938 = vmatmul.bf16.gmra.mxu0 %v2657
        %v2939 = vpop.f32.mrf.mxu0
        %v2940 = vadd.f32 0.0, %v2939
        %v2941 = vpop.f32.mrf.mxu0
        %v2942 = vadd.f32 0.0, %v2941
        %2943 = vdwg.mxu0
        %2944 = vmatpush.bf16.msra.mxu0 0
        %2945 = vmatpush.bf16.msra.mxu0 0
        %2946 = vmatpush.bf16.msra.mxu0 %v2331
        %2947 = vmatpush.bf16.msra.mxu0 %v2283
        %2948 = vmatpush.bf16.msra.mxu0 %v2235
        %2949 = vmatpush.bf16.msra.mxu0 %v2187
        %2950 = vmatpush.bf16.msra.mxu0 %v2139
        %2951 = vmatpush.bf16.msra.mxu0 %v2091
        %2952 = vmatmul.bf16.gmra.mxu0 %v2654
        %v2953 = vpop.f32.mrf.mxu0
        %v2954 = vadd.f32 0.0, %v2953
        %v2955 = vpop.f32.mrf.mxu0
        %v2956 = vadd.f32 0.0, %v2955
        %2957 = vmatmul.bf16.gmra.mxu0 %v2657
        %v2958 = vpop.f32.mrf.mxu0
        %v2959 = vadd.f32 0.0, %v2958
        %v2960 = vpop.f32.mrf.mxu0
        %v2961 = vadd.f32 0.0, %v2960
        %2962 = vdwg.mxu0
        %2963 = vmatpush.bf16.msra.mxu0 0
        %2964 = vmatpush.bf16.msra.mxu0 0
        %2965 = vmatpush.bf16.msra.mxu0 %v2332
        %2966 = vmatpush.bf16.msra.mxu0 %v2284
        %2967 = vmatpush.bf16.msra.mxu0 %v2236
        %2968 = vmatpush.bf16.msra.mxu0 %v2188
        %2969 = vmatpush.bf16.msra.mxu0 %v2140
        %2970 = vmatpush.bf16.msra.mxu0 %v2092
        %2971 = vmatmul.bf16.gmra.mxu0 %v2654
        %v2972 = vpop.f32.mrf.mxu0
        %v2973 = vadd.f32 0.0, %v2972
        %v2974 = vpop.f32.mrf.mxu0
        %v2975 = vadd.f32 0.0, %v2974
        %2976 = vmatmul.bf16.gmra.mxu0 %v2657
        %v2977 = vpop.f32.mrf.mxu0
        %v2978 = vadd.f32 0.0, %v2977
        %v2979 = vpop.f32.mrf.mxu0
        %v2980 = vadd.f32 0.0, %v2979
        %2981 = vdwg.mxu0
        %2982 = vmatpush.bf16.msra.mxu0 0
        %2983 = vmatpush.bf16.msra.mxu0 0
        %2984 = vmatpush.bf16.msra.mxu0 %v2333
        %2985 = vmatpush.bf16.msra.mxu0 %v2285
        %2986 = vmatpush.bf16.msra.mxu0 %v2237
        %2987 = vmatpush.bf16.msra.mxu0 %v2189
        %2988 = vmatpush.bf16.msra.mxu0 %v2141
        %2989 = vmatpush.bf16.msra.mxu0 %v2093
        %2990 = vmatmul.bf16.gmra.mxu0 %v2654
        %v2991 = vpop.f32.mrf.mxu0
        %v2992 = vadd.f32 0.0, %v2991
        %v2993 = vpop.f32.mrf.mxu0
        %v2994 = vadd.f32 0.0, %v2993
        %2995 = vmatmul.bf16.gmra.mxu0 %v2657
        %v2996 = vpop.f32.mrf.mxu0
        %v2997 = vadd.f32 0.0, %v2996
        %v2998 = vpop.f32.mrf.mxu0
        %v2999 = vadd.f32 0.0, %v2998
        %3000 = vdwg.mxu0
        %3001 = vmatpush.bf16.msra.mxu0 0
        %3002 = vmatpush.bf16.msra.mxu0 0
        %3003 = vmatpush.bf16.msra.mxu0 %v2334
        %3004 = vmatpush.bf16.msra.mxu0 %v2286
        %3005 = vmatpush.bf16.msra.mxu0 %v2238
        %3006 = vmatpush.bf16.msra.mxu0 %v2190
        %3007 = vmatpush.bf16.msra.mxu0 %v2142
        %3008 = vmatpush.bf16.msra.mxu0 %v2094
        %3009 = vmatmul.bf16.gmra.mxu0 %v2654
        %v3010 = vpop.f32.mrf.mxu0
        %v3011 = vadd.f32 0.0, %v3010
        %v3012 = vpop.f32.mrf.mxu0
        %v3013 = vadd.f32 0.0, %v3012
        %3014 = vmatmul.bf16.gmra.mxu0 %v2657
        %v3015 = vpop.f32.mrf.mxu0
        %v3016 = vadd.f32 0.0, %v3015
        %v3017 = vpop.f32.mrf.mxu0
        %v3018 = vadd.f32 0.0, %v3017
        %3019 = vdwg.mxu0
        %3020 = vmatpush.bf16.msra.mxu0 0
        %3021 = vmatpush.bf16.msra.mxu0 0
        %3022 = vmatpush.bf16.msra.mxu0 %v2335
        %3023 = vmatpush.bf16.msra.mxu0 %v2287
        %3024 = vmatpush.bf16.msra.mxu0 %v2239
        %3025 = vmatpush.bf16.msra.mxu0 %v2191
        %3026 = vmatpush.bf16.msra.mxu0 %v2143
        %3027 = vmatpush.bf16.msra.mxu0 %v2095
        %3028 = vmatmul.bf16.gmra.mxu0 %v2654
        %v3029 = vpop.f32.mrf.mxu0
        %v3030 = vadd.f32 0.0, %v3029
        %v3031 = vpop.f32.mrf.mxu0
        %v3032 = vadd.f32 0.0, %v3031
        %3033 = vmatmul.bf16.gmra.mxu0 %v2657
        %v3034 = vpop.f32.mrf.mxu0
        %v3035 = vadd.f32 0.0, %v3034
        %v3036 = vpop.f32.mrf.mxu0
        %v3037 = vadd.f32 0.0, %v3036
        %3038 = vdwg.mxu0
        %3039 = vmatpush.bf16.msra.mxu0 0
        %3040 = vmatpush.bf16.msra.mxu0 0
        %3041 = vmatpush.bf16.msra.mxu0 %v2336
        %3042 = vmatpush.bf16.msra.mxu0 %v2288
        %3043 = vmatpush.bf16.msra.mxu0 %v2240
        %3044 = vmatpush.bf16.msra.mxu0 %v2192
        %3045 = vmatpush.bf16.msra.mxu0 %v2144
        %3046 = vmatpush.bf16.msra.mxu0 %v2096
        %3047 = vmatmul.bf16.gmra.mxu0 %v2654
        %v3048 = vpop.f32.mrf.mxu0
        %v3049 = vadd.f32 0.0, %v3048
        %v3050 = vpop.f32.mrf.mxu0
        %v3051 = vadd.f32 0.0, %v3050
        %3052 = vmatmul.bf16.gmra.mxu0 %v2657
        %v3053 = vpop.f32.mrf.mxu0
        %v3054 = vadd.f32 0.0, %v3053
        %v3055 = vpop.f32.mrf.mxu0
        %v3056 = vadd.f32 0.0, %v3055
        %3057 = vdwg.mxu0
        %3058 = vmatpush.bf16.msra.mxu0 0
        %3059 = vmatpush.bf16.msra.mxu0 0
        %3060 = vmatpush.bf16.msra.mxu0 %v2337
        %3061 = vmatpush.bf16.msra.mxu0 %v2289
        %3062 = vmatpush.bf16.msra.mxu0 %v2241
        %3063 = vmatpush.bf16.msra.mxu0 %v2193
        %3064 = vmatpush.bf16.msra.mxu0 %v2145
        %3065 = vmatpush.bf16.msra.mxu0 %v2097
        %3066 = vmatmul.bf16.gmra.mxu0 %v2654
        %v3067 = vpop.f32.mrf.mxu0
        %v3068 = vadd.f32 0.0, %v3067
        %v3069 = vpop.f32.mrf.mxu0
        %v3070 = vadd.f32 0.0, %v3069
        %3071 = vmatmul.bf16.gmra.mxu0 %v2657
        %v3072 = vpop.f32.mrf.mxu0
        %v3073 = vadd.f32 0.0, %v3072
        %v3074 = vpop.f32.mrf.mxu0
        %v3075 = vadd.f32 0.0, %v3074
        %3076 = vdwg.mxu0
        %3077 = vmatpush.bf16.msra.mxu0 0
        %3078 = vmatpush.bf16.msra.mxu0 0
        %3079 = vmatpush.bf16.msra.mxu0 %v2338
        %3080 = vmatpush.bf16.msra.mxu0 %v2290
        %3081 = vmatpush.bf16.msra.mxu0 %v2242
        %3082 = vmatpush.bf16.msra.mxu0 %v2194
        %3083 = vmatpush.bf16.msra.mxu0 %v2146
        %3084 = vmatpush.bf16.msra.mxu0 %v2098
        %3085 = vmatmul.bf16.gmra.mxu0 %v2654
        %v3086 = vpop.f32.mrf.mxu0
        %v3087 = vadd.f32 0.0, %v3086
        %v3088 = vpop.f32.mrf.mxu0
        %v3089 = vadd.f32 0.0, %v3088
        %3090 = vmatmul.bf16.gmra.mxu0 %v2657
        %v3091 = vpop.f32.mrf.mxu0
        %v3092 = vadd.f32 0.0, %v3091
        %v3093 = vpop.f32.mrf.mxu0
        %v3094 = vadd.f32 0.0, %v3093
        %3095 = vdwg.mxu0
        %3096 = vmatpush.bf16.msra.mxu0 0
        %3097 = vmatpush.bf16.msra.mxu0 0
        %3098 = vmatpush.bf16.msra.mxu0 %v2339
        %3099 = vmatpush.bf16.msra.mxu0 %v2291
        %3100 = vmatpush.bf16.msra.mxu0 %v2243
        %3101 = vmatpush.bf16.msra.mxu0 %v2195
        %3102 = vmatpush.bf16.msra.mxu0 %v2147
        %3103 = vmatpush.bf16.msra.mxu0 %v2099
        %3104 = vmatmul.bf16.gmra.mxu0 %v2654
        %v3105 = vpop.f32.mrf.mxu0
        %v3106 = vadd.f32 0.0, %v3105
        %v3107 = vpop.f32.mrf.mxu0
        %v3108 = vadd.f32 0.0, %v3107
        %3109 = vmatmul.bf16.gmra.mxu0 %v2657
        %v3110 = vpop.f32.mrf.mxu0
        %v3111 = vadd.f32 0.0, %v3110
        %v3112 = vpop.f32.mrf.mxu0
        %v3113 = vadd.f32 0.0, %v3112
        %3114 = vdwg.mxu0
        %3115 = vmatpush.bf16.msra.mxu0 0
        %3116 = vmatpush.bf16.msra.mxu0 0
        %3117 = vmatpush.bf16.msra.mxu0 %v2340
        %3118 = vmatpush.bf16.msra.mxu0 %v2292
        %3119 = vmatpush.bf16.msra.mxu0 %v2244
        %3120 = vmatpush.bf16.msra.mxu0 %v2196
        %3121 = vmatpush.bf16.msra.mxu0 %v2148
        %3122 = vmatpush.bf16.msra.mxu0 %v2100
        %3123 = vmatmul.bf16.gmra.mxu0 %v2654
        %v3124 = vpop.f32.mrf.mxu0
        %v3125 = vadd.f32 0.0, %v3124
        %v3126 = vpop.f32.mrf.mxu0
        %v3127 = vadd.f32 0.0, %v3126
        %3128 = vmatmul.bf16.gmra.mxu0 %v2657
        %v3129 = vpop.f32.mrf.mxu0
        %v3130 = vadd.f32 0.0, %v3129
        %v3131 = vpop.f32.mrf.mxu0
        %v3132 = vadd.f32 0.0, %v3131
        %3133 = vdwg.mxu0
        %3134 = vmatpush.bf16.msra.mxu0 0
        %3135 = vmatpush.bf16.msra.mxu0 0
        %3136 = vmatpush.bf16.msra.mxu0 %v2341
        %3137 = vmatpush.bf16.msra.mxu0 %v2293
        %3138 = vmatpush.bf16.msra.mxu0 %v2245
        %3139 = vmatpush.bf16.msra.mxu0 %v2197
        %3140 = vmatpush.bf16.msra.mxu0 %v2149
        %3141 = vmatpush.bf16.msra.mxu0 %v2101
        %3142 = vmatmul.bf16.gmra.mxu0 %v2654
        %v3143 = vpop.f32.mrf.mxu0
        %v3144 = vadd.f32 0.0, %v3143
        %v3145 = vpop.f32.mrf.mxu0
        %v3146 = vadd.f32 0.0, %v3145
        %3147 = vmatmul.bf16.gmra.mxu0 %v2657
        %v3148 = vpop.f32.mrf.mxu0
        %v3149 = vadd.f32 0.0, %v3148
        %v3150 = vpop.f32.mrf.mxu0
        %v3151 = vadd.f32 0.0, %v3150
        %3152 = vdwg.mxu0
        %3153 = vmatpush.bf16.msra.mxu0 0
        %3154 = vmatpush.bf16.msra.mxu0 0
        %3155 = vmatpush.bf16.msra.mxu0 %v2342
        %3156 = vmatpush.bf16.msra.mxu0 %v2294
        %3157 = vmatpush.bf16.msra.mxu0 %v2246
        %3158 = vmatpush.bf16.msra.mxu0 %v2198
        %3159 = vmatpush.bf16.msra.mxu0 %v2150
        %3160 = vmatpush.bf16.msra.mxu0 %v2102
        %3161 = vmatmul.bf16.gmra.mxu0 %v2654
        %v3162 = vpop.f32.mrf.mxu0
        %v3163 = vadd.f32 0.0, %v3162
        %v3164 = vpop.f32.mrf.mxu0
        %v3165 = vadd.f32 0.0, %v3164
        %3166 = vmatmul.bf16.gmra.mxu0 %v2657
        %v3167 = vpop.f32.mrf.mxu0
        %v3168 = vadd.f32 0.0, %v3167
        %v3169 = vpop.f32.mrf.mxu0
        %v3170 = vadd.f32 0.0, %v3169
        %3171 = vdwg.mxu0
        %3172 = vmatpush.bf16.msra.mxu0 0
        %3173 = vmatpush.bf16.msra.mxu0 0
        %3174 = vmatpush.bf16.msra.mxu0 %v2343
        %3175 = vmatpush.bf16.msra.mxu0 %v2295
        %3176 = vmatpush.bf16.msra.mxu0 %v2247
        %3177 = vmatpush.bf16.msra.mxu0 %v2199
        %3178 = vmatpush.bf16.msra.mxu0 %v2151
        %3179 = vmatpush.bf16.msra.mxu0 %v2103
        %3180 = vmatmul.bf16.gmra.mxu0 %v2654
        %v3181 = vpop.f32.mrf.mxu0
        %v3182 = vadd.f32 0.0, %v3181
        %v3183 = vpop.f32.mrf.mxu0
        %v3184 = vadd.f32 0.0, %v3183
        %3185 = vmatmul.bf16.gmra.mxu0 %v2657
        %v3186 = vpop.f32.mrf.mxu0
        %v3187 = vadd.f32 0.0, %v3186
        %v3188 = vpop.f32.mrf.mxu0
        %v3189 = vadd.f32 0.0, %v3188
        %3190 = vdwg.mxu0
        %3191 = vmatpush.bf16.msra.mxu0 0
        %3192 = vmatpush.bf16.msra.mxu0 0
        %3193 = vmatpush.bf16.msra.mxu0 %v2344
        %3194 = vmatpush.bf16.msra.mxu0 %v2296
        %3195 = vmatpush.bf16.msra.mxu0 %v2248
        %3196 = vmatpush.bf16.msra.mxu0 %v2200
        %3197 = vmatpush.bf16.msra.mxu0 %v2152
        %3198 = vmatpush.bf16.msra.mxu0 %v2104
        %3199 = vmatmul.bf16.gmra.mxu0 %v2654
        %v3200 = vpop.f32.mrf.mxu0
        %v3201 = vadd.f32 0.0, %v3200
        %v3202 = vpop.f32.mrf.mxu0
        %v3203 = vadd.f32 0.0, %v3202
        %3204 = vmatmul.bf16.gmra.mxu0 %v2657
        %v3205 = vpop.f32.mrf.mxu0
        %v3206 = vadd.f32 0.0, %v3205
        %v3207 = vpop.f32.mrf.mxu0
        %v3208 = vadd.f32 0.0, %v3207
        %3209 = vdwg.mxu0
        %3210 = vmatpush.bf16.msra.mxu0 0
        %3211 = vmatpush.bf16.msra.mxu0 0
        %3212 = vmatpush.bf16.msra.mxu0 %v2345
        %3213 = vmatpush.bf16.msra.mxu0 %v2297
        %3214 = vmatpush.bf16.msra.mxu0 %v2249
        %3215 = vmatpush.bf16.msra.mxu0 %v2201
        %3216 = vmatpush.bf16.msra.mxu0 %v2153
        %3217 = vmatpush.bf16.msra.mxu0 %v2105
        %3218 = vmatmul.bf16.gmra.mxu0 %v2654
        %v3219 = vpop.f32.mrf.mxu0
        %v3220 = vadd.f32 0.0, %v3219
        %v3221 = vpop.f32.mrf.mxu0
        %v3222 = vadd.f32 0.0, %v3221
        %3223 = vmatmul.bf16.gmra.mxu0 %v2657
        %v3224 = vpop.f32.mrf.mxu0
        %v3225 = vadd.f32 0.0, %v3224
        %v3226 = vpop.f32.mrf.mxu0
        %v3227 = vadd.f32 0.0, %v3226
        %3228 = vdwg.mxu0
        %3229 = vmatpush.bf16.msra.mxu0 0
        %3230 = vmatpush.bf16.msra.mxu0 0
        %3231 = vmatpush.bf16.msra.mxu0 %v2346
        %3232 = vmatpush.bf16.msra.mxu0 %v2298
        %3233 = vmatpush.bf16.msra.mxu0 %v2250
        %3234 = vmatpush.bf16.msra.mxu0 %v2202
        %3235 = vmatpush.bf16.msra.mxu0 %v2154
        %3236 = vmatpush.bf16.msra.mxu0 %v2106
        %3237 = vmatmul.bf16.gmra.mxu0 %v2654
        %v3238 = vpop.f32.mrf.mxu0
        %v3239 = vadd.f32 0.0, %v3238
        %v3240 = vpop.f32.mrf.mxu0
        %v3241 = vadd.f32 0.0, %v3240
        %3242 = vmatmul.bf16.gmra.mxu0 %v2657
        %v3243 = vpop.f32.mrf.mxu0
        %v3244 = vadd.f32 0.0, %v3243
        %v3245 = vpop.f32.mrf.mxu0
        %v3246 = vadd.f32 0.0, %v3245
        %3247 = vdwg.mxu0
        %3248 = vmatpush.bf16.msra.mxu0 0
        %3249 = vmatpush.bf16.msra.mxu0 0
        %3250 = vmatpush.bf16.msra.mxu0 %v2347
        %3251 = vmatpush.bf16.msra.mxu0 %v2299
        %3252 = vmatpush.bf16.msra.mxu0 %v2251
        %3253 = vmatpush.bf16.msra.mxu0 %v2203
        %3254 = vmatpush.bf16.msra.mxu0 %v2155
        %3255 = vmatpush.bf16.msra.mxu0 %v2107
        %3256 = vmatmul.bf16.gmra.mxu0 %v2654
        %v3257 = vpop.f32.mrf.mxu0
        %v3258 = vadd.f32 0.0, %v3257
        %v3259 = vpop.f32.mrf.mxu0
        %v3260 = vadd.f32 0.0, %v3259
        %3261 = vmatmul.bf16.gmra.mxu0 %v2657
        %v3262 = vpop.f32.mrf.mxu0
        %v3263 = vadd.f32 0.0, %v3262
        %v3264 = vpop.f32.mrf.mxu0
        %v3265 = vadd.f32 0.0, %v3264
        %3266 = vdwg.mxu0
        %3267 = vmatpush.bf16.msra.mxu0 0
        %3268 = vmatpush.bf16.msra.mxu0 0
        %3269 = vmatpush.bf16.msra.mxu0 %v2348
        %3270 = vmatpush.bf16.msra.mxu0 %v2300
        %3271 = vmatpush.bf16.msra.mxu0 %v2252
        %3272 = vmatpush.bf16.msra.mxu0 %v2204
        %3273 = vmatpush.bf16.msra.mxu0 %v2156
        %3274 = vmatpush.bf16.msra.mxu0 %v2108
        %3275 = vmatmul.bf16.gmra.mxu0 %v2654
        %v3276 = vpop.f32.mrf.mxu0
        %v3277 = vadd.f32 0.0, %v3276
        %v3278 = vpop.f32.mrf.mxu0
        %v3279 = vadd.f32 0.0, %v3278
        %3280 = vmatmul.bf16.gmra.mxu0 %v2657
        %v3281 = vpop.f32.mrf.mxu0
        %v3282 = vadd.f32 0.0, %v3281
        %v3283 = vpop.f32.mrf.mxu0
        %v3284 = vadd.f32 0.0, %v3283
        %3285 = vdwg.mxu0
        %3286 = vmatpush.bf16.msra.mxu0 0
        %3287 = vmatpush.bf16.msra.mxu0 0
        %3288 = vmatpush.bf16.msra.mxu0 %v2349
        %3289 = vmatpush.bf16.msra.mxu0 %v2301
        %3290 = vmatpush.bf16.msra.mxu0 %v2253
        %3291 = vmatpush.bf16.msra.mxu0 %v2205
        %3292 = vmatpush.bf16.msra.mxu0 %v2157
        %3293 = vmatpush.bf16.msra.mxu0 %v2109
        %3294 = vmatmul.bf16.gmra.mxu0 %v2654
        %v3295 = vpop.f32.mrf.mxu0
        %v3296 = vadd.f32 0.0, %v3295
        %v3297 = vpop.f32.mrf.mxu0
        %v3298 = vadd.f32 0.0, %v3297
        %3299 = vmatmul.bf16.gmra.mxu0 %v2657
        %v3300 = vpop.f32.mrf.mxu0
        %v3301 = vadd.f32 0.0, %v3300
        %v3302 = vpop.f32.mrf.mxu0
        %v3303 = vadd.f32 0.0, %v3302
        %3304 = vdwg.mxu0
        %3305 = vmatpush.bf16.msra.mxu0 0
        %3306 = vmatpush.bf16.msra.mxu0 0
        %3307 = vmatpush.bf16.msra.mxu0 %v2350
        %3308 = vmatpush.bf16.msra.mxu0 %v2302
        %3309 = vmatpush.bf16.msra.mxu0 %v2254
        %3310 = vmatpush.bf16.msra.mxu0 %v2206
        %3311 = vmatpush.bf16.msra.mxu0 %v2158
        %3312 = vmatpush.bf16.msra.mxu0 %v2110
        %3313 = vmatmul.bf16.gmra.mxu0 %v2654
        %v3314 = vpop.f32.mrf.mxu0
        %v3315 = vadd.f32 0.0, %v3314
        %v3316 = vpop.f32.mrf.mxu0
        %v3317 = vadd.f32 0.0, %v3316
        %3318 = vmatmul.bf16.gmra.mxu0 %v2657
        %v3319 = vpop.f32.mrf.mxu0
        %v3320 = vadd.f32 0.0, %v3319
        %v3321 = vpop.f32.mrf.mxu0
        %v3322 = vadd.f32 0.0, %v3321
        %3323 = vdwg.mxu0
        %3324 = vmatpush.bf16.msra.mxu0 0
        %3325 = vmatpush.bf16.msra.mxu0 0
        %3326 = vmatpush.bf16.msra.mxu0 %v2351
        %3327 = vmatpush.bf16.msra.mxu0 %v2303
        %3328 = vmatpush.bf16.msra.mxu0 %v2255
        %3329 = vmatpush.bf16.msra.mxu0 %v2207
        %3330 = vmatpush.bf16.msra.mxu0 %v2159
        %3331 = vmatpush.bf16.msra.mxu0 %v2111
        %3332 = vmatmul.bf16.gmra.mxu0 %v2654
        %v3333 = vpop.f32.mrf.mxu0
        %v3334 = vadd.f32 0.0, %v3333
        %v3335 = vpop.f32.mrf.mxu0
        %v3336 = vadd.f32 0.0, %v3335
        %3337 = vmatmul.bf16.gmra.mxu0 %v2657
        %v3338 = vpop.f32.mrf.mxu0
        %v3339 = vadd.f32 0.0, %v3338
        %v3340 = vpop.f32.mrf.mxu0
        %v3341 = vadd.f32 0.0, %v3340
        %3342 = vdwg.mxu0
        %3343 = vmatpush.bf16.msra.mxu0 0
        %3344 = vmatpush.bf16.msra.mxu0 0
        %3345 = vmatpush.bf16.msra.mxu0 %v2352
        %3346 = vmatpush.bf16.msra.mxu0 %v2304
        %3347 = vmatpush.bf16.msra.mxu0 %v2256
        %3348 = vmatpush.bf16.msra.mxu0 %v2208
        %3349 = vmatpush.bf16.msra.mxu0 %v2160
        %3350 = vmatpush.bf16.msra.mxu0 %v2112
        %3351 = vmatmul.bf16.gmra.mxu0 %v2654
        %v3352 = vpop.f32.mrf.mxu0
        %v3353 = vadd.f32 0.0, %v3352
        %v3354 = vpop.f32.mrf.mxu0
        %v3355 = vadd.f32 0.0, %v3354
        %3356 = vmatmul.bf16.gmra.mxu0 %v2657
        %v3357 = vpop.f32.mrf.mxu0
        %v3358 = vadd.f32 0.0, %v3357
        %v3359 = vpop.f32.mrf.mxu0
        %v3360 = vadd.f32 0.0, %v3359
        %3361 = vdwg.mxu0
        %3362 = vmatpush.bf16.msra.mxu0 0
        %3363 = vmatpush.bf16.msra.mxu0 0
        %3364 = vmatpush.bf16.msra.mxu0 %v2353
        %3365 = vmatpush.bf16.msra.mxu0 %v2305
        %3366 = vmatpush.bf16.msra.mxu0 %v2257
        %3367 = vmatpush.bf16.msra.mxu0 %v2209
        %3368 = vmatpush.bf16.msra.mxu0 %v2161
        %3369 = vmatpush.bf16.msra.mxu0 %v2113
        %3370 = vmatmul.bf16.gmra.mxu0 %v2654
        %v3371 = vpop.f32.mrf.mxu0
        %v3372 = vadd.f32 0.0, %v3371
        %v3373 = vpop.f32.mrf.mxu0
        %v3374 = vadd.f32 0.0, %v3373
        %3375 = vmatmul.bf16.gmra.mxu0 %v2657
        %v3376 = vpop.f32.mrf.mxu0
        %v3377 = vadd.f32 0.0, %v3376
        %v3378 = vpop.f32.mrf.mxu0
        %v3379 = vadd.f32 0.0, %v3378
        %3380 = vdwg.mxu0
        %3381 = vmatpush.bf16.msra.mxu0 0
        %3382 = vmatpush.bf16.msra.mxu0 0
        %3383 = vmatpush.bf16.msra.mxu0 %v2354
        %3384 = vmatpush.bf16.msra.mxu0 %v2306
        %3385 = vmatpush.bf16.msra.mxu0 %v2258
        %3386 = vmatpush.bf16.msra.mxu0 %v2210
        %3387 = vmatpush.bf16.msra.mxu0 %v2162
        %3388 = vmatpush.bf16.msra.mxu0 %v2114
        %3389 = vmatmul.bf16.gmra.mxu0 %v2654
        %v3390 = vpop.f32.mrf.mxu0
        %v3391 = vadd.f32 0.0, %v3390
        %v3392 = vpop.f32.mrf.mxu0
        %v3393 = vadd.f32 0.0, %v3392
        %3394 = vmatmul.bf16.gmra.mxu0 %v2657
        %v3395 = vpop.f32.mrf.mxu0
        %v3396 = vadd.f32 0.0, %v3395
        %v3397 = vpop.f32.mrf.mxu0
        %v3398 = vadd.f32 0.0, %v3397
        %3399 = vdwg.mxu0
        %3400 = vmatpush.bf16.msra.mxu0 0
        %3401 = vmatpush.bf16.msra.mxu0 0
        %3402 = vmatpush.bf16.msra.mxu0 %v2355
        %3403 = vmatpush.bf16.msra.mxu0 %v2307
        %3404 = vmatpush.bf16.msra.mxu0 %v2259
        %3405 = vmatpush.bf16.msra.mxu0 %v2211
        %3406 = vmatpush.bf16.msra.mxu0 %v2163
        %3407 = vmatpush.bf16.msra.mxu0 %v2115
        %3408 = vmatmul.bf16.gmra.mxu0 %v2654
        %v3409 = vpop.f32.mrf.mxu0
        %v3410 = vadd.f32 0.0, %v3409
        %v3411 = vpop.f32.mrf.mxu0
        %v3412 = vadd.f32 0.0, %v3411
        %3413 = vmatmul.bf16.gmra.mxu0 %v2657
        %v3414 = vpop.f32.mrf.mxu0
        %v3415 = vadd.f32 0.0, %v3414
        %v3416 = vpop.f32.mrf.mxu0
        %v3417 = vadd.f32 0.0, %v3416
        %3418 = vdwg.mxu0
        %3419 = vmatpush.bf16.msra.mxu0 0
        %3420 = vmatpush.bf16.msra.mxu0 0
        %3421 = vmatpush.bf16.msra.mxu0 %v2356
        %3422 = vmatpush.bf16.msra.mxu0 %v2308
        %3423 = vmatpush.bf16.msra.mxu0 %v2260
        %3424 = vmatpush.bf16.msra.mxu0 %v2212
        %3425 = vmatpush.bf16.msra.mxu0 %v2164
        %3426 = vmatpush.bf16.msra.mxu0 %v2116
        %3427 = vmatmul.bf16.gmra.mxu0 %v2654
        %v3428 = vpop.f32.mrf.mxu0
        %v3429 = vadd.f32 0.0, %v3428
        %v3430 = vpop.f32.mrf.mxu0
        %v3431 = vadd.f32 0.0, %v3430
        %3432 = vmatmul.bf16.gmra.mxu0 %v2657
        %v3433 = vpop.f32.mrf.mxu0
        %v3434 = vadd.f32 0.0, %v3433
        %v3435 = vpop.f32.mrf.mxu0
        %v3436 = vadd.f32 0.0, %v3435
        %3437 = vdwg.mxu0
        %3438 = vmatpush.bf16.msra.mxu0 0
        %3439 = vmatpush.bf16.msra.mxu0 0
        %3440 = vmatpush.bf16.msra.mxu0 %v2357
        %3441 = vmatpush.bf16.msra.mxu0 %v2309
        %3442 = vmatpush.bf16.msra.mxu0 %v2261
        %3443 = vmatpush.bf16.msra.mxu0 %v2213
        %3444 = vmatpush.bf16.msra.mxu0 %v2165
        %3445 = vmatpush.bf16.msra.mxu0 %v2117
        %3446 = vmatmul.bf16.gmra.mxu0 %v2654
        %v3447 = vpop.f32.mrf.mxu0
        %v3448 = vadd.f32 0.0, %v3447
        %v3449 = vpop.f32.mrf.mxu0
        %v3450 = vadd.f32 0.0, %v3449
        %3451 = vmatmul.bf16.gmra.mxu0 %v2657
        %v3452 = vpop.f32.mrf.mxu0
        %v3453 = vadd.f32 0.0, %v3452
        %v3454 = vpop.f32.mrf.mxu0
        %v3455 = vadd.f32 0.0, %v3454
        %3456 = vdwg.mxu0
        %3457 = vmatpush.bf16.msra.mxu0 0
        %3458 = vmatpush.bf16.msra.mxu0 0
        %3459 = vmatpush.bf16.msra.mxu0 %v2358
        %3460 = vmatpush.bf16.msra.mxu0 %v2310
        %3461 = vmatpush.bf16.msra.mxu0 %v2262
        %3462 = vmatpush.bf16.msra.mxu0 %v2214
        %3463 = vmatpush.bf16.msra.mxu0 %v2166
        %3464 = vmatpush.bf16.msra.mxu0 %v2118
        %3465 = vmatmul.bf16.gmra.mxu0 %v2654
        %v3466 = vpop.f32.mrf.mxu0
        %v3467 = vadd.f32 0.0, %v3466
        %v3468 = vpop.f32.mrf.mxu0
        %v3469 = vadd.f32 0.0, %v3468
        %3470 = vmatmul.bf16.gmra.mxu0 %v2657
        %v3471 = vpop.f32.mrf.mxu0
        %v3472 = vadd.f32 0.0, %v3471
        %v3473 = vpop.f32.mrf.mxu0
        %v3474 = vadd.f32 0.0, %v3473
        %3475 = vdwg.mxu0
        %3476 = vmatpush.bf16.msra.mxu0 0
        %3477 = vmatpush.bf16.msra.mxu0 0
        %3478 = vmatpush.bf16.msra.mxu0 %v2359
        %3479 = vmatpush.bf16.msra.mxu0 %v2311
        %3480 = vmatpush.bf16.msra.mxu0 %v2263
        %3481 = vmatpush.bf16.msra.mxu0 %v2215
        %3482 = vmatpush.bf16.msra.mxu0 %v2167
        %3483 = vmatpush.bf16.msra.mxu0 %v2119
        %3484 = vmatmul.bf16.gmra.mxu0 %v2654
        %v3485 = vpop.f32.mrf.mxu0
        %v3486 = vadd.f32 0.0, %v3485
        %v3487 = vpop.f32.mrf.mxu0
        %v3488 = vadd.f32 0.0, %v3487
        %3489 = vmatmul.bf16.gmra.mxu0 %v2657
        %v3490 = vpop.f32.mrf.mxu0
        %v3491 = vadd.f32 0.0, %v3490
        %v3492 = vpop.f32.mrf.mxu0
        %v3493 = vadd.f32 0.0, %v3492
        %3494 = vdwg.mxu0
        %3495 = vmatpush.bf16.msra.mxu0 0
        %3496 = vmatpush.bf16.msra.mxu0 0
        %3497 = vmatpush.bf16.msra.mxu0 %v2360
        %3498 = vmatpush.bf16.msra.mxu0 %v2312
        %3499 = vmatpush.bf16.msra.mxu0 %v2264
        %3500 = vmatpush.bf16.msra.mxu0 %v2216
        %3501 = vmatpush.bf16.msra.mxu0 %v2168
        %3502 = vmatpush.bf16.msra.mxu0 %v2120
        %3503 = vmatmul.bf16.gmra.mxu0 %v2654
        %v3504 = vpop.f32.mrf.mxu0
        %v3505 = vadd.f32 0.0, %v3504
        %v3506 = vpop.f32.mrf.mxu0
        %v3507 = vadd.f32 0.0, %v3506
        %3508 = vmatmul.bf16.gmra.mxu0 %v2657
        %v3509 = vpop.f32.mrf.mxu0
        %v3510 = vadd.f32 0.0, %v3509
        %v3511 = vpop.f32.mrf.mxu0
        %v3512 = vadd.f32 0.0, %v3511
        %3513 = vdwg.mxu0
        %3514 = vmatpush.bf16.msra.mxu0 0
        %3515 = vmatpush.bf16.msra.mxu0 0
        %3516 = vmatpush.bf16.msra.mxu0 %v2361
        %3517 = vmatpush.bf16.msra.mxu0 %v2313
        %3518 = vmatpush.bf16.msra.mxu0 %v2265
        %3519 = vmatpush.bf16.msra.mxu0 %v2217
        %3520 = vmatpush.bf16.msra.mxu0 %v2169
        %3521 = vmatpush.bf16.msra.mxu0 %v2121
        %3522 = vmatmul.bf16.gmra.mxu0 %v2654
        %v3523 = vpop.f32.mrf.mxu0
        %v3524 = vadd.f32 0.0, %v3523
        %v3525 = vpop.f32.mrf.mxu0
        %v3526 = vadd.f32 0.0, %v3525
        %3527 = vmatmul.bf16.gmra.mxu0 %v2657
        %v3528 = vpop.f32.mrf.mxu0
        %v3529 = vadd.f32 0.0, %v3528
        %v3530 = vpop.f32.mrf.mxu0
        %v3531 = vadd.f32 0.0, %v3530
        %3532 = vdwg.mxu0
        %3533 = vmatpush.bf16.msra.mxu0 0
        %3534 = vmatpush.bf16.msra.mxu0 0
        %3535 = vmatpush.bf16.msra.mxu0 %v2362
        %3536 = vmatpush.bf16.msra.mxu0 %v2314
        %3537 = vmatpush.bf16.msra.mxu0 %v2266
        %3538 = vmatpush.bf16.msra.mxu0 %v2218
        %3539 = vmatpush.bf16.msra.mxu0 %v2170
        %3540 = vmatpush.bf16.msra.mxu0 %v2122
        %3541 = vmatmul.bf16.gmra.mxu0 %v2654
        %v3542 = vpop.f32.mrf.mxu0
        %v3543 = vadd.f32 0.0, %v3542
        %v3544 = vpop.f32.mrf.mxu0
        %v3545 = vadd.f32 0.0, %v3544
        %3546 = vmatmul.bf16.gmra.mxu0 %v2657
        %v3547 = vpop.f32.mrf.mxu0
        %v3548 = vadd.f32 0.0, %v3547
        %v3549 = vpop.f32.mrf.mxu0
        %v3550 = vadd.f32 0.0, %v3549
        %3551 = vdwg.mxu0
        %3552 = vmatpush.bf16.msra.mxu0 0
        %3553 = vmatpush.bf16.msra.mxu0 0
        %3554 = vmatpush.bf16.msra.mxu0 %v2363
        %3555 = vmatpush.bf16.msra.mxu0 %v2315
        %3556 = vmatpush.bf16.msra.mxu0 %v2267
        %3557 = vmatpush.bf16.msra.mxu0 %v2219
        %3558 = vmatpush.bf16.msra.mxu0 %v2171
        %3559 = vmatpush.bf16.msra.mxu0 %v2123
        %3560 = vmatmul.bf16.gmra.mxu0 %v2654
        %v3561 = vpop.f32.mrf.mxu0
        %v3562 = vadd.f32 0.0, %v3561
        %v3563 = vpop.f32.mrf.mxu0
        %v3564 = vadd.f32 0.0, %v3563
        %3565 = vmatmul.bf16.gmra.mxu0 %v2657
        %v3566 = vpop.f32.mrf.mxu0
        %v3567 = vadd.f32 0.0, %v3566
        %v3568 = vpop.f32.mrf.mxu0
        %v3569 = vadd.f32 0.0, %v3568
        %3570 = vdwg.mxu0
        %v3571 = vld [vmem:[%s2] sm:$0xff]
        %v3572 = vld [vmem:[%s2 + $0x8] sm:$0xff]
        %v3573 = vld [vmem:[%s2 + $0x10] sm:$0xff]
        %v3574 = vld [vmem:[%s2 + $0x18] sm:$0x3]
        %3575 = vmatpush.xpose.msra.mxu0 0.0
        %3576 = vmatpush.xpose.msra.mxu0 0.0
        %3577 = vmatpush.xpose.msra.mxu0 0.0
        %3578 = vmatpush.xpose.msra.mxu0 0.0
        %3579 = vmatpush.xpose.msra.mxu0 0.0
        %3580 = vmatpush.xpose.msra.mxu0 0.0
        %3581 = vmatpush.xpose.msra.mxu0 0.0
        %3582 = vmatpush.xpose.msra.mxu0 0.0
        %3583 = vmatpush.xpose.msra.mxu0 0.0
        %3584 = vmatpush.xpose.msra.mxu0 0.0
        %3585 = vmatpush.xpose.msra.mxu0 0.0
        %3586 = vmatpush.xpose.msra.mxu0 0.0
        %3587 = vmatpush.xpose.msra.mxu0 %v2980
        %3588 = vmatpush.xpose.msra.mxu0 %v2978
        %3589 = vmatpush.xpose.msra.mxu0 %v2975
        %3590 = vmatpush.xpose.msra.mxu0 %v2973
        %3591 = vmatmul.f32.gmra.mxu0 %v2669
        %v3592 = vpop.f32.mrf.mxu0
        %v3593 = vadd.f32 %v3571, %v3592
        %3594 = vmatmul.f32.gmra.mxu0 %v2671
        %v3595 = vpop.f32.mrf.mxu0
        %v3596 = vadd.f32 %v3572, %v3595
        %3597 = vmatmul.f32.gmra.mxu0 %v2674
        %v3598 = vpop.f32.mrf.mxu0
        %v3599 = vadd.f32 %v3573, %v3598
        %3600 = vmatmul.f32.gmra.mxu0 %v2676
        %v3601 = vpop.f32.mrf.mxu0
        %v3602 = vadd.f32 %v3574, %v3601
        %3603 = vdwg.mxu0
        %vm3604 = vcmask 211968
        %v3605 = vsel %vm3604, %v3593, -inf
        %3606 = vmax.xlane.f32.xlu0 %v3605
        %v3607 = vpop.xlane.xlu0 %3606
        %v3608 = vsel %vm3604, %v3596, -inf
        %3609 = vmax.xlane.f32.xlu0 %v3608
        %v3610 = vpop.xlane.xlu0 %3609
        %v3611 = vsel %vm3604, %v3599, -inf
        %3612 = vmax.xlane.f32.xlu0 %v3611
        %v3613 = vpop.xlane.xlu0 %3612
        %vm3614 = vcmask 205824
        %v3615 = vsel %vm3614, %v3602, -inf
        %3616 = vmax.xlane.f32.xlu0 %v3615
        %v3617 = vpop.xlane.xlu0 %3616
        %v3618 = vsub.f32 %v3593, %v3607
        %v3619 = vsub.f32 %v3596, %v3610
        %v3620 = vsub.f32 %v3599, %v3613
        %v3621 = vsub.f32 %v3602, %v3617
        %v3622 = vmul.f32 %v3618, 1.442695
        %v3623 = vpow.pop %v3622
        %v3624 = vmul.f32 %v3619, 1.442695
        %v3625 = vpow.pop %v3624
        %v3626 = vmul.f32 %v3620, 1.442695
        %v3627 = vpow.pop %v3626
        %v3628 = vmul.f32 %v3621, 1.442695
        %v3629 = vpow.pop %v3628
        %v3630 = vsel %vm3604, %v3623, 0.0
        %3631 = vadd.xlane.f32.xlu0 %v3630
        %v3632 = vpop.xlane.xlu0 %3631
        %v3633 = vsel %vm3604, %v3625, 0.0
        %3634 = vadd.xlane.f32.xlu0 %v3633
        %v3635 = vpop.xlane.xlu0 %3634
        %v3636 = vsel %vm3604, %v3627, 0.0
        %3637 = vadd.xlane.f32.xlu0 %v3636
        %v3638 = vpop.xlane.xlu0 %3637
        %v3639 = vsel %vm3614, %v3629, 0.0
        %3640 = vadd.xlane.f32.xlu0 %v3639
        %v3641 = vpop.xlane.xlu0 %3640
        %v3642 = vrcp.pop %v3632
        %v3643 = vrcp.pop %v3635
        %v3644 = vrcp.pop %v3638
        %v3645 = vrcp.pop %v3641
        %v3646 = vmul.f32 %v3623, %v3642
        %v3647 = vmul.f32 %v3625, %v3643
        %v3648 = vmul.f32 %v3627, %v3644
        %v3649 = vmul.f32 %v3629, %v3645
        %v3651 = vsel %vm3604, %v3646, 0
        %v3654 = vsel %vm3604, %v3647, 0
        %v3657 = vsel %vm3604, %v3648, 0
        %v3660 = vsel %vm3604, %v3649, 0
        %vm3662 = vcmask 1041408
        %v3664 = vsel %vm3662, %v3284, 0
        %3666 = vmatpush.msra.mxu0 0.0
        %3667 = vmatpush.msra.mxu0 0.0
        %3668 = vmatpush.msra.mxu0 0.0
        %3669 = vmatpush.msra.mxu0 0.0
        %3670 = vmatpush.msra.mxu0 0.0
        %3671 = vmatpush.msra.mxu0 0.0
        %3672 = vmatpush.msra.mxu0 0.0
        %3673 = vmatpush.msra.mxu0 0.0
        %3674 = vmatpush.msra.mxu0 0.0
        %3675 = vmatpush.msra.mxu0 0.0
        %3676 = vmatpush.msra.mxu0 0.0
        %3677 = vmatpush.msra.mxu0 0.0
        %3678 = vmatpush.msra.mxu0 %v3664
        %3679 = vmatpush.msra.mxu0 %v3282
        %3680 = vmatpush.msra.mxu0 %v3279
        %3681 = vmatpush.msra.mxu0 %v3277
        %3682 = vmatmul.f32.gmra.mxu0 %v3651
        %v3683 = vpop.f32.mrf.mxu0
        %v3684 = vadd.f32 0.0, %v3683
        %3685 = vmatmul.f32.gmra.mxu0 %v3654
        %v3686 = vpop.f32.mrf.mxu0
        %v3687 = vadd.f32 0.0, %v3686
        %3688 = vmatmul.f32.gmra.mxu0 %v3657
        %v3689 = vpop.f32.mrf.mxu0
        %v3690 = vadd.f32 0.0, %v3689
        %3691 = vmatmul.f32.gmra.mxu0 %v3660
        %v3692 = vpop.f32.mrf.mxu0
        %v3693 = vadd.f32 0.0, %v3692
        %3694 = vdwg.mxu0
        %v3695 = vpack.c.bf16 %v3684, %v3684
        %v3696 = vpack.c.bf16 %v3687, %v3687
        %v3697 = vpack.c.bf16 %v3690, %v3690
        %v3698 = vpack.c.bf16 %v3693, %v3693
        %3699 = vst [vmem:[#allocation3] sm:$0xf] %v3695
        %3700 = vst [vmem:[#allocation3 + $0x40] sm:$0xf] %v3696
        %3701 = vst [vmem:[#allocation3 + $0x80] sm:$0xf] %v3697
        %3702 = vst [vmem:[#allocation3 + $0xc0] sm:$0x1] %v3698
        %3703 = vmatpush.xpose.msra.mxu0 0.0
        %3704 = vmatpush.xpose.msra.mxu0 0.0
        %3705 = vmatpush.xpose.msra.mxu0 0.0
        %3706 = vmatpush.xpose.msra.mxu0 0.0
        %3707 = vmatpush.xpose.msra.mxu0 0.0
        %3708 = vmatpush.xpose.msra.mxu0 0.0
        %3709 = vmatpush.xpose.msra.mxu0 0.0
        %3710 = vmatpush.xpose.msra.mxu0 0.0
        %3711 = vmatpush.xpose.msra.mxu0 0.0
        %3712 = vmatpush.xpose.msra.mxu0 0.0
        %3713 = vmatpush.xpose.msra.mxu0 0.0
        %3714 = vmatpush.xpose.msra.mxu0 0.0
        %3715 = vmatpush.xpose.msra.mxu0 %v2999
        %3716 = vmatpush.xpose.msra.mxu0 %v2997
        %3717 = vmatpush.xpose.msra.mxu0 %v2994
        %3718 = vmatpush.xpose.msra.mxu0 %v2992
        %3719 = vmatmul.f32.gmra.mxu0 %v2688
        %v3720 = vpop.f32.mrf.mxu0
        %v3721 = vadd.f32 %v3571, %v3720
        %3722 = vmatmul.f32.gmra.mxu0 %v2690
        %v3723 = vpop.f32.mrf.mxu0
        %v3724 = vadd.f32 %v3572, %v3723
        %3725 = vmatmul.f32.gmra.mxu0 %v2693
        %v3726 = vpop.f32.mrf.mxu0
        %v3727 = vadd.f32 %v3573, %v3726
        %3728 = vmatmul.f32.gmra.mxu0 %v2695
        %v3729 = vpop.f32.mrf.mxu0
        %v3730 = vadd.f32 %v3574, %v3729
        %3731 = vdwg.mxu0
        %v3732 = vsel %vm3604, %v3721, -inf
        %3733 = vmax.xlane.f32.xlu0 %v3732
        %v3734 = vpop.xlane.xlu0 %3733
        %v3735 = vsel %vm3604, %v3724, -inf
        %3736 = vmax.xlane.f32.xlu0 %v3735
        %v3737 = vpop.xlane.xlu0 %3736
        %v3738 = vsel %vm3604, %v3727, -inf
        %3739 = vmax.xlane.f32.xlu0 %v3738
        %v3740 = vpop.xlane.xlu0 %3739
        %v3741 = vsel %vm3614, %v3730, -inf
        %3742 = vmax.xlane.f32.xlu0 %v3741
        %v3743 = vpop.xlane.xlu0 %3742
        %v3744 = vsub.f32 %v3721, %v3734
        %v3745 = vsub.f32 %v3724, %v3737
        %v3746 = vsub.f32 %v3727, %v3740
        %v3747 = vsub.f32 %v3730, %v3743
        %v3748 = vmul.f32 %v3744, 1.442695
        %v3749 = vpow.pop %v3748
        %v3750 = vmul.f32 %v3745, 1.442695
        %v3751 = vpow.pop %v3750
        %v3752 = vmul.f32 %v3746, 1.442695
        %v3753 = vpow.pop %v3752
        %v3754 = vmul.f32 %v3747, 1.442695
        %v3755 = vpow.pop %v3754
        %v3756 = vsel %vm3604, %v3749, 0.0
        %3757 = vadd.xlane.f32.xlu0 %v3756
        %v3758 = vpop.xlane.xlu0 %3757
        %v3759 = vsel %vm3604, %v3751, 0.0
        %3760 = vadd.xlane.f32.xlu0 %v3759
        %v3761 = vpop.xlane.xlu0 %3760
        %v3762 = vsel %vm3604, %v3753, 0.0
        %3763 = vadd.xlane.f32.xlu0 %v3762
        %v3764 = vpop.xlane.xlu0 %3763
        %v3765 = vsel %vm3614, %v3755, 0.0
        %3766 = vadd.xlane.f32.xlu0 %v3765
        %v3767 = vpop.xlane.xlu0 %3766
        %v3768 = vrcp.pop %v3758
        %v3769 = vrcp.pop %v3761
        %v3770 = vrcp.pop %v3764
        %v3771 = vrcp.pop %v3767
        %v3772 = vmul.f32 %v3749, %v3768
        %v3773 = vmul.f32 %v3751, %v3769
        %v3774 = vmul.f32 %v3753, %v3770
        %v3775 = vmul.f32 %v3755, %v3771
        %v3777 = vsel %vm3604, %v3772, 0
        %v3780 = vsel %vm3604, %v3773, 0
        %v3783 = vsel %vm3604, %v3774, 0
        %v3786 = vsel %vm3604, %v3775, 0
        %v3789 = vsel %vm3662, %v3303, 0
        %3791 = vmatpush.msra.mxu0 0.0
        %3792 = vmatpush.msra.mxu0 0.0
        %3793 = vmatpush.msra.mxu0 0.0
        %3794 = vmatpush.msra.mxu0 0.0
        %3795 = vmatpush.msra.mxu0 0.0
        %3796 = vmatpush.msra.mxu0 0.0
        %3797 = vmatpush.msra.mxu0 0.0
        %3798 = vmatpush.msra.mxu0 0.0
        %3799 = vmatpush.msra.mxu0 0.0
        %3800 = vmatpush.msra.mxu0 0.0
        %3801 = vmatpush.msra.mxu0 0.0
        %3802 = vmatpush.msra.mxu0 0.0
        %3803 = vmatpush.msra.mxu0 %v3789
        %3804 = vmatpush.msra.mxu0 %v3301
        %3805 = vmatpush.msra.mxu0 %v3298
        %3806 = vmatpush.msra.mxu0 %v3296
        %3807 = vmatmul.f32.gmra.mxu0 %v3777
        %v3808 = vpop.f32.mrf.mxu0
        %v3809 = vadd.f32 0.0, %v3808
        %3810 = vmatmul.f32.gmra.mxu0 %v3780
        %v3811 = vpop.f32.mrf.mxu0
        %v3812 = vadd.f32 0.0, %v3811
        %3813 = vmatmul.f32.gmra.mxu0 %v3783
        %v3814 = vpop.f32.mrf.mxu0
        %v3815 = vadd.f32 0.0, %v3814
        %3816 = vmatmul.f32.gmra.mxu0 %v3786
        %v3817 = vpop.f32.mrf.mxu0
        %v3818 = vadd.f32 0.0, %v3817
        %3819 = vdwg.mxu0
        %v3820 = vpack.c.bf16 %v3809, %v3809
        %v3821 = vpack.c.bf16 %v3812, %v3812
        %v3822 = vpack.c.bf16 %v3815, %v3815
        %v3823 = vpack.c.bf16 %v3818, %v3818
        %3824 = vst [vmem:[#allocation3 + $0x4] sm:$0xf] %v3820
        %3825 = vst [vmem:[#allocation3 + $0x44] sm:$0xf] %v3821
        %3826 = vst [vmem:[#allocation3 + $0x84] sm:$0xf] %v3822
        %3827 = vst [vmem:[#allocation3 + $0xc4] sm:$0x1] %v3823
        %3828 = vmatpush.xpose.msra.mxu0 0.0
        %3829 = vmatpush.xpose.msra.mxu0 0.0
        %3830 = vmatpush.xpose.msra.mxu0 0.0
        %3831 = vmatpush.xpose.msra.mxu0 0.0
        %3832 = vmatpush.xpose.msra.mxu0 0.0
        %3833 = vmatpush.xpose.msra.mxu0 0.0
        %3834 = vmatpush.xpose.msra.mxu0 0.0
        %3835 = vmatpush.xpose.msra.mxu0 0.0
        %3836 = vmatpush.xpose.msra.mxu0 0.0
        %3837 = vmatpush.xpose.msra.mxu0 0.0
        %3838 = vmatpush.xpose.msra.mxu0 0.0
        %3839 = vmatpush.xpose.msra.mxu0 0.0
        %3840 = vmatpush.xpose.msra.mxu0 %v3018
        %3841 = vmatpush.xpose.msra.mxu0 %v3016
        %3842 = vmatpush.xpose.msra.mxu0 %v3013
        %3843 = vmatpush.xpose.msra.mxu0 %v3011
        %3844 = vmatmul.f32.gmra.mxu0 %v2707
        %v3845 = vpop.f32.mrf.mxu0
        %v3846 = vadd.f32 %v3571, %v3845
        %3847 = vmatmul.f32.gmra.mxu0 %v2709
        %v3848 = vpop.f32.mrf.mxu0
        %v3849 = vadd.f32 %v3572, %v3848
        %3850 = vmatmul.f32.gmra.mxu0 %v2712
        %v3851 = vpop.f32.mrf.mxu0
        %v3852 = vadd.f32 %v3573, %v3851
        %3853 = vmatmul.f32.gmra.mxu0 %v2714
        %v3854 = vpop.f32.mrf.mxu0
        %v3855 = vadd.f32 %v3574, %v3854
        %3856 = vdwg.mxu0
        %v3857 = vsel %vm3604, %v3846, -inf
        %3858 = vmax.xlane.f32.xlu0 %v3857
        %v3859 = vpop.xlane.xlu0 %3858
        %v3860 = vsel %vm3604, %v3849, -inf
        %3861 = vmax.xlane.f32.xlu0 %v3860
        %v3862 = vpop.xlane.xlu0 %3861
        %v3863 = vsel %vm3604, %v3852, -inf
        %3864 = vmax.xlane.f32.xlu0 %v3863
        %v3865 = vpop.xlane.xlu0 %3864
        %v3866 = vsel %vm3614, %v3855, -inf
        %3867 = vmax.xlane.f32.xlu0 %v3866
        %v3868 = vpop.xlane.xlu0 %3867
        %v3869 = vsub.f32 %v3846, %v3859
        %v3870 = vsub.f32 %v3849, %v3862
        %v3871 = vsub.f32 %v3852, %v3865
        %v3872 = vsub.f32 %v3855, %v3868
        %v3873 = vmul.f32 %v3869, 1.442695
        %v3874 = vpow.pop %v3873
        %v3875 = vmul.f32 %v3870, 1.442695
        %v3876 = vpow.pop %v3875
        %v3877 = vmul.f32 %v3871, 1.442695
        %v3878 = vpow.pop %v3877
        %v3879 = vmul.f32 %v3872, 1.442695
        %v3880 = vpow.pop %v3879
        %v3881 = vsel %vm3604, %v3874, 0.0
        %3882 = vadd.xlane.f32.xlu0 %v3881
        %v3883 = vpop.xlane.xlu0 %3882
        %v3884 = vsel %vm3604, %v3876, 0.0
        %3885 = vadd.xlane.f32.xlu0 %v3884
        %v3886 = vpop.xlane.xlu0 %3885
        %v3887 = vsel %vm3604, %v3878, 0.0
        %3888 = vadd.xlane.f32.xlu0 %v3887
        %v3889 = vpop.xlane.xlu0 %3888
        %v3890 = vsel %vm3614, %v3880, 0.0
        %3891 = vadd.xlane.f32.xlu0 %v3890
        %v3892 = vpop.xlane.xlu0 %3891
        %v3893 = vrcp.pop %v3883
        %v3894 = vrcp.pop %v3886
        %v3895 = vrcp.pop %v3889
        %v3896 = vrcp.pop %v3892
        %v3897 = vmul.f32 %v3874, %v3893
        %v3898 = vmul.f32 %v3876, %v3894
        %v3899 = vmul.f32 %v3878, %v3895
        %v3900 = vmul.f32 %v3880, %v3896
        %v3902 = vsel %vm3604, %v3897, 0
        %v3905 = vsel %vm3604, %v3898, 0
        %v3908 = vsel %vm3604, %v3899, 0
        %v3911 = vsel %vm3604, %v3900, 0
        %v3914 = vsel %vm3662, %v3322, 0
        %3916 = vmatpush.msra.mxu0 0.0
        %3917 = vmatpush.msra.mxu0 0.0
        %3918 = vmatpush.msra.mxu0 0.0
        %3919 = vmatpush.msra.mxu0 0.0
        %3920 = vmatpush.msra.mxu0 0.0
        %3921 = vmatpush.msra.mxu0 0.0
        %3922 = vmatpush.msra.mxu0 0.0
        %3923 = vmatpush.msra.mxu0 0.0
        %3924 = vmatpush.msra.mxu0 0.0
        %3925 = vmatpush.msra.mxu0 0.0
        %3926 = vmatpush.msra.mxu0 0.0
        %3927 = vmatpush.msra.mxu0 0.0
        %3928 = vmatpush.msra.mxu0 %v3914
        %3929 = vmatpush.msra.mxu0 %v3320
        %3930 = vmatpush.msra.mxu0 %v3317
        %3931 = vmatpush.msra.mxu0 %v3315
        %3932 = vmatmul.f32.gmra.mxu0 %v3902
        %v3933 = vpop.f32.mrf.mxu0
        %v3934 = vadd.f32 0.0, %v3933
        %3935 = vmatmul.f32.gmra.mxu0 %v3905
        %v3936 = vpop.f32.mrf.mxu0
        %v3937 = vadd.f32 0.0, %v3936
        %3938 = vmatmul.f32.gmra.mxu0 %v3908
        %v3939 = vpop.f32.mrf.mxu0
        %v3940 = vadd.f32 0.0, %v3939
        %3941 = vmatmul.f32.gmra.mxu0 %v3911
        %v3942 = vpop.f32.mrf.mxu0
        %v3943 = vadd.f32 0.0, %v3942
        %3944 = vdwg.mxu0
        %v3945 = vpack.c.bf16 %v3934, %v3934
        %v3946 = vpack.c.bf16 %v3937, %v3937
        %v3947 = vpack.c.bf16 %v3940, %v3940
        %v3948 = vpack.c.bf16 %v3943, %v3943
        %3949 = vst [vmem:[#allocation3 + $0x8] sm:$0xf] %v3945
        %3950 = vst [vmem:[#allocation3 + $0x48] sm:$0xf] %v3946
        %3951 = vst [vmem:[#allocation3 + $0x88] sm:$0xf] %v3947
        %3952 = vst [vmem:[#allocation3 + $0xc8] sm:$0x1] %v3948
        %3953 = vmatpush.xpose.msra.mxu0 0.0
        %3954 = vmatpush.xpose.msra.mxu0 0.0
        %3955 = vmatpush.xpose.msra.mxu0 0.0
        %3956 = vmatpush.xpose.msra.mxu0 0.0
        %3957 = vmatpush.xpose.msra.mxu0 0.0
        %3958 = vmatpush.xpose.msra.mxu0 0.0
        %3959 = vmatpush.xpose.msra.mxu0 0.0
        %3960 = vmatpush.xpose.msra.mxu0 0.0
        %3961 = vmatpush.xpose.msra.mxu0 0.0
        %3962 = vmatpush.xpose.msra.mxu0 0.0
        %3963 = vmatpush.xpose.msra.mxu0 0.0
        %3964 = vmatpush.xpose.msra.mxu0 0.0
        %3965 = vmatpush.xpose.msra.mxu0 %v3037
        %3966 = vmatpush.xpose.msra.mxu0 %v3035
        %3967 = vmatpush.xpose.msra.mxu0 %v3032
        %3968 = vmatpush.xpose.msra.mxu0 %v3030
        %3969 = vmatmul.f32.gmra.mxu0 %v2726
        %v3970 = vpop.f32.mrf.mxu0
        %v3971 = vadd.f32 %v3571, %v3970
        %3972 = vmatmul.f32.gmra.mxu0 %v2728
        %v3973 = vpop.f32.mrf.mxu0
        %v3974 = vadd.f32 %v3572, %v3973
        %3975 = vmatmul.f32.gmra.mxu0 %v2731
        %v3976 = vpop.f32.mrf.mxu0
        %v3977 = vadd.f32 %v3573, %v3976
        %3978 = vmatmul.f32.gmra.mxu0 %v2733
        %v3979 = vpop.f32.mrf.mxu0
        %v3980 = vadd.f32 %v3574, %v3979
        %3981 = vdwg.mxu0
        %v3982 = vsel %vm3604, %v3971, -inf
        %3983 = vmax.xlane.f32.xlu0 %v3982
        %v3984 = vpop.xlane.xlu0 %3983
        %v3985 = vsel %vm3604, %v3974, -inf
        %3986 = vmax.xlane.f32.xlu0 %v3985
        %v3987 = vpop.xlane.xlu0 %3986
        %v3988 = vsel %vm3604, %v3977, -inf
        %3989 = vmax.xlane.f32.xlu0 %v3988
        %v3990 = vpop.xlane.xlu0 %3989
        %v3991 = vsel %vm3614, %v3980, -inf
        %3992 = vmax.xlane.f32.xlu0 %v3991
        %v3993 = vpop.xlane.xlu0 %3992
        %v3994 = vsub.f32 %v3971, %v3984
        %v3995 = vsub.f32 %v3974, %v3987
        %v3996 = vsub.f32 %v3977, %v3990
        %v3997 = vsub.f32 %v3980, %v3993
        %v3998 = vmul.f32 %v3994, 1.442695
        %v3999 = vpow.pop %v3998
        %v4000 = vmul.f32 %v3995, 1.442695
        %v4001 = vpow.pop %v4000
        %v4002 = vmul.f32 %v3996, 1.442695
        %v4003 = vpow.pop %v4002
        %v4004 = vmul.f32 %v3997, 1.442695
        %v4005 = vpow.pop %v4004
        %v4006 = vsel %vm3604, %v3999, 0.0
        %4007 = vadd.xlane.f32.xlu0 %v4006
        %v4008 = vpop.xlane.xlu0 %4007
        %v4009 = vsel %vm3604, %v4001, 0.0
        %4010 = vadd.xlane.f32.xlu0 %v4009
        %v4011 = vpop.xlane.xlu0 %4010
        %v4012 = vsel %vm3604, %v4003, 0.0
        %4013 = vadd.xlane.f32.xlu0 %v4012
        %v4014 = vpop.xlane.xlu0 %4013
        %v4015 = vsel %vm3614, %v4005, 0.0
        %4016 = vadd.xlane.f32.xlu0 %v4015
        %v4017 = vpop.xlane.xlu0 %4016
        %v4018 = vrcp.pop %v4008
        %v4019 = vrcp.pop %v4011
        %v4020 = vrcp.pop %v4014
        %v4021 = vrcp.pop %v4017
        %v4022 = vmul.f32 %v3999, %v4018
        %v4023 = vmul.f32 %v4001, %v4019
        %v4024 = vmul.f32 %v4003, %v4020
        %v4025 = vmul.f32 %v4005, %v4021
        %v4027 = vsel %vm3604, %v4022, 0
        %v4030 = vsel %vm3604, %v4023, 0
        %v4033 = vsel %vm3604, %v4024, 0
        %v4036 = vsel %vm3604, %v4025, 0
        %v4039 = vsel %vm3662, %v3341, 0
        %4041 = vmatpush.msra.mxu0 0.0
        %4042 = vmatpush.msra.mxu0 0.0
        %4043 = vmatpush.msra.mxu0 0.0
        %4044 = vmatpush.msra.mxu0 0.0
        %4045 = vmatpush.msra.mxu0 0.0
        %4046 = vmatpush.msra.mxu0 0.0
        %4047 = vmatpush.msra.mxu0 0.0
        %4048 = vmatpush.msra.mxu0 0.0
        %4049 = vmatpush.msra.mxu0 0.0
        %4050 = vmatpush.msra.mxu0 0.0
        %4051 = vmatpush.msra.mxu0 0.0
        %4052 = vmatpush.msra.mxu0 0.0
        %4053 = vmatpush.msra.mxu0 %v4039
        %4054 = vmatpush.msra.mxu0 %v3339
        %4055 = vmatpush.msra.mxu0 %v3336
        %4056 = vmatpush.msra.mxu0 %v3334
        %4057 = vmatmul.f32.gmra.mxu0 %v4027
        %v4058 = vpop.f32.mrf.mxu0
        %v4059 = vadd.f32 0.0, %v4058
        %4060 = vmatmul.f32.gmra.mxu0 %v4030
        %v4061 = vpop.f32.mrf.mxu0
        %v4062 = vadd.f32 0.0, %v4061
        %4063 = vmatmul.f32.gmra.mxu0 %v4033
        %v4064 = vpop.f32.mrf.mxu0
        %v4065 = vadd.f32 0.0, %v4064
        %4066 = vmatmul.f32.gmra.mxu0 %v4036
        %v4067 = vpop.f32.mrf.mxu0
        %v4068 = vadd.f32 0.0, %v4067
        %4069 = vdwg.mxu0
        %v4070 = vpack.c.bf16 %v4059, %v4059
        %v4071 = vpack.c.bf16 %v4062, %v4062
        %v4072 = vpack.c.bf16 %v4065, %v4065
        %v4073 = vpack.c.bf16 %v4068, %v4068
        %4074 = vst [vmem:[#allocation3 + $0xc] sm:$0xf] %v4070
        %4075 = vst [vmem:[#allocation3 + $0x4c] sm:$0xf] %v4071
        %4076 = vst [vmem:[#allocation3 + $0x8c] sm:$0xf] %v4072
        %4077 = vst [vmem:[#allocation3 + $0xcc] sm:$0x1] %v4073
        %4078 = vmatpush.xpose.msra.mxu0 0.0
        %4079 = vmatpush.xpose.msra.mxu0 0.0
        %4080 = vmatpush.xpose.msra.mxu0 0.0
        %4081 = vmatpush.xpose.msra.mxu0 0.0
        %4082 = vmatpush.xpose.msra.mxu0 0.0
        %4083 = vmatpush.xpose.msra.mxu0 0.0
        %4084 = vmatpush.xpose.msra.mxu0 0.0
        %4085 = vmatpush.xpose.msra.mxu0 0.0
        %4086 = vmatpush.xpose.msra.mxu0 0.0
        %4087 = vmatpush.xpose.msra.mxu0 0.0
        %4088 = vmatpush.xpose.msra.mxu0 0.0
        %4089 = vmatpush.xpose.msra.mxu0 0.0
        %4090 = vmatpush.xpose.msra.mxu0 %v3056
        %4091 = vmatpush.xpose.msra.mxu0 %v3054
        %4092 = vmatpush.xpose.msra.mxu0 %v3051
        %4093 = vmatpush.xpose.msra.mxu0 %v3049
        %4094 = vmatmul.f32.gmra.mxu0 %v2745
        %v4095 = vpop.f32.mrf.mxu0
        %v4096 = vadd.f32 %v3571, %v4095
        %4097 = vmatmul.f32.gmra.mxu0 %v2747
        %v4098 = vpop.f32.mrf.mxu0
        %v4099 = vadd.f32 %v3572, %v4098
        %4100 = vmatmul.f32.gmra.mxu0 %v2750
        %v4101 = vpop.f32.mrf.mxu0
        %v4102 = vadd.f32 %v3573, %v4101
        %4103 = vmatmul.f32.gmra.mxu0 %v2752
        %v4104 = vpop.f32.mrf.mxu0
        %v4105 = vadd.f32 %v3574, %v4104
        %4106 = vdwg.mxu0
        %v4107 = vsel %vm3604, %v4096, -inf
        %4108 = vmax.xlane.f32.xlu0 %v4107
        %v4109 = vpop.xlane.xlu0 %4108
        %v4110 = vsel %vm3604, %v4099, -inf
        %4111 = vmax.xlane.f32.xlu0 %v4110
        %v4112 = vpop.xlane.xlu0 %4111
        %v4113 = vsel %vm3604, %v4102, -inf
        %4114 = vmax.xlane.f32.xlu0 %v4113
        %v4115 = vpop.xlane.xlu0 %4114
        %v4116 = vsel %vm3614, %v4105, -inf
        %4117 = vmax.xlane.f32.xlu0 %v4116
        %v4118 = vpop.xlane.xlu0 %4117
        %v4119 = vsub.f32 %v4096, %v4109
        %v4120 = vsub.f32 %v4099, %v4112
        %v4121 = vsub.f32 %v4102, %v4115
        %v4122 = vsub.f32 %v4105, %v4118
        %v4123 = vmul.f32 %v4119, 1.442695
        %v4124 = vpow.pop %v4123
        %v4125 = vmul.f32 %v4120, 1.442695
        %v4126 = vpow.pop %v4125
        %v4127 = vmul.f32 %v4121, 1.442695
        %v4128 = vpow.pop %v4127
        %v4129 = vmul.f32 %v4122, 1.442695
        %v4130 = vpow.pop %v4129
        %v4131 = vsel %vm3604, %v4124, 0.0
        %4132 = vadd.xlane.f32.xlu0 %v4131
        %v4133 = vpop.xlane.xlu0 %4132
        %v4134 = vsel %vm3604, %v4126, 0.0
        %4135 = vadd.xlane.f32.xlu0 %v4134
        %v4136 = vpop.xlane.xlu0 %4135
        %v4137 = vsel %vm3604, %v4128, 0.0
        %4138 = vadd.xlane.f32.xlu0 %v4137
        %v4139 = vpop.xlane.xlu0 %4138
        %v4140 = vsel %vm3614, %v4130, 0.0
        %4141 = vadd.xlane.f32.xlu0 %v4140
        %v4142 = vpop.xlane.xlu0 %4141
        %v4143 = vrcp.pop %v4133
        %v4144 = vrcp.pop %v4136
        %v4145 = vrcp.pop %v4139
        %v4146 = vrcp.pop %v4142
        %v4147 = vmul.f32 %v4124, %v4143
        %v4148 = vmul.f32 %v4126, %v4144
        %v4149 = vmul.f32 %v4128, %v4145
        %v4150 = vmul.f32 %v4130, %v4146
        %v4152 = vsel %vm3604, %v4147, 0
        %v4155 = vsel %vm3604, %v4148, 0
        %v4158 = vsel %vm3604, %v4149, 0
        %v4161 = vsel %vm3604, %v4150, 0
        %v4164 = vsel %vm3662, %v3360, 0
        %4166 = vmatpush.msra.mxu0 0.0
        %4167 = vmatpush.msra.mxu0 0.0
        %4168 = vmatpush.msra.mxu0 0.0
        %4169 = vmatpush.msra.mxu0 0.0
        %4170 = vmatpush.msra.mxu0 0.0
        %4171 = vmatpush.msra.mxu0 0.0
        %4172 = vmatpush.msra.mxu0 0.0
        %4173 = vmatpush.msra.mxu0 0.0
        %4174 = vmatpush.msra.mxu0 0.0
        %4175 = vmatpush.msra.mxu0 0.0
        %4176 = vmatpush.msra.mxu0 0.0
        %4177 = vmatpush.msra.mxu0 0.0
        %4178 = vmatpush.msra.mxu0 %v4164
        %4179 = vmatpush.msra.mxu0 %v3358
        %4180 = vmatpush.msra.mxu0 %v3355
        %4181 = vmatpush.msra.mxu0 %v3353
        %4182 = vmatmul.f32.gmra.mxu0 %v4152
        %v4183 = vpop.f32.mrf.mxu0
        %v4184 = vadd.f32 0.0, %v4183
        %4185 = vmatmul.f32.gmra.mxu0 %v4155
        %v4186 = vpop.f32.mrf.mxu0
        %v4187 = vadd.f32 0.0, %v4186
        %4188 = vmatmul.f32.gmra.mxu0 %v4158
        %v4189 = vpop.f32.mrf.mxu0
        %v4190 = vadd.f32 0.0, %v4189
        %4191 = vmatmul.f32.gmra.mxu0 %v4161
        %v4192 = vpop.f32.mrf.mxu0
        %v4193 = vadd.f32 0.0, %v4192
        %4194 = vdwg.mxu0
        %v4195 = vpack.c.bf16 %v4184, %v4184
        %v4196 = vpack.c.bf16 %v4187, %v4187
        %v4197 = vpack.c.bf16 %v4190, %v4190
        %v4198 = vpack.c.bf16 %v4193, %v4193
        %4199 = vst [vmem:[#allocation3 + $0x10] sm:$0xf] %v4195
        %4200 = vst [vmem:[#allocation3 + $0x50] sm:$0xf] %v4196
        %4201 = vst [vmem:[#allocation3 + $0x90] sm:$0xf] %v4197
        %4202 = vst [vmem:[#allocation3 + $0xd0] sm:$0x1] %v4198
        %4203 = vmatpush.xpose.msra.mxu0 0.0
        %4204 = vmatpush.xpose.msra.mxu0 0.0
        %4205 = vmatpush.xpose.msra.mxu0 0.0
        %4206 = vmatpush.xpose.msra.mxu0 0.0
        %4207 = vmatpush.xpose.msra.mxu0 0.0
        %4208 = vmatpush.xpose.msra.mxu0 0.0
        %4209 = vmatpush.xpose.msra.mxu0 0.0
        %4210 = vmatpush.xpose.msra.mxu0 0.0
        %4211 = vmatpush.xpose.msra.mxu0 0.0
        %4212 = vmatpush.xpose.msra.mxu0 0.0
        %4213 = vmatpush.xpose.msra.mxu0 0.0
        %4214 = vmatpush.xpose.msra.mxu0 0.0
        %4215 = vmatpush.xpose.msra.mxu0 %v3075
        %4216 = vmatpush.xpose.msra.mxu0 %v3073
        %4217 = vmatpush.xpose.msra.mxu0 %v3070
        %4218 = vmatpush.xpose.msra.mxu0 %v3068
        %4219 = vmatmul.f32.gmra.mxu0 %v2764
        %v4220 = vpop.f32.mrf.mxu0
        %v4221 = vadd.f32 %v3571, %v4220
        %4222 = vmatmul.f32.gmra.mxu0 %v2766
        %v4223 = vpop.f32.mrf.mxu0
        %v4224 = vadd.f32 %v3572, %v4223
        %4225 = vmatmul.f32.gmra.mxu0 %v2769
        %v4226 = vpop.f32.mrf.mxu0
        %v4227 = vadd.f32 %v3573, %v4226
        %4228 = vmatmul.f32.gmra.mxu0 %v2771
        %v4229 = vpop.f32.mrf.mxu0
        %v4230 = vadd.f32 %v3574, %v4229
        %4231 = vdwg.mxu0
        %v4232 = vsel %vm3604, %v4221, -inf
        %4233 = vmax.xlane.f32.xlu0 %v4232
        %v4234 = vpop.xlane.xlu0 %4233
        %v4235 = vsel %vm3604, %v4224, -inf
        %4236 = vmax.xlane.f32.xlu0 %v4235
        %v4237 = vpop.xlane.xlu0 %4236
        %v4238 = vsel %vm3604, %v4227, -inf
        %4239 = vmax.xlane.f32.xlu0 %v4238
        %v4240 = vpop.xlane.xlu0 %4239
        %v4241 = vsel %vm3614, %v4230, -inf
        %4242 = vmax.xlane.f32.xlu0 %v4241
        %v4243 = vpop.xlane.xlu0 %4242
        %v4244 = vsub.f32 %v4221, %v4234
        %v4245 = vsub.f32 %v4224, %v4237
        %v4246 = vsub.f32 %v4227, %v4240
        %v4247 = vsub.f32 %v4230, %v4243
        %v4248 = vmul.f32 %v4244, 1.442695
        %v4249 = vpow.pop %v4248
        %v4250 = vmul.f32 %v4245, 1.442695
        %v4251 = vpow.pop %v4250
        %v4252 = vmul.f32 %v4246, 1.442695
        %v4253 = vpow.pop %v4252
        %v4254 = vmul.f32 %v4247, 1.442695
        %v4255 = vpow.pop %v4254
        %v4256 = vsel %vm3604, %v4249, 0.0
        %4257 = vadd.xlane.f32.xlu0 %v4256
        %v4258 = vpop.xlane.xlu0 %4257
        %v4259 = vsel %vm3604, %v4251, 0.0
        %4260 = vadd.xlane.f32.xlu0 %v4259
        %v4261 = vpop.xlane.xlu0 %4260
        %v4262 = vsel %vm3604, %v4253, 0.0
        %4263 = vadd.xlane.f32.xlu0 %v4262
        %v4264 = vpop.xlane.xlu0 %4263
        %v4265 = vsel %vm3614, %v4255, 0.0
        %4266 = vadd.xlane.f32.xlu0 %v4265
        %v4267 = vpop.xlane.xlu0 %4266
        %v4268 = vrcp.pop %v4258
        %v4269 = vrcp.pop %v4261
        %v4270 = vrcp.pop %v4264
        %v4271 = vrcp.pop %v4267
        %v4272 = vmul.f32 %v4249, %v4268
        %v4273 = vmul.f32 %v4251, %v4269
        %v4274 = vmul.f32 %v4253, %v4270
        %v4275 = vmul.f32 %v4255, %v4271
        %v4277 = vsel %vm3604, %v4272, 0
        %v4280 = vsel %vm3604, %v4273, 0
        %v4283 = vsel %vm3604, %v4274, 0
        %v4286 = vsel %vm3604, %v4275, 0
        %v4289 = vsel %vm3662, %v3379, 0
        %4291 = vmatpush.msra.mxu0 0.0
        %4292 = vmatpush.msra.mxu0 0.0
        %4293 = vmatpush.msra.mxu0 0.0
        %4294 = vmatpush.msra.mxu0 0.0
        %4295 = vmatpush.msra.mxu0 0.0
        %4296 = vmatpush.msra.mxu0 0.0
        %4297 = vmatpush.msra.mxu0 0.0
        %4298 = vmatpush.msra.mxu0 0.0
        %4299 = vmatpush.msra.mxu0 0.0
        %4300 = vmatpush.msra.mxu0 0.0
        %4301 = vmatpush.msra.mxu0 0.0
        %4302 = vmatpush.msra.mxu0 0.0
        %4303 = vmatpush.msra.mxu0 %v4289
        %4304 = vmatpush.msra.mxu0 %v3377
        %4305 = vmatpush.msra.mxu0 %v3374
        %4306 = vmatpush.msra.mxu0 %v3372
        %4307 = vmatmul.f32.gmra.mxu0 %v4277
        %v4308 = vpop.f32.mrf.mxu0
        %v4309 = vadd.f32 0.0, %v4308
        %4310 = vmatmul.f32.gmra.mxu0 %v4280
        %v4311 = vpop.f32.mrf.mxu0
        %v4312 = vadd.f32 0.0, %v4311
        %4313 = vmatmul.f32.gmra.mxu0 %v4283
        %v4314 = vpop.f32.mrf.mxu0
        %v4315 = vadd.f32 0.0, %v4314
        %4316 = vmatmul.f32.gmra.mxu0 %v4286
        %v4317 = vpop.f32.mrf.mxu0
        %v4318 = vadd.f32 0.0, %v4317
        %4319 = vdwg.mxu0
        %v4320 = vpack.c.bf16 %v4309, %v4309
        %v4321 = vpack.c.bf16 %v4312, %v4312
        %v4322 = vpack.c.bf16 %v4315, %v4315
        %v4323 = vpack.c.bf16 %v4318, %v4318
        %4324 = vst [vmem:[#allocation3 + $0x14] sm:$0xf] %v4320
        %4325 = vst [vmem:[#allocation3 + $0x54] sm:$0xf] %v4321
        %4326 = vst [vmem:[#allocation3 + $0x94] sm:$0xf] %v4322
        %4327 = vst [vmem:[#allocation3 + $0xd4] sm:$0x1] %v4323
        %4328 = vmatpush.xpose.msra.mxu0 0.0
        %4329 = vmatpush.xpose.msra.mxu0 0.0
        %4330 = vmatpush.xpose.msra.mxu0 0.0
        %4331 = vmatpush.xpose.msra.mxu0 0.0
        %4332 = vmatpush.xpose.msra.mxu0 0.0
        %4333 = vmatpush.xpose.msra.mxu0 0.0
        %4334 = vmatpush.xpose.msra.mxu0 0.0
        %4335 = vmatpush.xpose.msra.mxu0 0.0
        %4336 = vmatpush.xpose.msra.mxu0 0.0
        %4337 = vmatpush.xpose.msra.mxu0 0.0
        %4338 = vmatpush.xpose.msra.mxu0 0.0
        %4339 = vmatpush.xpose.msra.mxu0 0.0
        %4340 = vmatpush.xpose.msra.mxu0 %v3094
        %4341 = vmatpush.xpose.msra.mxu0 %v3092
        %4342 = vmatpush.xpose.msra.mxu0 %v3089
        %4343 = vmatpush.xpose.msra.mxu0 %v3087
        %4344 = vmatmul.f32.gmra.mxu0 %v2783
        %v4345 = vpop.f32.mrf.mxu0
        %v4346 = vadd.f32 %v3571, %v4345
        %4347 = vmatmul.f32.gmra.mxu0 %v2785
        %v4348 = vpop.f32.mrf.mxu0
        %v4349 = vadd.f32 %v3572, %v4348
        %4350 = vmatmul.f32.gmra.mxu0 %v2788
        %v4351 = vpop.f32.mrf.mxu0
        %v4352 = vadd.f32 %v3573, %v4351
        %4353 = vmatmul.f32.gmra.mxu0 %v2790
        %v4354 = vpop.f32.mrf.mxu0
        %v4355 = vadd.f32 %v3574, %v4354
        %4356 = vdwg.mxu0
        %v4357 = vsel %vm3604, %v4346, -inf
        %4358 = vmax.xlane.f32.xlu0 %v4357
        %v4359 = vpop.xlane.xlu0 %4358
        %v4360 = vsel %vm3604, %v4349, -inf
        %4361 = vmax.xlane.f32.xlu0 %v4360
        %v4362 = vpop.xlane.xlu0 %4361
        %v4363 = vsel %vm3604, %v4352, -inf
        %4364 = vmax.xlane.f32.xlu0 %v4363
        %v4365 = vpop.xlane.xlu0 %4364
        %v4366 = vsel %vm3614, %v4355, -inf
        %4367 = vmax.xlane.f32.xlu0 %v4366
        %v4368 = vpop.xlane.xlu0 %4367
        %v4369 = vsub.f32 %v4346, %v4359
        %v4370 = vsub.f32 %v4349, %v4362
        %v4371 = vsub.f32 %v4352, %v4365
        %v4372 = vsub.f32 %v4355, %v4368
        %v4373 = vmul.f32 %v4369, 1.442695
        %v4374 = vpow.pop %v4373
        %v4375 = vmul.f32 %v4370, 1.442695
        %v4376 = vpow.pop %v4375
        %v4377 = vmul.f32 %v4371, 1.442695
        %v4378 = vpow.pop %v4377
        %v4379 = vmul.f32 %v4372, 1.442695
        %v4380 = vpow.pop %v4379
        %v4381 = vsel %vm3604, %v4374, 0.0
        %4382 = vadd.xlane.f32.xlu0 %v4381
        %v4383 = vpop.xlane.xlu0 %4382
        %v4384 = vsel %vm3604, %v4376, 0.0
        %4385 = vadd.xlane.f32.xlu0 %v4384
        %v4386 = vpop.xlane.xlu0 %4385
        %v4387 = vsel %vm3604, %v4378, 0.0
        %4388 = vadd.xlane.f32.xlu0 %v4387
        %v4389 = vpop.xlane.xlu0 %4388
        %v4390 = vsel %vm3614, %v4380, 0.0
        %4391 = vadd.xlane.f32.xlu0 %v4390
        %v4392 = vpop.xlane.xlu0 %4391
        %v4393 = vrcp.pop %v4383
        %v4394 = vrcp.pop %v4386
        %v4395 = vrcp.pop %v4389
        %v4396 = vrcp.pop %v4392
        %v4397 = vmul.f32 %v4374, %v4393
        %v4398 = vmul.f32 %v4376, %v4394
        %v4399 = vmul.f32 %v4378, %v4395
        %v4400 = vmul.f32 %v4380, %v4396
        %v4402 = vsel %vm3604, %v4397, 0
        %v4405 = vsel %vm3604, %v4398, 0
        %v4408 = vsel %vm3604, %v4399, 0
        %v4411 = vsel %vm3604, %v4400, 0
        %v4414 = vsel %vm3662, %v3398, 0
        %4416 = vmatpush.msra.mxu0 0.0
        %4417 = vmatpush.msra.mxu0 0.0
        %4418 = vmatpush.msra.mxu0 0.0
        %4419 = vmatpush.msra.mxu0 0.0
        %4420 = vmatpush.msra.mxu0 0.0
        %4421 = vmatpush.msra.mxu0 0.0
        %4422 = vmatpush.msra.mxu0 0.0
        %4423 = vmatpush.msra.mxu0 0.0
        %4424 = vmatpush.msra.mxu0 0.0
        %4425 = vmatpush.msra.mxu0 0.0
        %4426 = vmatpush.msra.mxu0 0.0
        %4427 = vmatpush.msra.mxu0 0.0
        %4428 = vmatpush.msra.mxu0 %v4414
        %4429 = vmatpush.msra.mxu0 %v3396
        %4430 = vmatpush.msra.mxu0 %v3393
        %4431 = vmatpush.msra.mxu0 %v3391
        %4432 = vmatmul.f32.gmra.mxu0 %v4402
        %v4433 = vpop.f32.mrf.mxu0
        %v4434 = vadd.f32 0.0, %v4433
        %4435 = vmatmul.f32.gmra.mxu0 %v4405
        %v4436 = vpop.f32.mrf.mxu0
        %v4437 = vadd.f32 0.0, %v4436
        %4438 = vmatmul.f32.gmra.mxu0 %v4408
        %v4439 = vpop.f32.mrf.mxu0
        %v4440 = vadd.f32 0.0, %v4439
        %4441 = vmatmul.f32.gmra.mxu0 %v4411
        %v4442 = vpop.f32.mrf.mxu0
        %v4443 = vadd.f32 0.0, %v4442
        %4444 = vdwg.mxu0
        %v4445 = vpack.c.bf16 %v4434, %v4434
        %v4446 = vpack.c.bf16 %v4437, %v4437
        %v4447 = vpack.c.bf16 %v4440, %v4440
        %v4448 = vpack.c.bf16 %v4443, %v4443
        %4449 = vst [vmem:[#allocation3 + $0x18] sm:$0xf] %v4445
        %4450 = vst [vmem:[#allocation3 + $0x58] sm:$0xf] %v4446
        %4451 = vst [vmem:[#allocation3 + $0x98] sm:$0xf] %v4447
        %4452 = vst [vmem:[#allocation3 + $0xd8] sm:$0x1] %v4448
        %4453 = vmatpush.xpose.msra.mxu0 0.0
        %4454 = vmatpush.xpose.msra.mxu0 0.0
        %4455 = vmatpush.xpose.msra.mxu0 0.0
        %4456 = vmatpush.xpose.msra.mxu0 0.0
        %4457 = vmatpush.xpose.msra.mxu0 0.0
        %4458 = vmatpush.xpose.msra.mxu0 0.0
        %4459 = vmatpush.xpose.msra.mxu0 0.0
        %4460 = vmatpush.xpose.msra.mxu0 0.0
        %4461 = vmatpush.xpose.msra.mxu0 0.0
        %4462 = vmatpush.xpose.msra.mxu0 0.0
        %4463 = vmatpush.xpose.msra.mxu0 0.0
        %4464 = vmatpush.xpose.msra.mxu0 0.0
        %4465 = vmatpush.xpose.msra.mxu0 %v3113
        %4466 = vmatpush.xpose.msra.mxu0 %v3111
        %4467 = vmatpush.xpose.msra.mxu0 %v3108
        %4468 = vmatpush.xpose.msra.mxu0 %v3106
        %4469 = vmatmul.f32.gmra.mxu0 %v2802
        %v4470 = vpop.f32.mrf.mxu0
        %v4471 = vadd.f32 %v3571, %v4470
        %4472 = vmatmul.f32.gmra.mxu0 %v2804
        %v4473 = vpop.f32.mrf.mxu0
        %v4474 = vadd.f32 %v3572, %v4473
        %4475 = vmatmul.f32.gmra.mxu0 %v2807
        %v4476 = vpop.f32.mrf.mxu0
        %v4477 = vadd.f32 %v3573, %v4476
        %4478 = vmatmul.f32.gmra.mxu0 %v2809
        %v4479 = vpop.f32.mrf.mxu0
        %v4480 = vadd.f32 %v3574, %v4479
        %4481 = vdwg.mxu0
        %v4482 = vsel %vm3604, %v4471, -inf
        %4483 = vmax.xlane.f32.xlu0 %v4482
        %v4484 = vpop.xlane.xlu0 %4483
        %v4485 = vsel %vm3604, %v4474, -inf
        %4486 = vmax.xlane.f32.xlu0 %v4485
        %v4487 = vpop.xlane.xlu0 %4486
        %v4488 = vsel %vm3604, %v4477, -inf
        %4489 = vmax.xlane.f32.xlu0 %v4488
        %v4490 = vpop.xlane.xlu0 %4489
        %v4491 = vsel %vm3614, %v4480, -inf
        %4492 = vmax.xlane.f32.xlu0 %v4491
        %v4493 = vpop.xlane.xlu0 %4492
        %v4494 = vsub.f32 %v4471, %v4484
        %v4495 = vsub.f32 %v4474, %v4487
        %v4496 = vsub.f32 %v4477, %v4490
        %v4497 = vsub.f32 %v4480, %v4493
        %v4498 = vmul.f32 %v4494, 1.442695
        %v4499 = vpow.pop %v4498
        %v4500 = vmul.f32 %v4495, 1.442695
        %v4501 = vpow.pop %v4500
        %v4502 = vmul.f32 %v4496, 1.442695
        %v4503 = vpow.pop %v4502
        %v4504 = vmul.f32 %v4497, 1.442695
        %v4505 = vpow.pop %v4504
        %v4506 = vsel %vm3604, %v4499, 0.0
        %4507 = vadd.xlane.f32.xlu0 %v4506
        %v4508 = vpop.xlane.xlu0 %4507
        %v4509 = vsel %vm3604, %v4501, 0.0
        %4510 = vadd.xlane.f32.xlu0 %v4509
        %v4511 = vpop.xlane.xlu0 %4510
        %v4512 = vsel %vm3604, %v4503, 0.0
        %4513 = vadd.xlane.f32.xlu0 %v4512
        %v4514 = vpop.xlane.xlu0 %4513
        %v4515 = vsel %vm3614, %v4505, 0.0
        %4516 = vadd.xlane.f32.xlu0 %v4515
        %v4517 = vpop.xlane.xlu0 %4516
        %v4518 = vrcp.pop %v4508
        %v4519 = vrcp.pop %v4511
        %v4520 = vrcp.pop %v4514
        %v4521 = vrcp.pop %v4517
        %v4522 = vmul.f32 %v4499, %v4518
        %v4523 = vmul.f32 %v4501, %v4519
        %v4524 = vmul.f32 %v4503, %v4520
        %v4525 = vmul.f32 %v4505, %v4521
        %v4527 = vsel %vm3604, %v4522, 0
        %v4530 = vsel %vm3604, %v4523, 0
        %v4533 = vsel %vm3604, %v4524, 0
        %v4536 = vsel %vm3604, %v4525, 0
        %v4539 = vsel %vm3662, %v3417, 0
        %4541 = vmatpush.msra.mxu0 0.0
        %4542 = vmatpush.msra.mxu0 0.0
        %4543 = vmatpush.msra.mxu0 0.0
        %4544 = vmatpush.msra.mxu0 0.0
        %4545 = vmatpush.msra.mxu0 0.0
        %4546 = vmatpush.msra.mxu0 0.0
        %4547 = vmatpush.msra.mxu0 0.0
        %4548 = vmatpush.msra.mxu0 0.0
        %4549 = vmatpush.msra.mxu0 0.0
        %4550 = vmatpush.msra.mxu0 0.0
        %4551 = vmatpush.msra.mxu0 0.0
        %4552 = vmatpush.msra.mxu0 0.0
        %4553 = vmatpush.msra.mxu0 %v4539
        %4554 = vmatpush.msra.mxu0 %v3415
        %4555 = vmatpush.msra.mxu0 %v3412
        %4556 = vmatpush.msra.mxu0 %v3410
        %4557 = vmatmul.f32.gmra.mxu0 %v4527
        %v4558 = vpop.f32.mrf.mxu0
        %v4559 = vadd.f32 0.0, %v4558
        %4560 = vmatmul.f32.gmra.mxu0 %v4530
        %v4561 = vpop.f32.mrf.mxu0
        %v4562 = vadd.f32 0.0, %v4561
        %4563 = vmatmul.f32.gmra.mxu0 %v4533
        %v4564 = vpop.f32.mrf.mxu0
        %v4565 = vadd.f32 0.0, %v4564
        %4566 = vmatmul.f32.gmra.mxu0 %v4536
        %v4567 = vpop.f32.mrf.mxu0
        %v4568 = vadd.f32 0.0, %v4567
        %4569 = vdwg.mxu0
        %v4570 = vpack.c.bf16 %v4559, %v4559
        %v4571 = vpack.c.bf16 %v4562, %v4562
        %v4572 = vpack.c.bf16 %v4565, %v4565
        %v4573 = vpack.c.bf16 %v4568, %v4568
        %4574 = vst [vmem:[#allocation3 + $0x1c] sm:$0xf] %v4570
        %4575 = vst [vmem:[#allocation3 + $0x5c] sm:$0xf] %v4571
        %4576 = vst [vmem:[#allocation3 + $0x9c] sm:$0xf] %v4572
        %4577 = vst [vmem:[#allocation3 + $0xdc] sm:$0x1] %v4573
        %4578 = vmatpush.xpose.msra.mxu0 0.0
        %4579 = vmatpush.xpose.msra.mxu0 0.0
        %4580 = vmatpush.xpose.msra.mxu0 0.0
        %4581 = vmatpush.xpose.msra.mxu0 0.0
        %4582 = vmatpush.xpose.msra.mxu0 0.0
        %4583 = vmatpush.xpose.msra.mxu0 0.0
        %4584 = vmatpush.xpose.msra.mxu0 0.0
        %4585 = vmatpush.xpose.msra.mxu0 0.0
        %4586 = vmatpush.xpose.msra.mxu0 0.0
        %4587 = vmatpush.xpose.msra.mxu0 0.0
        %4588 = vmatpush.xpose.msra.mxu0 0.0
        %4589 = vmatpush.xpose.msra.mxu0 0.0
        %4590 = vmatpush.xpose.msra.mxu0 %v3132
        %4591 = vmatpush.xpose.msra.mxu0 %v3130
        %4592 = vmatpush.xpose.msra.mxu0 %v3127
        %4593 = vmatpush.xpose.msra.mxu0 %v3125
        %4594 = vmatmul.f32.gmra.mxu0 %v2821
        %v4595 = vpop.f32.mrf.mxu0
        %v4596 = vadd.f32 %v3571, %v4595
        %4597 = vmatmul.f32.gmra.mxu0 %v2823
        %v4598 = vpop.f32.mrf.mxu0
        %v4599 = vadd.f32 %v3572, %v4598
        %4600 = vmatmul.f32.gmra.mxu0 %v2826
        %v4601 = vpop.f32.mrf.mxu0
        %v4602 = vadd.f32 %v3573, %v4601
        %4603 = vmatmul.f32.gmra.mxu0 %v2828
        %v4604 = vpop.f32.mrf.mxu0
        %v4605 = vadd.f32 %v3574, %v4604
        %4606 = vdwg.mxu0
        %v4607 = vsel %vm3604, %v4596, -inf
        %4608 = vmax.xlane.f32.xlu0 %v4607
        %v4609 = vpop.xlane.xlu0 %4608
        %v4610 = vsel %vm3604, %v4599, -inf
        %4611 = vmax.xlane.f32.xlu0 %v4610
        %v4612 = vpop.xlane.xlu0 %4611
        %v4613 = vsel %vm3604, %v4602, -inf
        %4614 = vmax.xlane.f32.xlu0 %v4613
        %v4615 = vpop.xlane.xlu0 %4614
        %v4616 = vsel %vm3614, %v4605, -inf
        %4617 = vmax.xlane.f32.xlu0 %v4616
        %v4618 = vpop.xlane.xlu0 %4617
        %v4619 = vsub.f32 %v4596, %v4609
        %v4620 = vsub.f32 %v4599, %v4612
        %v4621 = vsub.f32 %v4602, %v4615
        %v4622 = vsub.f32 %v4605, %v4618
        %v4623 = vmul.f32 %v4619, 1.442695
        %v4624 = vpow.pop %v4623
        %v4625 = vmul.f32 %v4620, 1.442695
        %v4626 = vpow.pop %v4625
        %v4627 = vmul.f32 %v4621, 1.442695
        %v4628 = vpow.pop %v4627
        %v4629 = vmul.f32 %v4622, 1.442695
        %v4630 = vpow.pop %v4629
        %v4631 = vsel %vm3604, %v4624, 0.0
        %4632 = vadd.xlane.f32.xlu0 %v4631
        %v4633 = vpop.xlane.xlu0 %4632
        %v4634 = vsel %vm3604, %v4626, 0.0
        %4635 = vadd.xlane.f32.xlu0 %v4634
        %v4636 = vpop.xlane.xlu0 %4635
        %v4637 = vsel %vm3604, %v4628, 0.0
        %4638 = vadd.xlane.f32.xlu0 %v4637
        %v4639 = vpop.xlane.xlu0 %4638
        %v4640 = vsel %vm3614, %v4630, 0.0
        %4641 = vadd.xlane.f32.xlu0 %v4640
        %v4642 = vpop.xlane.xlu0 %4641
        %v4643 = vrcp.pop %v4633
        %v4644 = vrcp.pop %v4636
        %v4645 = vrcp.pop %v4639
        %v4646 = vrcp.pop %v4642
        %v4647 = vmul.f32 %v4624, %v4643
        %v4648 = vmul.f32 %v4626, %v4644
        %v4649 = vmul.f32 %v4628, %v4645
        %v4650 = vmul.f32 %v4630, %v4646
        %v4652 = vsel %vm3604, %v4647, 0
        %v4655 = vsel %vm3604, %v4648, 0
        %v4658 = vsel %vm3604, %v4649, 0
        %v4661 = vsel %vm3604, %v4650, 0
        %v4664 = vsel %vm3662, %v3436, 0
        %4666 = vmatpush.msra.mxu0 0.0
        %4667 = vmatpush.msra.mxu0 0.0
        %4668 = vmatpush.msra.mxu0 0.0
        %4669 = vmatpush.msra.mxu0 0.0
        %4670 = vmatpush.msra.mxu0 0.0
        %4671 = vmatpush.msra.mxu0 0.0
        %4672 = vmatpush.msra.mxu0 0.0
        %4673 = vmatpush.msra.mxu0 0.0
        %4674 = vmatpush.msra.mxu0 0.0
        %4675 = vmatpush.msra.mxu0 0.0
        %4676 = vmatpush.msra.mxu0 0.0
        %4677 = vmatpush.msra.mxu0 0.0
        %4678 = vmatpush.msra.mxu0 %v4664
        %4679 = vmatpush.msra.mxu0 %v3434
        %4680 = vmatpush.msra.mxu0 %v3431
        %4681 = vmatpush.msra.mxu0 %v3429
        %4682 = vmatmul.f32.gmra.mxu0 %v4652
        %v4683 = vpop.f32.mrf.mxu0
        %v4684 = vadd.f32 0.0, %v4683
        %4685 = vmatmul.f32.gmra.mxu0 %v4655
        %v4686 = vpop.f32.mrf.mxu0
        %v4687 = vadd.f32 0.0, %v4686
        %4688 = vmatmul.f32.gmra.mxu0 %v4658
        %v4689 = vpop.f32.mrf.mxu0
        %v4690 = vadd.f32 0.0, %v4689
        %4691 = vmatmul.f32.gmra.mxu0 %v4661
        %v4692 = vpop.f32.mrf.mxu0
        %v4693 = vadd.f32 0.0, %v4692
        %4694 = vdwg.mxu0
        %v4695 = vpack.c.bf16 %v4684, %v4684
        %v4696 = vpack.c.bf16 %v4687, %v4687
        %v4697 = vpack.c.bf16 %v4690, %v4690
        %v4698 = vpack.c.bf16 %v4693, %v4693
        %4699 = vst [vmem:[#allocation3 + $0x20] sm:$0xf] %v4695
        %4700 = vst [vmem:[#allocation3 + $0x60] sm:$0xf] %v4696
        %4701 = vst [vmem:[#allocation3 + $0xa0] sm:$0xf] %v4697
        %4702 = vst [vmem:[#allocation3 + $0xe0] sm:$0x1] %v4698
        %4703 = vmatpush.xpose.msra.mxu0 0.0
        %4704 = vmatpush.xpose.msra.mxu0 0.0
        %4705 = vmatpush.xpose.msra.mxu0 0.0
        %4706 = vmatpush.xpose.msra.mxu0 0.0
        %4707 = vmatpush.xpose.msra.mxu0 0.0
        %4708 = vmatpush.xpose.msra.mxu0 0.0
        %4709 = vmatpush.xpose.msra.mxu0 0.0
        %4710 = vmatpush.xpose.msra.mxu0 0.0
        %4711 = vmatpush.xpose.msra.mxu0 0.0
        %4712 = vmatpush.xpose.msra.mxu0 0.0
        %4713 = vmatpush.xpose.msra.mxu0 0.0
        %4714 = vmatpush.xpose.msra.mxu0 0.0
        %4715 = vmatpush.xpose.msra.mxu0 %v3151
        %4716 = vmatpush.xpose.msra.mxu0 %v3149
        %4717 = vmatpush.xpose.msra.mxu0 %v3146
        %4718 = vmatpush.xpose.msra.mxu0 %v3144
        %4719 = vmatmul.f32.gmra.mxu0 %v2840
        %v4720 = vpop.f32.mrf.mxu0
        %v4721 = vadd.f32 %v3571, %v4720
        %4722 = vmatmul.f32.gmra.mxu0 %v2842
        %v4723 = vpop.f32.mrf.mxu0
        %v4724 = vadd.f32 %v3572, %v4723
        %4725 = vmatmul.f32.gmra.mxu0 %v2845
        %v4726 = vpop.f32.mrf.mxu0
        %v4727 = vadd.f32 %v3573, %v4726
        %4728 = vmatmul.f32.gmra.mxu0 %v2847
        %v4729 = vpop.f32.mrf.mxu0
        %v4730 = vadd.f32 %v3574, %v4729
        %4731 = vdwg.mxu0
        %v4732 = vsel %vm3604, %v4721, -inf
        %4733 = vmax.xlane.f32.xlu0 %v4732
        %v4734 = vpop.xlane.xlu0 %4733
        %v4735 = vsel %vm3604, %v4724, -inf
        %4736 = vmax.xlane.f32.xlu0 %v4735
        %v4737 = vpop.xlane.xlu0 %4736
        %v4738 = vsel %vm3604, %v4727, -inf
        %4739 = vmax.xlane.f32.xlu0 %v4738
        %v4740 = vpop.xlane.xlu0 %4739
        %v4741 = vsel %vm3614, %v4730, -inf
        %4742 = vmax.xlane.f32.xlu0 %v4741
        %v4743 = vpop.xlane.xlu0 %4742
        %v4744 = vsub.f32 %v4721, %v4734
        %v4745 = vsub.f32 %v4724, %v4737
        %v4746 = vsub.f32 %v4727, %v4740
        %v4747 = vsub.f32 %v4730, %v4743
        %v4748 = vmul.f32 %v4744, 1.442695
        %v4749 = vpow.pop %v4748
        %v4750 = vmul.f32 %v4745, 1.442695
        %v4751 = vpow.pop %v4750
        %v4752 = vmul.f32 %v4746, 1.442695
        %v4753 = vpow.pop %v4752
        %v4754 = vmul.f32 %v4747, 1.442695
        %v4755 = vpow.pop %v4754
        %v4756 = vsel %vm3604, %v4749, 0.0
        %4757 = vadd.xlane.f32.xlu0 %v4756
        %v4758 = vpop.xlane.xlu0 %4757
        %v4759 = vsel %vm3604, %v4751, 0.0
        %4760 = vadd.xlane.f32.xlu0 %v4759
        %v4761 = vpop.xlane.xlu0 %4760
        %v4762 = vsel %vm3604, %v4753, 0.0
        %4763 = vadd.xlane.f32.xlu0 %v4762
        %v4764 = vpop.xlane.xlu0 %4763
        %v4765 = vsel %vm3614, %v4755, 0.0
        %4766 = vadd.xlane.f32.xlu0 %v4765
        %v4767 = vpop.xlane.xlu0 %4766
        %v4768 = vrcp.pop %v4758
        %v4769 = vrcp.pop %v4761
        %v4770 = vrcp.pop %v4764
        %v4771 = vrcp.pop %v4767
        %v4772 = vmul.f32 %v4749, %v4768
        %v4773 = vmul.f32 %v4751, %v4769
        %v4774 = vmul.f32 %v4753, %v4770
        %v4775 = vmul.f32 %v4755, %v4771
        %v4777 = vsel %vm3604, %v4772, 0
        %v4780 = vsel %vm3604, %v4773, 0
        %v4783 = vsel %vm3604, %v4774, 0
        %v4786 = vsel %vm3604, %v4775, 0
        %v4789 = vsel %vm3662, %v3455, 0
        %4791 = vmatpush.msra.mxu0 0.0
        %4792 = vmatpush.msra.mxu0 0.0
        %4793 = vmatpush.msra.mxu0 0.0
        %4794 = vmatpush.msra.mxu0 0.0
        %4795 = vmatpush.msra.mxu0 0.0
        %4796 = vmatpush.msra.mxu0 0.0
        %4797 = vmatpush.msra.mxu0 0.0
        %4798 = vmatpush.msra.mxu0 0.0
        %4799 = vmatpush.msra.mxu0 0.0
        %4800 = vmatpush.msra.mxu0 0.0
        %4801 = vmatpush.msra.mxu0 0.0
        %4802 = vmatpush.msra.mxu0 0.0
        %4803 = vmatpush.msra.mxu0 %v4789
        %4804 = vmatpush.msra.mxu0 %v3453
        %4805 = vmatpush.msra.mxu0 %v3450
        %4806 = vmatpush.msra.mxu0 %v3448
        %4807 = vmatmul.f32.gmra.mxu0 %v4777
        %v4808 = vpop.f32.mrf.mxu0
        %v4809 = vadd.f32 0.0, %v4808
        %4810 = vmatmul.f32.gmra.mxu0 %v4780
        %v4811 = vpop.f32.mrf.mxu0
        %v4812 = vadd.f32 0.0, %v4811
        %4813 = vmatmul.f32.gmra.mxu0 %v4783
        %v4814 = vpop.f32.mrf.mxu0
        %v4815 = vadd.f32 0.0, %v4814
        %4816 = vmatmul.f32.gmra.mxu0 %v4786
        %v4817 = vpop.f32.mrf.mxu0
        %v4818 = vadd.f32 0.0, %v4817
        %4819 = vdwg.mxu0
        %v4820 = vpack.c.bf16 %v4809, %v4809
        %v4821 = vpack.c.bf16 %v4812, %v4812
        %v4822 = vpack.c.bf16 %v4815, %v4815
        %v4823 = vpack.c.bf16 %v4818, %v4818
        %4824 = vst [vmem:[#allocation3 + $0x24] sm:$0xf] %v4820
        %4825 = vst [vmem:[#allocation3 + $0x64] sm:$0xf] %v4821
        %4826 = vst [vmem:[#allocation3 + $0xa4] sm:$0xf] %v4822
        %4827 = vst [vmem:[#allocation3 + $0xe4] sm:$0x1] %v4823
        %4828 = vmatpush.xpose.msra.mxu0 0.0
        %4829 = vmatpush.xpose.msra.mxu0 0.0
        %4830 = vmatpush.xpose.msra.mxu0 0.0
        %4831 = vmatpush.xpose.msra.mxu0 0.0
        %4832 = vmatpush.xpose.msra.mxu0 0.0
        %4833 = vmatpush.xpose.msra.mxu0 0.0
        %4834 = vmatpush.xpose.msra.mxu0 0.0
        %4835 = vmatpush.xpose.msra.mxu0 0.0
        %4836 = vmatpush.xpose.msra.mxu0 0.0
        %4837 = vmatpush.xpose.msra.mxu0 0.0
        %4838 = vmatpush.xpose.msra.mxu0 0.0
        %4839 = vmatpush.xpose.msra.mxu0 0.0
        %4840 = vmatpush.xpose.msra.mxu0 %v3170
        %4841 = vmatpush.xpose.msra.mxu0 %v3168
        %4842 = vmatpush.xpose.msra.mxu0 %v3165
        %4843 = vmatpush.xpose.msra.mxu0 %v3163
        %4844 = vmatmul.f32.gmra.mxu0 %v2859
        %v4845 = vpop.f32.mrf.mxu0
        %v4846 = vadd.f32 %v3571, %v4845
        %4847 = vmatmul.f32.gmra.mxu0 %v2861
        %v4848 = vpop.f32.mrf.mxu0
        %v4849 = vadd.f32 %v3572, %v4848
        %4850 = vmatmul.f32.gmra.mxu0 %v2864
        %v4851 = vpop.f32.mrf.mxu0
        %v4852 = vadd.f32 %v3573, %v4851
        %4853 = vmatmul.f32.gmra.mxu0 %v2866
        %v4854 = vpop.f32.mrf.mxu0
        %v4855 = vadd.f32 %v3574, %v4854
        %4856 = vdwg.mxu0
        %v4857 = vsel %vm3604, %v4846, -inf
        %4858 = vmax.xlane.f32.xlu0 %v4857
        %v4859 = vpop.xlane.xlu0 %4858
        %v4860 = vsel %vm3604, %v4849, -inf
        %4861 = vmax.xlane.f32.xlu0 %v4860
        %v4862 = vpop.xlane.xlu0 %4861
        %v4863 = vsel %vm3604, %v4852, -inf
        %4864 = vmax.xlane.f32.xlu0 %v4863
        %v4865 = vpop.xlane.xlu0 %4864
        %v4866 = vsel %vm3614, %v4855, -inf
        %4867 = vmax.xlane.f32.xlu0 %v4866
        %v4868 = vpop.xlane.xlu0 %4867
        %v4869 = vsub.f32 %v4846, %v4859
        %v4870 = vsub.f32 %v4849, %v4862
        %v4871 = vsub.f32 %v4852, %v4865
        %v4872 = vsub.f32 %v4855, %v4868
        %v4873 = vmul.f32 %v4869, 1.442695
        %v4874 = vpow.pop %v4873
        %v4875 = vmul.f32 %v4870, 1.442695
        %v4876 = vpow.pop %v4875
        %v4877 = vmul.f32 %v4871, 1.442695
        %v4878 = vpow.pop %v4877
        %v4879 = vmul.f32 %v4872, 1.442695
        %v4880 = vpow.pop %v4879
        %v4881 = vsel %vm3604, %v4874, 0.0
        %4882 = vadd.xlane.f32.xlu0 %v4881
        %v4883 = vpop.xlane.xlu0 %4882
        %v4884 = vsel %vm3604, %v4876, 0.0
        %4885 = vadd.xlane.f32.xlu0 %v4884
        %v4886 = vpop.xlane.xlu0 %4885
        %v4887 = vsel %vm3604, %v4878, 0.0
        %4888 = vadd.xlane.f32.xlu0 %v4887
        %v4889 = vpop.xlane.xlu0 %4888
        %v4890 = vsel %vm3614, %v4880, 0.0
        %4891 = vadd.xlane.f32.xlu0 %v4890
        %v4892 = vpop.xlane.xlu0 %4891
        %v4893 = vrcp.pop %v4883
        %v4894 = vrcp.pop %v4886
        %v4895 = vrcp.pop %v4889
        %v4896 = vrcp.pop %v4892
        %v4897 = vmul.f32 %v4874, %v4893
        %v4898 = vmul.f32 %v4876, %v4894
        %v4899 = vmul.f32 %v4878, %v4895
        %v4900 = vmul.f32 %v4880, %v4896
        %v4902 = vsel %vm3604, %v4897, 0
        %v4905 = vsel %vm3604, %v4898, 0
        %v4908 = vsel %vm3604, %v4899, 0
        %v4911 = vsel %vm3604, %v4900, 0
        %v4914 = vsel %vm3662, %v3474, 0
        %4916 = vmatpush.msra.mxu0 0.0
        %4917 = vmatpush.msra.mxu0 0.0
        %4918 = vmatpush.msra.mxu0 0.0
        %4919 = vmatpush.msra.mxu0 0.0
        %4920 = vmatpush.msra.mxu0 0.0
        %4921 = vmatpush.msra.mxu0 0.0
        %4922 = vmatpush.msra.mxu0 0.0
        %4923 = vmatpush.msra.mxu0 0.0
        %4924 = vmatpush.msra.mxu0 0.0
        %4925 = vmatpush.msra.mxu0 0.0
        %4926 = vmatpush.msra.mxu0 0.0
        %4927 = vmatpush.msra.mxu0 0.0
        %4928 = vmatpush.msra.mxu0 %v4914
        %4929 = vmatpush.msra.mxu0 %v3472
        %4930 = vmatpush.msra.mxu0 %v3469
        %4931 = vmatpush.msra.mxu0 %v3467
        %4932 = vmatmul.f32.gmra.mxu0 %v4902
        %v4933 = vpop.f32.mrf.mxu0
        %v4934 = vadd.f32 0.0, %v4933
        %4935 = vmatmul.f32.gmra.mxu0 %v4905
        %v4936 = vpop.f32.mrf.mxu0
        %v4937 = vadd.f32 0.0, %v4936
        %4938 = vmatmul.f32.gmra.mxu0 %v4908
        %v4939 = vpop.f32.mrf.mxu0
        %v4940 = vadd.f32 0.0, %v4939
        %4941 = vmatmul.f32.gmra.mxu0 %v4911
        %v4942 = vpop.f32.mrf.mxu0
        %v4943 = vadd.f32 0.0, %v4942
        %4944 = vdwg.mxu0
        %v4945 = vpack.c.bf16 %v4934, %v4934
        %v4946 = vpack.c.bf16 %v4937, %v4937
        %v4947 = vpack.c.bf16 %v4940, %v4940
        %v4948 = vpack.c.bf16 %v4943, %v4943
        %4949 = vst [vmem:[#allocation3 + $0x28] sm:$0xf] %v4945
        %4950 = vst [vmem:[#allocation3 + $0x68] sm:$0xf] %v4946
        %4951 = vst [vmem:[#allocation3 + $0xa8] sm:$0xf] %v4947
        %4952 = vst [vmem:[#allocation3 + $0xe8] sm:$0x1] %v4948
        %4953 = vmatpush.xpose.msra.mxu0 0.0
        %4954 = vmatpush.xpose.msra.mxu0 0.0
        %4955 = vmatpush.xpose.msra.mxu0 0.0
        %4956 = vmatpush.xpose.msra.mxu0 0.0
        %4957 = vmatpush.xpose.msra.mxu0 0.0
        %4958 = vmatpush.xpose.msra.mxu0 0.0
        %4959 = vmatpush.xpose.msra.mxu0 0.0
        %4960 = vmatpush.xpose.msra.mxu0 0.0
        %4961 = vmatpush.xpose.msra.mxu0 0.0
        %4962 = vmatpush.xpose.msra.mxu0 0.0
        %4963 = vmatpush.xpose.msra.mxu0 0.0
        %4964 = vmatpush.xpose.msra.mxu0 0.0
        %4965 = vmatpush.xpose.msra.mxu0 %v3189
        %4966 = vmatpush.xpose.msra.mxu0 %v3187
        %4967 = vmatpush.xpose.msra.mxu0 %v3184
        %4968 = vmatpush.xpose.msra.mxu0 %v3182
        %4969 = vmatmul.f32.gmra.mxu0 %v2878
        %v4970 = vpop.f32.mrf.mxu0
        %v4971 = vadd.f32 %v3571, %v4970
        %4972 = vmatmul.f32.gmra.mxu0 %v2880
        %v4973 = vpop.f32.mrf.mxu0
        %v4974 = vadd.f32 %v3572, %v4973
        %4975 = vmatmul.f32.gmra.mxu0 %v2883
        %v4976 = vpop.f32.mrf.mxu0
        %v4977 = vadd.f32 %v3573, %v4976
        %4978 = vmatmul.f32.gmra.mxu0 %v2885
        %v4979 = vpop.f32.mrf.mxu0
        %v4980 = vadd.f32 %v3574, %v4979
        %4981 = vdwg.mxu0
        %v4982 = vsel %vm3604, %v4971, -inf
        %4983 = vmax.xlane.f32.xlu0 %v4982
        %v4984 = vpop.xlane.xlu0 %4983
        %v4985 = vsel %vm3604, %v4974, -inf
        %4986 = vmax.xlane.f32.xlu0 %v4985
        %v4987 = vpop.xlane.xlu0 %4986
        %v4988 = vsel %vm3604, %v4977, -inf
        %4989 = vmax.xlane.f32.xlu0 %v4988
        %v4990 = vpop.xlane.xlu0 %4989
        %v4991 = vsel %vm3614, %v4980, -inf
        %4992 = vmax.xlane.f32.xlu0 %v4991
        %v4993 = vpop.xlane.xlu0 %4992
        %v4994 = vsub.f32 %v4971, %v4984
        %v4995 = vsub.f32 %v4974, %v4987
        %v4996 = vsub.f32 %v4977, %v4990
        %v4997 = vsub.f32 %v4980, %v4993
        %v4998 = vmul.f32 %v4994, 1.442695
        %v4999 = vpow.pop %v4998
        %v5000 = vmul.f32 %v4995, 1.442695
        %v5001 = vpow.pop %v5000
        %v5002 = vmul.f32 %v4996, 1.442695
        %v5003 = vpow.pop %v5002
        %v5004 = vmul.f32 %v4997, 1.442695
        %v5005 = vpow.pop %v5004
        %v5006 = vsel %vm3604, %v4999, 0.0
        %5007 = vadd.xlane.f32.xlu0 %v5006
        %v5008 = vpop.xlane.xlu0 %5007
        %v5009 = vsel %vm3604, %v5001, 0.0
        %5010 = vadd.xlane.f32.xlu0 %v5009
        %v5011 = vpop.xlane.xlu0 %5010
        %v5012 = vsel %vm3604, %v5003, 0.0
        %5013 = vadd.xlane.f32.xlu0 %v5012
        %v5014 = vpop.xlane.xlu0 %5013
        %v5015 = vsel %vm3614, %v5005, 0.0
        %5016 = vadd.xlane.f32.xlu0 %v5015
        %v5017 = vpop.xlane.xlu0 %5016
        %v5018 = vrcp.pop %v5008
        %v5019 = vrcp.pop %v5011
        %v5020 = vrcp.pop %v5014
        %v5021 = vrcp.pop %v5017
        %v5022 = vmul.f32 %v4999, %v5018
        %v5023 = vmul.f32 %v5001, %v5019
        %v5024 = vmul.f32 %v5003, %v5020
        %v5025 = vmul.f32 %v5005, %v5021
        %v5027 = vsel %vm3604, %v5022, 0
        %v5030 = vsel %vm3604, %v5023, 0
        %v5033 = vsel %vm3604, %v5024, 0
        %v5036 = vsel %vm3604, %v5025, 0
        %v5039 = vsel %vm3662, %v3493, 0
        %5041 = vmatpush.msra.mxu0 0.0
        %5042 = vmatpush.msra.mxu0 0.0
        %5043 = vmatpush.msra.mxu0 0.0
        %5044 = vmatpush.msra.mxu0 0.0
        %5045 = vmatpush.msra.mxu0 0.0
        %5046 = vmatpush.msra.mxu0 0.0
        %5047 = vmatpush.msra.mxu0 0.0
        %5048 = vmatpush.msra.mxu0 0.0
        %5049 = vmatpush.msra.mxu0 0.0
        %5050 = vmatpush.msra.mxu0 0.0
        %5051 = vmatpush.msra.mxu0 0.0
        %5052 = vmatpush.msra.mxu0 0.0
        %5053 = vmatpush.msra.mxu0 %v5039
        %5054 = vmatpush.msra.mxu0 %v3491
        %5055 = vmatpush.msra.mxu0 %v3488
        %5056 = vmatpush.msra.mxu0 %v3486
        %5057 = vmatmul.f32.gmra.mxu0 %v5027
        %v5058 = vpop.f32.mrf.mxu0
        %v5059 = vadd.f32 0.0, %v5058
        %5060 = vmatmul.f32.gmra.mxu0 %v5030
        %v5061 = vpop.f32.mrf.mxu0
        %v5062 = vadd.f32 0.0, %v5061
        %5063 = vmatmul.f32.gmra.mxu0 %v5033
        %v5064 = vpop.f32.mrf.mxu0
        %v5065 = vadd.f32 0.0, %v5064
        %5066 = vmatmul.f32.gmra.mxu0 %v5036
        %v5067 = vpop.f32.mrf.mxu0
        %v5068 = vadd.f32 0.0, %v5067
        %5069 = vdwg.mxu0
        %v5070 = vpack.c.bf16 %v5059, %v5059
        %v5071 = vpack.c.bf16 %v5062, %v5062
        %v5072 = vpack.c.bf16 %v5065, %v5065
        %v5073 = vpack.c.bf16 %v5068, %v5068
        %5074 = vst [vmem:[#allocation3 + $0x2c] sm:$0xf] %v5070
        %5075 = vst [vmem:[#allocation3 + $0x6c] sm:$0xf] %v5071
        %5076 = vst [vmem:[#allocation3 + $0xac] sm:$0xf] %v5072
        %5077 = vst [vmem:[#allocation3 + $0xec] sm:$0x1] %v5073
        %5078 = vmatpush.xpose.msra.mxu0 0.0
        %5079 = vmatpush.xpose.msra.mxu0 0.0
        %5080 = vmatpush.xpose.msra.mxu0 0.0
        %5081 = vmatpush.xpose.msra.mxu0 0.0
        %5082 = vmatpush.xpose.msra.mxu0 0.0
        %5083 = vmatpush.xpose.msra.mxu0 0.0
        %5084 = vmatpush.xpose.msra.mxu0 0.0
        %5085 = vmatpush.xpose.msra.mxu0 0.0
        %5086 = vmatpush.xpose.msra.mxu0 0.0
        %5087 = vmatpush.xpose.msra.mxu0 0.0
        %5088 = vmatpush.xpose.msra.mxu0 0.0
        %5089 = vmatpush.xpose.msra.mxu0 0.0
        %5090 = vmatpush.xpose.msra.mxu0 %v3208
        %5091 = vmatpush.xpose.msra.mxu0 %v3206
        %5092 = vmatpush.xpose.msra.mxu0 %v3203
        %5093 = vmatpush.xpose.msra.mxu0 %v3201
        %5094 = vmatmul.f32.gmra.mxu0 %v2897
        %v5095 = vpop.f32.mrf.mxu0
        %v5096 = vadd.f32 %v3571, %v5095
        %5097 = vmatmul.f32.gmra.mxu0 %v2899
        %v5098 = vpop.f32.mrf.mxu0
        %v5099 = vadd.f32 %v3572, %v5098
        %5100 = vmatmul.f32.gmra.mxu0 %v2902
        %v5101 = vpop.f32.mrf.mxu0
        %v5102 = vadd.f32 %v3573, %v5101
        %5103 = vmatmul.f32.gmra.mxu0 %v2904
        %v5104 = vpop.f32.mrf.mxu0
        %v5105 = vadd.f32 %v3574, %v5104
        %5106 = vdwg.mxu0
        %v5107 = vsel %vm3604, %v5096, -inf
        %5108 = vmax.xlane.f32.xlu0 %v5107
        %v5109 = vpop.xlane.xlu0 %5108
        %v5110 = vsel %vm3604, %v5099, -inf
        %5111 = vmax.xlane.f32.xlu0 %v5110
        %v5112 = vpop.xlane.xlu0 %5111
        %v5113 = vsel %vm3604, %v5102, -inf
        %5114 = vmax.xlane.f32.xlu0 %v5113
        %v5115 = vpop.xlane.xlu0 %5114
        %v5116 = vsel %vm3614, %v5105, -inf
        %5117 = vmax.xlane.f32.xlu0 %v5116
        %v5118 = vpop.xlane.xlu0 %5117
        %v5119 = vsub.f32 %v5096, %v5109
        %v5120 = vsub.f32 %v5099, %v5112
        %v5121 = vsub.f32 %v5102, %v5115
        %v5122 = vsub.f32 %v5105, %v5118
        %v5123 = vmul.f32 %v5119, 1.442695
        %v5124 = vpow.pop %v5123
        %v5125 = vmul.f32 %v5120, 1.442695
        %v5126 = vpow.pop %v5125
        %v5127 = vmul.f32 %v5121, 1.442695
        %v5128 = vpow.pop %v5127
        %v5129 = vmul.f32 %v5122, 1.442695
        %v5130 = vpow.pop %v5129
        %v5131 = vsel %vm3604, %v5124, 0.0
        %5132 = vadd.xlane.f32.xlu0 %v5131
        %v5133 = vpop.xlane.xlu0 %5132
        %v5134 = vsel %vm3604, %v5126, 0.0
        %5135 = vadd.xlane.f32.xlu0 %v5134
        %v5136 = vpop.xlane.xlu0 %5135
        %v5137 = vsel %vm3604, %v5128, 0.0
        %5138 = vadd.xlane.f32.xlu0 %v5137
        %v5139 = vpop.xlane.xlu0 %5138
        %v5140 = vsel %vm3614, %v5130, 0.0
        %5141 = vadd.xlane.f32.xlu0 %v5140
        %v5142 = vpop.xlane.xlu0 %5141
        %v5143 = vrcp.pop %v5133
        %v5144 = vrcp.pop %v5136
        %v5145 = vrcp.pop %v5139
        %v5146 = vrcp.pop %v5142
        %v5147 = vmul.f32 %v5124, %v5143
        %v5148 = vmul.f32 %v5126, %v5144
        %v5149 = vmul.f32 %v5128, %v5145
        %v5150 = vmul.f32 %v5130, %v5146
        %v5152 = vsel %vm3604, %v5147, 0
        %v5155 = vsel %vm3604, %v5148, 0
        %v5158 = vsel %vm3604, %v5149, 0
        %v5161 = vsel %vm3604, %v5150, 0
        %v5164 = vsel %vm3662, %v3512, 0
        %5166 = vmatpush.msra.mxu0 0.0
        %5167 = vmatpush.msra.mxu0 0.0
        %5168 = vmatpush.msra.mxu0 0.0
        %5169 = vmatpush.msra.mxu0 0.0
        %5170 = vmatpush.msra.mxu0 0.0
        %5171 = vmatpush.msra.mxu0 0.0
        %5172 = vmatpush.msra.mxu0 0.0
        %5173 = vmatpush.msra.mxu0 0.0
        %5174 = vmatpush.msra.mxu0 0.0
        %5175 = vmatpush.msra.mxu0 0.0
        %5176 = vmatpush.msra.mxu0 0.0
        %5177 = vmatpush.msra.mxu0 0.0
        %5178 = vmatpush.msra.mxu0 %v5164
        %5179 = vmatpush.msra.mxu0 %v3510
        %5180 = vmatpush.msra.mxu0 %v3507
        %5181 = vmatpush.msra.mxu0 %v3505
        %5182 = vmatmul.f32.gmra.mxu0 %v5152
        %v5183 = vpop.f32.mrf.mxu0
        %v5184 = vadd.f32 0.0, %v5183
        %5185 = vmatmul.f32.gmra.mxu0 %v5155
        %v5186 = vpop.f32.mrf.mxu0
        %v5187 = vadd.f32 0.0, %v5186
        %5188 = vmatmul.f32.gmra.mxu0 %v5158
        %v5189 = vpop.f32.mrf.mxu0
        %v5190 = vadd.f32 0.0, %v5189
        %5191 = vmatmul.f32.gmra.mxu0 %v5161
        %v5192 = vpop.f32.mrf.mxu0
        %v5193 = vadd.f32 0.0, %v5192
        %5194 = vdwg.mxu0
        %v5195 = vpack.c.bf16 %v5184, %v5184
        %v5196 = vpack.c.bf16 %v5187, %v5187
        %v5197 = vpack.c.bf16 %v5190, %v5190
        %v5198 = vpack.c.bf16 %v5193, %v5193
        %5199 = vst [vmem:[#allocation3 + $0x30] sm:$0xf] %v5195
        %5200 = vst [vmem:[#allocation3 + $0x70] sm:$0xf] %v5196
        %5201 = vst [vmem:[#allocation3 + $0xb0] sm:$0xf] %v5197
        %5202 = vst [vmem:[#allocation3 + $0xf0] sm:$0x1] %v5198
        %5203 = vmatpush.xpose.msra.mxu0 0.0
        %5204 = vmatpush.xpose.msra.mxu0 0.0
        %5205 = vmatpush.xpose.msra.mxu0 0.0
        %5206 = vmatpush.xpose.msra.mxu0 0.0
        %5207 = vmatpush.xpose.msra.mxu0 0.0
        %5208 = vmatpush.xpose.msra.mxu0 0.0
        %5209 = vmatpush.xpose.msra.mxu0 0.0
        %5210 = vmatpush.xpose.msra.mxu0 0.0
        %5211 = vmatpush.xpose.msra.mxu0 0.0
        %5212 = vmatpush.xpose.msra.mxu0 0.0
        %5213 = vmatpush.xpose.msra.mxu0 0.0
        %5214 = vmatpush.xpose.msra.mxu0 0.0
        %5215 = vmatpush.xpose.msra.mxu0 %v3227
        %5216 = vmatpush.xpose.msra.mxu0 %v3225
        %5217 = vmatpush.xpose.msra.mxu0 %v3222
        %5218 = vmatpush.xpose.msra.mxu0 %v3220
        %5219 = vmatmul.f32.gmra.mxu0 %v2916
        %v5220 = vpop.f32.mrf.mxu0
        %v5221 = vadd.f32 %v3571, %v5220
        %5222 = vmatmul.f32.gmra.mxu0 %v2918
        %v5223 = vpop.f32.mrf.mxu0
        %v5224 = vadd.f32 %v3572, %v5223
        %5225 = vmatmul.f32.gmra.mxu0 %v2921
        %v5226 = vpop.f32.mrf.mxu0
        %v5227 = vadd.f32 %v3573, %v5226
        %5228 = vmatmul.f32.gmra.mxu0 %v2923
        %v5229 = vpop.f32.mrf.mxu0
        %v5230 = vadd.f32 %v3574, %v5229
        %5231 = vdwg.mxu0
        %v5232 = vsel %vm3604, %v5221, -inf
        %5233 = vmax.xlane.f32.xlu0 %v5232
        %v5234 = vpop.xlane.xlu0 %5233
        %v5235 = vsel %vm3604, %v5224, -inf
        %5236 = vmax.xlane.f32.xlu0 %v5235
        %v5237 = vpop.xlane.xlu0 %5236
        %v5238 = vsel %vm3604, %v5227, -inf
        %5239 = vmax.xlane.f32.xlu0 %v5238
        %v5240 = vpop.xlane.xlu0 %5239
        %v5241 = vsel %vm3614, %v5230, -inf
        %5242 = vmax.xlane.f32.xlu0 %v5241
        %v5243 = vpop.xlane.xlu0 %5242
        %v5244 = vsub.f32 %v5221, %v5234
        %v5245 = vsub.f32 %v5224, %v5237
        %v5246 = vsub.f32 %v5227, %v5240
        %v5247 = vsub.f32 %v5230, %v5243
        %v5248 = vmul.f32 %v5244, 1.442695
        %v5249 = vpow.pop %v5248
        %v5250 = vmul.f32 %v5245, 1.442695
        %v5251 = vpow.pop %v5250
        %v5252 = vmul.f32 %v5246, 1.442695
        %v5253 = vpow.pop %v5252
        %v5254 = vmul.f32 %v5247, 1.442695
        %v5255 = vpow.pop %v5254
        %v5256 = vsel %vm3604, %v5249, 0.0
        %5257 = vadd.xlane.f32.xlu0 %v5256
        %v5258 = vpop.xlane.xlu0 %5257
        %v5259 = vsel %vm3604, %v5251, 0.0
        %5260 = vadd.xlane.f32.xlu0 %v5259
        %v5261 = vpop.xlane.xlu0 %5260
        %v5262 = vsel %vm3604, %v5253, 0.0
        %5263 = vadd.xlane.f32.xlu0 %v5262
        %v5264 = vpop.xlane.xlu0 %5263
        %v5265 = vsel %vm3614, %v5255, 0.0
        %5266 = vadd.xlane.f32.xlu0 %v5265
        %v5267 = vpop.xlane.xlu0 %5266
        %v5268 = vrcp.pop %v5258
        %v5269 = vrcp.pop %v5261
        %v5270 = vrcp.pop %v5264
        %v5271 = vrcp.pop %v5267
        %v5272 = vmul.f32 %v5249, %v5268
        %v5273 = vmul.f32 %v5251, %v5269
        %v5274 = vmul.f32 %v5253, %v5270
        %v5275 = vmul.f32 %v5255, %v5271
        %v5277 = vsel %vm3604, %v5272, 0
        %v5280 = vsel %vm3604, %v5273, 0
        %v5283 = vsel %vm3604, %v5274, 0
        %v5286 = vsel %vm3604, %v5275, 0
        %v5289 = vsel %vm3662, %v3531, 0
        %5291 = vmatpush.msra.mxu0 0.0
        %5292 = vmatpush.msra.mxu0 0.0
        %5293 = vmatpush.msra.mxu0 0.0
        %5294 = vmatpush.msra.mxu0 0.0
        %5295 = vmatpush.msra.mxu0 0.0
        %5296 = vmatpush.msra.mxu0 0.0
        %5297 = vmatpush.msra.mxu0 0.0
        %5298 = vmatpush.msra.mxu0 0.0
        %5299 = vmatpush.msra.mxu0 0.0
        %5300 = vmatpush.msra.mxu0 0.0
        %5301 = vmatpush.msra.mxu0 0.0
        %5302 = vmatpush.msra.mxu0 0.0
        %5303 = vmatpush.msra.mxu0 %v5289
        %5304 = vmatpush.msra.mxu0 %v3529
        %5305 = vmatpush.msra.mxu0 %v3526
        %5306 = vmatpush.msra.mxu0 %v3524
        %5307 = vmatmul.f32.gmra.mxu0 %v5277
        %v5308 = vpop.f32.mrf.mxu0
        %v5309 = vadd.f32 0.0, %v5308
        %5310 = vmatmul.f32.gmra.mxu0 %v5280
        %v5311 = vpop.f32.mrf.mxu0
        %v5312 = vadd.f32 0.0, %v5311
        %5313 = vmatmul.f32.gmra.mxu0 %v5283
        %v5314 = vpop.f32.mrf.mxu0
        %v5315 = vadd.f32 0.0, %v5314
        %5316 = vmatmul.f32.gmra.mxu0 %v5286
        %v5317 = vpop.f32.mrf.mxu0
        %v5318 = vadd.f32 0.0, %v5317
        %5319 = vdwg.mxu0
        %v5320 = vpack.c.bf16 %v5309, %v5309
        %v5321 = vpack.c.bf16 %v5312, %v5312
        %v5322 = vpack.c.bf16 %v5315, %v5315
        %v5323 = vpack.c.bf16 %v5318, %v5318
        %5324 = vst [vmem:[#allocation3 + $0x34] sm:$0xf] %v5320
        %5325 = vst [vmem:[#allocation3 + $0x74] sm:$0xf] %v5321
        %5326 = vst [vmem:[#allocation3 + $0xb4] sm:$0xf] %v5322
        %5327 = vst [vmem:[#allocation3 + $0xf4] sm:$0x1] %v5323
        %5328 = vmatpush.xpose.msra.mxu0 0.0
        %5329 = vmatpush.xpose.msra.mxu0 0.0
        %5330 = vmatpush.xpose.msra.mxu0 0.0
        %5331 = vmatpush.xpose.msra.mxu0 0.0
        %5332 = vmatpush.xpose.msra.mxu0 0.0
        %5333 = vmatpush.xpose.msra.mxu0 0.0
        %5334 = vmatpush.xpose.msra.mxu0 0.0
        %5335 = vmatpush.xpose.msra.mxu0 0.0
        %5336 = vmatpush.xpose.msra.mxu0 0.0
        %5337 = vmatpush.xpose.msra.mxu0 0.0
        %5338 = vmatpush.xpose.msra.mxu0 0.0
        %5339 = vmatpush.xpose.msra.mxu0 0.0
        %5340 = vmatpush.xpose.msra.mxu0 %v3246
        %5341 = vmatpush.xpose.msra.mxu0 %v3244
        %5342 = vmatpush.xpose.msra.mxu0 %v3241
        %5343 = vmatpush.xpose.msra.mxu0 %v3239
        %5344 = vmatmul.f32.gmra.mxu0 %v2935
        %v5345 = vpop.f32.mrf.mxu0
        %v5346 = vadd.f32 %v3571, %v5345
        %5347 = vmatmul.f32.gmra.mxu0 %v2937
        %v5348 = vpop.f32.mrf.mxu0
        %v5349 = vadd.f32 %v3572, %v5348
        %5350 = vmatmul.f32.gmra.mxu0 %v2940
        %v5351 = vpop.f32.mrf.mxu0
        %v5352 = vadd.f32 %v3573, %v5351
        %5353 = vmatmul.f32.gmra.mxu0 %v2942
        %v5354 = vpop.f32.mrf.mxu0
        %v5355 = vadd.f32 %v3574, %v5354
        %5356 = vdwg.mxu0
        %v5357 = vsel %vm3604, %v5346, -inf
        %5358 = vmax.xlane.f32.xlu0 %v5357
        %v5359 = vpop.xlane.xlu0 %5358
        %v5360 = vsel %vm3604, %v5349, -inf
        %5361 = vmax.xlane.f32.xlu0 %v5360
        %v5362 = vpop.xlane.xlu0 %5361
        %v5363 = vsel %vm3604, %v5352, -inf
        %5364 = vmax.xlane.f32.xlu0 %v5363
        %v5365 = vpop.xlane.xlu0 %5364
        %v5366 = vsel %vm3614, %v5355, -inf
        %5367 = vmax.xlane.f32.xlu0 %v5366
        %v5368 = vpop.xlane.xlu0 %5367
        %v5369 = vsub.f32 %v5346, %v5359
        %v5370 = vsub.f32 %v5349, %v5362
        %v5371 = vsub.f32 %v5352, %v5365
        %v5372 = vsub.f32 %v5355, %v5368
        %v5373 = vmul.f32 %v5369, 1.442695
        %v5374 = vpow.pop %v5373
        %v5375 = vmul.f32 %v5370, 1.442695
        %v5376 = vpow.pop %v5375
        %v5377 = vmul.f32 %v5371, 1.442695
        %v5378 = vpow.pop %v5377
        %v5379 = vmul.f32 %v5372, 1.442695
        %v5380 = vpow.pop %v5379
        %v5381 = vsel %vm3604, %v5374, 0.0
        %5382 = vadd.xlane.f32.xlu0 %v5381
        %v5383 = vpop.xlane.xlu0 %5382
        %v5384 = vsel %vm3604, %v5376, 0.0
        %5385 = vadd.xlane.f32.xlu0 %v5384
        %v5386 = vpop.xlane.xlu0 %5385
        %v5387 = vsel %vm3604, %v5378, 0.0
        %5388 = vadd.xlane.f32.xlu0 %v5387
        %v5389 = vpop.xlane.xlu0 %5388
        %v5390 = vsel %vm3614, %v5380, 0.0
        %5391 = vadd.xlane.f32.xlu0 %v5390
        %v5392 = vpop.xlane.xlu0 %5391
        %v5393 = vrcp.pop %v5383
        %v5394 = vrcp.pop %v5386
        %v5395 = vrcp.pop %v5389
        %v5396 = vrcp.pop %v5392
        %v5397 = vmul.f32 %v5374, %v5393
        %v5398 = vmul.f32 %v5376, %v5394
        %v5399 = vmul.f32 %v5378, %v5395
        %v5400 = vmul.f32 %v5380, %v5396
        %v5402 = vsel %vm3604, %v5397, 0
        %v5405 = vsel %vm3604, %v5398, 0
        %v5408 = vsel %vm3604, %v5399, 0
        %v5411 = vsel %vm3604, %v5400, 0
        %v5414 = vsel %vm3662, %v3550, 0
        %5416 = vmatpush.msra.mxu0 0.0
        %5417 = vmatpush.msra.mxu0 0.0
        %5418 = vmatpush.msra.mxu0 0.0
        %5419 = vmatpush.msra.mxu0 0.0
        %5420 = vmatpush.msra.mxu0 0.0
        %5421 = vmatpush.msra.mxu0 0.0
        %5422 = vmatpush.msra.mxu0 0.0
        %5423 = vmatpush.msra.mxu0 0.0
        %5424 = vmatpush.msra.mxu0 0.0
        %5425 = vmatpush.msra.mxu0 0.0
        %5426 = vmatpush.msra.mxu0 0.0
        %5427 = vmatpush.msra.mxu0 0.0
        %5428 = vmatpush.msra.mxu0 %v5414
        %5429 = vmatpush.msra.mxu0 %v3548
        %5430 = vmatpush.msra.mxu0 %v3545
        %5431 = vmatpush.msra.mxu0 %v3543
        %5432 = vmatmul.f32.gmra.mxu0 %v5402
        %v5433 = vpop.f32.mrf.mxu0
        %v5434 = vadd.f32 0.0, %v5433
        %5435 = vmatmul.f32.gmra.mxu0 %v5405
        %v5436 = vpop.f32.mrf.mxu0
        %v5437 = vadd.f32 0.0, %v5436
        %5438 = vmatmul.f32.gmra.mxu0 %v5408
        %v5439 = vpop.f32.mrf.mxu0
        %v5440 = vadd.f32 0.0, %v5439
        %5441 = vmatmul.f32.gmra.mxu0 %v5411
        %v5442 = vpop.f32.mrf.mxu0
        %v5443 = vadd.f32 0.0, %v5442
        %5444 = vdwg.mxu0
        %v5445 = vpack.c.bf16 %v5434, %v5434
        %v5446 = vpack.c.bf16 %v5437, %v5437
        %v5447 = vpack.c.bf16 %v5440, %v5440
        %v5448 = vpack.c.bf16 %v5443, %v5443
        %5449 = vst [vmem:[#allocation3 + $0x38] sm:$0xf] %v5445
        %5450 = vst [vmem:[#allocation3 + $0x78] sm:$0xf] %v5446
        %5451 = vst [vmem:[#allocation3 + $0xb8] sm:$0xf] %v5447
        %5452 = vst [vmem:[#allocation3 + $0xf8] sm:$0x1] %v5448
        %5453 = vmatpush.xpose.msra.mxu0 0.0
        %5454 = vmatpush.xpose.msra.mxu0 0.0
        %5455 = vmatpush.xpose.msra.mxu0 0.0
        %5456 = vmatpush.xpose.msra.mxu0 0.0
        %5457 = vmatpush.xpose.msra.mxu0 0.0
        %5458 = vmatpush.xpose.msra.mxu0 0.0
        %5459 = vmatpush.xpose.msra.mxu0 0.0
        %5460 = vmatpush.xpose.msra.mxu0 0.0
        %5461 = vmatpush.xpose.msra.mxu0 0.0
        %5462 = vmatpush.xpose.msra.mxu0 0.0
        %5463 = vmatpush.xpose.msra.mxu0 0.0
        %5464 = vmatpush.xpose.msra.mxu0 0.0
        %5465 = vmatpush.xpose.msra.mxu0 %v3265
        %5466 = vmatpush.xpose.msra.mxu0 %v3263
        %5467 = vmatpush.xpose.msra.mxu0 %v3260
        %5468 = vmatpush.xpose.msra.mxu0 %v3258
        %5469 = vmatmul.f32.gmra.mxu0 %v2954
        %v5470 = vpop.f32.mrf.mxu0
        %v5471 = vadd.f32 %v3571, %v5470
        %5472 = vmatmul.f32.gmra.mxu0 %v2956
        %v5473 = vpop.f32.mrf.mxu0
        %v5474 = vadd.f32 %v3572, %v5473
        %5475 = vmatmul.f32.gmra.mxu0 %v2959
        %v5476 = vpop.f32.mrf.mxu0
        %v5477 = vadd.f32 %v3573, %v5476
        %5478 = vmatmul.f32.gmra.mxu0 %v2961
        %v5479 = vpop.f32.mrf.mxu0
        %v5480 = vadd.f32 %v3574, %v5479
        %5481 = vdwg.mxu0
        %v5482 = vsel %vm3604, %v5471, -inf
        %5483 = vmax.xlane.f32.xlu0 %v5482
        %v5484 = vpop.xlane.xlu0 %5483
        %v5485 = vsel %vm3604, %v5474, -inf
        %5486 = vmax.xlane.f32.xlu0 %v5485
        %v5487 = vpop.xlane.xlu0 %5486
        %v5488 = vsel %vm3604, %v5477, -inf
        %5489 = vmax.xlane.f32.xlu0 %v5488
        %v5490 = vpop.xlane.xlu0 %5489
        %v5491 = vsel %vm3614, %v5480, -inf
        %5492 = vmax.xlane.f32.xlu0 %v5491
        %v5493 = vpop.xlane.xlu0 %5492
        %v5494 = vsub.f32 %v5471, %v5484
        %v5495 = vsub.f32 %v5474, %v5487
        %v5496 = vsub.f32 %v5477, %v5490
        %v5497 = vsub.f32 %v5480, %v5493
        %v5498 = vmul.f32 %v5494, 1.442695
        %v5499 = vpow.pop %v5498
        %v5500 = vmul.f32 %v5495, 1.442695
        %v5501 = vpow.pop %v5500
        %v5502 = vmul.f32 %v5496, 1.442695
        %v5503 = vpow.pop %v5502
        %v5504 = vmul.f32 %v5497, 1.442695
        %v5505 = vpow.pop %v5504
        %v5506 = vsel %vm3604, %v5499, 0.0
        %5507 = vadd.xlane.f32.xlu0 %v5506
        %v5508 = vpop.xlane.xlu0 %5507
        %v5509 = vsel %vm3604, %v5501, 0.0
        %5510 = vadd.xlane.f32.xlu0 %v5509
        %v5511 = vpop.xlane.xlu0 %5510
        %v5512 = vsel %vm3604, %v5503, 0.0
        %5513 = vadd.xlane.f32.xlu0 %v5512
        %v5514 = vpop.xlane.xlu0 %5513
        %v5515 = vsel %vm3614, %v5505, 0.0
        %5516 = vadd.xlane.f32.xlu0 %v5515
        %v5517 = vpop.xlane.xlu0 %5516
        %v5518 = vrcp.pop %v5508
        %v5519 = vrcp.pop %v5511
        %v5520 = vrcp.pop %v5514
        %v5521 = vrcp.pop %v5517
        %v5522 = vmul.f32 %v5499, %v5518
        %v5523 = vmul.f32 %v5501, %v5519
        %v5524 = vmul.f32 %v5503, %v5520
        %v5525 = vmul.f32 %v5505, %v5521
        %v5527 = vsel %vm3604, %v5522, 0
        %v5530 = vsel %vm3604, %v5523, 0
        %v5533 = vsel %vm3604, %v5524, 0
        %v5536 = vsel %vm3604, %v5525, 0
        %v5539 = vsel %vm3662, %v3569, 0
        %5541 = vmatpush.msra.mxu0 0.0
        %5542 = vmatpush.msra.mxu0 0.0
        %5543 = vmatpush.msra.mxu0 0.0
        %5544 = vmatpush.msra.mxu0 0.0
        %5545 = vmatpush.msra.mxu0 0.0
        %5546 = vmatpush.msra.mxu0 0.0
        %5547 = vmatpush.msra.mxu0 0.0
        %5548 = vmatpush.msra.mxu0 0.0
        %5549 = vmatpush.msra.mxu0 0.0
        %5550 = vmatpush.msra.mxu0 0.0
        %5551 = vmatpush.msra.mxu0 0.0
        %5552 = vmatpush.msra.mxu0 0.0
        %5553 = vmatpush.msra.mxu0 %v5539
        %5554 = vmatpush.msra.mxu0 %v3567
        %5555 = vmatpush.msra.mxu0 %v3564
        %5556 = vmatpush.msra.mxu0 %v3562
        %5557 = vmatmul.f32.gmra.mxu0 %v5527
        %v5558 = vpop.f32.mrf.mxu0
        %v5559 = vadd.f32 0.0, %v5558
        %5560 = vmatmul.f32.gmra.mxu0 %v5530
        %v5561 = vpop.f32.mrf.mxu0
        %v5562 = vadd.f32 0.0, %v5561
        %5563 = vmatmul.f32.gmra.mxu0 %v5533
        %v5564 = vpop.f32.mrf.mxu0
        %v5565 = vadd.f32 0.0, %v5564
        %5566 = vmatmul.f32.gmra.mxu0 %v5536
        %v5567 = vpop.f32.mrf.mxu0
        %v5568 = vadd.f32 0.0, %v5567
        %5569 = vdwg.mxu0
        %v5570 = vpack.c.bf16 %v5559, %v5559
        %v5571 = vpack.c.bf16 %v5562, %v5562
        %v5572 = vpack.c.bf16 %v5565, %v5565
        %v5573 = vpack.c.bf16 %v5568, %v5568
        %5574 = vst [vmem:[#allocation3 + $0x3c] sm:$0xf] %v5570
        %5575 = vst [vmem:[#allocation3 + $0x7c] sm:$0xf] %v5571
        %5576 = vst [vmem:[#allocation3 + $0xbc] sm:$0xf] %v5572
        %5577 = vst [vmem:[#allocation3 + $0xfc] sm:$0x1] %v5573
        %v5578 = vld [vmem:[#allocation3] sm:$0xff]
        %v5579 = vld [vmem:[#allocation3 + $0x8] sm:$0xff]
        %v5580 = vld [vmem:[#allocation3 + $0x10] sm:$0xff]
        %v5581 = vld [vmem:[#allocation3 + $0x18] sm:$0xff]
        %v5582 = vld [vmem:[#allocation3 + $0x20] sm:$0xff]
        %v5583 = vld [vmem:[#allocation3 + $0x28] sm:$0xff]
        %v5584 = vld [vmem:[#allocation3 + $0x30] sm:$0xff]
        %v5585 = vld [vmem:[#allocation3 + $0x38] sm:$0xff]
        %v5586 = vld [vmem:[#allocation3 + $0x40] sm:$0xff]
        %v5587 = vld [vmem:[#allocation3 + $0x48] sm:$0xff]
        %v5588 = vld [vmem:[#allocation3 + $0x50] sm:$0xff]
        %v5589 = vld [vmem:[#allocation3 + $0x58] sm:$0xff]
        %v5590 = vld [vmem:[#allocation3 + $0x60] sm:$0xff]
        %v5591 = vld [vmem:[#allocation3 + $0x68] sm:$0xff]
        %v5592 = vld [vmem:[#allocation3 + $0x70] sm:$0xff]
        %v5593 = vld [vmem:[#allocation3 + $0x78] sm:$0xff]
        %v5594 = vld [vmem:[#allocation3 + $0x80] sm:$0xff]
        %v5595 = vld [vmem:[#allocation3 + $0x88] sm:$0xff]
        %v5596 = vld [vmem:[#allocation3 + $0x90] sm:$0xff]
        %v5597 = vld [vmem:[#allocation3 + $0x98] sm:$0xff]
        %v5598 = vld [vmem:[#allocation3 + $0xa0] sm:$0xff]
        %v5599 = vld [vmem:[#allocation3 + $0xa8] sm:$0xff]
        %v5600 = vld [vmem:[#allocation3 + $0xb0] sm:$0xff]
        %v5601 = vld [vmem:[#allocation3 + $0xb8] sm:$0xff]
        %v5602 = vld [vmem:[#allocation3 + $0xc0] sm:$0x11]
        %v5603 = vld [vmem:[#allocation3 + $0xc8] sm:$0x11]
        %v5604 = vld [vmem:[#allocation3 + $0xd0] sm:$0x11]
        %v5605 = vld [vmem:[#allocation3 + $0xd8] sm:$0x11]
        %v5606 = vld [vmem:[#allocation3 + $0xe0] sm:$0x11]
        %v5607 = vld [vmem:[#allocation3 + $0xe8] sm:$0x11]
        %v5608 = vld [vmem:[#allocation3 + $0xf0] sm:$0x11]
        %v5609 = vld [vmem:[#allocation3 + $0xf8] sm:$0x11]
        %v5610 = vld [vmem:[%s686] sm:$0xf]
        %v5611 = vld [vmem:[%s686 + $0x4] sm:$0xf]
        %v5612 = vld [vmem:[%s686 + $0x8] sm:$0xf]
        %v5613 = vld [vmem:[%s686 + $0xc] sm:$0xf]
        %v5614 = vld [vmem:[%s686 + $0x10] sm:$0xf]
        %v5615 = vld [vmem:[%s686 + $0x14] sm:$0xf]
        %v5616 = vld [vmem:[%s686 + $0x18] sm:$0xf]
        %v5617 = vld [vmem:[%s686 + $0x1c] sm:$0xf]
        %v5618 = vld [vmem:[%s686 + $0x20] sm:$0xf]
        %v5619 = vld [vmem:[%s686 + $0x24] sm:$0xf]
        %v5620 = vld [vmem:[%s686 + $0x28] sm:$0xf]
        %v5621 = vld [vmem:[%s686 + $0x2c] sm:$0xf]
        %v5622 = vld [vmem:[%s686 + $0x30] sm:$0xf]
        %v5623 = vld [vmem:[%s686 + $0x34] sm:$0xf]
        %v5624 = vld [vmem:[%s686 + $0x38] sm:$0xf]
        %v5625 = vld [vmem:[%s686 + $0x3c] sm:$0xf]
        %v5626 = vld [vmem:[%s686 + $0x40] sm:$0xf]
        %v5627 = vld [vmem:[%s686 + $0x44] sm:$0xf]
        %v5628 = vld [vmem:[%s686 + $0x48] sm:$0xf]
        %v5629 = vld [vmem:[%s686 + $0x4c] sm:$0xf]
        %v5630 = vld [vmem:[%s686 + $0x50] sm:$0xf]
        %v5631 = vld [vmem:[%s686 + $0x54] sm:$0xf]
        %v5632 = vld [vmem:[%s686 + $0x58] sm:$0xf]
        %v5633 = vld [vmem:[%s686 + $0x5c] sm:$0xf]
        %v5634 = vld [vmem:[%s686 + $0x60] sm:$0xf]
        %v5635 = vld [vmem:[%s686 + $0x64] sm:$0xf]
        %v5636 = vld [vmem:[%s686 + $0x68] sm:$0xf]
        %v5637 = vld [vmem:[%s686 + $0x6c] sm:$0xf]
        %v5638 = vld [vmem:[%s686 + $0x70] sm:$0xf]
        %v5639 = vld [vmem:[%s686 + $0x74] sm:$0xf]
        %v5640 = vld [vmem:[%s686 + $0x78] sm:$0xf]
        %v5641 = vld [vmem:[%s686 + $0x7c] sm:$0xf]
        %v5642 = vld [vmem:[%s686 + $0x80] sm:$0xf]
        %v5643 = vld [vmem:[%s686 + $0x84] sm:$0xf]
        %v5644 = vld [vmem:[%s686 + $0x88] sm:$0xf]
        %v5645 = vld [vmem:[%s686 + $0x8c] sm:$0xf]
        %v5646 = vld [vmem:[%s686 + $0x90] sm:$0xf]
        %v5647 = vld [vmem:[%s686 + $0x94] sm:$0xf]
        %v5648 = vld [vmem:[%s686 + $0x98] sm:$0xf]
        %v5649 = vld [vmem:[%s686 + $0x9c] sm:$0xf]
        %v5650 = vld [vmem:[%s686 + $0xa0] sm:$0xf]
        %v5651 = vld [vmem:[%s686 + $0xa4] sm:$0xf]
        %v5652 = vld [vmem:[%s686 + $0xa8] sm:$0xf]
        %v5653 = vld [vmem:[%s686 + $0xac] sm:$0xf]
        %v5654 = vld [vmem:[%s686 + $0xb0] sm:$0xf]
        %v5655 = vld [vmem:[%s686 + $0xb4] sm:$0xf]
        %v5656 = vld [vmem:[%s686 + $0xb8] sm:$0xf]
        %v5657 = vld [vmem:[%s686 + $0xbc] sm:$0xf]
        %v5658 = vld [vmem:[%s686 + $0xc0] sm:$0xf]
        %v5659 = vld [vmem:[%s686 + $0xc4] sm:$0xf]
        %v5660 = vld [vmem:[%s686 + $0xc8] sm:$0xf]
        %v5661 = vld [vmem:[%s686 + $0xcc] sm:$0xf]
        %v5662 = vld [vmem:[%s686 + $0xd0] sm:$0xf]
        %v5663 = vld [vmem:[%s686 + $0xd4] sm:$0xf]
        %v5664 = vld [vmem:[%s686 + $0xd8] sm:$0xf]
        %v5665 = vld [vmem:[%s686 + $0xdc] sm:$0xf]
        %v5666 = vld [vmem:[%s686 + $0xe0] sm:$0xf]
        %v5667 = vld [vmem:[%s686 + $0xe4] sm:$0xf]
        %v5668 = vld [vmem:[%s686 + $0xe8] sm:$0xf]
        %v5669 = vld [vmem:[%s686 + $0xec] sm:$0xf]
        %v5670 = vld [vmem:[%s686 + $0xf0] sm:$0xf]
        %v5671 = vld [vmem:[%s686 + $0xf4] sm:$0xf]
        %v5672 = vld [vmem:[%s686 + $0xf8] sm:$0xf]
        %v5673 = vld [vmem:[%s686 + $0xfc] sm:$0xf]
        %v5674 = vld [vmem:[%s686 + $0x100] sm:$0xf]
        %v5675 = vld [vmem:[%s686 + $0x104] sm:$0xf]
        %v5676 = vld [vmem:[%s686 + $0x108] sm:$0xf]
        %v5677 = vld [vmem:[%s686 + $0x10c] sm:$0xf]
        %v5678 = vld [vmem:[%s686 + $0x110] sm:$0xf]
        %v5679 = vld [vmem:[%s686 + $0x114] sm:$0xf]
        %v5680 = vld [vmem:[%s686 + $0x118] sm:$0xf]
        %v5681 = vld [vmem:[%s686 + $0x11c] sm:$0xf]
        %v5682 = vld [vmem:[%s686 + $0x120] sm:$0xf]
        %v5683 = vld [vmem:[%s686 + $0x124] sm:$0xf]
        %v5684 = vld [vmem:[%s686 + $0x128] sm:$0xf]
        %v5685 = vld [vmem:[%s686 + $0x12c] sm:$0xf]
        %v5686 = vld [vmem:[%s686 + $0x130] sm:$0xf]
        %v5687 = vld [vmem:[%s686 + $0x134] sm:$0xf]
        %v5688 = vld [vmem:[%s686 + $0x138] sm:$0xf]
        %v5689 = vld [vmem:[%s686 + $0x13c] sm:$0xf]
        %v5690 = vld [vmem:[%s686 + $0x140] sm:$0xf]
        %v5691 = vld [vmem:[%s686 + $0x144] sm:$0xf]
        %v5692 = vld [vmem:[%s686 + $0x148] sm:$0xf]
        %v5693 = vld [vmem:[%s686 + $0x14c] sm:$0xf]
        %v5694 = vld [vmem:[%s686 + $0x150] sm:$0xf]
        %v5695 = vld [vmem:[%s686 + $0x154] sm:$0xf]
        %v5696 = vld [vmem:[%s686 + $0x158] sm:$0xf]
        %v5697 = vld [vmem:[%s686 + $0x15c] sm:$0xf]
        %v5698 = vld [vmem:[%s686 + $0x160] sm:$0xf]
        %v5699 = vld [vmem:[%s686 + $0x164] sm:$0xf]
        %v5700 = vld [vmem:[%s686 + $0x168] sm:$0xf]
        %v5701 = vld [vmem:[%s686 + $0x16c] sm:$0xf]
        %v5702 = vld [vmem:[%s686 + $0x170] sm:$0xf]
        %v5703 = vld [vmem:[%s686 + $0x174] sm:$0xf]
        %v5704 = vld [vmem:[%s686 + $0x178] sm:$0xf]
        %v5705 = vld [vmem:[%s686 + $0x17c] sm:$0xf]
        %v5706 = vld [vmem:[%s686 + $0x180] sm:$0xf]
        %v5707 = vld [vmem:[%s686 + $0x184] sm:$0xf]
        %v5708 = vld [vmem:[%s686 + $0x188] sm:$0xf]
        %v5709 = vld [vmem:[%s686 + $0x18c] sm:$0xf]
        %v5710 = vld [vmem:[%s686 + $0x190] sm:$0xf]
        %v5711 = vld [vmem:[%s686 + $0x194] sm:$0xf]
        %v5712 = vld [vmem:[%s686 + $0x198] sm:$0xf]
        %v5713 = vld [vmem:[%s686 + $0x19c] sm:$0xf]
        %v5714 = vld [vmem:[%s686 + $0x1a0] sm:$0xf]
        %v5715 = vld [vmem:[%s686 + $0x1a4] sm:$0xf]
        %v5716 = vld [vmem:[%s686 + $0x1a8] sm:$0xf]
        %v5717 = vld [vmem:[%s686 + $0x1ac] sm:$0xf]
        %v5718 = vld [vmem:[%s686 + $0x1b0] sm:$0xf]
        %v5719 = vld [vmem:[%s686 + $0x1b4] sm:$0xf]
        %v5720 = vld [vmem:[%s686 + $0x1b8] sm:$0xf]
        %v5721 = vld [vmem:[%s686 + $0x1bc] sm:$0xf]
        %v5722 = vld [vmem:[%s686 + $0x1c0] sm:$0xf]
        %v5723 = vld [vmem:[%s686 + $0x1c4] sm:$0xf]
        %v5724 = vld [vmem:[%s686 + $0x1c8] sm:$0xf]
        %v5725 = vld [vmem:[%s686 + $0x1cc] sm:$0xf]
        %v5726 = vld [vmem:[%s686 + $0x1d0] sm:$0xf]
        %v5727 = vld [vmem:[%s686 + $0x1d4] sm:$0xf]
        %v5728 = vld [vmem:[%s686 + $0x1d8] sm:$0xf]
        %v5729 = vld [vmem:[%s686 + $0x1dc] sm:$0xf]
        %v5730 = vld [vmem:[%s686 + $0x1e0] sm:$0xf]
        %v5731 = vld [vmem:[%s686 + $0x1e4] sm:$0xf]
        %v5732 = vld [vmem:[%s686 + $0x1e8] sm:$0xf]
        %v5733 = vld [vmem:[%s686 + $0x1ec] sm:$0xf]
        %v5734 = vld [vmem:[%s686 + $0x1f0] sm:$0xf]
        %v5735 = vld [vmem:[%s686 + $0x1f4] sm:$0xf]
        %v5736 = vld [vmem:[%s686 + $0x1f8] sm:$0xf]
        %v5737 = vld [vmem:[%s686 + $0x1fc] sm:$0xf]
        %v5738 = vld [vmem:[%s686 + $0x200] sm:$0xf]
        %v5739 = vld [vmem:[%s686 + $0x204] sm:$0xf]
        %v5740 = vld [vmem:[%s686 + $0x208] sm:$0xf]
        %v5741 = vld [vmem:[%s686 + $0x20c] sm:$0xf]
        %v5742 = vld [vmem:[%s686 + $0x210] sm:$0xf]
        %v5743 = vld [vmem:[%s686 + $0x214] sm:$0xf]
        %v5744 = vld [vmem:[%s686 + $0x218] sm:$0xf]
        %v5745 = vld [vmem:[%s686 + $0x21c] sm:$0xf]
        %v5746 = vld [vmem:[%s686 + $0x220] sm:$0xf]
        %v5747 = vld [vmem:[%s686 + $0x224] sm:$0xf]
        %v5748 = vld [vmem:[%s686 + $0x228] sm:$0xf]
        %v5749 = vld [vmem:[%s686 + $0x22c] sm:$0xf]
        %v5750 = vld [vmem:[%s686 + $0x230] sm:$0xf]
        %v5751 = vld [vmem:[%s686 + $0x234] sm:$0xf]
        %v5752 = vld [vmem:[%s686 + $0x238] sm:$0xf]
        %v5753 = vld [vmem:[%s686 + $0x23c] sm:$0xf]
        %v5754 = vld [vmem:[%s686 + $0x240] sm:$0xf]
        %v5755 = vld [vmem:[%s686 + $0x244] sm:$0xf]
        %v5756 = vld [vmem:[%s686 + $0x248] sm:$0xf]
        %v5757 = vld [vmem:[%s686 + $0x24c] sm:$0xf]
        %v5758 = vld [vmem:[%s686 + $0x250] sm:$0xf]
        %v5759 = vld [vmem:[%s686 + $0x254] sm:$0xf]
        %v5760 = vld [vmem:[%s686 + $0x258] sm:$0xf]
        %v5761 = vld [vmem:[%s686 + $0x25c] sm:$0xf]
        %v5762 = vld [vmem:[%s686 + $0x260] sm:$0xf]
        %v5763 = vld [vmem:[%s686 + $0x264] sm:$0xf]
        %v5764 = vld [vmem:[%s686 + $0x268] sm:$0xf]
        %v5765 = vld [vmem:[%s686 + $0x26c] sm:$0xf]
        %v5766 = vld [vmem:[%s686 + $0x270] sm:$0xf]
        %v5767 = vld [vmem:[%s686 + $0x274] sm:$0xf]
        %v5768 = vld [vmem:[%s686 + $0x278] sm:$0xf]
        %v5769 = vld [vmem:[%s686 + $0x27c] sm:$0xf]
        %v5770 = vld [vmem:[%s686 + $0x280] sm:$0xf]
        %v5771 = vld [vmem:[%s686 + $0x284] sm:$0xf]
        %v5772 = vld [vmem:[%s686 + $0x288] sm:$0xf]
        %v5773 = vld [vmem:[%s686 + $0x28c] sm:$0xf]
        %v5774 = vld [vmem:[%s686 + $0x290] sm:$0xf]
        %v5775 = vld [vmem:[%s686 + $0x294] sm:$0xf]
        %v5776 = vld [vmem:[%s686 + $0x298] sm:$0xf]
        %v5777 = vld [vmem:[%s686 + $0x29c] sm:$0xf]
        %v5778 = vld [vmem:[%s686 + $0x2a0] sm:$0xf]
        %v5779 = vld [vmem:[%s686 + $0x2a4] sm:$0xf]
        %v5780 = vld [vmem:[%s686 + $0x2a8] sm:$0xf]
        %v5781 = vld [vmem:[%s686 + $0x2ac] sm:$0xf]
        %v5782 = vld [vmem:[%s686 + $0x2b0] sm:$0xf]
        %v5783 = vld [vmem:[%s686 + $0x2b4] sm:$0xf]
        %v5784 = vld [vmem:[%s686 + $0x2b8] sm:$0xf]
        %v5785 = vld [vmem:[%s686 + $0x2bc] sm:$0xf]
        %v5786 = vld [vmem:[%s686 + $0x2c0] sm:$0xf]
        %v5787 = vld [vmem:[%s686 + $0x2c4] sm:$0xf]
        %v5788 = vld [vmem:[%s686 + $0x2c8] sm:$0xf]
        %v5789 = vld [vmem:[%s686 + $0x2cc] sm:$0xf]
        %v5790 = vld [vmem:[%s686 + $0x2d0] sm:$0xf]
        %v5791 = vld [vmem:[%s686 + $0x2d4] sm:$0xf]
        %v5792 = vld [vmem:[%s686 + $0x2d8] sm:$0xf]
        %v5793 = vld [vmem:[%s686 + $0x2dc] sm:$0xf]
        %v5794 = vld [vmem:[%s686 + $0x2e0] sm:$0xf]
        %v5795 = vld [vmem:[%s686 + $0x2e4] sm:$0xf]
        %v5796 = vld [vmem:[%s686 + $0x2e8] sm:$0xf]
        %v5797 = vld [vmem:[%s686 + $0x2ec] sm:$0xf]
        %v5798 = vld [vmem:[%s686 + $0x2f0] sm:$0xf]
        %v5799 = vld [vmem:[%s686 + $0x2f4] sm:$0xf]
        %v5800 = vld [vmem:[%s686 + $0x2f8] sm:$0xf]
        %v5801 = vld [vmem:[%s686 + $0x2fc] sm:$0xf]
        %v5802 = vld [vmem:[%s686 + $0x300] sm:$0xf]
        %v5803 = vld [vmem:[%s686 + $0x304] sm:$0xf]
        %v5804 = vld [vmem:[%s686 + $0x308] sm:$0xf]
        %v5805 = vld [vmem:[%s686 + $0x30c] sm:$0xf]
        %v5806 = vld [vmem:[%s686 + $0x310] sm:$0xf]
        %v5807 = vld [vmem:[%s686 + $0x314] sm:$0xf]
        %v5808 = vld [vmem:[%s686 + $0x318] sm:$0xf]
        %v5809 = vld [vmem:[%s686 + $0x31c] sm:$0xf]
        %v5810 = vld [vmem:[%s686 + $0x320] sm:$0xf]
        %v5811 = vld [vmem:[%s686 + $0x324] sm:$0xf]
        %v5812 = vld [vmem:[%s686 + $0x328] sm:$0xf]
        %v5813 = vld [vmem:[%s686 + $0x32c] sm:$0xf]
        %v5814 = vld [vmem:[%s686 + $0x330] sm:$0xf]
        %v5815 = vld [vmem:[%s686 + $0x334] sm:$0xf]
        %v5816 = vld [vmem:[%s686 + $0x338] sm:$0xf]
        %v5817 = vld [vmem:[%s686 + $0x33c] sm:$0xf]
        %v5818 = vld [vmem:[%s686 + $0x340] sm:$0xf]
        %v5819 = vld [vmem:[%s686 + $0x344] sm:$0xf]
        %v5820 = vld [vmem:[%s686 + $0x348] sm:$0xf]
        %v5821 = vld [vmem:[%s686 + $0x34c] sm:$0xf]
        %v5822 = vld [vmem:[%s686 + $0x350] sm:$0xf]
        %v5823 = vld [vmem:[%s686 + $0x354] sm:$0xf]
        %v5824 = vld [vmem:[%s686 + $0x358] sm:$0xf]
        %v5825 = vld [vmem:[%s686 + $0x35c] sm:$0xf]
        %v5826 = vld [vmem:[%s686 + $0x360] sm:$0xf]
        %v5827 = vld [vmem:[%s686 + $0x364] sm:$0xf]
        %v5828 = vld [vmem:[%s686 + $0x368] sm:$0xf]
        %v5829 = vld [vmem:[%s686 + $0x36c] sm:$0xf]
        %v5830 = vld [vmem:[%s686 + $0x370] sm:$0xf]
        %v5831 = vld [vmem:[%s686 + $0x374] sm:$0xf]
        %v5832 = vld [vmem:[%s686 + $0x378] sm:$0xf]
        %v5833 = vld [vmem:[%s686 + $0x37c] sm:$0xf]
        %v5834 = vld [vmem:[%s686 + $0x380] sm:$0xf]
        %v5835 = vld [vmem:[%s686 + $0x384] sm:$0xf]
        %v5836 = vld [vmem:[%s686 + $0x388] sm:$0xf]
        %v5837 = vld [vmem:[%s686 + $0x38c] sm:$0xf]
        %v5838 = vld [vmem:[%s686 + $0x390] sm:$0xf]
        %v5839 = vld [vmem:[%s686 + $0x394] sm:$0xf]
        %v5840 = vld [vmem:[%s686 + $0x398] sm:$0xf]
        %v5841 = vld [vmem:[%s686 + $0x39c] sm:$0xf]
        %v5842 = vld [vmem:[%s686 + $0x3a0] sm:$0xf]
        %v5843 = vld [vmem:[%s686 + $0x3a4] sm:$0xf]
        %v5844 = vld [vmem:[%s686 + $0x3a8] sm:$0xf]
        %v5845 = vld [vmem:[%s686 + $0x3ac] sm:$0xf]
        %v5846 = vld [vmem:[%s686 + $0x3b0] sm:$0xf]
        %v5847 = vld [vmem:[%s686 + $0x3b4] sm:$0xf]
        %v5848 = vld [vmem:[%s686 + $0x3b8] sm:$0xf]
        %v5849 = vld [vmem:[%s686 + $0x3bc] sm:$0xf]
        %v5850 = vld [vmem:[%s686 + $0x3c0] sm:$0xf]
        %v5851 = vld [vmem:[%s686 + $0x3c4] sm:$0xf]
        %v5852 = vld [vmem:[%s686 + $0x3c8] sm:$0xf]
        %v5853 = vld [vmem:[%s686 + $0x3cc] sm:$0xf]
        %v5854 = vld [vmem:[%s686 + $0x3d0] sm:$0xf]
        %v5855 = vld [vmem:[%s686 + $0x3d4] sm:$0xf]
        %v5856 = vld [vmem:[%s686 + $0x3d8] sm:$0xf]
        %v5857 = vld [vmem:[%s686 + $0x3dc] sm:$0xf]
        %v5858 = vld [vmem:[%s686 + $0x3e0] sm:$0xf]
        %v5859 = vld [vmem:[%s686 + $0x3e4] sm:$0xf]
        %v5860 = vld [vmem:[%s686 + $0x3e8] sm:$0xf]
        %v5861 = vld [vmem:[%s686 + $0x3ec] sm:$0xf]
        %v5862 = vld [vmem:[%s686 + $0x3f0] sm:$0xf]
        %v5863 = vld [vmem:[%s686 + $0x3f4] sm:$0xf]
        %v5864 = vld [vmem:[%s686 + $0x3f8] sm:$0xf]
        %v5865 = vld [vmem:[%s686 + $0x3fc] sm:$0xf]
        %v5866 = vld [vmem:[%s689] sm:$0x1]
        %v5868 = vperm.slane %v5866, 0
        %v5902 = vunpack.c.l.b16 %v5578
        %v5903 = vunpack.c.h.b16 %v5578
        %v5904 = vunpack.c.l.b16 %v5579
        %v5905 = vunpack.c.h.b16 %v5579
        %v5906 = vunpack.c.l.b16 %v5580
        %v5907 = vunpack.c.h.b16 %v5580
        %v5908 = vunpack.c.l.b16 %v5581
        %v5909 = vunpack.c.h.b16 %v5581
        %v5910 = vunpack.c.l.b16 %v5582
        %v5911 = vunpack.c.h.b16 %v5582
        %v5912 = vunpack.c.l.b16 %v5583
        %v5913 = vunpack.c.h.b16 %v5583
        %v5914 = vunpack.c.l.b16 %v5584
        %v5915 = vunpack.c.h.b16 %v5584
        %v5916 = vunpack.c.l.b16 %v5585
        %v5917 = vunpack.c.h.b16 %v5585
        %v5918 = vunpack.c.l.b16 %v5586
        %v5919 = vunpack.c.h.b16 %v5586
        %v5920 = vunpack.c.l.b16 %v5587
        %v5921 = vunpack.c.h.b16 %v5587
        %v5922 = vunpack.c.l.b16 %v5588
        %v5923 = vunpack.c.h.b16 %v5588
        %v5924 = vunpack.c.l.b16 %v5589
        %v5925 = vunpack.c.h.b16 %v5589
        %v5926 = vunpack.c.l.b16 %v5590
        %v5927 = vunpack.c.h.b16 %v5590
        %v5928 = vunpack.c.l.b16 %v5591
        %v5929 = vunpack.c.h.b16 %v5591
        %v5930 = vunpack.c.l.b16 %v5592
        %v5931 = vunpack.c.h.b16 %v5592
        %v5932 = vunpack.c.l.b16 %v5593
        %v5933 = vunpack.c.h.b16 %v5593
        %v5934 = vunpack.c.l.b16 %v5594
        %v5935 = vunpack.c.h.b16 %v5594
        %v5936 = vunpack.c.l.b16 %v5595
        %v5937 = vunpack.c.h.b16 %v5595
        %v5938 = vunpack.c.l.b16 %v5596
        %v5939 = vunpack.c.h.b16 %v5596
        %v5940 = vunpack.c.l.b16 %v5597
        %v5941 = vunpack.c.h.b16 %v5597
        %v5942 = vunpack.c.l.b16 %v5598
        %v5943 = vunpack.c.h.b16 %v5598
        %v5944 = vunpack.c.l.b16 %v5599
        %v5945 = vunpack.c.h.b16 %v5599
        %v5946 = vunpack.c.l.b16 %v5600
        %v5947 = vunpack.c.h.b16 %v5600
        %v5948 = vunpack.c.l.b16 %v5601
        %v5949 = vunpack.c.h.b16 %v5601
        %v5950 = vunpack.c.l.b16 %v5602
        %v5951 = vunpack.c.h.b16 %v5602
        %v5952 = vunpack.c.l.b16 %v5603
        %v5953 = vunpack.c.h.b16 %v5603
        %v5954 = vunpack.c.l.b16 %v5604
        %v5955 = vunpack.c.h.b16 %v5604
        %v5956 = vunpack.c.l.b16 %v5605
        %v5957 = vunpack.c.h.b16 %v5605
        %v5958 = vunpack.c.l.b16 %v5606
        %v5959 = vunpack.c.h.b16 %v5606
        %v5960 = vunpack.c.l.b16 %v5607
        %v5961 = vunpack.c.h.b16 %v5607
        %v5962 = vunpack.c.l.b16 %v5608
        %v5963 = vunpack.c.h.b16 %v5608
        %v5964 = vunpack.c.l.b16 %v5609
        %v5965 = vunpack.c.h.b16 %v5609
        %v5966 = vpack.c.b16 %v5918, %v5902
        %v5967 = vpack.c.b16 %v5919, %v5903
        %v5968 = vpack.c.b16 %v5920, %v5904
        %v5969 = vpack.c.b16 %v5921, %v5905
        %v5970 = vpack.c.b16 %v5922, %v5906
        %v5971 = vpack.c.b16 %v5923, %v5907
        %v5972 = vpack.c.b16 %v5924, %v5908
        %v5973 = vpack.c.b16 %v5925, %v5909
        %v5974 = vpack.c.b16 %v5926, %v5910
        %v5975 = vpack.c.b16 %v5927, %v5911
        %v5976 = vpack.c.b16 %v5928, %v5912
        %v5977 = vpack.c.b16 %v5929, %v5913
        %v5978 = vpack.c.b16 %v5930, %v5914
        %v5979 = vpack.c.b16 %v5931, %v5915
        %v5980 = vpack.c.b16 %v5932, %v5916
        %v5981 = vpack.c.b16 %v5933, %v5917
        %v5982 = vpack.c.b16 %v5950, %v5934
        %v5983 = vpack.c.b16 %v5951, %v5935
        %v5984 = vpack.c.b16 %v5952, %v5936
        %v5985 = vpack.c.b16 %v5953, %v5937
        %v5986 = vpack.c.b16 %v5954, %v5938
        %v5987 = vpack.c.b16 %v5955, %v5939
        %v5988 = vpack.c.b16 %v5956, %v5940
        %v5989 = vpack.c.b16 %v5957, %v5941
        %v5990 = vpack.c.b16 %v5958, %v5942
        %v5991 = vpack.c.b16 %v5959, %v5943
        %v5992 = vpack.c.b16 %v5960, %v5944
        %v5993 = vpack.c.b16 %v5961, %v5945
        %v5994 = vpack.c.b16 %v5962, %v5946
        %v5995 = vpack.c.b16 %v5963, %v5947
        %v5996 = vpack.c.b16 %v5964, %v5948
        %v5997 = vpack.c.b16 %v5965, %v5949
        %v6286 = vunpack.c.l.b16 %v5610
        %v6287 = vunpack.c.l.b16 %v5611
        %v6288 = vunpack.c.l.b16 %v5612
        %v6289 = vunpack.c.l.b16 %v5613
        %v6290 = vunpack.c.l.b16 %v5614
        %v6291 = vunpack.c.l.b16 %v5615
        %v6292 = vunpack.c.l.b16 %v5616
        %v6293 = vunpack.c.l.b16 %v5617
        %v6294 = vunpack.c.l.b16 %v5618
        %v6295 = vunpack.c.l.b16 %v5619
        %v6296 = vunpack.c.l.b16 %v5620
        %v6297 = vunpack.c.l.b16 %v5621
        %v6298 = vunpack.c.l.b16 %v5622
        %v6299 = vunpack.c.l.b16 %v5623
        %v6300 = vunpack.c.l.b16 %v5624
        %v6301 = vunpack.c.l.b16 %v5625
        %v6302 = vunpack.c.l.b16 %v5626
        %v6303 = vunpack.c.l.b16 %v5627
        %v6304 = vunpack.c.l.b16 %v5628
        %v6305 = vunpack.c.l.b16 %v5629
        %v6306 = vunpack.c.l.b16 %v5630
        %v6307 = vunpack.c.l.b16 %v5631
        %v6308 = vunpack.c.l.b16 %v5632
        %v6309 = vunpack.c.l.b16 %v5633
        %v6310 = vunpack.c.l.b16 %v5634
        %v6311 = vunpack.c.l.b16 %v5635
        %v6312 = vunpack.c.l.b16 %v5636
        %v6313 = vunpack.c.l.b16 %v5637
        %v6314 = vunpack.c.l.b16 %v5638
        %v6315 = vunpack.c.l.b16 %v5639
        %v6316 = vunpack.c.l.b16 %v5640
        %v6317 = vunpack.c.l.b16 %v5641
        %v6318 = vunpack.c.l.b16 %v5642
        %v6319 = vunpack.c.l.b16 %v5643
        %v6320 = vunpack.c.l.b16 %v5644
        %v6321 = vunpack.c.l.b16 %v5645
        %v6322 = vunpack.c.l.b16 %v5646
        %v6323 = vunpack.c.l.b16 %v5647
        %v6324 = vunpack.c.l.b16 %v5648
        %v6325 = vunpack.c.l.b16 %v5649
        %v6326 = vunpack.c.l.b16 %v5650
        %v6327 = vunpack.c.l.b16 %v5651
        %v6328 = vunpack.c.l.b16 %v5652
        %v6329 = vunpack.c.l.b16 %v5653
        %v6330 = vunpack.c.l.b16 %v5654
        %v6331 = vunpack.c.l.b16 %v5655
        %v6332 = vunpack.c.l.b16 %v5656
        %v6333 = vunpack.c.l.b16 %v5657
        %v6334 = vunpack.c.l.b16 %v5658
        %v6335 = vunpack.c.l.b16 %v5659
        %v6336 = vunpack.c.l.b16 %v5660
        %v6337 = vunpack.c.l.b16 %v5661
        %v6338 = vunpack.c.l.b16 %v5662
        %v6339 = vunpack.c.l.b16 %v5663
        %v6340 = vunpack.c.l.b16 %v5664
        %v6341 = vunpack.c.l.b16 %v5665
        %v6342 = vunpack.c.l.b16 %v5666
        %v6343 = vunpack.c.l.b16 %v5667
        %v6344 = vunpack.c.l.b16 %v5668
        %v6345 = vunpack.c.l.b16 %v5669
        %v6346 = vunpack.c.l.b16 %v5670
        %v6347 = vunpack.c.l.b16 %v5671
        %v6348 = vunpack.c.l.b16 %v5672
        %v6349 = vunpack.c.l.b16 %v5673
        %v6350 = vunpack.c.l.b16 %v5674
        %v6351 = vunpack.c.l.b16 %v5675
        %v6352 = vunpack.c.l.b16 %v5676
        %v6353 = vunpack.c.l.b16 %v5677
        %v6354 = vunpack.c.l.b16 %v5678
        %v6355 = vunpack.c.l.b16 %v5679
        %v6356 = vunpack.c.l.b16 %v5680
        %v6357 = vunpack.c.l.b16 %v5681
        %v6358 = vunpack.c.l.b16 %v5682
        %v6359 = vunpack.c.l.b16 %v5683
        %v6360 = vunpack.c.l.b16 %v5684
        %v6361 = vunpack.c.l.b16 %v5685
        %v6362 = vunpack.c.l.b16 %v5686
        %v6363 = vunpack.c.l.b16 %v5687
        %v6364 = vunpack.c.l.b16 %v5688
        %v6365 = vunpack.c.l.b16 %v5689
        %v6366 = vunpack.c.l.b16 %v5690
        %v6367 = vunpack.c.l.b16 %v5691
        %v6368 = vunpack.c.l.b16 %v5692
        %v6369 = vunpack.c.l.b16 %v5693
        %v6370 = vunpack.c.l.b16 %v5694
        %v6371 = vunpack.c.l.b16 %v5695
        %v6372 = vunpack.c.l.b16 %v5696
        %v6373 = vunpack.c.l.b16 %v5697
        %v6374 = vunpack.c.l.b16 %v5698
        %v6375 = vunpack.c.l.b16 %v5699
        %v6376 = vunpack.c.l.b16 %v5700
        %v6377 = vunpack.c.l.b16 %v5701
        %v6378 = vunpack.c.l.b16 %v5702
        %v6379 = vunpack.c.l.b16 %v5703
        %v6380 = vunpack.c.l.b16 %v5704
        %v6381 = vunpack.c.l.b16 %v5705
        %v6382 = vunpack.c.l.b16 %v5706
        %v6383 = vunpack.c.l.b16 %v5707
        %v6384 = vunpack.c.l.b16 %v5708
        %v6385 = vunpack.c.l.b16 %v5709
        %v6386 = vunpack.c.l.b16 %v5710
        %v6387 = vunpack.c.l.b16 %v5711
        %v6388 = vunpack.c.l.b16 %v5712
        %v6389 = vunpack.c.l.b16 %v5713
        %v6390 = vunpack.c.l.b16 %v5714
        %v6391 = vunpack.c.l.b16 %v5715
        %v6392 = vunpack.c.l.b16 %v5716
        %v6393 = vunpack.c.l.b16 %v5717
        %v6394 = vunpack.c.l.b16 %v5718
        %v6395 = vunpack.c.l.b16 %v5719
        %v6396 = vunpack.c.l.b16 %v5720
        %v6397 = vunpack.c.l.b16 %v5721
        %v6398 = vunpack.c.l.b16 %v5722
        %v6399 = vunpack.c.l.b16 %v5723
        %v6400 = vunpack.c.l.b16 %v5724
        %v6401 = vunpack.c.l.b16 %v5725
        %v6402 = vunpack.c.l.b16 %v5726
        %v6403 = vunpack.c.l.b16 %v5727
        %v6404 = vunpack.c.l.b16 %v5728
        %v6405 = vunpack.c.l.b16 %v5729
        %v6406 = vunpack.c.l.b16 %v5730
        %v6407 = vunpack.c.l.b16 %v5731
        %v6408 = vunpack.c.l.b16 %v5732
        %v6409 = vunpack.c.l.b16 %v5733
        %v6410 = vunpack.c.l.b16 %v5734
        %v6411 = vunpack.c.l.b16 %v5735
        %v6412 = vunpack.c.l.b16 %v5736
        %v6413 = vunpack.c.l.b16 %v5737
        %v6414 = vunpack.c.l.b16 %v5738
        %v6415 = vunpack.c.l.b16 %v5739
        %v6416 = vunpack.c.l.b16 %v5740
        %v6417 = vunpack.c.l.b16 %v5741
        %v6418 = vunpack.c.l.b16 %v5742
        %v6419 = vunpack.c.l.b16 %v5743
        %v6420 = vunpack.c.l.b16 %v5744
        %v6421 = vunpack.c.l.b16 %v5745
        %v6422 = vunpack.c.l.b16 %v5746
        %v6423 = vunpack.c.l.b16 %v5747
        %v6424 = vunpack.c.l.b16 %v5748
        %v6425 = vunpack.c.l.b16 %v5749
        %v6426 = vunpack.c.l.b16 %v5750
        %v6427 = vunpack.c.l.b16 %v5751
        %v6428 = vunpack.c.l.b16 %v5752
        %v6429 = vunpack.c.l.b16 %v5753
        %v6430 = vunpack.c.l.b16 %v5754
        %v6431 = vunpack.c.l.b16 %v5755
        %v6432 = vunpack.c.l.b16 %v5756
        %v6433 = vunpack.c.l.b16 %v5757
        %v6434 = vunpack.c.l.b16 %v5758
        %v6435 = vunpack.c.l.b16 %v5759
        %v6436 = vunpack.c.l.b16 %v5760
        %v6437 = vunpack.c.l.b16 %v5761
        %v6438 = vunpack.c.l.b16 %v5762
        %v6439 = vunpack.c.l.b16 %v5763
        %v6440 = vunpack.c.l.b16 %v5764
        %v6441 = vunpack.c.l.b16 %v5765
        %v6442 = vunpack.c.l.b16 %v5766
        %v6443 = vunpack.c.l.b16 %v5767
        %v6444 = vunpack.c.l.b16 %v5768
        %v6445 = vunpack.c.l.b16 %v5769
        %v6446 = vunpack.c.l.b16 %v5770
        %v6447 = vunpack.c.l.b16 %v5771
        %v6448 = vunpack.c.l.b16 %v5772
        %v6449 = vunpack.c.l.b16 %v5773
        %v6450 = vunpack.c.l.b16 %v5774
        %v6451 = vunpack.c.l.b16 %v5775
        %v6452 = vunpack.c.l.b16 %v5776
        %v6453 = vunpack.c.l.b16 %v5777
        %v6454 = vunpack.c.l.b16 %v5778
        %v6455 = vunpack.c.l.b16 %v5779
        %v6456 = vunpack.c.l.b16 %v5780
        %v6457 = vunpack.c.l.b16 %v5781
        %v6458 = vunpack.c.l.b16 %v5782
        %v6459 = vunpack.c.l.b16 %v5783
        %v6460 = vunpack.c.l.b16 %v5784
        %v6461 = vunpack.c.l.b16 %v5785
        %v6462 = vunpack.c.l.b16 %v5786
        %v6463 = vunpack.c.l.b16 %v5787
        %v6464 = vunpack.c.l.b16 %v5788
        %v6465 = vunpack.c.l.b16 %v5789
        %v6466 = vunpack.c.l.b16 %v5790
        %v6467 = vunpack.c.l.b16 %v5791
        %v6468 = vunpack.c.l.b16 %v5792
        %v6469 = vunpack.c.l.b16 %v5793
        %v6470 = vunpack.c.l.b16 %v5794
        %v6471 = vunpack.c.l.b16 %v5795
        %v6472 = vunpack.c.l.b16 %v5796
        %v6473 = vunpack.c.l.b16 %v5797
        %v6474 = vunpack.c.l.b16 %v5798
        %v6475 = vunpack.c.l.b16 %v5799
        %v6476 = vunpack.c.l.b16 %v5800
        %v6477 = vunpack.c.l.b16 %v5801
        %v6478 = vunpack.c.l.b16 %v5802
        %v6479 = vunpack.c.l.b16 %v5803
        %v6480 = vunpack.c.l.b16 %v5804
        %v6481 = vunpack.c.l.b16 %v5805
        %v6482 = vunpack.c.l.b16 %v5806
        %v6483 = vunpack.c.l.b16 %v5807
        %v6484 = vunpack.c.l.b16 %v5808
        %v6485 = vunpack.c.l.b16 %v5809
        %v6486 = vunpack.c.l.b16 %v5810
        %v6487 = vunpack.c.l.b16 %v5811
        %v6488 = vunpack.c.l.b16 %v5812
        %v6489 = vunpack.c.l.b16 %v5813
        %v6490 = vunpack.c.l.b16 %v5814
        %v6491 = vunpack.c.l.b16 %v5815
        %v6492 = vunpack.c.l.b16 %v5816
        %v6493 = vunpack.c.l.b16 %v5817
        %v6494 = vunpack.c.l.b16 %v5818
        %v6495 = vunpack.c.l.b16 %v5819
        %v6496 = vunpack.c.l.b16 %v5820
        %v6497 = vunpack.c.l.b16 %v5821
        %v6498 = vunpack.c.l.b16 %v5822
        %v6499 = vunpack.c.l.b16 %v5823
        %v6500 = vunpack.c.l.b16 %v5824
        %v6501 = vunpack.c.l.b16 %v5825
        %v6502 = vunpack.c.l.b16 %v5826
        %v6503 = vunpack.c.l.b16 %v5827
        %v6504 = vunpack.c.l.b16 %v5828
        %v6505 = vunpack.c.l.b16 %v5829
        %v6506 = vunpack.c.l.b16 %v5830
        %v6507 = vunpack.c.l.b16 %v5831
        %v6508 = vunpack.c.l.b16 %v5832
        %v6509 = vunpack.c.l.b16 %v5833
        %v6510 = vunpack.c.l.b16 %v5834
        %v6511 = vunpack.c.l.b16 %v5835
        %v6512 = vunpack.c.l.b16 %v5836
        %v6513 = vunpack.c.l.b16 %v5837
        %v6514 = vunpack.c.l.b16 %v5838
        %v6515 = vunpack.c.l.b16 %v5839
        %v6516 = vunpack.c.l.b16 %v5840
        %v6517 = vunpack.c.l.b16 %v5841
        %v6518 = vunpack.c.l.b16 %v5842
        %v6519 = vunpack.c.l.b16 %v5843
        %v6520 = vunpack.c.l.b16 %v5844
        %v6521 = vunpack.c.l.b16 %v5845
        %v6522 = vunpack.c.l.b16 %v5846
        %v6523 = vunpack.c.l.b16 %v5847
        %v6524 = vunpack.c.l.b16 %v5848
        %v6525 = vunpack.c.l.b16 %v5849
        %v6526 = vunpack.c.l.b16 %v5850
        %v6527 = vunpack.c.l.b16 %v5851
        %v6528 = vunpack.c.l.b16 %v5852
        %v6529 = vunpack.c.l.b16 %v5853
        %v6530 = vunpack.c.l.b16 %v5854
        %v6531 = vunpack.c.l.b16 %v5855
        %v6532 = vunpack.c.l.b16 %v5856
        %v6533 = vunpack.c.l.b16 %v5857
        %v6534 = vunpack.c.l.b16 %v5858
        %v6535 = vunpack.c.l.b16 %v5859
        %v6536 = vunpack.c.l.b16 %v5860
        %v6537 = vunpack.c.l.b16 %v5861
        %v6538 = vunpack.c.l.b16 %v5862
        %v6539 = vunpack.c.l.b16 %v5863
        %v6540 = vunpack.c.l.b16 %v5864
        %v6541 = vunpack.c.l.b16 %v5865
        %v6542 = vpack.c.b16 %v6287, %v6286
        %v6543 = vpack.c.b16 %v6289, %v6288
        %v6544 = vpack.c.b16 %v6291, %v6290
        %v6545 = vpack.c.b16 %v6293, %v6292
        %v6546 = vpack.c.b16 %v6295, %v6294
        %v6547 = vpack.c.b16 %v6297, %v6296
        %v6548 = vpack.c.b16 %v6299, %v6298
        %v6549 = vpack.c.b16 %v6301, %v6300
        %v6550 = vpack.c.b16 %v6303, %v6302
        %v6551 = vpack.c.b16 %v6305, %v6304
        %v6552 = vpack.c.b16 %v6307, %v6306
        %v6553 = vpack.c.b16 %v6309, %v6308
        %v6554 = vpack.c.b16 %v6311, %v6310
        %v6555 = vpack.c.b16 %v6313, %v6312
        %v6556 = vpack.c.b16 %v6315, %v6314
        %v6557 = vpack.c.b16 %v6317, %v6316
        %v6558 = vpack.c.b16 %v6319, %v6318
        %v6559 = vpack.c.b16 %v6321, %v6320
        %v6560 = vpack.c.b16 %v6323, %v6322
        %v6561 = vpack.c.b16 %v6325, %v6324
        %v6562 = vpack.c.b16 %v6327, %v6326
        %v6563 = vpack.c.b16 %v6329, %v6328
        %v6564 = vpack.c.b16 %v6331, %v6330
        %v6565 = vpack.c.b16 %v6333, %v6332
        %v6566 = vpack.c.b16 %v6335, %v6334
        %v6567 = vpack.c.b16 %v6337, %v6336
        %v6568 = vpack.c.b16 %v6339, %v6338
        %v6569 = vpack.c.b16 %v6341, %v6340
        %v6570 = vpack.c.b16 %v6343, %v6342
        %v6571 = vpack.c.b16 %v6345, %v6344
        %v6572 = vpack.c.b16 %v6347, %v6346
        %v6573 = vpack.c.b16 %v6349, %v6348
        %v6574 = vpack.c.b16 %v6351, %v6350
        %v6575 = vpack.c.b16 %v6353, %v6352
        %v6576 = vpack.c.b16 %v6355, %v6354
        %v6577 = vpack.c.b16 %v6357, %v6356
        %v6578 = vpack.c.b16 %v6359, %v6358
        %v6579 = vpack.c.b16 %v6361, %v6360
        %v6580 = vpack.c.b16 %v6363, %v6362
        %v6581 = vpack.c.b16 %v6365, %v6364
        %v6582 = vpack.c.b16 %v6367, %v6366
        %v6583 = vpack.c.b16 %v6369, %v6368
        %v6584 = vpack.c.b16 %v6371, %v6370
        %v6585 = vpack.c.b16 %v6373, %v6372
        %v6586 = vpack.c.b16 %v6375, %v6374
        %v6587 = vpack.c.b16 %v6377, %v6376
        %v6588 = vpack.c.b16 %v6379, %v6378
        %v6589 = vpack.c.b16 %v6381, %v6380
        %v6590 = vpack.c.b16 %v6383, %v6382
        %v6591 = vpack.c.b16 %v6385, %v6384
        %v6592 = vpack.c.b16 %v6387, %v6386
        %v6593 = vpack.c.b16 %v6389, %v6388
        %v6594 = vpack.c.b16 %v6391, %v6390
        %v6595 = vpack.c.b16 %v6393, %v6392
        %v6596 = vpack.c.b16 %v6395, %v6394
        %v6597 = vpack.c.b16 %v6397, %v6396
        %v6598 = vpack.c.b16 %v6399, %v6398
        %v6599 = vpack.c.b16 %v6401, %v6400
        %v6600 = vpack.c.b16 %v6403, %v6402
        %v6601 = vpack.c.b16 %v6405, %v6404
        %v6602 = vpack.c.b16 %v6407, %v6406
        %v6603 = vpack.c.b16 %v6409, %v6408
        %v6604 = vpack.c.b16 %v6411, %v6410
        %v6605 = vpack.c.b16 %v6413, %v6412
        %v6606 = vpack.c.b16 %v6415, %v6414
        %v6607 = vpack.c.b16 %v6417, %v6416
        %v6608 = vpack.c.b16 %v6419, %v6418
        %v6609 = vpack.c.b16 %v6421, %v6420
        %v6610 = vpack.c.b16 %v6423, %v6422
        %v6611 = vpack.c.b16 %v6425, %v6424
        %v6612 = vpack.c.b16 %v6427, %v6426
        %v6613 = vpack.c.b16 %v6429, %v6428
        %v6614 = vpack.c.b16 %v6431, %v6430
        %v6615 = vpack.c.b16 %v6433, %v6432
        %v6616 = vpack.c.b16 %v6435, %v6434
        %v6617 = vpack.c.b16 %v6437, %v6436
        %v6618 = vpack.c.b16 %v6439, %v6438
        %v6619 = vpack.c.b16 %v6441, %v6440
        %v6620 = vpack.c.b16 %v6443, %v6442
        %v6621 = vpack.c.b16 %v6445, %v6444
        %v6622 = vpack.c.b16 %v6447, %v6446
        %v6623 = vpack.c.b16 %v6449, %v6448
        %v6624 = vpack.c.b16 %v6451, %v6450
        %v6625 = vpack.c.b16 %v6453, %v6452
        %v6626 = vpack.c.b16 %v6455, %v6454
        %v6627 = vpack.c.b16 %v6457, %v6456
        %v6628 = vpack.c.b16 %v6459, %v6458
        %v6629 = vpack.c.b16 %v6461, %v6460
        %v6630 = vpack.c.b16 %v6463, %v6462
        %v6631 = vpack.c.b16 %v6465, %v6464
        %v6632 = vpack.c.b16 %v6467, %v6466
        %v6633 = vpack.c.b16 %v6469, %v6468
        %v6634 = vpack.c.b16 %v6471, %v6470
        %v6635 = vpack.c.b16 %v6473, %v6472
        %v6636 = vpack.c.b16 %v6475, %v6474
        %v6637 = vpack.c.b16 %v6477, %v6476
        %v6638 = vpack.c.b16 %v6479, %v6478
        %v6639 = vpack.c.b16 %v6481, %v6480
        %v6640 = vpack.c.b16 %v6483, %v6482
        %v6641 = vpack.c.b16 %v6485, %v6484
        %v6642 = vpack.c.b16 %v6487, %v6486
        %v6643 = vpack.c.b16 %v6489, %v6488
        %v6644 = vpack.c.b16 %v6491, %v6490
        %v6645 = vpack.c.b16 %v6493, %v6492
        %v6646 = vpack.c.b16 %v6495, %v6494
        %v6647 = vpack.c.b16 %v6497, %v6496
        %v6648 = vpack.c.b16 %v6499, %v6498
        %v6649 = vpack.c.b16 %v6501, %v6500
        %v6650 = vpack.c.b16 %v6503, %v6502
        %v6651 = vpack.c.b16 %v6505, %v6504
        %v6652 = vpack.c.b16 %v6507, %v6506
        %v6653 = vpack.c.b16 %v6509, %v6508
        %v6654 = vpack.c.b16 %v6511, %v6510
        %v6655 = vpack.c.b16 %v6513, %v6512
        %v6656 = vpack.c.b16 %v6515, %v6514
        %v6657 = vpack.c.b16 %v6517, %v6516
        %v6658 = vpack.c.b16 %v6519, %v6518
        %v6659 = vpack.c.b16 %v6521, %v6520
        %v6660 = vpack.c.b16 %v6523, %v6522
        %v6661 = vpack.c.b16 %v6525, %v6524
        %v6662 = vpack.c.b16 %v6527, %v6526
        %v6663 = vpack.c.b16 %v6529, %v6528
        %v6664 = vpack.c.b16 %v6531, %v6530
        %v6665 = vpack.c.b16 %v6533, %v6532
        %v6666 = vpack.c.b16 %v6535, %v6534
        %v6667 = vpack.c.b16 %v6537, %v6536
        %v6668 = vpack.c.b16 %v6539, %v6538
        %v6669 = vpack.c.b16 %v6541, %v6540
        %6798 = vmatpush.bf16.msra.mxu0 %v6549
        %6799 = vmatpush.bf16.msra.mxu0 %v6548
        %6800 = vmatpush.bf16.msra.mxu0 %v6547
        %6801 = vmatpush.bf16.msra.mxu0 %v6546
        %6802 = vmatpush.bf16.msra.mxu0 %v6545
        %6803 = vmatpush.bf16.msra.mxu0 %v6544
        %6804 = vmatpush.bf16.msra.mxu0 %v6543
        %6805 = vmatpush.bf16.msra.mxu0 %v6542
        %6806 = vmatmul.bf16.gmra.mxu0 %v5966
        %v6807 = vpop.f32.mrf.mxu0
        %v6808 = vadd.f32 %v5868, %v6807
        %v6809 = vpop.f32.mrf.mxu0
        %v6810 = vadd.f32 %v5868, %v6809
        %6811 = vmatmul.bf16.gmra.mxu0 %v5982
        %v6812 = vpop.f32.mrf.mxu0
        %v6813 = vadd.f32 %v5868, %v6812
        %v6814 = vpop.f32.mrf.mxu0
        %v6815 = vadd.f32 %v5868, %v6814
        %6816 = vdwg.mxu0
        %6817 = vmatpush.bf16.msra.mxu0 %v6557
        %6818 = vmatpush.bf16.msra.mxu0 %v6556
        %6819 = vmatpush.bf16.msra.mxu0 %v6555
        %6820 = vmatpush.bf16.msra.mxu0 %v6554
        %6821 = vmatpush.bf16.msra.mxu0 %v6553
        %6822 = vmatpush.bf16.msra.mxu0 %v6552
        %6823 = vmatpush.bf16.msra.mxu0 %v6551
        %6824 = vmatpush.bf16.msra.mxu0 %v6550
        %6825 = vmatmul.bf16.gmra.mxu0 %v5967
        %v6826 = vpop.f32.mrf.mxu0
        %v6827 = vadd.f32 %v6808, %v6826
        %v6828 = vpop.f32.mrf.mxu0
        %v6829 = vadd.f32 %v6810, %v6828
        %6830 = vmatmul.bf16.gmra.mxu0 %v5983
        %v6831 = vpop.f32.mrf.mxu0
        %v6832 = vadd.f32 %v6813, %v6831
        %v6833 = vpop.f32.mrf.mxu0
        %v6834 = vadd.f32 %v6815, %v6833
        %6835 = vdwg.mxu0
        %6836 = vmatpush.bf16.msra.mxu0 %v6565
        %6837 = vmatpush.bf16.msra.mxu0 %v6564
        %6838 = vmatpush.bf16.msra.mxu0 %v6563
        %6839 = vmatpush.bf16.msra.mxu0 %v6562
        %6840 = vmatpush.bf16.msra.mxu0 %v6561
        %6841 = vmatpush.bf16.msra.mxu0 %v6560
        %6842 = vmatpush.bf16.msra.mxu0 %v6559
        %6843 = vmatpush.bf16.msra.mxu0 %v6558
        %6844 = vmatmul.bf16.gmra.mxu0 %v5968
        %v6845 = vpop.f32.mrf.mxu0
        %v6846 = vadd.f32 %v6827, %v6845
        %v6847 = vpop.f32.mrf.mxu0
        %v6848 = vadd.f32 %v6829, %v6847
        %6849 = vmatmul.bf16.gmra.mxu0 %v5984
        %v6850 = vpop.f32.mrf.mxu0
        %v6851 = vadd.f32 %v6832, %v6850
        %v6852 = vpop.f32.mrf.mxu0
        %v6853 = vadd.f32 %v6834, %v6852
        %6854 = vdwg.mxu0
        %6855 = vmatpush.bf16.msra.mxu0 %v6573
        %6856 = vmatpush.bf16.msra.mxu0 %v6572
        %6857 = vmatpush.bf16.msra.mxu0 %v6571
        %6858 = vmatpush.bf16.msra.mxu0 %v6570
        %6859 = vmatpush.bf16.msra.mxu0 %v6569
        %6860 = vmatpush.bf16.msra.mxu0 %v6568
        %6861 = vmatpush.bf16.msra.mxu0 %v6567
        %6862 = vmatpush.bf16.msra.mxu0 %v6566
        %6863 = vmatmul.bf16.gmra.mxu0 %v5969
        %v6864 = vpop.f32.mrf.mxu0
        %v6865 = vadd.f32 %v6846, %v6864
        %v6866 = vpop.f32.mrf.mxu0
        %v6867 = vadd.f32 %v6848, %v6866
        %6868 = vmatmul.bf16.gmra.mxu0 %v5985
        %v6869 = vpop.f32.mrf.mxu0
        %v6870 = vadd.f32 %v6851, %v6869
        %v6871 = vpop.f32.mrf.mxu0
        %v6872 = vadd.f32 %v6853, %v6871
        %6873 = vdwg.mxu0
        %6874 = vmatpush.bf16.msra.mxu0 %v6581
        %6875 = vmatpush.bf16.msra.mxu0 %v6580
        %6876 = vmatpush.bf16.msra.mxu0 %v6579
        %6877 = vmatpush.bf16.msra.mxu0 %v6578
        %6878 = vmatpush.bf16.msra.mxu0 %v6577
        %6879 = vmatpush.bf16.msra.mxu0 %v6576
        %6880 = vmatpush.bf16.msra.mxu0 %v6575
        %6881 = vmatpush.bf16.msra.mxu0 %v6574
        %6882 = vmatmul.bf16.gmra.mxu0 %v5970
        %v6883 = vpop.f32.mrf.mxu0
        %v6884 = vadd.f32 %v6865, %v6883
        %v6885 = vpop.f32.mrf.mxu0
        %v6886 = vadd.f32 %v6867, %v6885
        %6887 = vmatmul.bf16.gmra.mxu0 %v5986
        %v6888 = vpop.f32.mrf.mxu0
        %v6889 = vadd.f32 %v6870, %v6888
        %v6890 = vpop.f32.mrf.mxu0
        %v6891 = vadd.f32 %v6872, %v6890
        %6892 = vdwg.mxu0
        %6893 = vmatpush.bf16.msra.mxu0 %v6589
        %6894 = vmatpush.bf16.msra.mxu0 %v6588
        %6895 = vmatpush.bf16.msra.mxu0 %v6587
        %6896 = vmatpush.bf16.msra.mxu0 %v6586
        %6897 = vmatpush.bf16.msra.mxu0 %v6585
        %6898 = vmatpush.bf16.msra.mxu0 %v6584
        %6899 = vmatpush.bf16.msra.mxu0 %v6583
        %6900 = vmatpush.bf16.msra.mxu0 %v6582
        %6901 = vmatmul.bf16.gmra.mxu0 %v5971
        %v6902 = vpop.f32.mrf.mxu0
        %v6903 = vadd.f32 %v6884, %v6902
        %v6904 = vpop.f32.mrf.mxu0
        %v6905 = vadd.f32 %v6886, %v6904
        %6906 = vmatmul.bf16.gmra.mxu0 %v5987
        %v6907 = vpop.f32.mrf.mxu0
        %v6908 = vadd.f32 %v6889, %v6907
        %v6909 = vpop.f32.mrf.mxu0
        %v6910 = vadd.f32 %v6891, %v6909
        %6911 = vdwg.mxu0
        %6912 = vmatpush.bf16.msra.mxu0 %v6597
        %6913 = vmatpush.bf16.msra.mxu0 %v6596
        %6914 = vmatpush.bf16.msra.mxu0 %v6595
        %6915 = vmatpush.bf16.msra.mxu0 %v6594
        %6916 = vmatpush.bf16.msra.mxu0 %v6593
        %6917 = vmatpush.bf16.msra.mxu0 %v6592
        %6918 = vmatpush.bf16.msra.mxu0 %v6591
        %6919 = vmatpush.bf16.msra.mxu0 %v6590
        %6920 = vmatmul.bf16.gmra.mxu0 %v5972
        %v6921 = vpop.f32.mrf.mxu0
        %v6922 = vadd.f32 %v6903, %v6921
        %v6923 = vpop.f32.mrf.mxu0
        %v6924 = vadd.f32 %v6905, %v6923
        %6925 = vmatmul.bf16.gmra.mxu0 %v5988
        %v6926 = vpop.f32.mrf.mxu0
        %v6927 = vadd.f32 %v6908, %v6926
        %v6928 = vpop.f32.mrf.mxu0
        %v6929 = vadd.f32 %v6910, %v6928
        %6930 = vdwg.mxu0
        %6931 = vmatpush.bf16.msra.mxu0 %v6605
        %6932 = vmatpush.bf16.msra.mxu0 %v6604
        %6933 = vmatpush.bf16.msra.mxu0 %v6603
        %6934 = vmatpush.bf16.msra.mxu0 %v6602
        %6935 = vmatpush.bf16.msra.mxu0 %v6601
        %6936 = vmatpush.bf16.msra.mxu0 %v6600
        %6937 = vmatpush.bf16.msra.mxu0 %v6599
        %6938 = vmatpush.bf16.msra.mxu0 %v6598
        %6939 = vmatmul.bf16.gmra.mxu0 %v5973
        %v6940 = vpop.f32.mrf.mxu0
        %v6941 = vadd.f32 %v6922, %v6940
        %v6942 = vpop.f32.mrf.mxu0
        %v6943 = vadd.f32 %v6924, %v6942
        %6944 = vmatmul.bf16.gmra.mxu0 %v5989
        %v6945 = vpop.f32.mrf.mxu0
        %v6946 = vadd.f32 %v6927, %v6945
        %v6947 = vpop.f32.mrf.mxu0
        %v6948 = vadd.f32 %v6929, %v6947
        %6949 = vdwg.mxu0
        %6950 = vmatpush.bf16.msra.mxu0 %v6613
        %6951 = vmatpush.bf16.msra.mxu0 %v6612
        %6952 = vmatpush.bf16.msra.mxu0 %v6611
        %6953 = vmatpush.bf16.msra.mxu0 %v6610
        %6954 = vmatpush.bf16.msra.mxu0 %v6609
        %6955 = vmatpush.bf16.msra.mxu0 %v6608
        %6956 = vmatpush.bf16.msra.mxu0 %v6607
        %6957 = vmatpush.bf16.msra.mxu0 %v6606
        %6958 = vmatmul.bf16.gmra.mxu0 %v5974
        %v6959 = vpop.f32.mrf.mxu0
        %v6960 = vadd.f32 %v6941, %v6959
        %v6961 = vpop.f32.mrf.mxu0
        %v6962 = vadd.f32 %v6943, %v6961
        %6963 = vmatmul.bf16.gmra.mxu0 %v5990
        %v6964 = vpop.f32.mrf.mxu0
        %v6965 = vadd.f32 %v6946, %v6964
        %v6966 = vpop.f32.mrf.mxu0
        %v6967 = vadd.f32 %v6948, %v6966
        %6968 = vdwg.mxu0
        %6969 = vmatpush.bf16.msra.mxu0 %v6621
        %6970 = vmatpush.bf16.msra.mxu0 %v6620
        %6971 = vmatpush.bf16.msra.mxu0 %v6619
        %6972 = vmatpush.bf16.msra.mxu0 %v6618
        %6973 = vmatpush.bf16.msra.mxu0 %v6617
        %6974 = vmatpush.bf16.msra.mxu0 %v6616
        %6975 = vmatpush.bf16.msra.mxu0 %v6615
        %6976 = vmatpush.bf16.msra.mxu0 %v6614
        %6977 = vmatmul.bf16.gmra.mxu0 %v5975
        %v6978 = vpop.f32.mrf.mxu0
        %v6979 = vadd.f32 %v6960, %v6978
        %v6980 = vpop.f32.mrf.mxu0
        %v6981 = vadd.f32 %v6962, %v6980
        %6982 = vmatmul.bf16.gmra.mxu0 %v5991
        %v6983 = vpop.f32.mrf.mxu0
        %v6984 = vadd.f32 %v6965, %v6983
        %v6985 = vpop.f32.mrf.mxu0
        %v6986 = vadd.f32 %v6967, %v6985
        %6987 = vdwg.mxu0
        %6988 = vmatpush.bf16.msra.mxu0 %v6629
        %6989 = vmatpush.bf16.msra.mxu0 %v6628
        %6990 = vmatpush.bf16.msra.mxu0 %v6627
        %6991 = vmatpush.bf16.msra.mxu0 %v6626
        %6992 = vmatpush.bf16.msra.mxu0 %v6625
        %6993 = vmatpush.bf16.msra.mxu0 %v6624
        %6994 = vmatpush.bf16.msra.mxu0 %v6623
        %6995 = vmatpush.bf16.msra.mxu0 %v6622
        %6996 = vmatmul.bf16.gmra.mxu0 %v5976
        %v6997 = vpop.f32.mrf.mxu0
        %v6998 = vadd.f32 %v6979, %v6997
        %v6999 = vpop.f32.mrf.mxu0
        %v7000 = vadd.f32 %v6981, %v6999
        %7001 = vmatmul.bf16.gmra.mxu0 %v5992
        %v7002 = vpop.f32.mrf.mxu0
        %v7003 = vadd.f32 %v6984, %v7002
        %v7004 = vpop.f32.mrf.mxu0
        %v7005 = vadd.f32 %v6986, %v7004
        %7006 = vdwg.mxu0
        %7007 = vmatpush.bf16.msra.mxu0 %v6637
        %7008 = vmatpush.bf16.msra.mxu0 %v6636
        %7009 = vmatpush.bf16.msra.mxu0 %v6635
        %7010 = vmatpush.bf16.msra.mxu0 %v6634
        %7011 = vmatpush.bf16.msra.mxu0 %v6633
        %7012 = vmatpush.bf16.msra.mxu0 %v6632
        %7013 = vmatpush.bf16.msra.mxu0 %v6631
        %7014 = vmatpush.bf16.msra.mxu0 %v6630
        %7015 = vmatmul.bf16.gmra.mxu0 %v5977
        %v7016 = vpop.f32.mrf.mxu0
        %v7017 = vadd.f32 %v6998, %v7016
        %v7018 = vpop.f32.mrf.mxu0
        %v7019 = vadd.f32 %v7000, %v7018
        %7020 = vmatmul.bf16.gmra.mxu0 %v5993
        %v7021 = vpop.f32.mrf.mxu0
        %v7022 = vadd.f32 %v7003, %v7021
        %v7023 = vpop.f32.mrf.mxu0
        %v7024 = vadd.f32 %v7005, %v7023
        %7025 = vdwg.mxu0
        %7026 = vmatpush.bf16.msra.mxu0 %v6645
        %7027 = vmatpush.bf16.msra.mxu0 %v6644
        %7028 = vmatpush.bf16.msra.mxu0 %v6643
        %7029 = vmatpush.bf16.msra.mxu0 %v6642
        %7030 = vmatpush.bf16.msra.mxu0 %v6641
        %7031 = vmatpush.bf16.msra.mxu0 %v6640
        %7032 = vmatpush.bf16.msra.mxu0 %v6639
        %7033 = vmatpush.bf16.msra.mxu0 %v6638
        %7034 = vmatmul.bf16.gmra.mxu0 %v5978
        %v7035 = vpop.f32.mrf.mxu0
        %v7036 = vadd.f32 %v7017, %v7035
        %v7037 = vpop.f32.mrf.mxu0
        %v7038 = vadd.f32 %v7019, %v7037
        %7039 = vmatmul.bf16.gmra.mxu0 %v5994
        %v7040 = vpop.f32.mrf.mxu0
        %v7041 = vadd.f32 %v7022, %v7040
        %v7042 = vpop.f32.mrf.mxu0
        %v7043 = vadd.f32 %v7024, %v7042
        %7044 = vdwg.mxu0
        %7045 = vmatpush.bf16.msra.mxu0 %v6653
        %7046 = vmatpush.bf16.msra.mxu0 %v6652
        %7047 = vmatpush.bf16.msra.mxu0 %v6651
        %7048 = vmatpush.bf16.msra.mxu0 %v6650
        %7049 = vmatpush.bf16.msra.mxu0 %v6649
        %7050 = vmatpush.bf16.msra.mxu0 %v6648
        %7051 = vmatpush.bf16.msra.mxu0 %v6647
        %7052 = vmatpush.bf16.msra.mxu0 %v6646
        %7053 = vmatmul.bf16.gmra.mxu0 %v5979
        %v7054 = vpop.f32.mrf.mxu0
        %v7055 = vadd.f32 %v7036, %v7054
        %v7056 = vpop.f32.mrf.mxu0
        %v7057 = vadd.f32 %v7038, %v7056
        %7058 = vmatmul.bf16.gmra.mxu0 %v5995
        %v7059 = vpop.f32.mrf.mxu0
        %v7060 = vadd.f32 %v7041, %v7059
        %v7061 = vpop.f32.mrf.mxu0
        %v7062 = vadd.f32 %v7043, %v7061
        %7063 = vdwg.mxu0
        %7064 = vmatpush.bf16.msra.mxu0 %v6661
        %7065 = vmatpush.bf16.msra.mxu0 %v6660
        %7066 = vmatpush.bf16.msra.mxu0 %v6659
        %7067 = vmatpush.bf16.msra.mxu0 %v6658
        %7068 = vmatpush.bf16.msra.mxu0 %v6657
        %7069 = vmatpush.bf16.msra.mxu0 %v6656
        %7070 = vmatpush.bf16.msra.mxu0 %v6655
        %7071 = vmatpush.bf16.msra.mxu0 %v6654
        %7072 = vmatmul.bf16.gmra.mxu0 %v5980
        %v7073 = vpop.f32.mrf.mxu0
        %v7074 = vadd.f32 %v7055, %v7073
        %v7075 = vpop.f32.mrf.mxu0
        %v7076 = vadd.f32 %v7057, %v7075
        %7077 = vmatmul.bf16.gmra.mxu0 %v5996
        %v7078 = vpop.f32.mrf.mxu0
        %v7079 = vadd.f32 %v7060, %v7078
        %v7080 = vpop.f32.mrf.mxu0
        %v7081 = vadd.f32 %v7062, %v7080
        %7082 = vdwg.mxu0
        %7083 = vmatpush.bf16.msra.mxu0 %v6669
        %7084 = vmatpush.bf16.msra.mxu0 %v6668
        %7085 = vmatpush.bf16.msra.mxu0 %v6667
        %7086 = vmatpush.bf16.msra.mxu0 %v6666
        %7087 = vmatpush.bf16.msra.mxu0 %v6665
        %7088 = vmatpush.bf16.msra.mxu0 %v6664
        %7089 = vmatpush.bf16.msra.mxu0 %v6663
        %7090 = vmatpush.bf16.msra.mxu0 %v6662
        %7091 = vmatmul.bf16.gmra.mxu0 %v5981
        %v7092 = vpop.f32.mrf.mxu0
        %v7093 = vadd.f32 %v7074, %v7092
        %v7094 = vpop.f32.mrf.mxu0
        %v7095 = vadd.f32 %v7076, %v7094
        %7096 = vmatmul.bf16.gmra.mxu0 %v5997
        %v7097 = vpop.f32.mrf.mxu0
        %v7098 = vadd.f32 %v7079, %v7097
        %v7099 = vpop.f32.mrf.mxu0
        %v7100 = vadd.f32 %v7081, %v7099
        %7101 = vdwg.mxu0
        %v7102 = vadd.f32 %v7093, %v918
        %v7103 = vadd.f32 %v7095, %v919
        %v7104 = vadd.f32 %v7098, %v920
        %v7105 = vadd.f32 %v7100, %v921
        %v7106 = vld [vmem:[%s692] sm:$0x1]
        %v7107 = vld [vmem:[%s695] sm:$0x1]
        %v7108 = vsel %vm2652, %v7102, 0.0
        %7109 = vadd.xlane.f32.xlu0 %v7108
        %v7110 = vpop.xlane.xlu0 %7109
        %v7111 = vsel %vm2652, %v7103, 0.0
        %7112 = vadd.xlane.f32.xlu0 %v7111
        %v7113 = vpop.xlane.xlu0 %7112
        %v7114 = vsel %vm2652, %v7104, 0.0
        %7115 = vadd.xlane.f32.xlu0 %v7114
        %v7116 = vpop.xlane.xlu0 %7115
        %vm7117 = vcmask 779264
        %v7118 = vsel %vm7117, %v7105, 0.0
        %7119 = vadd.xlane.f32.xlu0 %v7118
        %v7120 = vpop.xlane.xlu0 %7119
        %v7121 = vrcp.pop 96.0
        %v7122 = vmul.f32 96.0, %v7121
        %v7123 = vsub.f32 1.0, %v7122
        %v7124 = vmul.f32 %v7121, %v7123
        %v7125 = vadd.f32 %v7121, %v7124
        %vm7126 = vweird.f32 %v7121
        %v7127 = vsel %vm7126, %v7121, %v7125
        %v7128 = vmul.f32 %v7110, %v7127
        %v7129 = vmul.f32 %v7113, %v7127
        %v7130 = vmul.f32 %v7116, %v7127
        %v7131 = vmul.f32 %v7120, %v7127
        %v7132 = vsub.f32 %v7102, %v7128
        %v7133 = vsub.f32 %v7103, %v7129
        %v7134 = vsub.f32 %v7104, %v7130
        %v7135 = vsub.f32 %v7105, %v7131
        %v7136 = vmul.f32 %v7132, %v7132
        %v7137 = vmul.f32 %v7133, %v7133
        %v7138 = vmul.f32 %v7134, %v7134
        %v7139 = vmul.f32 %v7135, %v7135
        %v7140 = vsel %vm2652, %v7136, 0.0
        %7141 = vadd.xlane.f32.xlu0 %v7140
        %v7142 = vpop.xlane.xlu0 %7141
        %v7143 = vsel %vm2652, %v7137, 0.0
        %7144 = vadd.xlane.f32.xlu0 %v7143
        %v7145 = vpop.xlane.xlu0 %7144
        %v7146 = vsel %vm2652, %v7138, 0.0
        %7147 = vadd.xlane.f32.xlu0 %v7146
        %v7148 = vpop.xlane.xlu0 %7147
        %v7149 = vsel %vm7117, %v7139, 0.0
        %7150 = vadd.xlane.f32.xlu0 %v7149
        %v7151 = vpop.xlane.xlu0 %7150
        %v7152 = vmul.f32 %v7142, %v7127
        %v7153 = vmul.f32 %v7145, %v7127
        %v7154 = vmul.f32 %v7148, %v7127
        %v7155 = vmul.f32 %v7151, %v7127
        %v7156 = vadd.f32 %v7152, 1e-05
        %v7157 = vadd.f32 %v7153, 1e-05
        %v7158 = vadd.f32 %v7154, 1e-05
        %v7159 = vadd.f32 %v7155, 1e-05
        %v7160 = vrsqrt.pop %v7156
        %v7161 = vmul.f32 %v7160, %v7156
        %v7162 = vmul.f32 %v7161, %v7160
        %v7163 = vmul.f32 0.5, %v7162
        %v7164 = vsub.f32 1.5, %v7163
        %v7165 = vmul.f32 %v7160, %v7164
        %vm7166 = vweird.f32 %v7156
        %vm7167 = vweird.f32 %v7160
        %vm7168 = vmor %vm7166, %vm7167
        %v7169 = vsel %vm7168, %v7160, %v7165
        %v7170 = vrsqrt.pop %v7157
        %v7171 = vmul.f32 %v7170, %v7157
        %v7172 = vmul.f32 %v7171, %v7170
        %v7173 = vmul.f32 0.5, %v7172
        %v7174 = vsub.f32 1.5, %v7173
        %v7175 = vmul.f32 %v7170, %v7174
        %vm7176 = vweird.f32 %v7157
        %vm7177 = vweird.f32 %v7170
        %vm7178 = vmor %vm7176, %vm7177
        %v7179 = vsel %vm7178, %v7170, %v7175
        %v7180 = vrsqrt.pop %v7158
        %v7181 = vmul.f32 %v7180, %v7158
        %v7182 = vmul.f32 %v7181, %v7180
        %v7183 = vmul.f32 0.5, %v7182
        %v7184 = vsub.f32 1.5, %v7183
        %v7185 = vmul.f32 %v7180, %v7184
        %vm7186 = vweird.f32 %v7158
        %vm7187 = vweird.f32 %v7180
        %vm7188 = vmor %vm7186, %vm7187
        %v7189 = vsel %vm7188, %v7180, %v7185
        %v7190 = vrsqrt.pop %v7159
        %v7191 = vmul.f32 %v7190, %v7159
        %v7192 = vmul.f32 %v7191, %v7190
        %v7193 = vmul.f32 0.5, %v7192
        %v7194 = vsub.f32 1.5, %v7193
        %v7195 = vmul.f32 %v7190, %v7194
        %vm7196 = vweird.f32 %v7159
        %vm7197 = vweird.f32 %v7190
        %vm7198 = vmor %vm7196, %vm7197
        %v7199 = vsel %vm7198, %v7190, %v7195
        %v7200 = vmul.f32 %v7132, %v7169
        %v7201 = vmul.f32 %v7133, %v7179
        %v7202 = vmul.f32 %v7134, %v7189
        %v7203 = vmul.f32 %v7135, %v7199
        %v7205 = vperm.slane %v7106, 0
        %v7207 = vmul.f32 %v7200, %v7205
        %v7208 = vmul.f32 %v7201, %v7205
        %v7209 = vmul.f32 %v7202, %v7205
        %v7210 = vmul.f32 %v7203, %v7205
        %v7212 = vperm.slane %v7107, 0
        %v7214 = vadd.f32 %v7207, %v7212
        %v7215 = vadd.f32 %v7208, %v7212
        %v7216 = vadd.f32 %v7209, %v7212
        %v7217 = vadd.f32 %v7210, %v7212
        %v7218 = vpack.c.bf16 %v7215, %v7214
        %v7219 = vpack.c.bf16 %v7217, %v7216
        %v7220 = vld [vmem:[%s700] sm:$0xff]
        %v7221 = vld [vmem:[%s700 + $0x8] sm:$0xf]
        %v7222 = vld [vmem:[%s700 + $0xc] sm:$0xff]
        %v7223 = vld [vmem:[%s700 + $0x14] sm:$0xf]
        %v7224 = vld [vmem:[%s700 + $0x18] sm:$0xff]
        %v7225 = vld [vmem:[%s700 + $0x20] sm:$0xf]
        %v7226 = vld [vmem:[%s700 + $0x24] sm:$0xff]
        %v7227 = vld [vmem:[%s700 + $0x2c] sm:$0xf]
        %v7228 = vld [vmem:[%s700 + $0x30] sm:$0xff]
        %v7229 = vld [vmem:[%s700 + $0x38] sm:$0xf]
        %v7230 = vld [vmem:[%s700 + $0x3c] sm:$0xff]
        %v7231 = vld [vmem:[%s700 + $0x44] sm:$0xf]
        %v7232 = vld [vmem:[%s700 + $0x48] sm:$0xff]
        %v7233 = vld [vmem:[%s700 + $0x50] sm:$0xf]
        %v7234 = vld [vmem:[%s700 + $0x54] sm:$0xff]
        %v7235 = vld [vmem:[%s700 + $0x5c] sm:$0xf]
        %v7236 = vld [vmem:[%s700 + $0x60] sm:$0xff]
        %v7237 = vld [vmem:[%s700 + $0x68] sm:$0xf]
        %v7238 = vld [vmem:[%s700 + $0x6c] sm:$0xff]
        %v7239 = vld [vmem:[%s700 + $0x74] sm:$0xf]
        %v7240 = vld [vmem:[%s700 + $0x78] sm:$0xff]
        %v7241 = vld [vmem:[%s700 + $0x80] sm:$0xf]
        %v7242 = vld [vmem:[%s700 + $0x84] sm:$0xff]
        %v7243 = vld [vmem:[%s700 + $0x8c] sm:$0xf]
        %v7244 = vld [vmem:[%s704] sm:$0x7]
        %v7246 = vperm.slane %v7244, 0
        %v7247 = vperm.slane %v7244, 1
        %v7248 = vperm.slane %v7244, 2
        %v7276 = vunpack.c.l.b16 %v7220
        %v7277 = vunpack.c.h.b16 %v7220
        %v7278 = vunpack.c.l.b16 %v7221
        %v7279 = vunpack.c.l.b16 %v7222
        %v7280 = vunpack.c.h.b16 %v7222
        %v7281 = vunpack.c.l.b16 %v7223
        %v7282 = vunpack.c.l.b16 %v7224
        %v7283 = vunpack.c.h.b16 %v7224
        %v7284 = vunpack.c.l.b16 %v7225
        %v7285 = vunpack.c.l.b16 %v7226
        %v7286 = vunpack.c.h.b16 %v7226
        %v7287 = vunpack.c.l.b16 %v7227
        %v7288 = vunpack.c.l.b16 %v7228
        %v7289 = vunpack.c.h.b16 %v7228
        %v7290 = vunpack.c.l.b16 %v7229
        %v7291 = vunpack.c.l.b16 %v7230
        %v7292 = vunpack.c.h.b16 %v7230
        %v7293 = vunpack.c.l.b16 %v7231
        %v7294 = vunpack.c.l.b16 %v7232
        %v7295 = vunpack.c.h.b16 %v7232
        %v7296 = vunpack.c.l.b16 %v7233
        %v7297 = vunpack.c.l.b16 %v7234
        %v7298 = vunpack.c.h.b16 %v7234
        %v7299 = vunpack.c.l.b16 %v7235
        %v7300 = vunpack.c.l.b16 %v7236
        %v7301 = vunpack.c.h.b16 %v7236
        %v7302 = vunpack.c.l.b16 %v7237
        %v7303 = vunpack.c.l.b16 %v7238
        %v7304 = vunpack.c.h.b16 %v7238
        %v7305 = vunpack.c.l.b16 %v7239
        %v7306 = vunpack.c.l.b16 %v7240
        %v7307 = vunpack.c.h.b16 %v7240
        %v7308 = vunpack.c.l.b16 %v7241
        %v7309 = vunpack.c.l.b16 %v7242
        %v7310 = vunpack.c.h.b16 %v7242
        %v7311 = vunpack.c.l.b16 %v7243
        %v7312 = vpack.c.b16 %v7279, %v7276
        %v7313 = vpack.c.b16 %v7280, %v7277
        %v7314 = vpack.c.b16 %v7281, %v7278
        %v7315 = vpack.c.b16 %v7285, %v7282
        %v7316 = vpack.c.b16 %v7286, %v7283
        %v7317 = vpack.c.b16 %v7287, %v7284
        %v7318 = vpack.c.b16 %v7291, %v7288
        %v7319 = vpack.c.b16 %v7292, %v7289
        %v7320 = vpack.c.b16 %v7293, %v7290
        %v7321 = vpack.c.b16 %v7297, %v7294
        %v7322 = vpack.c.b16 %v7298, %v7295
        %v7323 = vpack.c.b16 %v7299, %v7296
        %v7324 = vpack.c.b16 %v7303, %v7300
        %v7325 = vpack.c.b16 %v7304, %v7301
        %v7326 = vpack.c.b16 %v7305, %v7302
        %v7327 = vpack.c.b16 %v7309, %v7306
        %v7328 = vpack.c.b16 %v7310, %v7307
        %v7329 = vpack.c.b16 %v7311, %v7308
        %v7349 = vsel %vm2652, %v7218, 0
        %v7352 = vsel %vm2652, %v7219, 0
        %7354 = vmatpush.bf16.msra.mxu0 0
        %7355 = vmatpush.bf16.msra.mxu0 0
        %7356 = vmatpush.bf16.msra.mxu0 %v7327
        %7357 = vmatpush.bf16.msra.mxu0 %v7324
        %7358 = vmatpush.bf16.msra.mxu0 %v7321
        %7359 = vmatpush.bf16.msra.mxu0 %v7318
        %7360 = vmatpush.bf16.msra.mxu0 %v7315
        %7361 = vmatpush.bf16.msra.mxu0 %v7312
        %7362 = vmatmul.bf16.gmra.mxu0 %v7349
        %v7363 = vpop.f32.mrf.mxu0
        %v7364 = vadd.f32 %v7246, %v7363
        %v7365 = vpop.f32.mrf.mxu0
        %v7366 = vadd.f32 %v7246, %v7365
        %7367 = vmatmul.bf16.gmra.mxu0 %v7352
        %v7368 = vpop.f32.mrf.mxu0
        %v7369 = vadd.f32 %v7246, %v7368
        %v7370 = vpop.f32.mrf.mxu0
        %v7371 = vadd.f32 %v7246, %v7370
        %7372 = vdwg.mxu0
        %7373 = vmatpush.bf16.msra.mxu0 0
        %7374 = vmatpush.bf16.msra.mxu0 0
        %7375 = vmatpush.bf16.msra.mxu0 %v7328
        %7376 = vmatpush.bf16.msra.mxu0 %v7325
        %7377 = vmatpush.bf16.msra.mxu0 %v7322
        %7378 = vmatpush.bf16.msra.mxu0 %v7319
        %7379 = vmatpush.bf16.msra.mxu0 %v7316
        %7380 = vmatpush.bf16.msra.mxu0 %v7313
        %7381 = vmatmul.bf16.gmra.mxu0 %v7349
        %v7382 = vpop.f32.mrf.mxu0
        %v7383 = vadd.f32 %v7247, %v7382
        %v7384 = vpop.f32.mrf.mxu0
        %v7385 = vadd.f32 %v7247, %v7384
        %7386 = vmatmul.bf16.gmra.mxu0 %v7352
        %v7387 = vpop.f32.mrf.mxu0
        %v7388 = vadd.f32 %v7247, %v7387
        %v7389 = vpop.f32.mrf.mxu0
        %v7390 = vadd.f32 %v7247, %v7389
        %7391 = vdwg.mxu0
        %7392 = vmatpush.bf16.msra.mxu0 0
        %7393 = vmatpush.bf16.msra.mxu0 0
        %7394 = vmatpush.bf16.msra.mxu0 %v7329
        %7395 = vmatpush.bf16.msra.mxu0 %v7326
        %7396 = vmatpush.bf16.msra.mxu0 %v7323
        %7397 = vmatpush.bf16.msra.mxu0 %v7320
        %7398 = vmatpush.bf16.msra.mxu0 %v7317
        %7399 = vmatpush.bf16.msra.mxu0 %v7314
        %7400 = vmatmul.bf16.gmra.mxu0 %v7349
        %v7401 = vpop.f32.mrf.mxu0
        %v7402 = vadd.f32 %v7248, %v7401
        %v7403 = vpop.f32.mrf.mxu0
        %v7404 = vadd.f32 %v7248, %v7403
        %7405 = vmatmul.bf16.gmra.mxu0 %v7352
        %v7406 = vpop.f32.mrf.mxu0
        %v7407 = vadd.f32 %v7248, %v7406
        %v7408 = vpop.f32.mrf.mxu0
        %v7409 = vadd.f32 %v7248, %v7408
        %7410 = vdwg.mxu0
        %v7411 = vmax.f32 %v7364, 0.0
        %v7412 = vmax.f32 %v7383, 0.0
        %v7413 = vmax.f32 %v7402, 0.0
        %v7414 = vmax.f32 %v7366, 0.0
        %v7415 = vmax.f32 %v7385, 0.0
        %v7416 = vmax.f32 %v7404, 0.0
        %v7417 = vmax.f32 %v7369, 0.0
        %v7418 = vmax.f32 %v7388, 0.0
        %v7419 = vmax.f32 %v7407, 0.0
        %v7420 = vmax.f32 %v7371, 0.0
        %v7421 = vmax.f32 %v7390, 0.0
        %v7422 = vmax.f32 %v7409, 0.0
        %v7423 = vpack.c.bf16 %v7414, %v7411
        %v7424 = vpack.c.bf16 %v7415, %v7412
        %v7425 = vpack.c.bf16 %v7416, %v7413
        %v7426 = vpack.c.bf16 %v7420, %v7417
        %v7427 = vpack.c.bf16 %v7421, %v7418
        %v7428 = vpack.c.bf16 %v7422, %v7419
        %v7429 = vld [vmem:[%s709] sm:$0xf]
        %v7430 = vld [vmem:[%s709 + $0x4] sm:$0xf]
        %v7431 = vld [vmem:[%s709 + $0x8] sm:$0xf]
        %v7432 = vld [vmem:[%s709 + $0xc] sm:$0xf]
        %v7433 = vld [vmem:[%s709 + $0x10] sm:$0xf]
        %v7434 = vld [vmem:[%s709 + $0x14] sm:$0xf]
        %v7435 = vld [vmem:[%s709 + $0x18] sm:$0xf]
        %v7436 = vld [vmem:[%s709 + $0x1c] sm:$0xf]
        %v7437 = vld [vmem:[%s709 + $0x20] sm:$0xf]
        %v7438 = vld [vmem:[%s709 + $0x24] sm:$0xf]
        %v7439 = vld [vmem:[%s709 + $0x28] sm:$0xf]
        %v7440 = vld [vmem:[%s709 + $0x2c] sm:$0xf]
        %v7441 = vld [vmem:[%s709 + $0x30] sm:$0xf]
        %v7442 = vld [vmem:[%s709 + $0x34] sm:$0xf]
        %v7443 = vld [vmem:[%s709 + $0x38] sm:$0xf]
        %v7444 = vld [vmem:[%s709 + $0x3c] sm:$0xf]
        %v7445 = vld [vmem:[%s709 + $0x40] sm:$0xf]
        %v7446 = vld [vmem:[%s709 + $0x44] sm:$0xf]
        %v7447 = vld [vmem:[%s709 + $0x48] sm:$0xf]
        %v7448 = vld [vmem:[%s709 + $0x4c] sm:$0xf]
        %v7449 = vld [vmem:[%s709 + $0x50] sm:$0xf]
        %v7450 = vld [vmem:[%s709 + $0x54] sm:$0xf]
        %v7451 = vld [vmem:[%s709 + $0x58] sm:$0xf]
        %v7452 = vld [vmem:[%s709 + $0x5c] sm:$0xf]
        %v7453 = vld [vmem:[%s709 + $0x60] sm:$0xf]
        %v7454 = vld [vmem:[%s709 + $0x64] sm:$0xf]
        %v7455 = vld [vmem:[%s709 + $0x68] sm:$0xf]
        %v7456 = vld [vmem:[%s709 + $0x6c] sm:$0xf]
        %v7457 = vld [vmem:[%s709 + $0x70] sm:$0xf]
        %v7458 = vld [vmem:[%s709 + $0x74] sm:$0xf]
        %v7459 = vld [vmem:[%s709 + $0x78] sm:$0xf]
        %v7460 = vld [vmem:[%s709 + $0x7c] sm:$0xf]
        %v7461 = vld [vmem:[%s709 + $0x80] sm:$0xf]
        %v7462 = vld [vmem:[%s709 + $0x84] sm:$0xf]
        %v7463 = vld [vmem:[%s709 + $0x88] sm:$0xf]
        %v7464 = vld [vmem:[%s709 + $0x8c] sm:$0xf]
        %v7465 = vld [vmem:[%s709 + $0x90] sm:$0xf]
        %v7466 = vld [vmem:[%s709 + $0x94] sm:$0xf]
        %v7467 = vld [vmem:[%s709 + $0x98] sm:$0xf]
        %v7468 = vld [vmem:[%s709 + $0x9c] sm:$0xf]
        %v7469 = vld [vmem:[%s709 + $0xa0] sm:$0xf]
        %v7470 = vld [vmem:[%s709 + $0xa4] sm:$0xf]
        %v7471 = vld [vmem:[%s709 + $0xa8] sm:$0xf]
        %v7472 = vld [vmem:[%s709 + $0xac] sm:$0xf]
        %v7473 = vld [vmem:[%s709 + $0xb0] sm:$0xf]
        %v7474 = vld [vmem:[%s709 + $0xb4] sm:$0xf]
        %v7475 = vld [vmem:[%s709 + $0xb8] sm:$0xf]
        %v7476 = vld [vmem:[%s709 + $0xbc] sm:$0xf]
        %v7477 = vld [vmem:[%s712] sm:$0x1]
        %v7479 = vperm.slane %v7477, 0
        %v7529 = vunpack.c.l.b16 %v7429
        %v7530 = vunpack.c.l.b16 %v7430
        %v7531 = vunpack.c.l.b16 %v7431
        %v7532 = vunpack.c.l.b16 %v7432
        %v7533 = vunpack.c.l.b16 %v7433
        %v7534 = vunpack.c.l.b16 %v7434
        %v7535 = vunpack.c.l.b16 %v7435
        %v7536 = vunpack.c.l.b16 %v7436
        %v7537 = vunpack.c.l.b16 %v7437
        %v7538 = vunpack.c.l.b16 %v7438
        %v7539 = vunpack.c.l.b16 %v7439
        %v7540 = vunpack.c.l.b16 %v7440
        %v7541 = vunpack.c.l.b16 %v7441
        %v7542 = vunpack.c.l.b16 %v7442
        %v7543 = vunpack.c.l.b16 %v7443
        %v7544 = vunpack.c.l.b16 %v7444
        %v7545 = vunpack.c.l.b16 %v7445
        %v7546 = vunpack.c.l.b16 %v7446
        %v7547 = vunpack.c.l.b16 %v7447
        %v7548 = vunpack.c.l.b16 %v7448
        %v7549 = vunpack.c.l.b16 %v7449
        %v7550 = vunpack.c.l.b16 %v7450
        %v7551 = vunpack.c.l.b16 %v7451
        %v7552 = vunpack.c.l.b16 %v7452
        %v7553 = vunpack.c.l.b16 %v7453
        %v7554 = vunpack.c.l.b16 %v7454
        %v7555 = vunpack.c.l.b16 %v7455
        %v7556 = vunpack.c.l.b16 %v7456
        %v7557 = vunpack.c.l.b16 %v7457
        %v7558 = vunpack.c.l.b16 %v7458
        %v7559 = vunpack.c.l.b16 %v7459
        %v7560 = vunpack.c.l.b16 %v7460
        %v7561 = vunpack.c.l.b16 %v7461
        %v7562 = vunpack.c.l.b16 %v7462
        %v7563 = vunpack.c.l.b16 %v7463
        %v7564 = vunpack.c.l.b16 %v7464
        %v7565 = vunpack.c.l.b16 %v7465
        %v7566 = vunpack.c.l.b16 %v7466
        %v7567 = vunpack.c.l.b16 %v7467
        %v7568 = vunpack.c.l.b16 %v7468
        %v7569 = vunpack.c.l.b16 %v7469
        %v7570 = vunpack.c.l.b16 %v7470
        %v7571 = vunpack.c.l.b16 %v7471
        %v7572 = vunpack.c.l.b16 %v7472
        %v7573 = vunpack.c.l.b16 %v7473
        %v7574 = vunpack.c.l.b16 %v7474
        %v7575 = vunpack.c.l.b16 %v7475
        %v7576 = vunpack.c.l.b16 %v7476
        %v7577 = vpack.c.b16 %v7530, %v7529
        %v7578 = vpack.c.b16 %v7532, %v7531
        %v7579 = vpack.c.b16 %v7534, %v7533
        %v7580 = vpack.c.b16 %v7536, %v7535
        %v7581 = vpack.c.b16 %v7538, %v7537
        %v7582 = vpack.c.b16 %v7540, %v7539
        %v7583 = vpack.c.b16 %v7542, %v7541
        %v7584 = vpack.c.b16 %v7544, %v7543
        %v7585 = vpack.c.b16 %v7546, %v7545
        %v7586 = vpack.c.b16 %v7548, %v7547
        %v7587 = vpack.c.b16 %v7550, %v7549
        %v7588 = vpack.c.b16 %v7552, %v7551
        %v7589 = vpack.c.b16 %v7554, %v7553
        %v7590 = vpack.c.b16 %v7556, %v7555
        %v7591 = vpack.c.b16 %v7558, %v7557
        %v7592 = vpack.c.b16 %v7560, %v7559
        %v7593 = vpack.c.b16 %v7562, %v7561
        %v7594 = vpack.c.b16 %v7564, %v7563
        %v7595 = vpack.c.b16 %v7566, %v7565
        %v7596 = vpack.c.b16 %v7568, %v7567
        %v7597 = vpack.c.b16 %v7570, %v7569
        %v7598 = vpack.c.b16 %v7572, %v7571
        %v7599 = vpack.c.b16 %v7574, %v7573
        %v7600 = vpack.c.b16 %v7576, %v7575
        %7625 = vmatpush.bf16.msra.mxu0 %v7584
        %7626 = vmatpush.bf16.msra.mxu0 %v7583
        %7627 = vmatpush.bf16.msra.mxu0 %v7582
        %7628 = vmatpush.bf16.msra.mxu0 %v7581
        %7629 = vmatpush.bf16.msra.mxu0 %v7580
        %7630 = vmatpush.bf16.msra.mxu0 %v7579
        %7631 = vmatpush.bf16.msra.mxu0 %v7578
        %7632 = vmatpush.bf16.msra.mxu0 %v7577
        %7633 = vmatmul.bf16.gmra.mxu0 %v7423
        %v7634 = vpop.f32.mrf.mxu0
        %v7635 = vadd.f32 %v7479, %v7634
        %v7636 = vpop.f32.mrf.mxu0
        %v7637 = vadd.f32 %v7479, %v7636
        %7638 = vmatmul.bf16.gmra.mxu0 %v7426
        %v7639 = vpop.f32.mrf.mxu0
        %v7640 = vadd.f32 %v7479, %v7639
        %v7641 = vpop.f32.mrf.mxu0
        %v7642 = vadd.f32 %v7479, %v7641
        %7643 = vdwg.mxu0
        %7644 = vmatpush.bf16.msra.mxu0 %v7592
        %7645 = vmatpush.bf16.msra.mxu0 %v7591
        %7646 = vmatpush.bf16.msra.mxu0 %v7590
        %7647 = vmatpush.bf16.msra.mxu0 %v7589
        %7648 = vmatpush.bf16.msra.mxu0 %v7588
        %7649 = vmatpush.bf16.msra.mxu0 %v7587
        %7650 = vmatpush.bf16.msra.mxu0 %v7586
        %7651 = vmatpush.bf16.msra.mxu0 %v7585
        %7652 = vmatmul.bf16.gmra.mxu0 %v7424
        %v7653 = vpop.f32.mrf.mxu0
        %v7654 = vadd.f32 %v7635, %v7653
        %v7655 = vpop.f32.mrf.mxu0
        %v7656 = vadd.f32 %v7637, %v7655
        %7657 = vmatmul.bf16.gmra.mxu0 %v7427
        %v7658 = vpop.f32.mrf.mxu0
        %v7659 = vadd.f32 %v7640, %v7658
        %v7660 = vpop.f32.mrf.mxu0
        %v7661 = vadd.f32 %v7642, %v7660
        %7662 = vdwg.mxu0
        %7663 = vmatpush.bf16.msra.mxu0 %v7600
        %7664 = vmatpush.bf16.msra.mxu0 %v7599
        %7665 = vmatpush.bf16.msra.mxu0 %v7598
        %7666 = vmatpush.bf16.msra.mxu0 %v7597
        %7667 = vmatpush.bf16.msra.mxu0 %v7596
        %7668 = vmatpush.bf16.msra.mxu0 %v7595
        %7669 = vmatpush.bf16.msra.mxu0 %v7594
        %7670 = vmatpush.bf16.msra.mxu0 %v7593
        %7671 = vmatmul.bf16.gmra.mxu0 %v7425
        %v7672 = vpop.f32.mrf.mxu0
        %v7673 = vadd.f32 %v7654, %v7672
        %v7674 = vpop.f32.mrf.mxu0
        %v7675 = vadd.f32 %v7656, %v7674
        %7676 = vmatmul.bf16.gmra.mxu0 %v7428
        %v7677 = vpop.f32.mrf.mxu0
        %v7678 = vadd.f32 %v7659, %v7677
        %v7679 = vpop.f32.mrf.mxu0
        %v7680 = vadd.f32 %v7661, %v7679
        %7681 = vdwg.mxu0
        %v7682 = vadd.f32 %v7673, %v7214
        %v7683 = vadd.f32 %v7675, %v7215
        %v7684 = vadd.f32 %v7678, %v7216
        %v7685 = vadd.f32 %v7680, %v7217
        %v7686 = vld [vmem:[%s715] sm:$0x1]
        %v7687 = vld [vmem:[%s718] sm:$0x1]
        %v7688 = vsel %vm2652, %v7682, 0.0
        %7689 = vadd.xlane.f32.xlu0 %v7688
        %v7690 = vpop.xlane.xlu0 %7689
        %v7691 = vsel %vm2652, %v7683, 0.0
        %7692 = vadd.xlane.f32.xlu0 %v7691
        %v7693 = vpop.xlane.xlu0 %7692
        %v7694 = vsel %vm2652, %v7684, 0.0
        %7695 = vadd.xlane.f32.xlu0 %v7694
        %v7696 = vpop.xlane.xlu0 %7695
        %v7697 = vsel %vm7117, %v7685, 0.0
        %7698 = vadd.xlane.f32.xlu0 %v7697
        %v7699 = vpop.xlane.xlu0 %7698
        %v7700 = vmul.f32 %v7690, %v7127
        %v7701 = vmul.f32 %v7693, %v7127
        %v7702 = vmul.f32 %v7696, %v7127
        %v7703 = vmul.f32 %v7699, %v7127
        %v7704 = vsub.f32 %v7682, %v7700
        %v7705 = vsub.f32 %v7683, %v7701
        %v7706 = vsub.f32 %v7684, %v7702
        %v7707 = vsub.f32 %v7685, %v7703
        %v7708 = vmul.f32 %v7704, %v7704
        %v7709 = vmul.f32 %v7705, %v7705
        %v7710 = vmul.f32 %v7706, %v7706
        %v7711 = vmul.f32 %v7707, %v7707
        %v7712 = vsel %vm2652, %v7708, 0.0
        %7713 = vadd.xlane.f32.xlu0 %v7712
        %v7714 = vpop.xlane.xlu0 %7713
        %v7715 = vsel %vm2652, %v7709, 0.0
        %7716 = vadd.xlane.f32.xlu0 %v7715
        %v7717 = vpop.xlane.xlu0 %7716
        %v7718 = vsel %vm2652, %v7710, 0.0
        %7719 = vadd.xlane.f32.xlu0 %v7718
        %v7720 = vpop.xlane.xlu0 %7719
        %v7721 = vsel %vm7117, %v7711, 0.0
        %7722 = vadd.xlane.f32.xlu0 %v7721
        %v7723 = vpop.xlane.xlu0 %7722
        %v7724 = vmul.f32 %v7714, %v7127
        %v7725 = vmul.f32 %v7717, %v7127
        %v7726 = vmul.f32 %v7720, %v7127
        %v7727 = vmul.f32 %v7723, %v7127
        %v7728 = vadd.f32 %v7724, 1e-05
        %v7729 = vadd.f32 %v7725, 1e-05
        %v7730 = vadd.f32 %v7726, 1e-05
        %v7731 = vadd.f32 %v7727, 1e-05
        %v7732 = vrsqrt.pop %v7728
        %v7733 = vmul.f32 %v7732, %v7728
        %v7734 = vmul.f32 %v7733, %v7732
        %v7735 = vmul.f32 0.5, %v7734
        %v7736 = vsub.f32 1.5, %v7735
        %v7737 = vmul.f32 %v7732, %v7736
        %vm7738 = vweird.f32 %v7728
        %vm7739 = vweird.f32 %v7732
        %vm7740 = vmor %vm7738, %vm7739
        %v7741 = vsel %vm7740, %v7732, %v7737
        %v7742 = vrsqrt.pop %v7729
        %v7743 = vmul.f32 %v7742, %v7729
        %v7744 = vmul.f32 %v7743, %v7742
        %v7745 = vmul.f32 0.5, %v7744
        %v7746 = vsub.f32 1.5, %v7745
        %v7747 = vmul.f32 %v7742, %v7746
        %vm7748 = vweird.f32 %v7729
        %vm7749 = vweird.f32 %v7742
        %vm7750 = vmor %vm7748, %vm7749
        %v7751 = vsel %vm7750, %v7742, %v7747
        %v7752 = vrsqrt.pop %v7730
        %v7753 = vmul.f32 %v7752, %v7730
        %v7754 = vmul.f32 %v7753, %v7752
        %v7755 = vmul.f32 0.5, %v7754
        %v7756 = vsub.f32 1.5, %v7755
        %v7757 = vmul.f32 %v7752, %v7756
        %vm7758 = vweird.f32 %v7730
        %vm7759 = vweird.f32 %v7752
        %vm7760 = vmor %vm7758, %vm7759
        %v7761 = vsel %vm7760, %v7752, %v7757
        %v7762 = vrsqrt.pop %v7731
        %v7763 = vmul.f32 %v7762, %v7731
        %v7764 = vmul.f32 %v7763, %v7762
        %v7765 = vmul.f32 0.5, %v7764
        %v7766 = vsub.f32 1.5, %v7765
        %v7767 = vmul.f32 %v7762, %v7766
        %vm7768 = vweird.f32 %v7731
        %vm7769 = vweird.f32 %v7762
        %vm7770 = vmor %vm7768, %vm7769
        %v7771 = vsel %vm7770, %v7762, %v7767
        %v7772 = vmul.f32 %v7704, %v7741
        %v7773 = vmul.f32 %v7705, %v7751
        %v7774 = vmul.f32 %v7706, %v7761
        %v7775 = vmul.f32 %v7707, %v7771
        %v7777 = vperm.slane %v7686, 0
        %v7779 = vmul.f32 %v7772, %v7777
        %v7780 = vmul.f32 %v7773, %v7777
        %v7781 = vmul.f32 %v7774, %v7777
        %v7782 = vmul.f32 %v7775, %v7777
        %v7784 = vperm.slane %v7687, 0
        %v7786 = vadd.f32 %v7779, %v7784
        %v7787 = vadd.f32 %v7780, %v7784
        %v7788 = vadd.f32 %v7781, %v7784
        %v7789 = vadd.f32 %v7782, %v7784
        %7790 = vst.msk [vmem:[#allocation2] sm:$0xff] %vm2652, %v7786
        %7791 = vst.msk [vmem:[#allocation2 + $0x8] sm:$0xff] %vm2652, %v7787
        %7792 = vst.msk [vmem:[#allocation2 + $0x10] sm:$0xff] %vm2652, %v7788
        %7793 = vst.msk [vmem:[#allocation2 + $0x18] sm:$0x3] %vm7117, %v7789
        %p7794 = scmp.eq.s32.totalorder %s33, 5
        // Predicated region
        $region97: #{transformer_forward.1} parent=87 // pred_check
          %p7795 = pneg %p7794
        $region98: #{transformer_forward.1} parent=87 // pred_check_branch
          %7797 = sbr.rel (%p7795) target = $region100
        $region99: #{transformer_forward.1} parent=87 // pred_region
          %v7798 = vld [vmem:[%s3] sm:$0xff]
          %v7799 = vld [vmem:[%s3 + $0x8] sm:$0xff]
          %v7800 = vld [vmem:[%s3 + $0x10] sm:$0xff]
          %v7801 = vld [vmem:[%s3 + $0x18] sm:$0x3]
          %v7802 = vmul.f32 %v7786, %v7798
          %v7803 = vmul.f32 %v7787, %v7799
          %v7804 = vmul.f32 %v7788, %v7800
          %v7805 = vmul.f32 %v7789, %v7801
          %v7806 = vld [vmem:[%s4] sm:$0x3]
          %v7808 = vsel %vm3604, %v7806, 0
          %v7811 = vsel %vm3662, %v7805, 0
          %7813 = vmatpush.msra.mxu0 0.0
          %7814 = vmatpush.msra.mxu0 0.0
          %7815 = vmatpush.msra.mxu0 0.0
          %7816 = vmatpush.msra.mxu0 0.0
          %7817 = vmatpush.msra.mxu0 0.0
          %7818 = vmatpush.msra.mxu0 0.0
          %7819 = vmatpush.msra.mxu0 0.0
          %7820 = vmatpush.msra.mxu0 0.0
          %7821 = vmatpush.msra.mxu0 0.0
          %7822 = vmatpush.msra.mxu0 0.0
          %7823 = vmatpush.msra.mxu0 0.0
          %7824 = vmatpush.msra.mxu0 0.0
          %7825 = vmatpush.msra.mxu0 %v7811
          %7826 = vmatpush.msra.mxu0 %v7804
          %7827 = vmatpush.msra.mxu0 %v7803
          %7828 = vmatpush.msra.mxu0 %v7802
          %7829 = vmatmul.f32.gmra.mxu0 %v7808
          %v7830 = vpop.f32.mrf.mxu0
          %v7831 = vadd.f32 0.0, %v7830
          %7832 = vdwg.mxu0
          %v7833 = vsel %vm7117, %v7831, 0.0
          %7834 = vadd.xlane.f32.xlu0 %v7833
          %v7835 = vpop.xlane.xlu0 %7834
          %v7836 = vld [vmem:[#allocation4] sm:$0x1]
          %v7838 = vperm.slane %v7836, 0
          %v7840 = vadd.f32 %v7835, %v7838
          %vm7841 = vcmask 1024
          %7842 = vst.msk [vmem:[%s17] sm:$0x3] %vm7841, %v7840
        $region100: #{transformer_forward.1} parent=87 // pred_fallthru
          _
        // Predicated region
        $region101: #{transformer_forward.1} parent=87 // pred_check
          %p7843 = pneg %p458
        $region102: #{transformer_forward.1} parent=87 // pred_check_branch
          %7845 = sbr.rel (%p7843) target = $region104
        $region103: #{transformer_forward.1} parent=87 // pred_region
          _
        $region104: #{transformer_forward.1} parent=87 // pred_fallthru
          _
        // Predicated region
        $region105: #{transformer_forward.1} parent=87 // pred_check
          %p7846 = pneg %p458
        $region106: #{transformer_forward.1} parent=87 // pred_check_branch
          %7848 = sbr.rel (%p7846) target = $region108
        $region107: #{transformer_forward.1} parent=87 // pred_region
          _
        $region108: #{transformer_forward.1} parent=87 // pred_fallthru
          _
      $region88: #{transformer_forward.1} parent=5 // pred_fallthru
        _
      %p7849 = scmp.le.s32.totalorder 2, %s28
      // Predicated region
      $region109: #{transformer_forward.1} parent=5 // pred_check
        %p7850 = pneg %p7849
      $region110: #{transformer_forward.1} parent=5 // pred_check_branch
        %7852 = sbr.rel (%p7850) target = $region112
      $region111: #{transformer_forward.1} parent=5 // pred_region
        %s7853 = ssub.s32 %s28, 2
      $region112: #{transformer_forward.1} parent=5 // pred_fallthru
        _
    $region6: #{transformer_forward.1} parent=1 // loop_footer
      %s32 = sadd.s32 1, %s28
    $region7: #{transformer_forward.1} parent=1 // loop_footer_branch
      %27 = sbr.rel target = $region3
    $region8: #{transformer_forward.1} parent=1 // loop_exit
      _
    %7854 = vsyncpa [#allocation6], 1
    %s7855 = scalar_lea.sflag [#allocation6], 1
    %7856 = vsyncpa %s7855, 1

</llo_original>
